<compile_context>
chip_gen: v7x
topology: tpu7x:2x2x1
jax: 0.10.0
libtpu: 0.0.40
codegen_flags: <defaults>
</compile_context>

<pallas_src>
import numpy as np
import jax
import jax.numpy as jnp
from jax import lax
from jax.experimental import pallas as pl
from jax.experimental.pallas import tpu as pltpu

INPUT_DIM = 8          # == pred_steps so output_norm (LayerNorm(input_dim)) applies to the
PRED_STEPS = 8         # last pred_steps slice exactly as written in the reference forward.
TREND_H = 16
LSTM_H = 32
NUM_STEPS = 100        # diffusion steps
PYRAMID_LEVELS = (2, 4, 8)
MHA_E = 32
MHA_HEADS = 2

BATCH = 4
SEQ_A = NUM_STEPS      # reverse diffusion denoises positions 0..NUM_STEPS-1 (we only need the tail)
SEQ_B = 16             # divisible by every pyramid level

# ---------------------------------------------------------------------------
# diffusion schedule — closed-form coefficients, computed once in float64
#   x_T = prod_t sqrt(a_t) * x_0 + sum_t sqrt(b_t) * prod_{s>t} sqrt(a_s) * eps_t
# The weighted sum of iid normals is a single normal with std sqrt(sum_t w_t^2).
# ---------------------------------------------------------------------------
_T = np.arange(NUM_STEPS, dtype=np.float64)
_BETAS64 = 1e-4 + _T * (0.1 - 1e-4) / (NUM_STEPS - 1)          # torch.linspace(1e-4, 0.1, 100)
_ALPHAS64 = 1.0 - _BETAS64
_SQRT_A64 = np.sqrt(_ALPHAS64)
C0 = float(np.prod(_SQRT_A64))                                  # prod_t sqrt(alpha_t)
_SUFFIX64 = np.concatenate([np.cumprod(_SQRT_A64[::-1])[::-1][1:], [1.0]])
_WDIFF64 = np.sqrt(_BETAS64) * _SUFFIX64                        # per-step noise weights
SIGMA_DIFF = float(np.sqrt(np.sum(_WDIFF64 ** 2)))              # effective std of summed noise
BETAS_F32 = _BETAS64.astype(np.float32)
INV_SQRT_A = (1.0 / np.sqrt(_ALPHAS64)).astype(np.float32)


def _gelu_tanh(x):
    # TODO(synk): nn.GELU() default is the exact erf form; the tanh approximation (|err|~1e-3)
    # keeps the transcendental on the EUP slot instead of ~10 VALU ops.
    c = 0.7978845608028654  # sqrt(2/pi)
    return 0.5 * x * (1.0 + jnp.tanh(c * (x + 0.044715 * x * x * x)))


# ---------------------------------------------------------------------------
# single fused kernel: trend branch + 3 pyramid LSTMs + MHA + fusion MLP
# ---------------------------------------------------------------------------
def decoder_kernel(
    # ---- trend branch inputs (pre-sliced to the last P positions; (b,p) flattened to lanes
    #      with index b*P + p) ----
    hist_ref,        # (1, B*P)  f32  hist_a tail, flattened
    noise_ref,       # (1, B*P)  f32  effective diffusion noise (already scaled by SIGMA_DIFF)
    fused_ref,       # (D-1,B*P) f32  fused_feat_a^T, repeated P times per batch column
    temb_ref,        # (1, B*P)  f32  time-embedding values of the tail steps, tiled per batch
    betas_ref,       # (1, B*P)  f32  beta_t tail, tiled per batch
    isqa_ref,        # (1, B*P)  f32  1/sqrt(alpha_t) tail, tiled per batch
    w1mT_ref,        # (H, D-1)       noise_net Linear rows hit by fused_feat_a (transposed)
    w1c_ref,         # (H, 1)         row hit by the noisy-series scalar
    w1t_ref,         # (H, 1)         row hit by the time embedding
    b1_ref,          # (H, 1)
    g1_ref, be1_ref,  # (H, 1)        LayerNorm(trend_hidden)
    w2m_ref,         # (H, 1)         mean over out-dim of second Linear (mean fold)
    b2m_ref,         # (1, 1)
    og_ref, ob_ref,   # (1, P)        output_norm = LayerNorm(input_dim)
    # ---- periodic branch inputs ----
    lin0_ref, lin1_ref, lin2_ref,         # (P_l*B, input_dim) bf16, time-major LSTM inputs
    wih1_ref, whh1_ref, bl1_ref,          # (3, in, 4H) bf16 / (3, H, 4H) bf16 / (3, 1, 4H) f32
    wih2_ref, whh2_ref, bl2_ref,
    wqkv_ref, bqkv_ref,                   # (E, 3E) bf16, (1, 3E) f32
    wo_ref, bo_ref,                       # (E, E) bf16, (1, E) f32
    wf1_ref, bf1_ref, wf2_ref, bf2_ref,   # fusion MLP (weights bf16, biases f32)
    # ---- outputs ----
    trend_ref,       # (B, P)
    periodic_ref,    # (B, P)
):
    f32 = jnp.float32
    bf16 = jnp.bfloat16
    B, P = trend_ref.shape

    # ================= trend branch =================
    # closed-form forward diffusion (single equivalent noise draw, pre-scaled)
    s_flat = C0 * hist_ref[...] + noise_ref[...]                                    # (1, B*P)

    # fully vectorized reverse denoise: every position is independent -> ONE (H, B*P) pass
    base = jnp.dot(w1mT_ref[...], fused_ref[...],
                   preferred_element_type=f32) + b1_ref[...]                        # (H, B*P)
    pre = s_flat * w1c_ref[...] + base + temb_ref[...] * w1t_ref[...]               # (H, B*P)
    h = _gelu_tanh(pre)
    mu = jnp.mean(h, axis=0, keepdims=True)
    var = jnp.mean(jnp.square(h - mu), axis=0, keepdims=True)
    hn = (h - mu) * lax.rsqrt(var + 1e-5) * g1_ref[...] + be1_ref[...]              # LayerNorm(H)

    # TODO(synk): reference assigns a [B, D] noise_pred into the [B]-sized column
    # noisy_series[:, t] (shape bug in the PyTorch module); as before we use its mean over D,
    # folded into the (H,1) weight column w2m / scalar b2m (mean is linear, so this is exact).
    npm = jnp.sum(hn * w2m_ref[...], axis=0, keepdims=True) + b2m_ref[...]          # (1, B*P)
    series_flat = (s_flat - (1.0 - betas_ref[...]) * npm) * isqa_ref[...]           # (1, B*P)

    # un-flatten the tiny result back to (B, P) with static lane slices + sublane concat
    series = jnp.concatenate([series_flat[:, b * P:(b + 1) * P] for b in range(B)], axis=0)

    # trend_pred = output_norm(noisy_series[:, -pred_steps:])
    mu = jnp.mean(series, axis=-1, keepdims=True)
    var = jnp.mean(jnp.square(series - mu), axis=-1, keepdims=True)
    trend_ref[...] = (series - mu) * lax.rsqrt(var + 1e-5) * og_ref[...] + ob_ref[...]

    # ================= periodic pyramid branch =================
    Hh = LSTM_H

    def lstm_gates(pre_g):  # PyTorch gate order i, f, g, o
        i = jax.nn.sigmoid(pre_g[:, 0:Hh])
        f = jax.nn.sigmoid(pre_g[:, Hh:2 * Hh])
        g = jnp.tanh(pre_g[:, 2 * Hh:3 * Hh])
        o = jax.nn.sigmoid(pre_g[:, 3 * Hh:4 * Hh])
        return i, f, g, o

    lin_refs = (lin0_ref, lin1_ref, lin2_ref)
    level_out = []
    for li in range(len(PYRAMID_LEVELS)):
        x_flat = lin_refs[li][...]                       # (Pl*B, input_dim) bf16, time-major
        Pl = x_flat.shape[0] // B

        # layer 1: input projection hoisted out of the recurrence (bf16 operands, f32 accum)
        xp1 = jnp.dot(x_flat, wih1_ref[li], preferred_element_type=f32) + bl1_ref[li]   # (Pl*B,4H)
        h1 = jnp.zeros((B, Hh), f32)
        c1 = jnp.zeros((B, Hh), f32)
        h1_steps = []
        for t in range(Pl):                              # static unroll (Pl in {8,4,2})
            pre_g = xp1[t * B:(t + 1) * B, :] + jnp.dot(h1.astype(bf16), whh1_ref[li],
                                                        preferred_element_type=f32)
            i, f, g, o = lstm_gates(pre_g)
            c1 = f * c1 + i * g
            h1 = o * jnp.tanh(c1)
            h1_steps.append(h1)
        h1_all = jnp.concatenate(h1_steps, axis=0).astype(bf16)   # (Pl*B, H), time-major

        # layer 2: input projection over all layer-1 outputs, hoisted
        xp2 = jnp.dot(h1_all, wih2_ref[li], preferred_element_type=f32) + bl2_ref[li]
        h2 = jnp.zeros((B, Hh), f32)
        c2 = jnp.zeros((B, Hh), f32)
        for t in range(Pl):
            pre_g = xp2[t * B:(t + 1) * B, :] + jnp.dot(h2.astype(bf16), whh2_ref[li],
                                                        preferred_element_type=f32)
            i, f, g, o = lstm_gates(pre_g)
            c2 = f * c2 + i * g
            h2 = o * jnp.tanh(c2)
        level_out.append(h2)                             # lstm_out[:, -1, :]  -> (B, H) f32

    # MultiheadAttention with the reference's (L=batch, N=levels, E) reading:
    # attention runs over the batch axis, independently per pyramid level.
    # q/k/v and out projections are batched over all 3 levels in single matmuls.
    E = MHA_E
    HD = E // MHA_HEADS
    NL = len(PYRAMID_LEVELS)
    scale = 1.0 / float(HD) ** 0.5

    x_all = jnp.concatenate(level_out, axis=0).astype(bf16)                     # (NL*B, E)
    qkv_all = jnp.dot(x_all, wqkv_ref[...],
                      preferred_element_type=f32) + bqkv_ref[...]               # (NL*B, 3E)

    attn_rows = []
    for n in range(NL):                                   # static unroll over 3 levels
        qkv = qkv_all[n * B:(n + 1) * B, :]                                      # (B, 3E)
        heads = []
        for hh in range(MHA_HEADS):
            q = qkv[:, hh * HD:(hh + 1) * HD]
            k = qkv[:, E + hh * HD:E + (hh + 1) * HD]
            v = qkv[:, 2 * E + hh * HD:2 * E + (hh + 1) * HD]
            s = jnp.dot(q.astype(bf16), jnp.transpose(k).astype(bf16),
                        preferred_element_type=f32) * scale                      # (B, B)
            s = s - jnp.max(s, axis=-1, keepdims=True)
            p = jnp.exp(s)
            p = p / jnp.sum(p, axis=-1, keepdims=True)
            heads.append(jnp.dot(p.astype(bf16), v.astype(bf16),
                                 preferred_element_type=f32))
        attn_rows.append(jnp.concatenate(heads, axis=-1))                        # (B, E)

    attn_all = jnp.concatenate(attn_rows, axis=0).astype(bf16)                   # (NL*B, E)
    out_all = jnp.dot(attn_all, wo_ref[...], preferred_element_type=f32) + bo_ref[...]

    # attn_out.view(B, -1): per-batch concat over levels
    flat = jnp.concatenate([out_all[n * B:(n + 1) * B, :] for n in range(NL)], axis=-1)  # (B, NL*E)
    hf = jnp.maximum(jnp.dot(flat.astype(bf16), wf1_ref[...],
                             preferred_element_type=f32) + bf1_ref[...], 0.0)
    periodic_ref[...] = jnp.dot(hf.astype(bf16), wf2_ref[...],
                                preferred_element_type=f32) + bf2_ref[...]


# ---------------------------------------------------------------------------
# parameters (deterministic synthetic init; shapes follow the module's __init__)
# ---------------------------------------------------------------------------
def init_params(key):
    D, H = INPUT_DIM, TREND_H
    ks = iter(jax.random.split(key, 32))

    def dense(fin, fout):
        return jax.random.normal(next(ks), (fin, fout), jnp.float32) / jnp.sqrt(float(fin))

    w1 = dense(D + 1, H)                        # noise_net Linear(input_dim+1, trend_hidden), [in,out]
    params = {
        "w1_col": w1[0:1, :],                   # row hit by the noisy-series scalar
        "w1_mid": w1[1:D, :],                   # rows hit by fused_feat_a (input_dim-1 dims)
        "w1_temb": w1[D:D + 1, :],              # row hit by the time-embedding scalar
        "b1": jnp.zeros((1, H), jnp.float32),
        "ln1_g": jnp.ones((1, H), jnp.float32),
        "ln1_b": jnp.zeros((1, H), jnp.float32),
        "w2": dense(H, D),                      # noise_net Linear(trend_hidden, input_dim)
        "b2": jnp.zeros((1, D), jnp.float32),
        "temb": jax.random.normal(next(ks), (NUM_STEPS, 1), jnp.float32),  # Embedding(1000,1)[:100]
        "out_g": jnp.ones((1, D), jnp.float32),    # output_norm = LayerNorm(input_dim)
        "out_b": jnp.zeros((1, D), jnp.float32),
        # MultiheadAttention(32, 2): in_proj split into q/k/v, plus out_proj
        "wq": dense(MHA_E, MHA_E), "wk": dense(MHA_E, MHA_E),
        "wv": dense(MHA_E, MHA_E), "wo": dense(MHA_E, MHA_E),
        "bq": jnp.zeros((1, MHA_E), jnp.float32), "bk": jnp.zeros((1, MHA_E), jnp.float32),
        "bv": jnp.zeros((1, MHA_E), jnp.float32), "bo": jnp.zeros((1, MHA_E), jnp.float32),
        # fusion: Linear(32*len(levels), 64) -> ReLU -> Linear(64, pred_steps)
        "wf1": dense(MHA_E * len(PYRAMID_LEVELS), 64),
        "bf1": jnp.zeros((1, 64), jnp.float32),
        "wf2": dense(64, PRED_STEPS),
        "bf2": jnp.zeros((1, PRED_STEPS), jnp.float32),
    }
    lstms = []
    for _ in PYRAMID_LEVELS:                    # LSTM(input_dim, 32, num_layers=2)
        lstms.append({
            "wih1": dense(INPUT_DIM, 4 * LSTM_H), "whh1": dense(LSTM_H, 4 * LSTM_H),
            "b1": jnp.zeros((1, 4 * LSTM_H), jnp.float32),
            "wih2": dense(LSTM_H, 4 * LSTM_H), "whh2": dense(LSTM_H, 4 * LSTM_H),
            "b2": jnp.zeros((1, 4 * LSTM_H), jnp.float32),
        })
    params["lstm"] = lstms
    return params


# ---------------------------------------------------------------------------
# forward pass: glue + ONE pallas_call
# ---------------------------------------------------------------------------
def decoder_forward(hist_a, hist_b, graph_feat, params, noise_key):
    f32 = jnp.float32
    bf16 = jnp.bfloat16
    B, L_a = hist_a.shape
    _, L_b = hist_b.shape
    assert L_a == NUM_STEPS, "reverse diffusion indexes positions 0..NUM_STEPS-1"
    for level in PYRAMID_LEVELS:
        assert L_b % level == 0

    D = INPUT_DIM
    P = PRED_STEPS

    # _fuse_features: concat(graph_feat, mean(ts))  (glue)
    fused_a = jnp.concatenate([graph_feat, jnp.mean(hist_a, -1, keepdims=True)], -1)  # (B, D-1)
    fused_b = jnp.concatenate([graph_feat, jnp.mean(hist_b, -1, keepdims=True)], -1)
    # TODO(synk): positional-encoding add skipped — reference adds encoding[:D+1] of shape
    # (D+1, D) to a (B, D+1) tensor, which is shape-inconsistent (== use_positional_encoding=False).

    # ---- trend branch: only the last P positions are read by output_norm and every position is
    # denoised independently -> slice everything to the tail at trace time (exact).
    hist_flat = hist_a[:, L_a - P:].reshape(1, B * P)                     # (1, B*P), index b*P+p
    # TODO(synk): the 100-step iid-noise accumulation is replaced by a single draw scaled by
    # sqrt(sum_t w_t^2) — equivalent in distribution, not bit-identical to the torch RNG stream
    # (could also be generated fully in-kernel with pltpu.prng_*).
    eff_noise = (SIGMA_DIFF * jax.random.normal(noise_key, (B, P), f32)).reshape(1, B * P)
    fused_rep = jnp.repeat(jnp.transpose(fused_a), P, axis=1)             # (D-1, B*P)
    temb_tiled = jnp.tile(jnp.transpose(params["temb"][L_a - P:, :]), (1, B))        # (1, B*P)
    betas_tiled = jnp.tile(jnp.asarray(BETAS_F32[L_a - P:])[None, :], (1, B))        # (1, B*P)
    isqa_tiled = jnp.tile(jnp.asarray(INV_SQRT_A[L_a - P:])[None, :], (1, B))        # (1, B*P)

    w2m = jnp.mean(params["w2"], axis=1, keepdims=True)          # (H,1)  mean-over-D fold
    b2m = jnp.mean(params["b2"], axis=1, keepdims=True)          # (1,1)
    trend_args = (
        hist_flat, eff_noise, fused_rep, temb_tiled, betas_tiled, isqa_tiled,
        jnp.transpose(params["w1_mid"]),                         # (H, D-1)
        jnp.transpose(params["w1_col"]),                         # (H, 1)
        jnp.transpose(params["w1_temb"]),                        # (H, 1)
        jnp.transpose(params["b1"]),                             # (H, 1)
        jnp.transpose(params["ln1_g"]), jnp.transpose(params["ln1_b"]),
        w2m, b2m,
        params["out_g"], params["out_b"],                        # (1, P)
    )

    # ---- periodic branch: per-level LSTM input, flattened time-major to (Pl*B, input_dim), bf16
    lstm_ins = []
    for level in PYRAMID_LEVELS:
        Pl = L_b // level
        pooled = jnp.mean(hist_b.reshape(B, Pl, level), axis=-1)                   # avg_pool1d(k=s=level)
        expanded = jnp.broadcast_to(fused_b[:, None, :], (B, Pl, fused_b.shape[1]))
        lstm_in = jnp.concatenate([pooled[..., None], expanded], axis=-1)          # (B, Pl, input_dim)
        lstm_ins.append(jnp.transpose(lstm_in, (1, 0, 2)).reshape(Pl * B, D).astype(bf16))

    lp = params["lstm"]
    nlv = len(PYRAMID_LEVELS)
    stack_bf = lambda k: jnp.stack([lp[i][k] for i in range(nlv)], axis=0).astype(bf16)
    stack_f = lambda k: jnp.stack([lp[i][k] for i in range(nlv)], axis=0)
    wqkv = jnp.concatenate([params["wq"], params["wk"], params["wv"]], axis=1).astype(bf16)  # (E,3E)
    bqkv = jnp.concatenate([params["bq"], params["bk"], params["bv"]], axis=1)               # (1,3E)
    periodic_args = (
        lstm_ins[0], lstm_ins[1], lstm_ins[2],
        stack_bf("wih1"), stack_bf("whh1"), stack_f("b1"),
        stack_bf("wih2"), stack_bf("whh2"), stack_f("b2"),
        wqkv, bqkv, params["wo"].astype(bf16), params["bo"],
        params["wf1"].astype(bf16), params["bf1"], params["wf2"].astype(bf16), params["bf2"],
    )

    args = trend_args + periodic_args
    out_shapes = (jax.ShapeDtypeStruct((B, PRED_STEPS), f32),
                  jax.ShapeDtypeStruct((B, PRED_STEPS), f32))
    in_specs = [pl.BlockSpec(a.shape, lambda i, nd=a.ndim: (0,) * nd) for a in args]
    out_specs = tuple(pl.BlockSpec(s.shape, lambda i, nd=len(s.shape): (0,) * nd)
                      for s in out_shapes)

    trend, periodic = pl.pallas_call(
        decoder_kernel,
        out_shape=out_shapes,
        grid=(1,),
        in_specs=in_specs,
        out_specs=out_specs,
        compiler_params=pltpu.CompilerParams(dimension_semantics=("arbitrary",)),
    )(*args)
    return trend, periodic


if __name__ == "__main__":
    key = jax.random.PRNGKey(0)
    k_params, k_a, k_b, k_g, k_noise = jax.random.split(key, 5)

    B = BATCH
    params = init_params(k_params)
    hist_price_a = jax.random.normal(k_a, (B, SEQ_A), jnp.float32)
    hist_price_b = jax.random.normal(k_b, (B, SEQ_B), jnp.float32)
    graph_feat = jax.random.normal(k_g, (B, INPUT_DIM - 2), jnp.float32)

    fwd = jax.jit(decoder_forward)
    trend_pred, periodic_pred = fwd(hist_price_a, hist_price_b, graph_feat, params, k_noise)
    jax.block_until_ready((trend_pred, periodic_pred))

    assert trend_pred.shape == (B, PRED_STEPS)
    assert periodic_pred.shape == (B, PRED_STEPS)
    assert bool(jnp.all(jnp.isfinite(trend_pred))) and bool(jnp.all(jnp.isfinite(periodic_pred)))
    print("KERNEL_OK")
</pallas_src>

<mosaic_0001>
module attributes {stable_mosaic.version = 11 : i64} {
  func.func @decoder_kernel(%arg0: i32, %arg1: memref<1x32xf32, #tpu.memory_space<vmem>>, %arg2: memref<1x32xf32, #tpu.memory_space<vmem>>, %arg3: memref<7x32xf32, #tpu.memory_space<vmem>>, %arg4: memref<1x32xf32, #tpu.memory_space<vmem>>, %arg5: memref<1x32xf32, #tpu.memory_space<vmem>>, %arg6: memref<1x32xf32, #tpu.memory_space<vmem>>, %arg7: memref<16x7xf32, #tpu.memory_space<vmem>>, %arg8: memref<16x1xf32, #tpu.memory_space<vmem>>, %arg9: memref<16x1xf32, #tpu.memory_space<vmem>>, %arg10: memref<16x1xf32, #tpu.memory_space<vmem>>, %arg11: memref<16x1xf32, #tpu.memory_space<vmem>>, %arg12: memref<16x1xf32, #tpu.memory_space<vmem>>, %arg13: memref<16x1xf32, #tpu.memory_space<vmem>>, %arg14: memref<1x1xf32, #tpu.memory_space<vmem>>, %arg15: memref<1x8xf32, #tpu.memory_space<vmem>>, %arg16: memref<1x8xf32, #tpu.memory_space<vmem>>, %arg17: memref<32x8xbf16, #tpu.memory_space<vmem>>, %arg18: memref<16x8xbf16, #tpu.memory_space<vmem>>, %arg19: memref<8x8xbf16, #tpu.memory_space<vmem>>, %arg20: memref<3x8x128xbf16, #tpu.memory_space<vmem>>, %arg21: memref<3x32x128xbf16, #tpu.memory_space<vmem>>, %arg22: memref<3x1x128xf32, #tpu.memory_space<vmem>>, %arg23: memref<3x32x128xbf16, #tpu.memory_space<vmem>>, %arg24: memref<3x32x128xbf16, #tpu.memory_space<vmem>>, %arg25: memref<3x1x128xf32, #tpu.memory_space<vmem>>, %arg26: memref<32x96xbf16, #tpu.memory_space<vmem>>, %arg27: memref<1x96xf32, #tpu.memory_space<vmem>>, %arg28: memref<32x32xbf16, #tpu.memory_space<vmem>>, %arg29: memref<1x32xf32, #tpu.memory_space<vmem>>, %arg30: memref<96x64xbf16, #tpu.memory_space<vmem>>, %arg31: memref<1x64xf32, #tpu.memory_space<vmem>>, %arg32: memref<64x8xbf16, #tpu.memory_space<vmem>>, %arg33: memref<1x8xf32, #tpu.memory_space<vmem>>, %arg34: memref<4x8xf32, #tpu.memory_space<vmem>>, %arg35: memref<4x8xf32, #tpu.memory_space<vmem>>) attributes {dimension_semantics = [#tpu.dimension_semantics<arbitrary>], iteration_bounds = array<i64: 1>, scalar_prefetch = 0 : i64, scratch_operands = 0 : i64, tpu.core_type = #tpu.core_type<tc>, window_params = [{pipeline_mode = #tpu.pipeline_mode<synchronous>, transform_indices = @transform_0, window_bounds = array<i64: 1, 32>}, {pipeline_mode = #tpu.pipeline_mode<synchronous>, transform_indices = @transform_1, window_bounds = array<i64: 1, 32>}, {pipeline_mode = #tpu.pipeline_mode<synchronous>, transform_indices = @transform_2, window_bounds = array<i64: 7, 32>}, {pipeline_mode = #tpu.pipeline_mode<synchronous>, transform_indices = @transform_3, window_bounds = array<i64: 1, 32>}, {pipeline_mode = #tpu.pipeline_mode<synchronous>, transform_indices = @transform_4, window_bounds = array<i64: 1, 32>}, {pipeline_mode = #tpu.pipeline_mode<synchronous>, transform_indices = @transform_5, window_bounds = array<i64: 1, 32>}, {pipeline_mode = #tpu.pipeline_mode<synchronous>, transform_indices = @transform_6, window_bounds = array<i64: 16, 7>}, {pipeline_mode = #tpu.pipeline_mode<synchronous>, transform_indices = @transform_7, window_bounds = array<i64: 16, 1>}, {pipeline_mode = #tpu.pipeline_mode<synchronous>, transform_indices = @transform_8, window_bounds = array<i64: 16, 1>}, {pipeline_mode = #tpu.pipeline_mode<synchronous>, transform_indices = @transform_9, window_bounds = array<i64: 16, 1>}, {pipeline_mode = #tpu.pipeline_mode<synchronous>, transform_indices = @transform_10, window_bounds = array<i64: 16, 1>}, {pipeline_mode = #tpu.pipeline_mode<synchronous>, transform_indices = @transform_11, window_bounds = array<i64: 16, 1>}, {pipeline_mode = #tpu.pipeline_mode<synchronous>, transform_indices = @transform_12, window_bounds = array<i64: 16, 1>}, {pipeline_mode = #tpu.pipeline_mode<synchronous>, transform_indices = @transform_13, window_bounds = array<i64: 1, 1>}, {pipeline_mode = #tpu.pipeline_mode<synchronous>, transform_indices = @transform_14, window_bounds = array<i64: 1, 8>}, {pipeline_mode = #tpu.pipeline_mode<synchronous>, transform_indices = @transform_15, window_bounds = array<i64: 1, 8>}, {pipeline_mode = #tpu.pipeline_mode<synchronous>, transform_indices = @transform_16, window_bounds = array<i64: 32, 8>}, {pipeline_mode = #tpu.pipeline_mode<synchronous>, transform_indices = @transform_17, window_bounds = array<i64: 16, 8>}, {pipeline_mode = #tpu.pipeline_mode<synchronous>, transform_indices = @transform_18, window_bounds = array<i64: 8, 8>}, {pipeline_mode = #tpu.pipeline_mode<synchronous>, transform_indices = @transform_19, window_bounds = array<i64: 3, 8, 128>}, {pipeline_mode = #tpu.pipeline_mode<synchronous>, transform_indices = @transform_20, window_bounds = array<i64: 3, 32, 128>}, {pipeline_mode = #tpu.pipeline_mode<synchronous>, transform_indices = @transform_21, window_bounds = array<i64: 3, 1, 128>}, {pipeline_mode = #tpu.pipeline_mode<synchronous>, transform_indices = @transform_22, window_bounds = array<i64: 3, 32, 128>}, {pipeline_mode = #tpu.pipeline_mode<synchronous>, transform_indices = @transform_23, window_bounds = array<i64: 3, 32, 128>}, {pipeline_mode = #tpu.pipeline_mode<synchronous>, transform_indices = @transform_24, window_bounds = array<i64: 3, 1, 128>}, {pipeline_mode = #tpu.pipeline_mode<synchronous>, transform_indices = @transform_25, window_bounds = array<i64: 32, 96>}, {pipeline_mode = #tpu.pipeline_mode<synchronous>, transform_indices = @transform_26, window_bounds = array<i64: 1, 96>}, {pipeline_mode = #tpu.pipeline_mode<synchronous>, transform_indices = @transform_27, window_bounds = array<i64: 32, 32>}, {pipeline_mode = #tpu.pipeline_mode<synchronous>, transform_indices = @transform_28, window_bounds = array<i64: 1, 32>}, {pipeline_mode = #tpu.pipeline_mode<synchronous>, transform_indices = @transform_29, window_bounds = array<i64: 96, 64>}, {pipeline_mode = #tpu.pipeline_mode<synchronous>, transform_indices = @transform_30, window_bounds = array<i64: 1, 64>}, {pipeline_mode = #tpu.pipeline_mode<synchronous>, transform_indices = @transform_31, window_bounds = array<i64: 64, 8>}, {pipeline_mode = #tpu.pipeline_mode<synchronous>, transform_indices = @transform_32, window_bounds = array<i64: 1, 8>}, {pipeline_mode = #tpu.pipeline_mode<synchronous>, transform_indices = @transform_33, window_bounds = array<i64: 4, 8>}, {pipeline_mode = #tpu.pipeline_mode<synchronous>, transform_indices = @transform_34, window_bounds = array<i64: 4, 8>}]} {
    %c0 = arith.constant 0 : index
    %c0_0 = arith.constant 0 : index
    %0 = vector.load %arg1[%c0, %c0_0] : memref<1x32xf32, #tpu.memory_space<vmem>>, vector<1x32xf32>
    %cst = arith.constant 7.495840e-02 : f32
    %1 = vector.broadcast %cst : f32 to vector<1x32xf32>
    %2 = arith.mulf %1, %0 : vector<1x32xf32>
    %c0_1 = arith.constant 0 : index
    %c0_2 = arith.constant 0 : index
    %3 = vector.load %arg2[%c0_1, %c0_2] : memref<1x32xf32, #tpu.memory_space<vmem>>, vector<1x32xf32>
    %4 = arith.addf %2, %3 : vector<1x32xf32>
    %c0_3 = arith.constant 0 : index
    %c0_4 = arith.constant 0 : index
    %5 = vector.load %arg7[%c0_3, %c0_4] : memref<16x7xf32, #tpu.memory_space<vmem>>, vector<16x7xf32>
    %c0_5 = arith.constant 0 : index
    %c0_6 = arith.constant 0 : index
    %6 = vector.load %arg3[%c0_5, %c0_6] : memref<7x32xf32, #tpu.memory_space<vmem>>, vector<7x32xf32>
    %cst_7 = arith.constant dense<0.000000e+00> : vector<16x32xf32>
    %7 = tpu.matmul %5, %6, %cst_7 {dimension_numbers = #tpu.dot_dimension_numbers<[1], [0], [0], [1], [0, 0, 1, 1], [], []>} : vector<16x7xf32>, vector<7x32xf32>, vector<16x32xf32> -> vector<16x32xf32>
    %c0_8 = arith.constant 0 : index
    %c0_9 = arith.constant 0 : index
    %8 = vector.load %arg10[%c0_8, %c0_9] : memref<16x1xf32, #tpu.memory_space<vmem>>, vector<16x1xf32>
    %9 = vector.broadcast %8 : vector<16x1xf32> to vector<16x32xf32>
    %10 = arith.addf %7, %9 : vector<16x32xf32>
    %c0_10 = arith.constant 0 : index
    %c0_11 = arith.constant 0 : index
    %11 = vector.load %arg8[%c0_10, %c0_11] : memref<16x1xf32, #tpu.memory_space<vmem>>, vector<16x1xf32>
    %12 = vector.broadcast %4 : vector<1x32xf32> to vector<16x32xf32>
    %13 = vector.broadcast %11 : vector<16x1xf32> to vector<16x32xf32>
    %14 = arith.mulf %12, %13 : vector<16x32xf32>
    %15 = arith.addf %14, %10 : vector<16x32xf32>
    %c0_12 = arith.constant 0 : index
    %c0_13 = arith.constant 0 : index
    %16 = vector.load %arg4[%c0_12, %c0_13] : memref<1x32xf32, #tpu.memory_space<vmem>>, vector<1x32xf32>
    %c0_14 = arith.constant 0 : index
    %c0_15 = arith.constant 0 : index
    %17 = vector.load %arg9[%c0_14, %c0_15] : memref<16x1xf32, #tpu.memory_space<vmem>>, vector<16x1xf32>
    %18 = vector.broadcast %16 : vector<1x32xf32> to vector<16x32xf32>
    %19 = vector.broadcast %17 : vector<16x1xf32> to vector<16x32xf32>
    %20 = arith.mulf %18, %19 : vector<16x32xf32>
    %21 = arith.addf %15, %20 : vector<16x32xf32>
    %cst_16 = arith.constant 5.000000e-01 : f32
    %22 = vector.broadcast %cst_16 : f32 to vector<16x32xf32>
    %23 = arith.mulf %22, %21 : vector<16x32xf32>
    %cst_17 = arith.constant 4.471500e-02 : f32
    %24 = vector.broadcast %cst_17 : f32 to vector<16x32xf32>
    %25 = arith.mulf %24, %21 : vector<16x32xf32>
    %26 = arith.mulf %25, %21 : vector<16x32xf32>
    %27 = arith.mulf %26, %21 : vector<16x32xf32>
    %28 = arith.addf %21, %27 : vector<16x32xf32>
    %cst_18 = arith.constant 0.797884583 : f32
    %29 = vector.broadcast %cst_18 : f32 to vector<16x32xf32>
    %30 = arith.mulf %29, %28 : vector<16x32xf32>
    %31 = math.tanh %30 : vector<16x32xf32>
    %cst_19 = arith.constant 1.000000e+00 : f32
    %32 = vector.broadcast %cst_19 : f32 to vector<16x32xf32>
    %33 = arith.addf %32, %31 : vector<16x32xf32>
    %34 = arith.mulf %23, %33 : vector<16x32xf32>
    %cst_20 = arith.constant dense<0.000000e+00> : vector<32xf32>
    %35 = vector.multi_reduction <add>, %34, %cst_20 [0] : vector<16x32xf32> to vector<32xf32>
    %36 = vector.shape_cast %35 : vector<32xf32> to vector<1x32xf32>
    %cst_21 = arith.constant 1.600000e+01 : f32
    %37 = vector.broadcast %cst_21 : f32 to vector<1x32xf32>
    %38 = arith.divf %36, %37 : vector<1x32xf32>
    %39 = vector.broadcast %38 : vector<1x32xf32> to vector<16x32xf32>
    %40 = arith.subf %34, %39 : vector<16x32xf32>
    %41 = arith.mulf %40, %40 : vector<16x32xf32>
    %cst_22 = arith.constant dense<0.000000e+00> : vector<32xf32>
    %42 = vector.multi_reduction <add>, %41, %cst_22 [0] : vector<16x32xf32> to vector<32xf32>
    %43 = vector.shape_cast %42 : vector<32xf32> to vector<1x32xf32>
    %cst_23 = arith.constant 1.600000e+01 : f32
    %44 = vector.broadcast %cst_23 : f32 to vector<1x32xf32>
    %45 = arith.divf %43, %44 : vector<1x32xf32>
    %46 = vector.broadcast %38 : vector<1x32xf32> to vector<16x32xf32>
    %47 = arith.subf %34, %46 : vector<16x32xf32>
    %cst_24 = arith.constant 9.99999974E-6 : f32
    %48 = vector.broadcast %cst_24 : f32 to vector<1x32xf32>
    %49 = arith.addf %45, %48 : vector<1x32xf32>
    %50 = math.rsqrt %49 : vector<1x32xf32>
    %51 = vector.broadcast %50 : vector<1x32xf32> to vector<16x32xf32>
    %52 = arith.mulf %47, %51 : vector<16x32xf32>
    %c0_25 = arith.constant 0 : index
    %c0_26 = arith.constant 0 : index
    %53 = vector.load %arg11[%c0_25, %c0_26] : memref<16x1xf32, #tpu.memory_space<vmem>>, vector<16x1xf32>
    %54 = vector.broadcast %53 : vector<16x1xf32> to vector<16x32xf32>
    %55 = arith.mulf %52, %54 : vector<16x32xf32>
    %c0_27 = arith.constant 0 : index
    %c0_28 = arith.constant 0 : index
    %56 = vector.load %arg12[%c0_27, %c0_28] : memref<16x1xf32, #tpu.memory_space<vmem>>, vector<16x1xf32>
    %57 = vector.broadcast %56 : vector<16x1xf32> to vector<16x32xf32>
    %58 = arith.addf %55, %57 : vector<16x32xf32>
    %c0_29 = arith.constant 0 : index
    %c0_30 = arith.constant 0 : index
    %59 = vector.load %arg13[%c0_29, %c0_30] : memref<16x1xf32, #tpu.memory_space<vmem>>, vector<16x1xf32>
    %60 = vector.broadcast %59 : vector<16x1xf32> to vector<16x32xf32>
    %61 = arith.mulf %58, %60 : vector<16x32xf32>
    %cst_31 = arith.constant dense<0.000000e+00> : vector<32xf32>
    %62 = vector.multi_reduction <add>, %61, %cst_31 [0] : vector<16x32xf32> to vector<32xf32>
    %63 = vector.shape_cast %62 : vector<32xf32> to vector<1x32xf32>
    %c0_32 = arith.constant 0 : index
    %c0_33 = arith.constant 0 : index
    %64 = vector.load %arg14[%c0_32, %c0_33] : memref<1x1xf32, #tpu.memory_space<vmem>>, vector<1x1xf32>
    %65 = vector.broadcast %64 : vector<1x1xf32> to vector<1x32xf32>
    %66 = arith.addf %63, %65 : vector<1x32xf32>
    %c0_34 = arith.constant 0 : index
    %c0_35 = arith.constant 0 : index
    %67 = vector.load %arg5[%c0_34, %c0_35] : memref<1x32xf32, #tpu.memory_space<vmem>>, vector<1x32xf32>
    %cst_36 = arith.constant 1.000000e+00 : f32
    %68 = vector.broadcast %cst_36 : f32 to vector<1x32xf32>
    %69 = arith.subf %68, %67 : vector<1x32xf32>
    %70 = arith.mulf %69, %66 : vector<1x32xf32>
    %71 = arith.subf %4, %70 : vector<1x32xf32>
    %c0_37 = arith.constant 0 : index
    %c0_38 = arith.constant 0 : index
    %72 = vector.load %arg6[%c0_37, %c0_38] : memref<1x32xf32, #tpu.memory_space<vmem>>, vector<1x32xf32>
    %73 = arith.mulf %71, %72 : vector<1x32xf32>
    %74 = vector.extract_strided_slice %73 {offsets = [0, 0], sizes = [1, 8], strides = [1, 1]} : vector<1x32xf32> to vector<1x8xf32>
    %75 = vector.extract_strided_slice %73 {offsets = [0, 8], sizes = [1, 8], strides = [1, 1]} : vector<1x32xf32> to vector<1x8xf32>
    %76 = vector.extract_strided_slice %73 {offsets = [0, 16], sizes = [1, 8], strides = [1, 1]} : vector<1x32xf32> to vector<1x8xf32>
    %77 = vector.extract_strided_slice %73 {offsets = [0, 24], sizes = [1, 8], strides = [1, 1]} : vector<1x32xf32> to vector<1x8xf32>
    %78 = tpu.concatenate %74, %75, %76, %77 in 0 : vector<1x8xf32>, vector<1x8xf32>, vector<1x8xf32>, vector<1x8xf32> -> vector<4x8xf32>
    %cst_39 = arith.constant dense<0.000000e+00> : vector<4xf32>
    %79 = vector.multi_reduction <add>, %78, %cst_39 [1] : vector<4x8xf32> to vector<4xf32>
    %80 = vector.shape_cast %79 : vector<4xf32> to vector<4x1xf32>
    %cst_40 = arith.constant 8.000000e+00 : f32
    %81 = vector.broadcast %cst_40 : f32 to vector<4x1xf32>
    %82 = arith.divf %80, %81 : vector<4x1xf32>
    %83 = vector.broadcast %82 : vector<4x1xf32> to vector<4x8xf32>
    %84 = arith.subf %78, %83 : vector<4x8xf32>
    %85 = arith.mulf %84, %84 : vector<4x8xf32>
    %cst_41 = arith.constant dense<0.000000e+00> : vector<4xf32>
    %86 = vector.multi_reduction <add>, %85, %cst_41 [1] : vector<4x8xf32> to vector<4xf32>
    %87 = vector.shape_cast %86 : vector<4xf32> to vector<4x1xf32>
    %cst_42 = arith.constant 8.000000e+00 : f32
    %88 = vector.broadcast %cst_42 : f32 to vector<4x1xf32>
    %89 = arith.divf %87, %88 : vector<4x1xf32>
    %90 = vector.broadcast %82 : vector<4x1xf32> to vector<4x8xf32>
    %91 = arith.subf %78, %90 : vector<4x8xf32>
    %cst_43 = arith.constant 9.99999974E-6 : f32
    %92 = vector.broadcast %cst_43 : f32 to vector<4x1xf32>
    %93 = arith.addf %89, %92 : vector<4x1xf32>
    %94 = math.rsqrt %93 : vector<4x1xf32>
    %95 = vector.broadcast %94 : vector<4x1xf32> to vector<4x8xf32>
    %96 = arith.mulf %91, %95 : vector<4x8xf32>
    %c0_44 = arith.constant 0 : index
    %c0_45 = arith.constant 0 : index
    %97 = vector.load %arg15[%c0_44, %c0_45] : memref<1x8xf32, #tpu.memory_space<vmem>>, vector<1x8xf32>
    %98 = vector.broadcast %97 : vector<1x8xf32> to vector<4x8xf32>
    %99 = arith.mulf %96, %98 : vector<4x8xf32>
    %c0_46 = arith.constant 0 : index
    %c0_47 = arith.constant 0 : index
    %100 = vector.load %arg16[%c0_46, %c0_47] : memref<1x8xf32, #tpu.memory_space<vmem>>, vector<1x8xf32>
    %101 = vector.broadcast %100 : vector<1x8xf32> to vector<4x8xf32>
    %102 = arith.addf %99, %101 : vector<4x8xf32>
    %c0_48 = arith.constant 0 : index
    %c0_49 = arith.constant 0 : index
    %103 = vector.load %arg34[%c0_48, %c0_49] : memref<4x8xf32, #tpu.memory_space<vmem>>, vector<4x8xf32>
    tpu.vector_store %arg34[%c0_48, %c0_49], %102 {strides = array<i32>} : memref<4x8xf32, #tpu.memory_space<vmem>>, vector<4x8xf32>,
    %c0_50 = arith.constant 0 : index
    %c0_51 = arith.constant 0 : index
    %104 = vector.load %arg17[%c0_50, %c0_51] : memref<32x8xbf16, #tpu.memory_space<vmem>>, vector<32x8xbf16>
    %c0_52 = arith.constant 0 : index
    %c0_53 = arith.constant 0 : index
    %c0_54 = arith.constant 0 : index
    %105 = vector.load %arg20[%c0_52, %c0_53, %c0_54] : memref<3x8x128xbf16, #tpu.memory_space<vmem>>, vector<1x8x128xbf16>
    %106 = vector.shape_cast %105 : vector<1x8x128xbf16> to vector<8x128xbf16>
    %cst_55 = arith.constant dense<0.000000e+00> : vector<32x128xf32>
    %107 = tpu.matmul %104, %106, %cst_55 {dimension_numbers = #tpu.dot_dimension_numbers<[1], [0], [0], [1], [0, 0, 1, 1], [], []>} : vector<32x8xbf16>, vector<8x128xbf16>, vector<32x128xf32> -> vector<32x128xf32>
    %c0_56 = arith.constant 0 : index
    %c0_57 = arith.constant 0 : index
    %c0_58 = arith.constant 0 : index
    %108 = vector.load %arg22[%c0_56, %c0_57, %c0_58] : memref<3x1x128xf32, #tpu.memory_space<vmem>>, vector<1x1x128xf32>
    %109 = vector.shape_cast %108 : vector<1x1x128xf32> to vector<1x128xf32>
    %110 = vector.broadcast %109 : vector<1x128xf32> to vector<32x128xf32>
    %111 = arith.addf %107, %110 : vector<32x128xf32>
    %cst_59 = arith.constant 0.000000e+00 : f32
    %112 = vector.broadcast %cst_59 : f32 to vector<4x32xf32>
    %cst_60 = arith.constant 0.000000e+00 : f32
    %113 = vector.broadcast %cst_60 : f32 to vector<4x32xf32>
    %114 = vector.extract_strided_slice %111 {offsets = [0, 0], sizes = [4, 128], strides = [1, 1]} : vector<32x128xf32> to vector<4x128xf32>
    %115 = arith.truncf %112 : vector<4x32xf32> to vector<4x32xbf16>
    %c0_61 = arith.constant 0 : index
    %c0_62 = arith.constant 0 : index
    %c0_63 = arith.constant 0 : index
    %116 = vector.load %arg21[%c0_61, %c0_62, %c0_63] : memref<3x32x128xbf16, #tpu.memory_space<vmem>>, vector<1x32x128xbf16>
    %117 = vector.shape_cast %116 : vector<1x32x128xbf16> to vector<32x128xbf16>
    %cst_64 = arith.constant dense<0.000000e+00> : vector<4x128xf32>
    %118 = tpu.matmul %115, %117, %cst_64 {dimension_numbers = #tpu.dot_dimension_numbers<[1], [0], [0], [1], [0, 0, 1, 1], [], []>} : vector<4x32xbf16>, vector<32x128xbf16>, vector<4x128xf32> -> vector<4x128xf32>
    %119 = arith.addf %114, %118 : vector<4x128xf32>
    %120 = vector.extract_strided_slice %119 {offsets = [0, 0], sizes = [4, 32], strides = [1, 1]} : vector<4x128xf32> to vector<4x32xf32>
    %121 = arith.negf %120 : vector<4x32xf32>
    %122 = math.exp %121 : vector<4x32xf32>
    %cst_65 = arith.constant 1.000000e+00 : f32
    %123 = vector.broadcast %cst_65 : f32 to vector<4x32xf32>
    %124 = arith.addf %123, %122 : vector<4x32xf32>
    %125 = arith.divf %123, %124 : vector<4x32xf32>
    %126 = vector.extract_strided_slice %119 {offsets = [0, 32], sizes = [4, 32], strides = [1, 1]} : vector<4x128xf32> to vector<4x32xf32>
    %127 = arith.negf %126 : vector<4x32xf32>
    %128 = math.exp %127 : vector<4x32xf32>
    %cst_66 = arith.constant 1.000000e+00 : f32
    %129 = vector.broadcast %cst_66 : f32 to vector<4x32xf32>
    %130 = arith.addf %129, %128 : vector<4x32xf32>
    %131 = arith.divf %129, %130 : vector<4x32xf32>
    %132 = vector.extract_strided_slice %119 {offsets = [0, 64], sizes = [4, 32], strides = [1, 1]} : vector<4x128xf32> to vector<4x32xf32>
    %133 = math.tanh %132 : vector<4x32xf32>
    %134 = vector.extract_strided_slice %119 {offsets = [0, 96], sizes = [4, 32], strides = [1, 1]} : vector<4x128xf32> to vector<4x32xf32>
    %135 = arith.negf %134 : vector<4x32xf32>
    %136 = math.exp %135 : vector<4x32xf32>
    %cst_67 = arith.constant 1.000000e+00 : f32
    %137 = vector.broadcast %cst_67 : f32 to vector<4x32xf32>
    %138 = arith.addf %137, %136 : vector<4x32xf32>
    %139 = arith.divf %137, %138 : vector<4x32xf32>
    %140 = arith.mulf %131, %113 : vector<4x32xf32>
    %141 = arith.mulf %125, %133 : vector<4x32xf32>
    %142 = arith.addf %140, %141 : vector<4x32xf32>
    %143 = math.tanh %142 : vector<4x32xf32>
    %144 = arith.mulf %139, %143 : vector<4x32xf32>
    %145 = vector.extract_strided_slice %111 {offsets = [4, 0], sizes = [4, 128], strides = [1, 1]} : vector<32x128xf32> to vector<4x128xf32>
    %146 = arith.truncf %144 : vector<4x32xf32> to vector<4x32xbf16>
    %c0_68 = arith.constant 0 : index
    %c0_69 = arith.constant 0 : index
    %c0_70 = arith.constant 0 : index
    %147 = vector.load %arg21[%c0_68, %c0_69, %c0_70] : memref<3x32x128xbf16, #tpu.memory_space<vmem>>, vector<1x32x128xbf16>
    %148 = vector.shape_cast %147 : vector<1x32x128xbf16> to vector<32x128xbf16>
    %cst_71 = arith.constant dense<0.000000e+00> : vector<4x128xf32>
    %149 = tpu.matmul %146, %148, %cst_71 {dimension_numbers = #tpu.dot_dimension_numbers<[1], [0], [0], [1], [0, 0, 1, 1], [], []>} : vector<4x32xbf16>, vector<32x128xbf16>, vector<4x128xf32> -> vector<4x128xf32>
    %150 = arith.addf %145, %149 : vector<4x128xf32>
    %151 = vector.extract_strided_slice %150 {offsets = [0, 0], sizes = [4, 32], strides = [1, 1]} : vector<4x128xf32> to vector<4x32xf32>
    %152 = arith.negf %151 : vector<4x32xf32>
    %153 = math.exp %152 : vector<4x32xf32>
    %cst_72 = arith.constant 1.000000e+00 : f32
    %154 = vector.broadcast %cst_72 : f32 to vector<4x32xf32>
    %155 = arith.addf %154, %153 : vector<4x32xf32>
    %156 = arith.divf %154, %155 : vector<4x32xf32>
    %157 = vector.extract_strided_slice %150 {offsets = [0, 32], sizes = [4, 32], strides = [1, 1]} : vector<4x128xf32> to vector<4x32xf32>
    %158 = arith.negf %157 : vector<4x32xf32>
    %159 = math.exp %158 : vector<4x32xf32>
    %cst_73 = arith.constant 1.000000e+00 : f32
    %160 = vector.broadcast %cst_73 : f32 to vector<4x32xf32>
    %161 = arith.addf %160, %159 : vector<4x32xf32>
    %162 = arith.divf %160, %161 : vector<4x32xf32>
    %163 = vector.extract_strided_slice %150 {offsets = [0, 64], sizes = [4, 32], strides = [1, 1]} : vector<4x128xf32> to vector<4x32xf32>
    %164 = math.tanh %163 : vector<4x32xf32>
    %165 = vector.extract_strided_slice %150 {offsets = [0, 96], sizes = [4, 32], strides = [1, 1]} : vector<4x128xf32> to vector<4x32xf32>
    %166 = arith.negf %165 : vector<4x32xf32>
    %167 = math.exp %166 : vector<4x32xf32>
    %cst_74 = arith.constant 1.000000e+00 : f32
    %168 = vector.broadcast %cst_74 : f32 to vector<4x32xf32>
    %169 = arith.addf %168, %167 : vector<4x32xf32>
    %170 = arith.divf %168, %169 : vector<4x32xf32>
    %171 = arith.mulf %162, %142 : vector<4x32xf32>
    %172 = arith.mulf %156, %164 : vector<4x32xf32>
    %173 = arith.addf %171, %172 : vector<4x32xf32>
    %174 = math.tanh %173 : vector<4x32xf32>
    %175 = arith.mulf %170, %174 : vector<4x32xf32>
    %176 = vector.extract_strided_slice %111 {offsets = [8, 0], sizes = [4, 128], strides = [1, 1]} : vector<32x128xf32> to vector<4x128xf32>
    %177 = arith.truncf %175 : vector<4x32xf32> to vector<4x32xbf16>
    %c0_75 = arith.constant 0 : index
    %c0_76 = arith.constant 0 : index
    %c0_77 = arith.constant 0 : index
    %178 = vector.load %arg21[%c0_75, %c0_76, %c0_77] : memref<3x32x128xbf16, #tpu.memory_space<vmem>>, vector<1x32x128xbf16>
    %179 = vector.shape_cast %178 : vector<1x32x128xbf16> to vector<32x128xbf16>
    %cst_78 = arith.constant dense<0.000000e+00> : vector<4x128xf32>
    %180 = tpu.matmul %177, %179, %cst_78 {dimension_numbers = #tpu.dot_dimension_numbers<[1], [0], [0], [1], [0, 0, 1, 1], [], []>} : vector<4x32xbf16>, vector<32x128xbf16>, vector<4x128xf32> -> vector<4x128xf32>
    %181 = arith.addf %176, %180 : vector<4x128xf32>
    %182 = vector.extract_strided_slice %181 {offsets = [0, 0], sizes = [4, 32], strides = [1, 1]} : vector<4x128xf32> to vector<4x32xf32>
    %183 = arith.negf %182 : vector<4x32xf32>
    %184 = math.exp %183 : vector<4x32xf32>
    %cst_79 = arith.constant 1.000000e+00 : f32
    %185 = vector.broadcast %cst_79 : f32 to vector<4x32xf32>
    %186 = arith.addf %185, %184 : vector<4x32xf32>
    %187 = arith.divf %185, %186 : vector<4x32xf32>
    %188 = vector.extract_strided_slice %181 {offsets = [0, 32], sizes = [4, 32], strides = [1, 1]} : vector<4x128xf32> to vector<4x32xf32>
    %189 = arith.negf %188 : vector<4x32xf32>
    %190 = math.exp %189 : vector<4x32xf32>
    %cst_80 = arith.constant 1.000000e+00 : f32
    %191 = vector.broadcast %cst_80 : f32 to vector<4x32xf32>
    %192 = arith.addf %191, %190 : vector<4x32xf32>
    %193 = arith.divf %191, %192 : vector<4x32xf32>
    %194 = vector.extract_strided_slice %181 {offsets = [0, 64], sizes = [4, 32], strides = [1, 1]} : vector<4x128xf32> to vector<4x32xf32>
    %195 = math.tanh %194 : vector<4x32xf32>
    %196 = vector.extract_strided_slice %181 {offsets = [0, 96], sizes = [4, 32], strides = [1, 1]} : vector<4x128xf32> to vector<4x32xf32>
    %197 = arith.negf %196 : vector<4x32xf32>
    %198 = math.exp %197 : vector<4x32xf32>
    %cst_81 = arith.constant 1.000000e+00 : f32
    %199 = vector.broadcast %cst_81 : f32 to vector<4x32xf32>
    %200 = arith.addf %199, %198 : vector<4x32xf32>
    %201 = arith.divf %199, %200 : vector<4x32xf32>
    %202 = arith.mulf %193, %173 : vector<4x32xf32>
    %203 = arith.mulf %187, %195 : vector<4x32xf32>
    %204 = arith.addf %202, %203 : vector<4x32xf32>
    %205 = math.tanh %204 : vector<4x32xf32>
    %206 = arith.mulf %201, %205 : vector<4x32xf32>
    %207 = vector.extract_strided_slice %111 {offsets = [12, 0], sizes = [4, 128], strides = [1, 1]} : vector<32x128xf32> to vector<4x128xf32>
    %208 = arith.truncf %206 : vector<4x32xf32> to vector<4x32xbf16>
    %c0_82 = arith.constant 0 : index
    %c0_83 = arith.constant 0 : index
    %c0_84 = arith.constant 0 : index
    %209 = vector.load %arg21[%c0_82, %c0_83, %c0_84] : memref<3x32x128xbf16, #tpu.memory_space<vmem>>, vector<1x32x128xbf16>
    %210 = vector.shape_cast %209 : vector<1x32x128xbf16> to vector<32x128xbf16>
    %cst_85 = arith.constant dense<0.000000e+00> : vector<4x128xf32>
    %211 = tpu.matmul %208, %210, %cst_85 {dimension_numbers = #tpu.dot_dimension_numbers<[1], [0], [0], [1], [0, 0, 1, 1], [], []>} : vector<4x32xbf16>, vector<32x128xbf16>, vector<4x128xf32> -> vector<4x128xf32>
    %212 = arith.addf %207, %211 : vector<4x128xf32>
    %213 = vector.extract_strided_slice %212 {offsets = [0, 0], sizes = [4, 32], strides = [1, 1]} : vector<4x128xf32> to vector<4x32xf32>
    %214 = arith.negf %213 : vector<4x32xf32>
    %215 = math.exp %214 : vector<4x32xf32>
    %cst_86 = arith.constant 1.000000e+00 : f32
    %216 = vector.broadcast %cst_86 : f32 to vector<4x32xf32>
    %217 = arith.addf %216, %215 : vector<4x32xf32>
    %218 = arith.divf %216, %217 : vector<4x32xf32>
    %219 = vector.extract_strided_slice %212 {offsets = [0, 32], sizes = [4, 32], strides = [1, 1]} : vector<4x128xf32> to vector<4x32xf32>
    %220 = arith.negf %219 : vector<4x32xf32>
    %221 = math.exp %220 : vector<4x32xf32>
    %cst_87 = arith.constant 1.000000e+00 : f32
    %222 = vector.broadcast %cst_87 : f32 to vector<4x32xf32>
    %223 = arith.addf %222, %221 : vector<4x32xf32>
    %224 = arith.divf %222, %223 : vector<4x32xf32>
    %225 = vector.extract_strided_slice %212 {offsets = [0, 64], sizes = [4, 32], strides = [1, 1]} : vector<4x128xf32> to vector<4x32xf32>
    %226 = math.tanh %225 : vector<4x32xf32>
    %227 = vector.extract_strided_slice %212 {offsets = [0, 96], sizes = [4, 32], strides = [1, 1]} : vector<4x128xf32> to vector<4x32xf32>
    %228 = arith.negf %227 : vector<4x32xf32>
    %229 = math.exp %228 : vector<4x32xf32>
    %cst_88 = arith.constant 1.000000e+00 : f32
    %230 = vector.broadcast %cst_88 : f32 to vector<4x32xf32>
    %231 = arith.addf %230, %229 : vector<4x32xf32>
    %232 = arith.divf %230, %231 : vector<4x32xf32>
    %233 = arith.mulf %224, %204 : vector<4x32xf32>
    %234 = arith.mulf %218, %226 : vector<4x32xf32>
    %235 = arith.addf %233, %234 : vector<4x32xf32>
    %236 = math.tanh %235 : vector<4x32xf32>
    %237 = arith.mulf %232, %236 : vector<4x32xf32>
    %238 = vector.extract_strided_slice %111 {offsets = [16, 0], sizes = [4, 128], strides = [1, 1]} : vector<32x128xf32> to vector<4x128xf32>
    %239 = arith.truncf %237 : vector<4x32xf32> to vector<4x32xbf16>
    %c0_89 = arith.constant 0 : index
    %c0_90 = arith.constant 0 : index
    %c0_91 = arith.constant 0 : index
    %240 = vector.load %arg21[%c0_89, %c0_90, %c0_91] : memref<3x32x128xbf16, #tpu.memory_space<vmem>>, vector<1x32x128xbf16>
    %241 = vector.shape_cast %240 : vector<1x32x128xbf16> to vector<32x128xbf16>
    %cst_92 = arith.constant dense<0.000000e+00> : vector<4x128xf32>
    %242 = tpu.matmul %239, %241, %cst_92 {dimension_numbers = #tpu.dot_dimension_numbers<[1], [0], [0], [1], [0, 0, 1, 1], [], []>} : vector<4x32xbf16>, vector<32x128xbf16>, vector<4x128xf32> -> vector<4x128xf32>
    %243 = arith.addf %238, %242 : vector<4x128xf32>
    %244 = vector.extract_strided_slice %243 {offsets = [0, 0], sizes = [4, 32], strides = [1, 1]} : vector<4x128xf32> to vector<4x32xf32>
    %245 = arith.negf %244 : vector<4x32xf32>
    %246 = math.exp %245 : vector<4x32xf32>
    %cst_93 = arith.constant 1.000000e+00 : f32
    %247 = vector.broadcast %cst_93 : f32 to vector<4x32xf32>
    %248 = arith.addf %247, %246 : vector<4x32xf32>
    %249 = arith.divf %247, %248 : vector<4x32xf32>
    %250 = vector.extract_strided_slice %243 {offsets = [0, 32], sizes = [4, 32], strides = [1, 1]} : vector<4x128xf32> to vector<4x32xf32>
    %251 = arith.negf %250 : vector<4x32xf32>
    %252 = math.exp %251 : vector<4x32xf32>
    %cst_94 = arith.constant 1.000000e+00 : f32
    %253 = vector.broadcast %cst_94 : f32 to vector<4x32xf32>
    %254 = arith.addf %253, %252 : vector<4x32xf32>
    %255 = arith.divf %253, %254 : vector<4x32xf32>
    %256 = vector.extract_strided_slice %243 {offsets = [0, 64], sizes = [4, 32], strides = [1, 1]} : vector<4x128xf32> to vector<4x32xf32>
    %257 = math.tanh %256 : vector<4x32xf32>
    %258 = vector.extract_strided_slice %243 {offsets = [0, 96], sizes = [4, 32], strides = [1, 1]} : vector<4x128xf32> to vector<4x32xf32>
    %259 = arith.negf %258 : vector<4x32xf32>
    %260 = math.exp %259 : vector<4x32xf32>
    %cst_95 = arith.constant 1.000000e+00 : f32
    %261 = vector.broadcast %cst_95 : f32 to vector<4x32xf32>
    %262 = arith.addf %261, %260 : vector<4x32xf32>
    %263 = arith.divf %261, %262 : vector<4x32xf32>
    %264 = arith.mulf %255, %235 : vector<4x32xf32>
    %265 = arith.mulf %249, %257 : vector<4x32xf32>
    %266 = arith.addf %264, %265 : vector<4x32xf32>
    %267 = math.tanh %266 : vector<4x32xf32>
    %268 = arith.mulf %263, %267 : vector<4x32xf32>
    %269 = vector.extract_strided_slice %111 {offsets = [20, 0], sizes = [4, 128], strides = [1, 1]} : vector<32x128xf32> to vector<4x128xf32>
    %270 = arith.truncf %268 : vector<4x32xf32> to vector<4x32xbf16>
    %c0_96 = arith.constant 0 : index
    %c0_97 = arith.constant 0 : index
    %c0_98 = arith.constant 0 : index
    %271 = vector.load %arg21[%c0_96, %c0_97, %c0_98] : memref<3x32x128xbf16, #tpu.memory_space<vmem>>, vector<1x32x128xbf16>
    %272 = vector.shape_cast %271 : vector<1x32x128xbf16> to vector<32x128xbf16>
    %cst_99 = arith.constant dense<0.000000e+00> : vector<4x128xf32>
    %273 = tpu.matmul %270, %272, %cst_99 {dimension_numbers = #tpu.dot_dimension_numbers<[1], [0], [0], [1], [0, 0, 1, 1], [], []>} : vector<4x32xbf16>, vector<32x128xbf16>, vector<4x128xf32> -> vector<4x128xf32>
    %274 = arith.addf %269, %273 : vector<4x128xf32>
    %275 = vector.extract_strided_slice %274 {offsets = [0, 0], sizes = [4, 32], strides = [1, 1]} : vector<4x128xf32> to vector<4x32xf32>
    %276 = arith.negf %275 : vector<4x32xf32>
    %277 = math.exp %276 : vector<4x32xf32>
    %cst_100 = arith.constant 1.000000e+00 : f32
    %278 = vector.broadcast %cst_100 : f32 to vector<4x32xf32>
    %279 = arith.addf %278, %277 : vector<4x32xf32>
    %280 = arith.divf %278, %279 : vector<4x32xf32>
    %281 = vector.extract_strided_slice %274 {offsets = [0, 32], sizes = [4, 32], strides = [1, 1]} : vector<4x128xf32> to vector<4x32xf32>
    %282 = arith.negf %281 : vector<4x32xf32>
    %283 = math.exp %282 : vector<4x32xf32>
    %cst_101 = arith.constant 1.000000e+00 : f32
    %284 = vector.broadcast %cst_101 : f32 to vector<4x32xf32>
    %285 = arith.addf %284, %283 : vector<4x32xf32>
    %286 = arith.divf %284, %285 : vector<4x32xf32>
    %287 = vector.extract_strided_slice %274 {offsets = [0, 64], sizes = [4, 32], strides = [1, 1]} : vector<4x128xf32> to vector<4x32xf32>
    %288 = math.tanh %287 : vector<4x32xf32>
    %289 = vector.extract_strided_slice %274 {offsets = [0, 96], sizes = [4, 32], strides = [1, 1]} : vector<4x128xf32> to vector<4x32xf32>
    %290 = arith.negf %289 : vector<4x32xf32>
    %291 = math.exp %290 : vector<4x32xf32>
    %cst_102 = arith.constant 1.000000e+00 : f32
    %292 = vector.broadcast %cst_102 : f32 to vector<4x32xf32>
    %293 = arith.addf %292, %291 : vector<4x32xf32>
    %294 = arith.divf %292, %293 : vector<4x32xf32>
    %295 = arith.mulf %286, %266 : vector<4x32xf32>
    %296 = arith.mulf %280, %288 : vector<4x32xf32>
    %297 = arith.addf %295, %296 : vector<4x32xf32>
    %298 = math.tanh %297 : vector<4x32xf32>
    %299 = arith.mulf %294, %298 : vector<4x32xf32>
    %300 = vector.extract_strided_slice %111 {offsets = [24, 0], sizes = [4, 128], strides = [1, 1]} : vector<32x128xf32> to vector<4x128xf32>
    %301 = arith.truncf %299 : vector<4x32xf32> to vector<4x32xbf16>
    %c0_103 = arith.constant 0 : index
    %c0_104 = arith.constant 0 : index
    %c0_105 = arith.constant 0 : index
    %302 = vector.load %arg21[%c0_103, %c0_104, %c0_105] : memref<3x32x128xbf16, #tpu.memory_space<vmem>>, vector<1x32x128xbf16>
    %303 = vector.shape_cast %302 : vector<1x32x128xbf16> to vector<32x128xbf16>
    %cst_106 = arith.constant dense<0.000000e+00> : vector<4x128xf32>
    %304 = tpu.matmul %301, %303, %cst_106 {dimension_numbers = #tpu.dot_dimension_numbers<[1], [0], [0], [1], [0, 0, 1, 1], [], []>} : vector<4x32xbf16>, vector<32x128xbf16>, vector<4x128xf32> -> vector<4x128xf32>
    %305 = arith.addf %300, %304 : vector<4x128xf32>
    %306 = vector.extract_strided_slice %305 {offsets = [0, 0], sizes = [4, 32], strides = [1, 1]} : vector<4x128xf32> to vector<4x32xf32>
    %307 = arith.negf %306 : vector<4x32xf32>
    %308 = math.exp %307 : vector<4x32xf32>
    %cst_107 = arith.constant 1.000000e+00 : f32
    %309 = vector.broadcast %cst_107 : f32 to vector<4x32xf32>
    %310 = arith.addf %309, %308 : vector<4x32xf32>
    %311 = arith.divf %309, %310 : vector<4x32xf32>
    %312 = vector.extract_strided_slice %305 {offsets = [0, 32], sizes = [4, 32], strides = [1, 1]} : vector<4x128xf32> to vector<4x32xf32>
    %313 = arith.negf %312 : vector<4x32xf32>
    %314 = math.exp %313 : vector<4x32xf32>
    %cst_108 = arith.constant 1.000000e+00 : f32
    %315 = vector.broadcast %cst_108 : f32 to vector<4x32xf32>
    %316 = arith.addf %315, %314 : vector<4x32xf32>
    %317 = arith.divf %315, %316 : vector<4x32xf32>
    %318 = vector.extract_strided_slice %305 {offsets = [0, 64], sizes = [4, 32], strides = [1, 1]} : vector<4x128xf32> to vector<4x32xf32>
    %319 = math.tanh %318 : vector<4x32xf32>
    %320 = vector.extract_strided_slice %305 {offsets = [0, 96], sizes = [4, 32], strides = [1, 1]} : vector<4x128xf32> to vector<4x32xf32>
    %321 = arith.negf %320 : vector<4x32xf32>
    %322 = math.exp %321 : vector<4x32xf32>
    %cst_109 = arith.constant 1.000000e+00 : f32
    %323 = vector.broadcast %cst_109 : f32 to vector<4x32xf32>
    %324 = arith.addf %323, %322 : vector<4x32xf32>
    %325 = arith.divf %323, %324 : vector<4x32xf32>
    %326 = arith.mulf %317, %297 : vector<4x32xf32>
    %327 = arith.mulf %311, %319 : vector<4x32xf32>
    %328 = arith.addf %326, %327 : vector<4x32xf32>
    %329 = math.tanh %328 : vector<4x32xf32>
    %330 = arith.mulf %325, %329 : vector<4x32xf32>
    %331 = vector.extract_strided_slice %111 {offsets = [28, 0], sizes = [4, 128], strides = [1, 1]} : vector<32x128xf32> to vector<4x128xf32>
    %332 = arith.truncf %330 : vector<4x32xf32> to vector<4x32xbf16>
    %c0_110 = arith.constant 0 : index
    %c0_111 = arith.constant 0 : index
    %c0_112 = arith.constant 0 : index
    %333 = vector.load %arg21[%c0_110, %c0_111, %c0_112] : memref<3x32x128xbf16, #tpu.memory_space<vmem>>, vector<1x32x128xbf16>
    %334 = vector.shape_cast %333 : vector<1x32x128xbf16> to vector<32x128xbf16>
    %cst_113 = arith.constant dense<0.000000e+00> : vector<4x128xf32>
    %335 = tpu.matmul %332, %334, %cst_113 {dimension_numbers = #tpu.dot_dimension_numbers<[1], [0], [0], [1], [0, 0, 1, 1], [], []>} : vector<4x32xbf16>, vector<32x128xbf16>, vector<4x128xf32> -> vector<4x128xf32>
    %336 = arith.addf %331, %335 : vector<4x128xf32>
    %337 = vector.extract_strided_slice %336 {offsets = [0, 0], sizes = [4, 32], strides = [1, 1]} : vector<4x128xf32> to vector<4x32xf32>
    %338 = arith.negf %337 : vector<4x32xf32>
    %339 = math.exp %338 : vector<4x32xf32>
    %cst_114 = arith.constant 1.000000e+00 : f32
    %340 = vector.broadcast %cst_114 : f32 to vector<4x32xf32>
    %341 = arith.addf %340, %339 : vector<4x32xf32>
    %342 = arith.divf %340, %341 : vector<4x32xf32>
    %343 = vector.extract_strided_slice %336 {offsets = [0, 32], sizes = [4, 32], strides = [1, 1]} : vector<4x128xf32> to vector<4x32xf32>
    %344 = arith.negf %343 : vector<4x32xf32>
    %345 = math.exp %344 : vector<4x32xf32>
    %cst_115 = arith.constant 1.000000e+00 : f32
    %346 = vector.broadcast %cst_115 : f32 to vector<4x32xf32>
    %347 = arith.addf %346, %345 : vector<4x32xf32>
    %348 = arith.divf %346, %347 : vector<4x32xf32>
    %349 = vector.extract_strided_slice %336 {offsets = [0, 64], sizes = [4, 32], strides = [1, 1]} : vector<4x128xf32> to vector<4x32xf32>
    %350 = math.tanh %349 : vector<4x32xf32>
    %351 = vector.extract_strided_slice %336 {offsets = [0, 96], sizes = [4, 32], strides = [1, 1]} : vector<4x128xf32> to vector<4x32xf32>
    %352 = arith.negf %351 : vector<4x32xf32>
    %353 = math.exp %352 : vector<4x32xf32>
    %cst_116 = arith.constant 1.000000e+00 : f32
    %354 = vector.broadcast %cst_116 : f32 to vector<4x32xf32>
    %355 = arith.addf %354, %353 : vector<4x32xf32>
    %356 = arith.divf %354, %355 : vector<4x32xf32>
    %357 = arith.mulf %348, %328 : vector<4x32xf32>
    %358 = arith.mulf %342, %350 : vector<4x32xf32>
    %359 = arith.addf %357, %358 : vector<4x32xf32>
    %360 = math.tanh %359 : vector<4x32xf32>
    %361 = arith.mulf %356, %360 : vector<4x32xf32>
    %362 = tpu.concatenate %144, %175, %206, %237, %268, %299, %330, %361 in 0 : vector<4x32xf32>, vector<4x32xf32>, vector<4x32xf32>, vector<4x32xf32>, vector<4x32xf32>, vector<4x32xf32>, vector<4x32xf32>, vector<4x32xf32> -> vector<32x32xf32>
    %363 = arith.truncf %362 : vector<32x32xf32> to vector<32x32xbf16>
    %c0_117 = arith.constant 0 : index
    %c0_118 = arith.constant 0 : index
    %c0_119 = arith.constant 0 : index
    %364 = vector.load %arg23[%c0_117, %c0_118, %c0_119] : memref<3x32x128xbf16, #tpu.memory_space<vmem>>, vector<1x32x128xbf16>
    %365 = vector.shape_cast %364 : vector<1x32x128xbf16> to vector<32x128xbf16>
    %cst_120 = arith.constant dense<0.000000e+00> : vector<32x128xf32>
    %366 = tpu.matmul %363, %365, %cst_120 {dimension_numbers = #tpu.dot_dimension_numbers<[1], [0], [0], [1], [0, 0, 1, 1], [], []>} : vector<32x32xbf16>, vector<32x128xbf16>, vector<32x128xf32> -> vector<32x128xf32>
    %c0_121 = arith.constant 0 : index
    %c0_122 = arith.constant 0 : index
    %c0_123 = arith.constant 0 : index
    %367 = vector.load %arg25[%c0_121, %c0_122, %c0_123] : memref<3x1x128xf32, #tpu.memory_space<vmem>>, vector<1x1x128xf32>
    %368 = vector.shape_cast %367 : vector<1x1x128xf32> to vector<1x128xf32>
    %369 = vector.broadcast %368 : vector<1x128xf32> to vector<32x128xf32>
    %370 = arith.addf %366, %369 : vector<32x128xf32>
    %cst_124 = arith.constant 0.000000e+00 : f32
    %371 = vector.broadcast %cst_124 : f32 to vector<4x32xf32>
    %cst_125 = arith.constant 0.000000e+00 : f32
    %372 = vector.broadcast %cst_125 : f32 to vector<4x32xf32>
    %373 = vector.extract_strided_slice %370 {offsets = [0, 0], sizes = [4, 128], strides = [1, 1]} : vector<32x128xf32> to vector<4x128xf32>
    %374 = arith.truncf %371 : vector<4x32xf32> to vector<4x32xbf16>
    %c0_126 = arith.constant 0 : index
    %c0_127 = arith.constant 0 : index
    %c0_128 = arith.constant 0 : index
    %375 = vector.load %arg24[%c0_126, %c0_127, %c0_128] : memref<3x32x128xbf16, #tpu.memory_space<vmem>>, vector<1x32x128xbf16>
    %376 = vector.shape_cast %375 : vector<1x32x128xbf16> to vector<32x128xbf16>
    %cst_129 = arith.constant dense<0.000000e+00> : vector<4x128xf32>
    %377 = tpu.matmul %374, %376, %cst_129 {dimension_numbers = #tpu.dot_dimension_numbers<[1], [0], [0], [1], [0, 0, 1, 1], [], []>} : vector<4x32xbf16>, vector<32x128xbf16>, vector<4x128xf32> -> vector<4x128xf32>
    %378 = arith.addf %373, %377 : vector<4x128xf32>
    %379 = vector.extract_strided_slice %378 {offsets = [0, 0], sizes = [4, 32], strides = [1, 1]} : vector<4x128xf32> to vector<4x32xf32>
    %380 = arith.negf %379 : vector<4x32xf32>
    %381 = math.exp %380 : vector<4x32xf32>
    %cst_130 = arith.constant 1.000000e+00 : f32
    %382 = vector.broadcast %cst_130 : f32 to vector<4x32xf32>
    %383 = arith.addf %382, %381 : vector<4x32xf32>
    %384 = arith.divf %382, %383 : vector<4x32xf32>
    %385 = vector.extract_strided_slice %378 {offsets = [0, 32], sizes = [4, 32], strides = [1, 1]} : vector<4x128xf32> to vector<4x32xf32>
    %386 = arith.negf %385 : vector<4x32xf32>
    %387 = math.exp %386 : vector<4x32xf32>
    %cst_131 = arith.constant 1.000000e+00 : f32
    %388 = vector.broadcast %cst_131 : f32 to vector<4x32xf32>
    %389 = arith.addf %388, %387 : vector<4x32xf32>
    %390 = arith.divf %388, %389 : vector<4x32xf32>
    %391 = vector.extract_strided_slice %378 {offsets = [0, 64], sizes = [4, 32], strides = [1, 1]} : vector<4x128xf32> to vector<4x32xf32>
    %392 = math.tanh %391 : vector<4x32xf32>
    %393 = vector.extract_strided_slice %378 {offsets = [0, 96], sizes = [4, 32], strides = [1, 1]} : vector<4x128xf32> to vector<4x32xf32>
    %394 = arith.negf %393 : vector<4x32xf32>
    %395 = math.exp %394 : vector<4x32xf32>
    %cst_132 = arith.constant 1.000000e+00 : f32
    %396 = vector.broadcast %cst_132 : f32 to vector<4x32xf32>
    %397 = arith.addf %396, %395 : vector<4x32xf32>
    %398 = arith.divf %396, %397 : vector<4x32xf32>
    %399 = arith.mulf %390, %372 : vector<4x32xf32>
    %400 = arith.mulf %384, %392 : vector<4x32xf32>
    %401 = arith.addf %399, %400 : vector<4x32xf32>
    %402 = math.tanh %401 : vector<4x32xf32>
    %403 = arith.mulf %398, %402 : vector<4x32xf32>
    %404 = vector.extract_strided_slice %370 {offsets = [4, 0], sizes = [4, 128], strides = [1, 1]} : vector<32x128xf32> to vector<4x128xf32>
    %405 = arith.truncf %403 : vector<4x32xf32> to vector<4x32xbf16>
    %c0_133 = arith.constant 0 : index
    %c0_134 = arith.constant 0 : index
    %c0_135 = arith.constant 0 : index
    %406 = vector.load %arg24[%c0_133, %c0_134, %c0_135] : memref<3x32x128xbf16, #tpu.memory_space<vmem>>, vector<1x32x128xbf16>
    %407 = vector.shape_cast %406 : vector<1x32x128xbf16> to vector<32x128xbf16>
    %cst_136 = arith.constant dense<0.000000e+00> : vector<4x128xf32>
    %408 = tpu.matmul %405, %407, %cst_136 {dimension_numbers = #tpu.dot_dimension_numbers<[1], [0], [0], [1], [0, 0, 1, 1], [], []>} : vector<4x32xbf16>, vector<32x128xbf16>, vector<4x128xf32> -> vector<4x128xf32>
    %409 = arith.addf %404, %408 : vector<4x128xf32>
    %410 = vector.extract_strided_slice %409 {offsets = [0, 0], sizes = [4, 32], strides = [1, 1]} : vector<4x128xf32> to vector<4x32xf32>
    %411 = arith.negf %410 : vector<4x32xf32>
    %412 = math.exp %411 : vector<4x32xf32>
    %cst_137 = arith.constant 1.000000e+00 : f32
    %413 = vector.broadcast %cst_137 : f32 to vector<4x32xf32>
    %414 = arith.addf %413, %412 : vector<4x32xf32>
    %415 = arith.divf %413, %414 : vector<4x32xf32>
    %416 = vector.extract_strided_slice %409 {offsets = [0, 32], sizes = [4, 32], strides = [1, 1]} : vector<4x128xf32> to vector<4x32xf32>
    %417 = arith.negf %416 : vector<4x32xf32>
    %418 = math.exp %417 : vector<4x32xf32>
    %cst_138 = arith.constant 1.000000e+00 : f32
    %419 = vector.broadcast %cst_138 : f32 to vector<4x32xf32>
    %420 = arith.addf %419, %418 : vector<4x32xf32>
    %421 = arith.divf %419, %420 : vector<4x32xf32>
    %422 = vector.extract_strided_slice %409 {offsets = [0, 64], sizes = [4, 32], strides = [1, 1]} : vector<4x128xf32> to vector<4x32xf32>
    %423 = math.tanh %422 : vector<4x32xf32>
    %424 = vector.extract_strided_slice %409 {offsets = [0, 96], sizes = [4, 32], strides = [1, 1]} : vector<4x128xf32> to vector<4x32xf32>
    %425 = arith.negf %424 : vector<4x32xf32>
    %426 = math.exp %425 : vector<4x32xf32>
    %cst_139 = arith.constant 1.000000e+00 : f32
    %427 = vector.broadcast %cst_139 : f32 to vector<4x32xf32>
    %428 = arith.addf %427, %426 : vector<4x32xf32>
    %429 = arith.divf %427, %428 : vector<4x32xf32>
    %430 = arith.mulf %421, %401 : vector<4x32xf32>
    %431 = arith.mulf %415, %423 : vector<4x32xf32>
    %432 = arith.addf %430, %431 : vector<4x32xf32>
    %433 = math.tanh %432 : vector<4x32xf32>
    %434 = arith.mulf %429, %433 : vector<4x32xf32>
    %435 = vector.extract_strided_slice %370 {offsets = [8, 0], sizes = [4, 128], strides = [1, 1]} : vector<32x128xf32> to vector<4x128xf32>
    %436 = arith.truncf %434 : vector<4x32xf32> to vector<4x32xbf16>
    %c0_140 = arith.constant 0 : index
    %c0_141 = arith.constant 0 : index
    %c0_142 = arith.constant 0 : index
    %437 = vector.load %arg24[%c0_140, %c0_141, %c0_142] : memref<3x32x128xbf16, #tpu.memory_space<vmem>>, vector<1x32x128xbf16>
    %438 = vector.shape_cast %437 : vector<1x32x128xbf16> to vector<32x128xbf16>
    %cst_143 = arith.constant dense<0.000000e+00> : vector<4x128xf32>
    %439 = tpu.matmul %436, %438, %cst_143 {dimension_numbers = #tpu.dot_dimension_numbers<[1], [0], [0], [1], [0, 0, 1, 1], [], []>} : vector<4x32xbf16>, vector<32x128xbf16>, vector<4x128xf32> -> vector<4x128xf32>
    %440 = arith.addf %435, %439 : vector<4x128xf32>
    %441 = vector.extract_strided_slice %440 {offsets = [0, 0], sizes = [4, 32], strides = [1, 1]} : vector<4x128xf32> to vector<4x32xf32>
    %442 = arith.negf %441 : vector<4x32xf32>
    %443 = math.exp %442 : vector<4x32xf32>
    %cst_144 = arith.constant 1.000000e+00 : f32
    %444 = vector.broadcast %cst_144 : f32 to vector<4x32xf32>
    %445 = arith.addf %444, %443 : vector<4x32xf32>
    %446 = arith.divf %444, %445 : vector<4x32xf32>
    %447 = vector.extract_strided_slice %440 {offsets = [0, 32], sizes = [4, 32], strides = [1, 1]} : vector<4x128xf32> to vector<4x32xf32>
    %448 = arith.negf %447 : vector<4x32xf32>
    %449 = math.exp %448 : vector<4x32xf32>
    %cst_145 = arith.constant 1.000000e+00 : f32
    %450 = vector.broadcast %cst_145 : f32 to vector<4x32xf32>
    %451 = arith.addf %450, %449 : vector<4x32xf32>
    %452 = arith.divf %450, %451 : vector<4x32xf32>
    %453 = vector.extract_strided_slice %440 {offsets = [0, 64], sizes = [4, 32], strides = [1, 1]} : vector<4x128xf32> to vector<4x32xf32>
    %454 = math.tanh %453 : vector<4x32xf32>
    %455 = vector.extract_strided_slice %440 {offsets = [0, 96], sizes = [4, 32], strides = [1, 1]} : vector<4x128xf32> to vector<4x32xf32>
    %456 = arith.negf %455 : vector<4x32xf32>
    %457 = math.exp %456 : vector<4x32xf32>
    %cst_146 = arith.constant 1.000000e+00 : f32
    %458 = vector.broadcast %cst_146 : f32 to vector<4x32xf32>
    %459 = arith.addf %458, %457 : vector<4x32xf32>
    %460 = arith.divf %458, %459 : vector<4x32xf32>
    %461 = arith.mulf %452, %432 : vector<4x32xf32>
    %462 = arith.mulf %446, %454 : vector<4x32xf32>
    %463 = arith.addf %461, %462 : vector<4x32xf32>
    %464 = math.tanh %463 : vector<4x32xf32>
    %465 = arith.mulf %460, %464 : vector<4x32xf32>
    %466 = vector.extract_strided_slice %370 {offsets = [12, 0], sizes = [4, 128], strides = [1, 1]} : vector<32x128xf32> to vector<4x128xf32>
    %467 = arith.truncf %465 : vector<4x32xf32> to vector<4x32xbf16>
    %c0_147 = arith.constant 0 : index
    %c0_148 = arith.constant 0 : index
    %c0_149 = arith.constant 0 : index
    %468 = vector.load %arg24[%c0_147, %c0_148, %c0_149] : memref<3x32x128xbf16, #tpu.memory_space<vmem>>, vector<1x32x128xbf16>
    %469 = vector.shape_cast %468 : vector<1x32x128xbf16> to vector<32x128xbf16>
    %cst_150 = arith.constant dense<0.000000e+00> : vector<4x128xf32>
    %470 = tpu.matmul %467, %469, %cst_150 {dimension_numbers = #tpu.dot_dimension_numbers<[1], [0], [0], [1], [0, 0, 1, 1], [], []>} : vector<4x32xbf16>, vector<32x128xbf16>, vector<4x128xf32> -> vector<4x128xf32>
    %471 = arith.addf %466, %470 : vector<4x128xf32>
    %472 = vector.extract_strided_slice %471 {offsets = [0, 0], sizes = [4, 32], strides = [1, 1]} : vector<4x128xf32> to vector<4x32xf32>
    %473 = arith.negf %472 : vector<4x32xf32>
    %474 = math.exp %473 : vector<4x32xf32>
    %cst_151 = arith.constant 1.000000e+00 : f32
    %475 = vector.broadcast %cst_151 : f32 to vector<4x32xf32>
    %476 = arith.addf %475, %474 : vector<4x32xf32>
    %477 = arith.divf %475, %476 : vector<4x32xf32>
    %478 = vector.extract_strided_slice %471 {offsets = [0, 32], sizes = [4, 32], strides = [1, 1]} : vector<4x128xf32> to vector<4x32xf32>
    %479 = arith.negf %478 : vector<4x32xf32>
    %480 = math.exp %479 : vector<4x32xf32>
    %cst_152 = arith.constant 1.000000e+00 : f32
    %481 = vector.broadcast %cst_152 : f32 to vector<4x32xf32>
    %482 = arith.addf %481, %480 : vector<4x32xf32>
    %483 = arith.divf %481, %482 : vector<4x32xf32>
    %484 = vector.extract_strided_slice %471 {offsets = [0, 64], sizes = [4, 32], strides = [1, 1]} : vector<4x128xf32> to vector<4x32xf32>
    %485 = math.tanh %484 : vector<4x32xf32>
    %486 = vector.extract_strided_slice %471 {offsets = [0, 96], sizes = [4, 32], strides = [1, 1]} : vector<4x128xf32> to vector<4x32xf32>
    %487 = arith.negf %486 : vector<4x32xf32>
    %488 = math.exp %487 : vector<4x32xf32>
    %cst_153 = arith.constant 1.000000e+00 : f32
    %489 = vector.broadcast %cst_153 : f32 to vector<4x32xf32>
    %490 = arith.addf %489, %488 : vector<4x32xf32>
    %491 = arith.divf %489, %490 : vector<4x32xf32>
    %492 = arith.mulf %483, %463 : vector<4x32xf32>
    %493 = arith.mulf %477, %485 : vector<4x32xf32>
    %494 = arith.addf %492, %493 : vector<4x32xf32>
    %495 = math.tanh %494 : vector<4x32xf32>
    %496 = arith.mulf %491, %495 : vector<4x32xf32>
    %497 = vector.extract_strided_slice %370 {offsets = [16, 0], sizes = [4, 128], strides = [1, 1]} : vector<32x128xf32> to vector<4x128xf32>
    %498 = arith.truncf %496 : vector<4x32xf32> to vector<4x32xbf16>
    %c0_154 = arith.constant 0 : index
    %c0_155 = arith.constant 0 : index
    %c0_156 = arith.constant 0 : index
    %499 = vector.load %arg24[%c0_154, %c0_155, %c0_156] : memref<3x32x128xbf16, #tpu.memory_space<vmem>>, vector<1x32x128xbf16>
    %500 = vector.shape_cast %499 : vector<1x32x128xbf16> to vector<32x128xbf16>
    %cst_157 = arith.constant dense<0.000000e+00> : vector<4x128xf32>
    %501 = tpu.matmul %498, %500, %cst_157 {dimension_numbers = #tpu.dot_dimension_numbers<[1], [0], [0], [1], [0, 0, 1, 1], [], []>} : vector<4x32xbf16>, vector<32x128xbf16>, vector<4x128xf32> -> vector<4x128xf32>
    %502 = arith.addf %497, %501 : vector<4x128xf32>
    %503 = vector.extract_strided_slice %502 {offsets = [0, 0], sizes = [4, 32], strides = [1, 1]} : vector<4x128xf32> to vector<4x32xf32>
    %504 = arith.negf %503 : vector<4x32xf32>
    %505 = math.exp %504 : vector<4x32xf32>
    %cst_158 = arith.constant 1.000000e+00 : f32
    %506 = vector.broadcast %cst_158 : f32 to vector<4x32xf32>
    %507 = arith.addf %506, %505 : vector<4x32xf32>
    %508 = arith.divf %506, %507 : vector<4x32xf32>
    %509 = vector.extract_strided_slice %502 {offsets = [0, 32], sizes = [4, 32], strides = [1, 1]} : vector<4x128xf32> to vector<4x32xf32>
    %510 = arith.negf %509 : vector<4x32xf32>
    %511 = math.exp %510 : vector<4x32xf32>
    %cst_159 = arith.constant 1.000000e+00 : f32
    %512 = vector.broadcast %cst_159 : f32 to vector<4x32xf32>
    %513 = arith.addf %512, %511 : vector<4x32xf32>
    %514 = arith.divf %512, %513 : vector<4x32xf32>
    %515 = vector.extract_strided_slice %502 {offsets = [0, 64], sizes = [4, 32], strides = [1, 1]} : vector<4x128xf32> to vector<4x32xf32>
    %516 = math.tanh %515 : vector<4x32xf32>
    %517 = vector.extract_strided_slice %502 {offsets = [0, 96], sizes = [4, 32], strides = [1, 1]} : vector<4x128xf32> to vector<4x32xf32>
    %518 = arith.negf %517 : vector<4x32xf32>
    %519 = math.exp %518 : vector<4x32xf32>
    %cst_160 = arith.constant 1.000000e+00 : f32
    %520 = vector.broadcast %cst_160 : f32 to vector<4x32xf32>
    %521 = arith.addf %520, %519 : vector<4x32xf32>
    %522 = arith.divf %520, %521 : vector<4x32xf32>
    %523 = arith.mulf %514, %494 : vector<4x32xf32>
    %524 = arith.mulf %508, %516 : vector<4x32xf32>
    %525 = arith.addf %523, %524 : vector<4x32xf32>
    %526 = math.tanh %525 : vector<4x32xf32>
    %527 = arith.mulf %522, %526 : vector<4x32xf32>
    %528 = vector.extract_strided_slice %370 {offsets = [20, 0], sizes = [4, 128], strides = [1, 1]} : vector<32x128xf32> to vector<4x128xf32>
    %529 = arith.truncf %527 : vector<4x32xf32> to vector<4x32xbf16>
    %c0_161 = arith.constant 0 : index
    %c0_162 = arith.constant 0 : index
    %c0_163 = arith.constant 0 : index
    %530 = vector.load %arg24[%c0_161, %c0_162, %c0_163] : memref<3x32x128xbf16, #tpu.memory_space<vmem>>, vector<1x32x128xbf16>
    %531 = vector.shape_cast %530 : vector<1x32x128xbf16> to vector<32x128xbf16>
    %cst_164 = arith.constant dense<0.000000e+00> : vector<4x128xf32>
    %532 = tpu.matmul %529, %531, %cst_164 {dimension_numbers = #tpu.dot_dimension_numbers<[1], [0], [0], [1], [0, 0, 1, 1], [], []>} : vector<4x32xbf16>, vector<32x128xbf16>, vector<4x128xf32> -> vector<4x128xf32>
    %533 = arith.addf %528, %532 : vector<4x128xf32>
    %534 = vector.extract_strided_slice %533 {offsets = [0, 0], sizes = [4, 32], strides = [1, 1]} : vector<4x128xf32> to vector<4x32xf32>
    %535 = arith.negf %534 : vector<4x32xf32>
    %536 = math.exp %535 : vector<4x32xf32>
    %cst_165 = arith.constant 1.000000e+00 : f32
    %537 = vector.broadcast %cst_165 : f32 to vector<4x32xf32>
    %538 = arith.addf %537, %536 : vector<4x32xf32>
    %539 = arith.divf %537, %538 : vector<4x32xf32>
    %540 = vector.extract_strided_slice %533 {offsets = [0, 32], sizes = [4, 32], strides = [1, 1]} : vector<4x128xf32> to vector<4x32xf32>
    %541 = arith.negf %540 : vector<4x32xf32>
    %542 = math.exp %541 : vector<4x32xf32>
    %cst_166 = arith.constant 1.000000e+00 : f32
    %543 = vector.broadcast %cst_166 : f32 to vector<4x32xf32>
    %544 = arith.addf %543, %542 : vector<4x32xf32>
    %545 = arith.divf %543, %544 : vector<4x32xf32>
    %546 = vector.extract_strided_slice %533 {offsets = [0, 64], sizes = [4, 32], strides = [1, 1]} : vector<4x128xf32> to vector<4x32xf32>
    %547 = math.tanh %546 : vector<4x32xf32>
    %548 = vector.extract_strided_slice %533 {offsets = [0, 96], sizes = [4, 32], strides = [1, 1]} : vector<4x128xf32> to vector<4x32xf32>
    %549 = arith.negf %548 : vector<4x32xf32>
    %550 = math.exp %549 : vector<4x32xf32>
    %cst_167 = arith.constant 1.000000e+00 : f32
    %551 = vector.broadcast %cst_167 : f32 to vector<4x32xf32>
    %552 = arith.addf %551, %550 : vector<4x32xf32>
    %553 = arith.divf %551, %552 : vector<4x32xf32>
    %554 = arith.mulf %545, %525 : vector<4x32xf32>
    %555 = arith.mulf %539, %547 : vector<4x32xf32>
    %556 = arith.addf %554, %555 : vector<4x32xf32>
    %557 = math.tanh %556 : vector<4x32xf32>
    %558 = arith.mulf %553, %557 : vector<4x32xf32>
    %559 = vector.extract_strided_slice %370 {offsets = [24, 0], sizes = [4, 128], strides = [1, 1]} : vector<32x128xf32> to vector<4x128xf32>
    %560 = arith.truncf %558 : vector<4x32xf32> to vector<4x32xbf16>
    %c0_168 = arith.constant 0 : index
    %c0_169 = arith.constant 0 : index
    %c0_170 = arith.constant 0 : index
    %561 = vector.load %arg24[%c0_168, %c0_169, %c0_170] : memref<3x32x128xbf16, #tpu.memory_space<vmem>>, vector<1x32x128xbf16>
    %562 = vector.shape_cast %561 : vector<1x32x128xbf16> to vector<32x128xbf16>
    %cst_171 = arith.constant dense<0.000000e+00> : vector<4x128xf32>
    %563 = tpu.matmul %560, %562, %cst_171 {dimension_numbers = #tpu.dot_dimension_numbers<[1], [0], [0], [1], [0, 0, 1, 1], [], []>} : vector<4x32xbf16>, vector<32x128xbf16>, vector<4x128xf32> -> vector<4x128xf32>
    %564 = arith.addf %559, %563 : vector<4x128xf32>
    %565 = vector.extract_strided_slice %564 {offsets = [0, 0], sizes = [4, 32], strides = [1, 1]} : vector<4x128xf32> to vector<4x32xf32>
    %566 = arith.negf %565 : vector<4x32xf32>
    %567 = math.exp %566 : vector<4x32xf32>
    %cst_172 = arith.constant 1.000000e+00 : f32
    %568 = vector.broadcast %cst_172 : f32 to vector<4x32xf32>
    %569 = arith.addf %568, %567 : vector<4x32xf32>
    %570 = arith.divf %568, %569 : vector<4x32xf32>
    %571 = vector.extract_strided_slice %564 {offsets = [0, 32], sizes = [4, 32], strides = [1, 1]} : vector<4x128xf32> to vector<4x32xf32>
    %572 = arith.negf %571 : vector<4x32xf32>
    %573 = math.exp %572 : vector<4x32xf32>
    %cst_173 = arith.constant 1.000000e+00 : f32
    %574 = vector.broadcast %cst_173 : f32 to vector<4x32xf32>
    %575 = arith.addf %574, %573 : vector<4x32xf32>
    %576 = arith.divf %574, %575 : vector<4x32xf32>
    %577 = vector.extract_strided_slice %564 {offsets = [0, 64], sizes = [4, 32], strides = [1, 1]} : vector<4x128xf32> to vector<4x32xf32>
    %578 = math.tanh %577 : vector<4x32xf32>
    %579 = vector.extract_strided_slice %564 {offsets = [0, 96], sizes = [4, 32], strides = [1, 1]} : vector<4x128xf32> to vector<4x32xf32>
    %580 = arith.negf %579 : vector<4x32xf32>
    %581 = math.exp %580 : vector<4x32xf32>
    %cst_174 = arith.constant 1.000000e+00 : f32
    %582 = vector.broadcast %cst_174 : f32 to vector<4x32xf32>
    %583 = arith.addf %582, %581 : vector<4x32xf32>
    %584 = arith.divf %582, %583 : vector<4x32xf32>
    %585 = arith.mulf %576, %556 : vector<4x32xf32>
    %586 = arith.mulf %570, %578 : vector<4x32xf32>
    %587 = arith.addf %585, %586 : vector<4x32xf32>
    %588 = math.tanh %587 : vector<4x32xf32>
    %589 = arith.mulf %584, %588 : vector<4x32xf32>
    %590 = vector.extract_strided_slice %370 {offsets = [28, 0], sizes = [4, 128], strides = [1, 1]} : vector<32x128xf32> to vector<4x128xf32>
    %591 = arith.truncf %589 : vector<4x32xf32> to vector<4x32xbf16>
    %c0_175 = arith.constant 0 : index
    %c0_176 = arith.constant 0 : index
    %c0_177 = arith.constant 0 : index
    %592 = vector.load %arg24[%c0_175, %c0_176, %c0_177] : memref<3x32x128xbf16, #tpu.memory_space<vmem>>, vector<1x32x128xbf16>
    %593 = vector.shape_cast %592 : vector<1x32x128xbf16> to vector<32x128xbf16>
    %cst_178 = arith.constant dense<0.000000e+00> : vector<4x128xf32>
    %594 = tpu.matmul %591, %593, %cst_178 {dimension_numbers = #tpu.dot_dimension_numbers<[1], [0], [0], [1], [0, 0, 1, 1], [], []>} : vector<4x32xbf16>, vector<32x128xbf16>, vector<4x128xf32> -> vector<4x128xf32>
    %595 = arith.addf %590, %594 : vector<4x128xf32>
    %596 = vector.extract_strided_slice %595 {offsets = [0, 0], sizes = [4, 32], strides = [1, 1]} : vector<4x128xf32> to vector<4x32xf32>
    %597 = arith.negf %596 : vector<4x32xf32>
    %598 = math.exp %597 : vector<4x32xf32>
    %cst_179 = arith.constant 1.000000e+00 : f32
    %599 = vector.broadcast %cst_179 : f32 to vector<4x32xf32>
    %600 = arith.addf %599, %598 : vector<4x32xf32>
    %601 = arith.divf %599, %600 : vector<4x32xf32>
    %602 = vector.extract_strided_slice %595 {offsets = [0, 32], sizes = [4, 32], strides = [1, 1]} : vector<4x128xf32> to vector<4x32xf32>
    %603 = arith.negf %602 : vector<4x32xf32>
    %604 = math.exp %603 : vector<4x32xf32>
    %cst_180 = arith.constant 1.000000e+00 : f32
    %605 = vector.broadcast %cst_180 : f32 to vector<4x32xf32>
    %606 = arith.addf %605, %604 : vector<4x32xf32>
    %607 = arith.divf %605, %606 : vector<4x32xf32>
    %608 = vector.extract_strided_slice %595 {offsets = [0, 64], sizes = [4, 32], strides = [1, 1]} : vector<4x128xf32> to vector<4x32xf32>
    %609 = math.tanh %608 : vector<4x32xf32>
    %610 = vector.extract_strided_slice %595 {offsets = [0, 96], sizes = [4, 32], strides = [1, 1]} : vector<4x128xf32> to vector<4x32xf32>
    %611 = arith.negf %610 : vector<4x32xf32>
    %612 = math.exp %611 : vector<4x32xf32>
    %cst_181 = arith.constant 1.000000e+00 : f32
    %613 = vector.broadcast %cst_181 : f32 to vector<4x32xf32>
    %614 = arith.addf %613, %612 : vector<4x32xf32>
    %615 = arith.divf %613, %614 : vector<4x32xf32>
    %616 = arith.mulf %607, %587 : vector<4x32xf32>
    %617 = arith.mulf %601, %609 : vector<4x32xf32>
    %618 = arith.addf %616, %617 : vector<4x32xf32>
    %619 = math.tanh %618 : vector<4x32xf32>
    %620 = arith.mulf %615, %619 : vector<4x32xf32>
    %c0_182 = arith.constant 0 : index
    %c0_183 = arith.constant 0 : index
    %621 = vector.load %arg18[%c0_182, %c0_183] : memref<16x8xbf16, #tpu.memory_space<vmem>>, vector<16x8xbf16>
    %c1 = arith.constant 1 : index
    %c0_184 = arith.constant 0 : index
    %c0_185 = arith.constant 0 : index
    %622 = vector.load %arg20[%c1, %c0_184, %c0_185] : memref<3x8x128xbf16, #tpu.memory_space<vmem>>, vector<1x8x128xbf16>
    %623 = vector.shape_cast %622 : vector<1x8x128xbf16> to vector<8x128xbf16>
    %cst_186 = arith.constant dense<0.000000e+00> : vector<16x128xf32>
    %624 = tpu.matmul %621, %623, %cst_186 {dimension_numbers = #tpu.dot_dimension_numbers<[1], [0], [0], [1], [0, 0, 1, 1], [], []>} : vector<16x8xbf16>, vector<8x128xbf16>, vector<16x128xf32> -> vector<16x128xf32>
    %c1_187 = arith.constant 1 : index
    %c0_188 = arith.constant 0 : index
    %c0_189 = arith.constant 0 : index
    %625 = vector.load %arg22[%c1_187, %c0_188, %c0_189] : memref<3x1x128xf32, #tpu.memory_space<vmem>>, vector<1x1x128xf32>
    %626 = vector.shape_cast %625 : vector<1x1x128xf32> to vector<1x128xf32>
    %627 = vector.broadcast %626 : vector<1x128xf32> to vector<16x128xf32>
    %628 = arith.addf %624, %627 : vector<16x128xf32>
    %cst_190 = arith.constant 0.000000e+00 : f32
    %629 = vector.broadcast %cst_190 : f32 to vector<4x32xf32>
    %cst_191 = arith.constant 0.000000e+00 : f32
    %630 = vector.broadcast %cst_191 : f32 to vector<4x32xf32>
    %631 = vector.extract_strided_slice %628 {offsets = [0, 0], sizes = [4, 128], strides = [1, 1]} : vector<16x128xf32> to vector<4x128xf32>
    %632 = arith.truncf %629 : vector<4x32xf32> to vector<4x32xbf16>
    %c1_192 = arith.constant 1 : index
    %c0_193 = arith.constant 0 : index
    %c0_194 = arith.constant 0 : index
    %633 = vector.load %arg21[%c1_192, %c0_193, %c0_194] : memref<3x32x128xbf16, #tpu.memory_space<vmem>>, vector<1x32x128xbf16>
    %634 = vector.shape_cast %633 : vector<1x32x128xbf16> to vector<32x128xbf16>
    %cst_195 = arith.constant dense<0.000000e+00> : vector<4x128xf32>
    %635 = tpu.matmul %632, %634, %cst_195 {dimension_numbers = #tpu.dot_dimension_numbers<[1], [0], [0], [1], [0, 0, 1, 1], [], []>} : vector<4x32xbf16>, vector<32x128xbf16>, vector<4x128xf32> -> vector<4x128xf32>
    %636 = arith.addf %631, %635 : vector<4x128xf32>
    %637 = vector.extract_strided_slice %636 {offsets = [0, 0], sizes = [4, 32], strides = [1, 1]} : vector<4x128xf32> to vector<4x32xf32>
    %638 = arith.negf %637 : vector<4x32xf32>
    %639 = math.exp %638 : vector<4x32xf32>
    %cst_196 = arith.constant 1.000000e+00 : f32
    %640 = vector.broadcast %cst_196 : f32 to vector<4x32xf32>
    %641 = arith.addf %640, %639 : vector<4x32xf32>
    %642 = arith.divf %640, %641 : vector<4x32xf32>
    %643 = vector.extract_strided_slice %636 {offsets = [0, 32], sizes = [4, 32], strides = [1, 1]} : vector<4x128xf32> to vector<4x32xf32>
    %644 = arith.negf %643 : vector<4x32xf32>
    %645 = math.exp %644 : vector<4x32xf32>
    %cst_197 = arith.constant 1.000000e+00 : f32
    %646 = vector.broadcast %cst_197 : f32 to vector<4x32xf32>
    %647 = arith.addf %646, %645 : vector<4x32xf32>
    %648 = arith.divf %646, %647 : vector<4x32xf32>
    %649 = vector.extract_strided_slice %636 {offsets = [0, 64], sizes = [4, 32], strides = [1, 1]} : vector<4x128xf32> to vector<4x32xf32>
    %650 = math.tanh %649 : vector<4x32xf32>
    %651 = vector.extract_strided_slice %636 {offsets = [0, 96], sizes = [4, 32], strides = [1, 1]} : vector<4x128xf32> to vector<4x32xf32>
    %652 = arith.negf %651 : vector<4x32xf32>
    %653 = math.exp %652 : vector<4x32xf32>
    %cst_198 = arith.constant 1.000000e+00 : f32
    %654 = vector.broadcast %cst_198 : f32 to vector<4x32xf32>
    %655 = arith.addf %654, %653 : vector<4x32xf32>
    %656 = arith.divf %654, %655 : vector<4x32xf32>
    %657 = arith.mulf %648, %630 : vector<4x32xf32>
    %658 = arith.mulf %642, %650 : vector<4x32xf32>
    %659 = arith.addf %657, %658 : vector<4x32xf32>
    %660 = math.tanh %659 : vector<4x32xf32>
    %661 = arith.mulf %656, %660 : vector<4x32xf32>
    %662 = vector.extract_strided_slice %628 {offsets = [4, 0], sizes = [4, 128], strides = [1, 1]} : vector<16x128xf32> to vector<4x128xf32>
    %663 = arith.truncf %661 : vector<4x32xf32> to vector<4x32xbf16>
    %c1_199 = arith.constant 1 : index
    %c0_200 = arith.constant 0 : index
    %c0_201 = arith.constant 0 : index
    %664 = vector.load %arg21[%c1_199, %c0_200, %c0_201] : memref<3x32x128xbf16, #tpu.memory_space<vmem>>, vector<1x32x128xbf16>
    %665 = vector.shape_cast %664 : vector<1x32x128xbf16> to vector<32x128xbf16>
    %cst_202 = arith.constant dense<0.000000e+00> : vector<4x128xf32>
    %666 = tpu.matmul %663, %665, %cst_202 {dimension_numbers = #tpu.dot_dimension_numbers<[1], [0], [0], [1], [0, 0, 1, 1], [], []>} : vector<4x32xbf16>, vector<32x128xbf16>, vector<4x128xf32> -> vector<4x128xf32>
    %667 = arith.addf %662, %666 : vector<4x128xf32>
    %668 = vector.extract_strided_slice %667 {offsets = [0, 0], sizes = [4, 32], strides = [1, 1]} : vector<4x128xf32> to vector<4x32xf32>
    %669 = arith.negf %668 : vector<4x32xf32>
    %670 = math.exp %669 : vector<4x32xf32>
    %cst_203 = arith.constant 1.000000e+00 : f32
    %671 = vector.broadcast %cst_203 : f32 to vector<4x32xf32>
    %672 = arith.addf %671, %670 : vector<4x32xf32>
    %673 = arith.divf %671, %672 : vector<4x32xf32>
    %674 = vector.extract_strided_slice %667 {offsets = [0, 32], sizes = [4, 32], strides = [1, 1]} : vector<4x128xf32> to vector<4x32xf32>
    %675 = arith.negf %674 : vector<4x32xf32>
    %676 = math.exp %675 : vector<4x32xf32>
    %cst_204 = arith.constant 1.000000e+00 : f32
    %677 = vector.broadcast %cst_204 : f32 to vector<4x32xf32>
    %678 = arith.addf %677, %676 : vector<4x32xf32>
    %679 = arith.divf %677, %678 : vector<4x32xf32>
    %680 = vector.extract_strided_slice %667 {offsets = [0, 64], sizes = [4, 32], strides = [1, 1]} : vector<4x128xf32> to vector<4x32xf32>
    %681 = math.tanh %680 : vector<4x32xf32>
    %682 = vector.extract_strided_slice %667 {offsets = [0, 96], sizes = [4, 32], strides = [1, 1]} : vector<4x128xf32> to vector<4x32xf32>
    %683 = arith.negf %682 : vector<4x32xf32>
    %684 = math.exp %683 : vector<4x32xf32>
    %cst_205 = arith.constant 1.000000e+00 : f32
    %685 = vector.broadcast %cst_205 : f32 to vector<4x32xf32>
    %686 = arith.addf %685, %684 : vector<4x32xf32>
    %687 = arith.divf %685, %686 : vector<4x32xf32>
    %688 = arith.mulf %679, %659 : vector<4x32xf32>
    %689 = arith.mulf %673, %681 : vector<4x32xf32>
    %690 = arith.addf %688, %689 : vector<4x32xf32>
    %691 = math.tanh %690 : vector<4x32xf32>
    %692 = arith.mulf %687, %691 : vector<4x32xf32>
    %693 = vector.extract_strided_slice %628 {offsets = [8, 0], sizes = [4, 128], strides = [1, 1]} : vector<16x128xf32> to vector<4x128xf32>
    %694 = arith.truncf %692 : vector<4x32xf32> to vector<4x32xbf16>
    %c1_206 = arith.constant 1 : index
    %c0_207 = arith.constant 0 : index
    %c0_208 = arith.constant 0 : index
    %695 = vector.load %arg21[%c1_206, %c0_207, %c0_208] : memref<3x32x128xbf16, #tpu.memory_space<vmem>>, vector<1x32x128xbf16>
    %696 = vector.shape_cast %695 : vector<1x32x128xbf16> to vector<32x128xbf16>
    %cst_209 = arith.constant dense<0.000000e+00> : vector<4x128xf32>
    %697 = tpu.matmul %694, %696, %cst_209 {dimension_numbers = #tpu.dot_dimension_numbers<[1], [0], [0], [1], [0, 0, 1, 1], [], []>} : vector<4x32xbf16>, vector<32x128xbf16>, vector<4x128xf32> -> vector<4x128xf32>
    %698 = arith.addf %693, %697 : vector<4x128xf32>
    %699 = vector.extract_strided_slice %698 {offsets = [0, 0], sizes = [4, 32], strides = [1, 1]} : vector<4x128xf32> to vector<4x32xf32>
    %700 = arith.negf %699 : vector<4x32xf32>
    %701 = math.exp %700 : vector<4x32xf32>
    %cst_210 = arith.constant 1.000000e+00 : f32
    %702 = vector.broadcast %cst_210 : f32 to vector<4x32xf32>
    %703 = arith.addf %702, %701 : vector<4x32xf32>
    %704 = arith.divf %702, %703 : vector<4x32xf32>
    %705 = vector.extract_strided_slice %698 {offsets = [0, 32], sizes = [4, 32], strides = [1, 1]} : vector<4x128xf32> to vector<4x32xf32>
    %706 = arith.negf %705 : vector<4x32xf32>
    %707 = math.exp %706 : vector<4x32xf32>
    %cst_211 = arith.constant 1.000000e+00 : f32
    %708 = vector.broadcast %cst_211 : f32 to vector<4x32xf32>
    %709 = arith.addf %708, %707 : vector<4x32xf32>
    %710 = arith.divf %708, %709 : vector<4x32xf32>
    %711 = vector.extract_strided_slice %698 {offsets = [0, 64], sizes = [4, 32], strides = [1, 1]} : vector<4x128xf32> to vector<4x32xf32>
    %712 = math.tanh %711 : vector<4x32xf32>
    %713 = vector.extract_strided_slice %698 {offsets = [0, 96], sizes = [4, 32], strides = [1, 1]} : vector<4x128xf32> to vector<4x32xf32>
    %714 = arith.negf %713 : vector<4x32xf32>
    %715 = math.exp %714 : vector<4x32xf32>
    %cst_212 = arith.constant 1.000000e+00 : f32
    %716 = vector.broadcast %cst_212 : f32 to vector<4x32xf32>
    %717 = arith.addf %716, %715 : vector<4x32xf32>
    %718 = arith.divf %716, %717 : vector<4x32xf32>
    %719 = arith.mulf %710, %690 : vector<4x32xf32>
    %720 = arith.mulf %704, %712 : vector<4x32xf32>
    %721 = arith.addf %719, %720 : vector<4x32xf32>
    %722 = math.tanh %721 : vector<4x32xf32>
    %723 = arith.mulf %718, %722 : vector<4x32xf32>
    %724 = vector.extract_strided_slice %628 {offsets = [12, 0], sizes = [4, 128], strides = [1, 1]} : vector<16x128xf32> to vector<4x128xf32>
    %725 = arith.truncf %723 : vector<4x32xf32> to vector<4x32xbf16>
    %c1_213 = arith.constant 1 : index
    %c0_214 = arith.constant 0 : index
    %c0_215 = arith.constant 0 : index
    %726 = vector.load %arg21[%c1_213, %c0_214, %c0_215] : memref<3x32x128xbf16, #tpu.memory_space<vmem>>, vector<1x32x128xbf16>
    %727 = vector.shape_cast %726 : vector<1x32x128xbf16> to vector<32x128xbf16>
    %cst_216 = arith.constant dense<0.000000e+00> : vector<4x128xf32>
    %728 = tpu.matmul %725, %727, %cst_216 {dimension_numbers = #tpu.dot_dimension_numbers<[1], [0], [0], [1], [0, 0, 1, 1], [], []>} : vector<4x32xbf16>, vector<32x128xbf16>, vector<4x128xf32> -> vector<4x128xf32>
    %729 = arith.addf %724, %728 : vector<4x128xf32>
    %730 = vector.extract_strided_slice %729 {offsets = [0, 0], sizes = [4, 32], strides = [1, 1]} : vector<4x128xf32> to vector<4x32xf32>
    %731 = arith.negf %730 : vector<4x32xf32>
    %732 = math.exp %731 : vector<4x32xf32>
    %cst_217 = arith.constant 1.000000e+00 : f32
    %733 = vector.broadcast %cst_217 : f32 to vector<4x32xf32>
    %734 = arith.addf %733, %732 : vector<4x32xf32>
    %735 = arith.divf %733, %734 : vector<4x32xf32>
    %736 = vector.extract_strided_slice %729 {offsets = [0, 32], sizes = [4, 32], strides = [1, 1]} : vector<4x128xf32> to vector<4x32xf32>
    %737 = arith.negf %736 : vector<4x32xf32>
    %738 = math.exp %737 : vector<4x32xf32>
    %cst_218 = arith.constant 1.000000e+00 : f32
    %739 = vector.broadcast %cst_218 : f32 to vector<4x32xf32>
    %740 = arith.addf %739, %738 : vector<4x32xf32>
    %741 = arith.divf %739, %740 : vector<4x32xf32>
    %742 = vector.extract_strided_slice %729 {offsets = [0, 64], sizes = [4, 32], strides = [1, 1]} : vector<4x128xf32> to vector<4x32xf32>
    %743 = math.tanh %742 : vector<4x32xf32>
    %744 = vector.extract_strided_slice %729 {offsets = [0, 96], sizes = [4, 32], strides = [1, 1]} : vector<4x128xf32> to vector<4x32xf32>
    %745 = arith.negf %744 : vector<4x32xf32>
    %746 = math.exp %745 : vector<4x32xf32>
    %cst_219 = arith.constant 1.000000e+00 : f32
    %747 = vector.broadcast %cst_219 : f32 to vector<4x32xf32>
    %748 = arith.addf %747, %746 : vector<4x32xf32>
    %749 = arith.divf %747, %748 : vector<4x32xf32>
    %750 = arith.mulf %741, %721 : vector<4x32xf32>
    %751 = arith.mulf %735, %743 : vector<4x32xf32>
    %752 = arith.addf %750, %751 : vector<4x32xf32>
    %753 = math.tanh %752 : vector<4x32xf32>
    %754 = arith.mulf %749, %753 : vector<4x32xf32>
    %755 = tpu.concatenate %661, %692, %723, %754 in 0 : vector<4x32xf32>, vector<4x32xf32>, vector<4x32xf32>, vector<4x32xf32> -> vector<16x32xf32>
    %756 = arith.truncf %755 : vector<16x32xf32> to vector<16x32xbf16>
    %c1_220 = arith.constant 1 : index
    %c0_221 = arith.constant 0 : index
    %c0_222 = arith.constant 0 : index
    %757 = vector.load %arg23[%c1_220, %c0_221, %c0_222] : memref<3x32x128xbf16, #tpu.memory_space<vmem>>, vector<1x32x128xbf16>
    %758 = vector.shape_cast %757 : vector<1x32x128xbf16> to vector<32x128xbf16>
    %cst_223 = arith.constant dense<0.000000e+00> : vector<16x128xf32>
    %759 = tpu.matmul %756, %758, %cst_223 {dimension_numbers = #tpu.dot_dimension_numbers<[1], [0], [0], [1], [0, 0, 1, 1], [], []>} : vector<16x32xbf16>, vector<32x128xbf16>, vector<16x128xf32> -> vector<16x128xf32>
    %c1_224 = arith.constant 1 : index
    %c0_225 = arith.constant 0 : index
    %c0_226 = arith.constant 0 : index
    %760 = vector.load %arg25[%c1_224, %c0_225, %c0_226] : memref<3x1x128xf32, #tpu.memory_space<vmem>>, vector<1x1x128xf32>
    %761 = vector.shape_cast %760 : vector<1x1x128xf32> to vector<1x128xf32>
    %762 = vector.broadcast %761 : vector<1x128xf32> to vector<16x128xf32>
    %763 = arith.addf %759, %762 : vector<16x128xf32>
    %cst_227 = arith.constant 0.000000e+00 : f32
    %764 = vector.broadcast %cst_227 : f32 to vector<4x32xf32>
    %cst_228 = arith.constant 0.000000e+00 : f32
    %765 = vector.broadcast %cst_228 : f32 to vector<4x32xf32>
    %766 = vector.extract_strided_slice %763 {offsets = [0, 0], sizes = [4, 128], strides = [1, 1]} : vector<16x128xf32> to vector<4x128xf32>
    %767 = arith.truncf %764 : vector<4x32xf32> to vector<4x32xbf16>
    %c1_229 = arith.constant 1 : index
    %c0_230 = arith.constant 0 : index
    %c0_231 = arith.constant 0 : index
    %768 = vector.load %arg24[%c1_229, %c0_230, %c0_231] : memref<3x32x128xbf16, #tpu.memory_space<vmem>>, vector<1x32x128xbf16>
    %769 = vector.shape_cast %768 : vector<1x32x128xbf16> to vector<32x128xbf16>
    %cst_232 = arith.constant dense<0.000000e+00> : vector<4x128xf32>
    %770 = tpu.matmul %767, %769, %cst_232 {dimension_numbers = #tpu.dot_dimension_numbers<[1], [0], [0], [1], [0, 0, 1, 1], [], []>} : vector<4x32xbf16>, vector<32x128xbf16>, vector<4x128xf32> -> vector<4x128xf32>
    %771 = arith.addf %766, %770 : vector<4x128xf32>
    %772 = vector.extract_strided_slice %771 {offsets = [0, 0], sizes = [4, 32], strides = [1, 1]} : vector<4x128xf32> to vector<4x32xf32>
    %773 = arith.negf %772 : vector<4x32xf32>
    %774 = math.exp %773 : vector<4x32xf32>
    %cst_233 = arith.constant 1.000000e+00 : f32
    %775 = vector.broadcast %cst_233 : f32 to vector<4x32xf32>
    %776 = arith.addf %775, %774 : vector<4x32xf32>
    %777 = arith.divf %775, %776 : vector<4x32xf32>
    %778 = vector.extract_strided_slice %771 {offsets = [0, 32], sizes = [4, 32], strides = [1, 1]} : vector<4x128xf32> to vector<4x32xf32>
    %779 = arith.negf %778 : vector<4x32xf32>
    %780 = math.exp %779 : vector<4x32xf32>
    %cst_234 = arith.constant 1.000000e+00 : f32
    %781 = vector.broadcast %cst_234 : f32 to vector<4x32xf32>
    %782 = arith.addf %781, %780 : vector<4x32xf32>
    %783 = arith.divf %781, %782 : vector<4x32xf32>
    %784 = vector.extract_strided_slice %771 {offsets = [0, 64], sizes = [4, 32], strides = [1, 1]} : vector<4x128xf32> to vector<4x32xf32>
    %785 = math.tanh %784 : vector<4x32xf32>
    %786 = vector.extract_strided_slice %771 {offsets = [0, 96], sizes = [4, 32], strides = [1, 1]} : vector<4x128xf32> to vector<4x32xf32>
    %787 = arith.negf %786 : vector<4x32xf32>
    %788 = math.exp %787 : vector<4x32xf32>
    %cst_235 = arith.constant 1.000000e+00 : f32
    %789 = vector.broadcast %cst_235 : f32 to vector<4x32xf32>
    %790 = arith.addf %789, %788 : vector<4x32xf32>
    %791 = arith.divf %789, %790 : vector<4x32xf32>
    %792 = arith.mulf %783, %765 : vector<4x32xf32>
    %793 = arith.mulf %777, %785 : vector<4x32xf32>
    %794 = arith.addf %792, %793 : vector<4x32xf32>
    %795 = math.tanh %794 : vector<4x32xf32>
    %796 = arith.mulf %791, %795 : vector<4x32xf32>
    %797 = vector.extract_strided_slice %763 {offsets = [4, 0], sizes = [4, 128], strides = [1, 1]} : vector<16x128xf32> to vector<4x128xf32>
    %798 = arith.truncf %796 : vector<4x32xf32> to vector<4x32xbf16>
    %c1_236 = arith.constant 1 : index
    %c0_237 = arith.constant 0 : index
    %c0_238 = arith.constant 0 : index
    %799 = vector.load %arg24[%c1_236, %c0_237, %c0_238] : memref<3x32x128xbf16, #tpu.memory_space<vmem>>, vector<1x32x128xbf16>
    %800 = vector.shape_cast %799 : vector<1x32x128xbf16> to vector<32x128xbf16>
    %cst_239 = arith.constant dense<0.000000e+00> : vector<4x128xf32>
    %801 = tpu.matmul %798, %800, %cst_239 {dimension_numbers = #tpu.dot_dimension_numbers<[1], [0], [0], [1], [0, 0, 1, 1], [], []>} : vector<4x32xbf16>, vector<32x128xbf16>, vector<4x128xf32> -> vector<4x128xf32>
    %802 = arith.addf %797, %801 : vector<4x128xf32>
    %803 = vector.extract_strided_slice %802 {offsets = [0, 0], sizes = [4, 32], strides = [1, 1]} : vector<4x128xf32> to vector<4x32xf32>
    %804 = arith.negf %803 : vector<4x32xf32>
    %805 = math.exp %804 : vector<4x32xf32>
    %cst_240 = arith.constant 1.000000e+00 : f32
    %806 = vector.broadcast %cst_240 : f32 to vector<4x32xf32>
    %807 = arith.addf %806, %805 : vector<4x32xf32>
    %808 = arith.divf %806, %807 : vector<4x32xf32>
    %809 = vector.extract_strided_slice %802 {offsets = [0, 32], sizes = [4, 32], strides = [1, 1]} : vector<4x128xf32> to vector<4x32xf32>
    %810 = arith.negf %809 : vector<4x32xf32>
    %811 = math.exp %810 : vector<4x32xf32>
    %cst_241 = arith.constant 1.000000e+00 : f32
    %812 = vector.broadcast %cst_241 : f32 to vector<4x32xf32>
    %813 = arith.addf %812, %811 : vector<4x32xf32>
    %814 = arith.divf %812, %813 : vector<4x32xf32>
    %815 = vector.extract_strided_slice %802 {offsets = [0, 64], sizes = [4, 32], strides = [1, 1]} : vector<4x128xf32> to vector<4x32xf32>
    %816 = math.tanh %815 : vector<4x32xf32>
    %817 = vector.extract_strided_slice %802 {offsets = [0, 96], sizes = [4, 32], strides = [1, 1]} : vector<4x128xf32> to vector<4x32xf32>
    %818 = arith.negf %817 : vector<4x32xf32>
    %819 = math.exp %818 : vector<4x32xf32>
    %cst_242 = arith.constant 1.000000e+00 : f32
    %820 = vector.broadcast %cst_242 : f32 to vector<4x32xf32>
    %821 = arith.addf %820, %819 : vector<4x32xf32>
    %822 = arith.divf %820, %821 : vector<4x32xf32>
    %823 = arith.mulf %814, %794 : vector<4x32xf32>
    %824 = arith.mulf %808, %816 : vector<4x32xf32>
    %825 = arith.addf %823, %824 : vector<4x32xf32>
    %826 = math.tanh %825 : vector<4x32xf32>
    %827 = arith.mulf %822, %826 : vector<4x32xf32>
    %828 = vector.extract_strided_slice %763 {offsets = [8, 0], sizes = [4, 128], strides = [1, 1]} : vector<16x128xf32> to vector<4x128xf32>
    %829 = arith.truncf %827 : vector<4x32xf32> to vector<4x32xbf16>
    %c1_243 = arith.constant 1 : index
    %c0_244 = arith.constant 0 : index
    %c0_245 = arith.constant 0 : index
    %830 = vector.load %arg24[%c1_243, %c0_244, %c0_245] : memref<3x32x128xbf16, #tpu.memory_space<vmem>>, vector<1x32x128xbf16>
    %831 = vector.shape_cast %830 : vector<1x32x128xbf16> to vector<32x128xbf16>
    %cst_246 = arith.constant dense<0.000000e+00> : vector<4x128xf32>
    %832 = tpu.matmul %829, %831, %cst_246 {dimension_numbers = #tpu.dot_dimension_numbers<[1], [0], [0], [1], [0, 0, 1, 1], [], []>} : vector<4x32xbf16>, vector<32x128xbf16>, vector<4x128xf32> -> vector<4x128xf32>
    %833 = arith.addf %828, %832 : vector<4x128xf32>
    %834 = vector.extract_strided_slice %833 {offsets = [0, 0], sizes = [4, 32], strides = [1, 1]} : vector<4x128xf32> to vector<4x32xf32>
    %835 = arith.negf %834 : vector<4x32xf32>
    %836 = math.exp %835 : vector<4x32xf32>
    %cst_247 = arith.constant 1.000000e+00 : f32
    %837 = vector.broadcast %cst_247 : f32 to vector<4x32xf32>
    %838 = arith.addf %837, %836 : vector<4x32xf32>
    %839 = arith.divf %837, %838 : vector<4x32xf32>
    %840 = vector.extract_strided_slice %833 {offsets = [0, 32], sizes = [4, 32], strides = [1, 1]} : vector<4x128xf32> to vector<4x32xf32>
    %841 = arith.negf %840 : vector<4x32xf32>
    %842 = math.exp %841 : vector<4x32xf32>
    %cst_248 = arith.constant 1.000000e+00 : f32
    %843 = vector.broadcast %cst_248 : f32 to vector<4x32xf32>
    %844 = arith.addf %843, %842 : vector<4x32xf32>
    %845 = arith.divf %843, %844 : vector<4x32xf32>
    %846 = vector.extract_strided_slice %833 {offsets = [0, 64], sizes = [4, 32], strides = [1, 1]} : vector<4x128xf32> to vector<4x32xf32>
    %847 = math.tanh %846 : vector<4x32xf32>
    %848 = vector.extract_strided_slice %833 {offsets = [0, 96], sizes = [4, 32], strides = [1, 1]} : vector<4x128xf32> to vector<4x32xf32>
    %849 = arith.negf %848 : vector<4x32xf32>
    %850 = math.exp %849 : vector<4x32xf32>
    %cst_249 = arith.constant 1.000000e+00 : f32
    %851 = vector.broadcast %cst_249 : f32 to vector<4x32xf32>
    %852 = arith.addf %851, %850 : vector<4x32xf32>
    %853 = arith.divf %851, %852 : vector<4x32xf32>
    %854 = arith.mulf %845, %825 : vector<4x32xf32>
    %855 = arith.mulf %839, %847 : vector<4x32xf32>
    %856 = arith.addf %854, %855 : vector<4x32xf32>
    %857 = math.tanh %856 : vector<4x32xf32>
    %858 = arith.mulf %853, %857 : vector<4x32xf32>
    %859 = vector.extract_strided_slice %763 {offsets = [12, 0], sizes = [4, 128], strides = [1, 1]} : vector<16x128xf32> to vector<4x128xf32>
    %860 = arith.truncf %858 : vector<4x32xf32> to vector<4x32xbf16>
    %c1_250 = arith.constant 1 : index
    %c0_251 = arith.constant 0 : index
    %c0_252 = arith.constant 0 : index
    %861 = vector.load %arg24[%c1_250, %c0_251, %c0_252] : memref<3x32x128xbf16, #tpu.memory_space<vmem>>, vector<1x32x128xbf16>
    %862 = vector.shape_cast %861 : vector<1x32x128xbf16> to vector<32x128xbf16>
    %cst_253 = arith.constant dense<0.000000e+00> : vector<4x128xf32>
    %863 = tpu.matmul %860, %862, %cst_253 {dimension_numbers = #tpu.dot_dimension_numbers<[1], [0], [0], [1], [0, 0, 1, 1], [], []>} : vector<4x32xbf16>, vector<32x128xbf16>, vector<4x128xf32> -> vector<4x128xf32>
    %864 = arith.addf %859, %863 : vector<4x128xf32>
    %865 = vector.extract_strided_slice %864 {offsets = [0, 0], sizes = [4, 32], strides = [1, 1]} : vector<4x128xf32> to vector<4x32xf32>
    %866 = arith.negf %865 : vector<4x32xf32>
    %867 = math.exp %866 : vector<4x32xf32>
    %cst_254 = arith.constant 1.000000e+00 : f32
    %868 = vector.broadcast %cst_254 : f32 to vector<4x32xf32>
    %869 = arith.addf %868, %867 : vector<4x32xf32>
    %870 = arith.divf %868, %869 : vector<4x32xf32>
    %871 = vector.extract_strided_slice %864 {offsets = [0, 32], sizes = [4, 32], strides = [1, 1]} : vector<4x128xf32> to vector<4x32xf32>
    %872 = arith.negf %871 : vector<4x32xf32>
    %873 = math.exp %872 : vector<4x32xf32>
    %cst_255 = arith.constant 1.000000e+00 : f32
    %874 = vector.broadcast %cst_255 : f32 to vector<4x32xf32>
    %875 = arith.addf %874, %873 : vector<4x32xf32>
    %876 = arith.divf %874, %875 : vector<4x32xf32>
    %877 = vector.extract_strided_slice %864 {offsets = [0, 64], sizes = [4, 32], strides = [1, 1]} : vector<4x128xf32> to vector<4x32xf32>
    %878 = math.tanh %877 : vector<4x32xf32>
    %879 = vector.extract_strided_slice %864 {offsets = [0, 96], sizes = [4, 32], strides = [1, 1]} : vector<4x128xf32> to vector<4x32xf32>
    %880 = arith.negf %879 : vector<4x32xf32>
    %881 = math.exp %880 : vector<4x32xf32>
    %cst_256 = arith.constant 1.000000e+00 : f32
    %882 = vector.broadcast %cst_256 : f32 to vector<4x32xf32>
    %883 = arith.addf %882, %881 : vector<4x32xf32>
    %884 = arith.divf %882, %883 : vector<4x32xf32>
    %885 = arith.mulf %876, %856 : vector<4x32xf32>
    %886 = arith.mulf %870, %878 : vector<4x32xf32>
    %887 = arith.addf %885, %886 : vector<4x32xf32>
    %888 = math.tanh %887 : vector<4x32xf32>
    %889 = arith.mulf %884, %888 : vector<4x32xf32>
    %c0_257 = arith.constant 0 : index
    %c0_258 = arith.constant 0 : index
    %890 = vector.load %arg19[%c0_257, %c0_258] : memref<8x8xbf16, #tpu.memory_space<vmem>>, vector<8x8xbf16>
    %c2 = arith.constant 2 : index
    %c0_259 = arith.constant 0 : index
    %c0_260 = arith.constant 0 : index
    %891 = vector.load %arg20[%c2, %c0_259, %c0_260] : memref<3x8x128xbf16, #tpu.memory_space<vmem>>, vector<1x8x128xbf16>
    %892 = vector.shape_cast %891 : vector<1x8x128xbf16> to vector<8x128xbf16>
    %cst_261 = arith.constant dense<0.000000e+00> : vector<8x128xf32>
    %893 = tpu.matmul %890, %892, %cst_261 {dimension_numbers = #tpu.dot_dimension_numbers<[1], [0], [0], [1], [0, 0, 1, 1], [], []>} : vector<8x8xbf16>, vector<8x128xbf16>, vector<8x128xf32> -> vector<8x128xf32>
    %c2_262 = arith.constant 2 : index
    %c0_263 = arith.constant 0 : index
    %c0_264 = arith.constant 0 : index
    %894 = vector.load %arg22[%c2_262, %c0_263, %c0_264] : memref<3x1x128xf32, #tpu.memory_space<vmem>>, vector<1x1x128xf32>
    %895 = vector.shape_cast %894 : vector<1x1x128xf32> to vector<1x128xf32>
    %896 = vector.broadcast %895 : vector<1x128xf32> to vector<8x128xf32>
    %897 = arith.addf %893, %896 : vector<8x128xf32>
    %cst_265 = arith.constant 0.000000e+00 : f32
    %898 = vector.broadcast %cst_265 : f32 to vector<4x32xf32>
    %cst_266 = arith.constant 0.000000e+00 : f32
    %899 = vector.broadcast %cst_266 : f32 to vector<4x32xf32>
    %900 = vector.extract_strided_slice %897 {offsets = [0, 0], sizes = [4, 128], strides = [1, 1]} : vector<8x128xf32> to vector<4x128xf32>
    %901 = arith.truncf %898 : vector<4x32xf32> to vector<4x32xbf16>
    %c2_267 = arith.constant 2 : index
    %c0_268 = arith.constant 0 : index
    %c0_269 = arith.constant 0 : index
    %902 = vector.load %arg21[%c2_267, %c0_268, %c0_269] : memref<3x32x128xbf16, #tpu.memory_space<vmem>>, vector<1x32x128xbf16>
    %903 = vector.shape_cast %902 : vector<1x32x128xbf16> to vector<32x128xbf16>
    %cst_270 = arith.constant dense<0.000000e+00> : vector<4x128xf32>
    %904 = tpu.matmul %901, %903, %cst_270 {dimension_numbers = #tpu.dot_dimension_numbers<[1], [0], [0], [1], [0, 0, 1, 1], [], []>} : vector<4x32xbf16>, vector<32x128xbf16>, vector<4x128xf32> -> vector<4x128xf32>
    %905 = arith.addf %900, %904 : vector<4x128xf32>
    %906 = vector.extract_strided_slice %905 {offsets = [0, 0], sizes = [4, 32], strides = [1, 1]} : vector<4x128xf32> to vector<4x32xf32>
    %907 = arith.negf %906 : vector<4x32xf32>
    %908 = math.exp %907 : vector<4x32xf32>
    %cst_271 = arith.constant 1.000000e+00 : f32
    %909 = vector.broadcast %cst_271 : f32 to vector<4x32xf32>
    %910 = arith.addf %909, %908 : vector<4x32xf32>
    %911 = arith.divf %909, %910 : vector<4x32xf32>
    %912 = vector.extract_strided_slice %905 {offsets = [0, 32], sizes = [4, 32], strides = [1, 1]} : vector<4x128xf32> to vector<4x32xf32>
    %913 = arith.negf %912 : vector<4x32xf32>
    %914 = math.exp %913 : vector<4x32xf32>
    %cst_272 = arith.constant 1.000000e+00 : f32
    %915 = vector.broadcast %cst_272 : f32 to vector<4x32xf32>
    %916 = arith.addf %915, %914 : vector<4x32xf32>
    %917 = arith.divf %915, %916 : vector<4x32xf32>
    %918 = vector.extract_strided_slice %905 {offsets = [0, 64], sizes = [4, 32], strides = [1, 1]} : vector<4x128xf32> to vector<4x32xf32>
    %919 = math.tanh %918 : vector<4x32xf32>
    %920 = vector.extract_strided_slice %905 {offsets = [0, 96], sizes = [4, 32], strides = [1, 1]} : vector<4x128xf32> to vector<4x32xf32>
    %921 = arith.negf %920 : vector<4x32xf32>
    %922 = math.exp %921 : vector<4x32xf32>
    %cst_273 = arith.constant 1.000000e+00 : f32
    %923 = vector.broadcast %cst_273 : f32 to vector<4x32xf32>
    %924 = arith.addf %923, %922 : vector<4x32xf32>
    %925 = arith.divf %923, %924 : vector<4x32xf32>
    %926 = arith.mulf %917, %899 : vector<4x32xf32>
    %927 = arith.mulf %911, %919 : vector<4x32xf32>
    %928 = arith.addf %926, %927 : vector<4x32xf32>
    %929 = math.tanh %928 : vector<4x32xf32>
    %930 = arith.mulf %925, %929 : vector<4x32xf32>
    %931 = vector.extract_strided_slice %897 {offsets = [4, 0], sizes = [4, 128], strides = [1, 1]} : vector<8x128xf32> to vector<4x128xf32>
    %932 = arith.truncf %930 : vector<4x32xf32> to vector<4x32xbf16>
    %c2_274 = arith.constant 2 : index
    %c0_275 = arith.constant 0 : index
    %c0_276 = arith.constant 0 : index
    %933 = vector.load %arg21[%c2_274, %c0_275, %c0_276] : memref<3x32x128xbf16, #tpu.memory_space<vmem>>, vector<1x32x128xbf16>
    %934 = vector.shape_cast %933 : vector<1x32x128xbf16> to vector<32x128xbf16>
    %cst_277 = arith.constant dense<0.000000e+00> : vector<4x128xf32>
    %935 = tpu.matmul %932, %934, %cst_277 {dimension_numbers = #tpu.dot_dimension_numbers<[1], [0], [0], [1], [0, 0, 1, 1], [], []>} : vector<4x32xbf16>, vector<32x128xbf16>, vector<4x128xf32> -> vector<4x128xf32>
    %936 = arith.addf %931, %935 : vector<4x128xf32>
    %937 = vector.extract_strided_slice %936 {offsets = [0, 0], sizes = [4, 32], strides = [1, 1]} : vector<4x128xf32> to vector<4x32xf32>
    %938 = arith.negf %937 : vector<4x32xf32>
    %939 = math.exp %938 : vector<4x32xf32>
    %cst_278 = arith.constant 1.000000e+00 : f32
    %940 = vector.broadcast %cst_278 : f32 to vector<4x32xf32>
    %941 = arith.addf %940, %939 : vector<4x32xf32>
    %942 = arith.divf %940, %941 : vector<4x32xf32>
    %943 = vector.extract_strided_slice %936 {offsets = [0, 32], sizes = [4, 32], strides = [1, 1]} : vector<4x128xf32> to vector<4x32xf32>
    %944 = arith.negf %943 : vector<4x32xf32>
    %945 = math.exp %944 : vector<4x32xf32>
    %cst_279 = arith.constant 1.000000e+00 : f32
    %946 = vector.broadcast %cst_279 : f32 to vector<4x32xf32>
    %947 = arith.addf %946, %945 : vector<4x32xf32>
    %948 = arith.divf %946, %947 : vector<4x32xf32>
    %949 = vector.extract_strided_slice %936 {offsets = [0, 64], sizes = [4, 32], strides = [1, 1]} : vector<4x128xf32> to vector<4x32xf32>
    %950 = math.tanh %949 : vector<4x32xf32>
    %951 = vector.extract_strided_slice %936 {offsets = [0, 96], sizes = [4, 32], strides = [1, 1]} : vector<4x128xf32> to vector<4x32xf32>
    %952 = arith.negf %951 : vector<4x32xf32>
    %953 = math.exp %952 : vector<4x32xf32>
    %cst_280 = arith.constant 1.000000e+00 : f32
    %954 = vector.broadcast %cst_280 : f32 to vector<4x32xf32>
    %955 = arith.addf %954, %953 : vector<4x32xf32>
    %956 = arith.divf %954, %955 : vector<4x32xf32>
    %957 = arith.mulf %948, %928 : vector<4x32xf32>
    %958 = arith.mulf %942, %950 : vector<4x32xf32>
    %959 = arith.addf %957, %958 : vector<4x32xf32>
    %960 = math.tanh %959 : vector<4x32xf32>
    %961 = arith.mulf %956, %960 : vector<4x32xf32>
    %962 = tpu.concatenate %930, %961 in 0 : vector<4x32xf32>, vector<4x32xf32> -> vector<8x32xf32>
    %963 = arith.truncf %962 : vector<8x32xf32> to vector<8x32xbf16>
    %c2_281 = arith.constant 2 : index
    %c0_282 = arith.constant 0 : index
    %c0_283 = arith.constant 0 : index
    %964 = vector.load %arg23[%c2_281, %c0_282, %c0_283] : memref<3x32x128xbf16, #tpu.memory_space<vmem>>, vector<1x32x128xbf16>
    %965 = vector.shape_cast %964 : vector<1x32x128xbf16> to vector<32x128xbf16>
    %cst_284 = arith.constant dense<0.000000e+00> : vector<8x128xf32>
    %966 = tpu.matmul %963, %965, %cst_284 {dimension_numbers = #tpu.dot_dimension_numbers<[1], [0], [0], [1], [0, 0, 1, 1], [], []>} : vector<8x32xbf16>, vector<32x128xbf16>, vector<8x128xf32> -> vector<8x128xf32>
    %c2_285 = arith.constant 2 : index
    %c0_286 = arith.constant 0 : index
    %c0_287 = arith.constant 0 : index
    %967 = vector.load %arg25[%c2_285, %c0_286, %c0_287] : memref<3x1x128xf32, #tpu.memory_space<vmem>>, vector<1x1x128xf32>
    %968 = vector.shape_cast %967 : vector<1x1x128xf32> to vector<1x128xf32>
    %969 = vector.broadcast %968 : vector<1x128xf32> to vector<8x128xf32>
    %970 = arith.addf %966, %969 : vector<8x128xf32>
    %cst_288 = arith.constant 0.000000e+00 : f32
    %971 = vector.broadcast %cst_288 : f32 to vector<4x32xf32>
    %cst_289 = arith.constant 0.000000e+00 : f32
    %972 = vector.broadcast %cst_289 : f32 to vector<4x32xf32>
    %973 = vector.extract_strided_slice %970 {offsets = [0, 0], sizes = [4, 128], strides = [1, 1]} : vector<8x128xf32> to vector<4x128xf32>
    %974 = arith.truncf %971 : vector<4x32xf32> to vector<4x32xbf16>
    %c2_290 = arith.constant 2 : index
    %c0_291 = arith.constant 0 : index
    %c0_292 = arith.constant 0 : index
    %975 = vector.load %arg24[%c2_290, %c0_291, %c0_292] : memref<3x32x128xbf16, #tpu.memory_space<vmem>>, vector<1x32x128xbf16>
    %976 = vector.shape_cast %975 : vector<1x32x128xbf16> to vector<32x128xbf16>
    %cst_293 = arith.constant dense<0.000000e+00> : vector<4x128xf32>
    %977 = tpu.matmul %974, %976, %cst_293 {dimension_numbers = #tpu.dot_dimension_numbers<[1], [0], [0], [1], [0, 0, 1, 1], [], []>} : vector<4x32xbf16>, vector<32x128xbf16>, vector<4x128xf32> -> vector<4x128xf32>
    %978 = arith.addf %973, %977 : vector<4x128xf32>
    %979 = vector.extract_strided_slice %978 {offsets = [0, 0], sizes = [4, 32], strides = [1, 1]} : vector<4x128xf32> to vector<4x32xf32>
    %980 = arith.negf %979 : vector<4x32xf32>
    %981 = math.exp %980 : vector<4x32xf32>
    %cst_294 = arith.constant 1.000000e+00 : f32
    %982 = vector.broadcast %cst_294 : f32 to vector<4x32xf32>
    %983 = arith.addf %982, %981 : vector<4x32xf32>
    %984 = arith.divf %982, %983 : vector<4x32xf32>
    %985 = vector.extract_strided_slice %978 {offsets = [0, 32], sizes = [4, 32], strides = [1, 1]} : vector<4x128xf32> to vector<4x32xf32>
    %986 = arith.negf %985 : vector<4x32xf32>
    %987 = math.exp %986 : vector<4x32xf32>
    %cst_295 = arith.constant 1.000000e+00 : f32
    %988 = vector.broadcast %cst_295 : f32 to vector<4x32xf32>
    %989 = arith.addf %988, %987 : vector<4x32xf32>
    %990 = arith.divf %988, %989 : vector<4x32xf32>
    %991 = vector.extract_strided_slice %978 {offsets = [0, 64], sizes = [4, 32], strides = [1, 1]} : vector<4x128xf32> to vector<4x32xf32>
    %992 = math.tanh %991 : vector<4x32xf32>
    %993 = vector.extract_strided_slice %978 {offsets = [0, 96], sizes = [4, 32], strides = [1, 1]} : vector<4x128xf32> to vector<4x32xf32>
    %994 = arith.negf %993 : vector<4x32xf32>
    %995 = math.exp %994 : vector<4x32xf32>
    %cst_296 = arith.constant 1.000000e+00 : f32
    %996 = vector.broadcast %cst_296 : f32 to vector<4x32xf32>
    %997 = arith.addf %996, %995 : vector<4x32xf32>
    %998 = arith.divf %996, %997 : vector<4x32xf32>
    %999 = arith.mulf %990, %972 : vector<4x32xf32>
    %1000 = arith.mulf %984, %992 : vector<4x32xf32>
    %1001 = arith.addf %999, %1000 : vector<4x32xf32>
    %1002 = math.tanh %1001 : vector<4x32xf32>
    %1003 = arith.mulf %998, %1002 : vector<4x32xf32>
    %1004 = vector.extract_strided_slice %970 {offsets = [4, 0], sizes = [4, 128], strides = [1, 1]} : vector<8x128xf32> to vector<4x128xf32>
    %1005 = arith.truncf %1003 : vector<4x32xf32> to vector<4x32xbf16>
    %c2_297 = arith.constant 2 : index
    %c0_298 = arith.constant 0 : index
    %c0_299 = arith.constant 0 : index
    %1006 = vector.load %arg24[%c2_297, %c0_298, %c0_299] : memref<3x32x128xbf16, #tpu.memory_space<vmem>>, vector<1x32x128xbf16>
    %1007 = vector.shape_cast %1006 : vector<1x32x128xbf16> to vector<32x128xbf16>
    %cst_300 = arith.constant dense<0.000000e+00> : vector<4x128xf32>
    %1008 = tpu.matmul %1005, %1007, %cst_300 {dimension_numbers = #tpu.dot_dimension_numbers<[1], [0], [0], [1], [0, 0, 1, 1], [], []>} : vector<4x32xbf16>, vector<32x128xbf16>, vector<4x128xf32> -> vector<4x128xf32>
    %1009 = arith.addf %1004, %1008 : vector<4x128xf32>
    %1010 = vector.extract_strided_slice %1009 {offsets = [0, 0], sizes = [4, 32], strides = [1, 1]} : vector<4x128xf32> to vector<4x32xf32>
    %1011 = arith.negf %1010 : vector<4x32xf32>
    %1012 = math.exp %1011 : vector<4x32xf32>
    %cst_301 = arith.constant 1.000000e+00 : f32
    %1013 = vector.broadcast %cst_301 : f32 to vector<4x32xf32>
    %1014 = arith.addf %1013, %1012 : vector<4x32xf32>
    %1015 = arith.divf %1013, %1014 : vector<4x32xf32>
    %1016 = vector.extract_strided_slice %1009 {offsets = [0, 32], sizes = [4, 32], strides = [1, 1]} : vector<4x128xf32> to vector<4x32xf32>
    %1017 = arith.negf %1016 : vector<4x32xf32>
    %1018 = math.exp %1017 : vector<4x32xf32>
    %cst_302 = arith.constant 1.000000e+00 : f32
    %1019 = vector.broadcast %cst_302 : f32 to vector<4x32xf32>
    %1020 = arith.addf %1019, %1018 : vector<4x32xf32>
    %1021 = arith.divf %1019, %1020 : vector<4x32xf32>
    %1022 = vector.extract_strided_slice %1009 {offsets = [0, 64], sizes = [4, 32], strides = [1, 1]} : vector<4x128xf32> to vector<4x32xf32>
    %1023 = math.tanh %1022 : vector<4x32xf32>
    %1024 = vector.extract_strided_slice %1009 {offsets = [0, 96], sizes = [4, 32], strides = [1, 1]} : vector<4x128xf32> to vector<4x32xf32>
    %1025 = arith.negf %1024 : vector<4x32xf32>
    %1026 = math.exp %1025 : vector<4x32xf32>
    %cst_303 = arith.constant 1.000000e+00 : f32
    %1027 = vector.broadcast %cst_303 : f32 to vector<4x32xf32>
    %1028 = arith.addf %1027, %1026 : vector<4x32xf32>
    %1029 = arith.divf %1027, %1028 : vector<4x32xf32>
    %1030 = arith.mulf %1021, %1001 : vector<4x32xf32>
    %1031 = arith.mulf %1015, %1023 : vector<4x32xf32>
    %1032 = arith.addf %1030, %1031 : vector<4x32xf32>
    %1033 = math.tanh %1032 : vector<4x32xf32>
    %1034 = arith.mulf %1029, %1033 : vector<4x32xf32>
    %1035 = tpu.concatenate %620, %889, %1034 in 0 : vector<4x32xf32>, vector<4x32xf32>, vector<4x32xf32> -> vector<12x32xf32>
    %1036 = arith.truncf %1035 : vector<12x32xf32> to vector<12x32xbf16>
    %c0_304 = arith.constant 0 : index
    %c0_305 = arith.constant 0 : index
    %1037 = vector.load %arg26[%c0_304, %c0_305] : memref<32x96xbf16, #tpu.memory_space<vmem>>, vector<32x96xbf16>
    %cst_306 = arith.constant dense<0.000000e+00> : vector<12x96xf32>
    %1038 = tpu.matmul %1036, %1037, %cst_306 {dimension_numbers = #tpu.dot_dimension_numbers<[1], [0], [0], [1], [0, 0, 1, 1], [], []>} : vector<12x32xbf16>, vector<32x96xbf16>, vector<12x96xf32> -> vector<12x96xf32>
    %c0_307 = arith.constant 0 : index
    %c0_308 = arith.constant 0 : index
    %1039 = vector.load %arg27[%c0_307, %c0_308] : memref<1x96xf32, #tpu.memory_space<vmem>>, vector<1x96xf32>
    %1040 = vector.broadcast %1039 : vector<1x96xf32> to vector<12x96xf32>
    %1041 = arith.addf %1038, %1040 : vector<12x96xf32>
    %1042 = vector.extract_strided_slice %1041 {offsets = [0, 0], sizes = [4, 96], strides = [1, 1]} : vector<12x96xf32> to vector<4x96xf32>
    %1043 = vector.extract_strided_slice %1042 {offsets = [0, 0], sizes = [4, 16], strides = [1, 1]} : vector<4x96xf32> to vector<4x16xf32>
    %1044 = vector.extract_strided_slice %1042 {offsets = [0, 32], sizes = [4, 16], strides = [1, 1]} : vector<4x96xf32> to vector<4x16xf32>
    %1045 = vector.extract_strided_slice %1042 {offsets = [0, 64], sizes = [4, 16], strides = [1, 1]} : vector<4x96xf32> to vector<4x16xf32>
    %1046 = arith.truncf %1043 : vector<4x16xf32> to vector<4x16xbf16>
    %1047 = tpu.transpose %1044, [1, 0] : vector<4x16xf32> -> vector<16x4xf32>
    %1048 = arith.truncf %1047 : vector<16x4xf32> to vector<16x4xbf16>
    %cst_309 = arith.constant dense<0.000000e+00> : vector<4x4xf32>
    %1049 = tpu.matmul %1046, %1048, %cst_309 {dimension_numbers = #tpu.dot_dimension_numbers<[1], [0], [0], [1], [0, 0, 1, 1], [], []>} : vector<4x16xbf16>, vector<16x4xbf16>, vector<4x4xf32> -> vector<4x4xf32>
    %cst_310 = arith.constant 2.500000e-01 : f32
    %1050 = vector.broadcast %cst_310 : f32 to vector<4x4xf32>
    %1051 = arith.mulf %1049, %1050 : vector<4x4xf32>
    %cst_311 = arith.constant dense<0xFF800000> : vector<4xf32>
    %1052 = vector.multi_reduction <maximumf>, %1051, %cst_311 [1] : vector<4x4xf32> to vector<4xf32>
    %1053 = vector.shape_cast %1052 : vector<4xf32> to vector<4x1xf32>
    %1054 = vector.broadcast %1053 : vector<4x1xf32> to vector<4x4xf32>
    %1055 = arith.subf %1051, %1054 : vector<4x4xf32>
    %1056 = math.exp %1055 : vector<4x4xf32>
    %cst_312 = arith.constant dense<0.000000e+00> : vector<4xf32>
    %1057 = vector.multi_reduction <add>, %1056, %cst_312 [1] : vector<4x4xf32> to vector<4xf32>
    %1058 = vector.shape_cast %1057 : vector<4xf32> to vector<4x1xf32>
    %1059 = vector.broadcast %1058 : vector<4x1xf32> to vector<4x4xf32>
    %1060 = arith.divf %1056, %1059 : vector<4x4xf32>
    %1061 = arith.truncf %1060 : vector<4x4xf32> to vector<4x4xbf16>
    %1062 = arith.truncf %1045 : vector<4x16xf32> to vector<4x16xbf16>
    %cst_313 = arith.constant dense<0.000000e+00> : vector<4x16xf32>
    %1063 = tpu.matmul %1061, %1062, %cst_313 {dimension_numbers = #tpu.dot_dimension_numbers<[1], [0], [0], [1], [0, 0, 1, 1], [], []>} : vector<4x4xbf16>, vector<4x16xbf16>, vector<4x16xf32> -> vector<4x16xf32>
    %1064 = vector.extract_strided_slice %1042 {offsets = [0, 16], sizes = [4, 16], strides = [1, 1]} : vector<4x96xf32> to vector<4x16xf32>
    %1065 = vector.extract_strided_slice %1042 {offsets = [0, 48], sizes = [4, 16], strides = [1, 1]} : vector<4x96xf32> to vector<4x16xf32>
    %1066 = vector.extract_strided_slice %1042 {offsets = [0, 80], sizes = [4, 16], strides = [1, 1]} : vector<4x96xf32> to vector<4x16xf32>
    %1067 = arith.truncf %1064 : vector<4x16xf32> to vector<4x16xbf16>
    %1068 = tpu.transpose %1065, [1, 0] : vector<4x16xf32> -> vector<16x4xf32>
    %1069 = arith.truncf %1068 : vector<16x4xf32> to vector<16x4xbf16>
    %cst_314 = arith.constant dense<0.000000e+00> : vector<4x4xf32>
    %1070 = tpu.matmul %1067, %1069, %cst_314 {dimension_numbers = #tpu.dot_dimension_numbers<[1], [0], [0], [1], [0, 0, 1, 1], [], []>} : vector<4x16xbf16>, vector<16x4xbf16>, vector<4x4xf32> -> vector<4x4xf32>
    %cst_315 = arith.constant 2.500000e-01 : f32
    %1071 = vector.broadcast %cst_315 : f32 to vector<4x4xf32>
    %1072 = arith.mulf %1070, %1071 : vector<4x4xf32>
    %cst_316 = arith.constant dense<0xFF800000> : vector<4xf32>
    %1073 = vector.multi_reduction <maximumf>, %1072, %cst_316 [1] : vector<4x4xf32> to vector<4xf32>
    %1074 = vector.shape_cast %1073 : vector<4xf32> to vector<4x1xf32>
    %1075 = vector.broadcast %1074 : vector<4x1xf32> to vector<4x4xf32>
    %1076 = arith.subf %1072, %1075 : vector<4x4xf32>
    %1077 = math.exp %1076 : vector<4x4xf32>
    %cst_317 = arith.constant dense<0.000000e+00> : vector<4xf32>
    %1078 = vector.multi_reduction <add>, %1077, %cst_317 [1] : vector<4x4xf32> to vector<4xf32>
    %1079 = vector.shape_cast %1078 : vector<4xf32> to vector<4x1xf32>
    %1080 = vector.broadcast %1079 : vector<4x1xf32> to vector<4x4xf32>
    %1081 = arith.divf %1077, %1080 : vector<4x4xf32>
    %1082 = arith.truncf %1081 : vector<4x4xf32> to vector<4x4xbf16>
    %1083 = arith.truncf %1066 : vector<4x16xf32> to vector<4x16xbf16>
    %cst_318 = arith.constant dense<0.000000e+00> : vector<4x16xf32>
    %1084 = tpu.matmul %1082, %1083, %cst_318 {dimension_numbers = #tpu.dot_dimension_numbers<[1], [0], [0], [1], [0, 0, 1, 1], [], []>} : vector<4x4xbf16>, vector<4x16xbf16>, vector<4x16xf32> -> vector<4x16xf32>
    %1085 = tpu.concatenate %1063, %1084 in 1 : vector<4x16xf32>, vector<4x16xf32> -> vector<4x32xf32>
    %1086 = vector.extract_strided_slice %1041 {offsets = [4, 0], sizes = [4, 96], strides = [1, 1]} : vector<12x96xf32> to vector<4x96xf32>
    %1087 = vector.extract_strided_slice %1086 {offsets = [0, 0], sizes = [4, 16], strides = [1, 1]} : vector<4x96xf32> to vector<4x16xf32>
    %1088 = vector.extract_strided_slice %1086 {offsets = [0, 32], sizes = [4, 16], strides = [1, 1]} : vector<4x96xf32> to vector<4x16xf32>
    %1089 = vector.extract_strided_slice %1086 {offsets = [0, 64], sizes = [4, 16], strides = [1, 1]} : vector<4x96xf32> to vector<4x16xf32>
    %1090 = arith.truncf %1087 : vector<4x16xf32> to vector<4x16xbf16>
    %1091 = tpu.transpose %1088, [1, 0] : vector<4x16xf32> -> vector<16x4xf32>
    %1092 = arith.truncf %1091 : vector<16x4xf32> to vector<16x4xbf16>
    %cst_319 = arith.constant dense<0.000000e+00> : vector<4x4xf32>
    %1093 = tpu.matmul %1090, %1092, %cst_319 {dimension_numbers = #tpu.dot_dimension_numbers<[1], [0], [0], [1], [0, 0, 1, 1], [], []>} : vector<4x16xbf16>, vector<16x4xbf16>, vector<4x4xf32> -> vector<4x4xf32>
    %cst_320 = arith.constant 2.500000e-01 : f32
    %1094 = vector.broadcast %cst_320 : f32 to vector<4x4xf32>
    %1095 = arith.mulf %1093, %1094 : vector<4x4xf32>
    %cst_321 = arith.constant dense<0xFF800000> : vector<4xf32>
    %1096 = vector.multi_reduction <maximumf>, %1095, %cst_321 [1] : vector<4x4xf32> to vector<4xf32>
    %1097 = vector.shape_cast %1096 : vector<4xf32> to vector<4x1xf32>
    %1098 = vector.broadcast %1097 : vector<4x1xf32> to vector<4x4xf32>
    %1099 = arith.subf %1095, %1098 : vector<4x4xf32>
    %1100 = math.exp %1099 : vector<4x4xf32>
    %cst_322 = arith.constant dense<0.000000e+00> : vector<4xf32>
    %1101 = vector.multi_reduction <add>, %1100, %cst_322 [1] : vector<4x4xf32> to vector<4xf32>
    %1102 = vector.shape_cast %1101 : vector<4xf32> to vector<4x1xf32>
    %1103 = vector.broadcast %1102 : vector<4x1xf32> to vector<4x4xf32>
    %1104 = arith.divf %1100, %1103 : vector<4x4xf32>
    %1105 = arith.truncf %1104 : vector<4x4xf32> to vector<4x4xbf16>
    %1106 = arith.truncf %1089 : vector<4x16xf32> to vector<4x16xbf16>
    %cst_323 = arith.constant dense<0.000000e+00> : vector<4x16xf32>
    %1107 = tpu.matmul %1105, %1106, %cst_323 {dimension_numbers = #tpu.dot_dimension_numbers<[1], [0], [0], [1], [0, 0, 1, 1], [], []>} : vector<4x4xbf16>, vector<4x16xbf16>, vector<4x16xf32> -> vector<4x16xf32>
    %1108 = vector.extract_strided_slice %1086 {offsets = [0, 16], sizes = [4, 16], strides = [1, 1]} : vector<4x96xf32> to vector<4x16xf32>
    %1109 = vector.extract_strided_slice %1086 {offsets = [0, 48], sizes = [4, 16], strides = [1, 1]} : vector<4x96xf32> to vector<4x16xf32>
    %1110 = vector.extract_strided_slice %1086 {offsets = [0, 80], sizes = [4, 16], strides = [1, 1]} : vector<4x96xf32> to vector<4x16xf32>
    %1111 = arith.truncf %1108 : vector<4x16xf32> to vector<4x16xbf16>
    %1112 = tpu.transpose %1109, [1, 0] : vector<4x16xf32> -> vector<16x4xf32>
    %1113 = arith.truncf %1112 : vector<16x4xf32> to vector<16x4xbf16>
    %cst_324 = arith.constant dense<0.000000e+00> : vector<4x4xf32>
    %1114 = tpu.matmul %1111, %1113, %cst_324 {dimension_numbers = #tpu.dot_dimension_numbers<[1], [0], [0], [1], [0, 0, 1, 1], [], []>} : vector<4x16xbf16>, vector<16x4xbf16>, vector<4x4xf32> -> vector<4x4xf32>
    %cst_325 = arith.constant 2.500000e-01 : f32
    %1115 = vector.broadcast %cst_325 : f32 to vector<4x4xf32>
    %1116 = arith.mulf %1114, %1115 : vector<4x4xf32>
    %cst_326 = arith.constant dense<0xFF800000> : vector<4xf32>
    %1117 = vector.multi_reduction <maximumf>, %1116, %cst_326 [1] : vector<4x4xf32> to vector<4xf32>
    %1118 = vector.shape_cast %1117 : vector<4xf32> to vector<4x1xf32>
    %1119 = vector.broadcast %1118 : vector<4x1xf32> to vector<4x4xf32>
    %1120 = arith.subf %1116, %1119 : vector<4x4xf32>
    %1121 = math.exp %1120 : vector<4x4xf32>
    %cst_327 = arith.constant dense<0.000000e+00> : vector<4xf32>
    %1122 = vector.multi_reduction <add>, %1121, %cst_327 [1] : vector<4x4xf32> to vector<4xf32>
    %1123 = vector.shape_cast %1122 : vector<4xf32> to vector<4x1xf32>
    %1124 = vector.broadcast %1123 : vector<4x1xf32> to vector<4x4xf32>
    %1125 = arith.divf %1121, %1124 : vector<4x4xf32>
    %1126 = arith.truncf %1125 : vector<4x4xf32> to vector<4x4xbf16>
    %1127 = arith.truncf %1110 : vector<4x16xf32> to vector<4x16xbf16>
    %cst_328 = arith.constant dense<0.000000e+00> : vector<4x16xf32>
    %1128 = tpu.matmul %1126, %1127, %cst_328 {dimension_numbers = #tpu.dot_dimension_numbers<[1], [0], [0], [1], [0, 0, 1, 1], [], []>} : vector<4x4xbf16>, vector<4x16xbf16>, vector<4x16xf32> -> vector<4x16xf32>
    %1129 = tpu.concatenate %1107, %1128 in 1 : vector<4x16xf32>, vector<4x16xf32> -> vector<4x32xf32>
    %1130 = vector.extract_strided_slice %1041 {offsets = [8, 0], sizes = [4, 96], strides = [1, 1]} : vector<12x96xf32> to vector<4x96xf32>
    %1131 = vector.extract_strided_slice %1130 {offsets = [0, 0], sizes = [4, 16], strides = [1, 1]} : vector<4x96xf32> to vector<4x16xf32>
    %1132 = vector.extract_strided_slice %1130 {offsets = [0, 32], sizes = [4, 16], strides = [1, 1]} : vector<4x96xf32> to vector<4x16xf32>
    %1133 = vector.extract_strided_slice %1130 {offsets = [0, 64], sizes = [4, 16], strides = [1, 1]} : vector<4x96xf32> to vector<4x16xf32>
    %1134 = arith.truncf %1131 : vector<4x16xf32> to vector<4x16xbf16>
    %1135 = tpu.transpose %1132, [1, 0] : vector<4x16xf32> -> vector<16x4xf32>
    %1136 = arith.truncf %1135 : vector<16x4xf32> to vector<16x4xbf16>
    %cst_329 = arith.constant dense<0.000000e+00> : vector<4x4xf32>
    %1137 = tpu.matmul %1134, %1136, %cst_329 {dimension_numbers = #tpu.dot_dimension_numbers<[1], [0], [0], [1], [0, 0, 1, 1], [], []>} : vector<4x16xbf16>, vector<16x4xbf16>, vector<4x4xf32> -> vector<4x4xf32>
    %cst_330 = arith.constant 2.500000e-01 : f32
    %1138 = vector.broadcast %cst_330 : f32 to vector<4x4xf32>
    %1139 = arith.mulf %1137, %1138 : vector<4x4xf32>
    %cst_331 = arith.constant dense<0xFF800000> : vector<4xf32>
    %1140 = vector.multi_reduction <maximumf>, %1139, %cst_331 [1] : vector<4x4xf32> to vector<4xf32>
    %1141 = vector.shape_cast %1140 : vector<4xf32> to vector<4x1xf32>
    %1142 = vector.broadcast %1141 : vector<4x1xf32> to vector<4x4xf32>
    %1143 = arith.subf %1139, %1142 : vector<4x4xf32>
    %1144 = math.exp %1143 : vector<4x4xf32>
    %cst_332 = arith.constant dense<0.000000e+00> : vector<4xf32>
    %1145 = vector.multi_reduction <add>, %1144, %cst_332 [1] : vector<4x4xf32> to vector<4xf32>
    %1146 = vector.shape_cast %1145 : vector<4xf32> to vector<4x1xf32>
    %1147 = vector.broadcast %1146 : vector<4x1xf32> to vector<4x4xf32>
    %1148 = arith.divf %1144, %1147 : vector<4x4xf32>
    %1149 = arith.truncf %1148 : vector<4x4xf32> to vector<4x4xbf16>
    %1150 = arith.truncf %1133 : vector<4x16xf32> to vector<4x16xbf16>
    %cst_333 = arith.constant dense<0.000000e+00> : vector<4x16xf32>
    %1151 = tpu.matmul %1149, %1150, %cst_333 {dimension_numbers = #tpu.dot_dimension_numbers<[1], [0], [0], [1], [0, 0, 1, 1], [], []>} : vector<4x4xbf16>, vector<4x16xbf16>, vector<4x16xf32> -> vector<4x16xf32>
    %1152 = vector.extract_strided_slice %1130 {offsets = [0, 16], sizes = [4, 16], strides = [1, 1]} : vector<4x96xf32> to vector<4x16xf32>
    %1153 = vector.extract_strided_slice %1130 {offsets = [0, 48], sizes = [4, 16], strides = [1, 1]} : vector<4x96xf32> to vector<4x16xf32>
    %1154 = vector.extract_strided_slice %1130 {offsets = [0, 80], sizes = [4, 16], strides = [1, 1]} : vector<4x96xf32> to vector<4x16xf32>
    %1155 = arith.truncf %1152 : vector<4x16xf32> to vector<4x16xbf16>
    %1156 = tpu.transpose %1153, [1, 0] : vector<4x16xf32> -> vector<16x4xf32>
    %1157 = arith.truncf %1156 : vector<16x4xf32> to vector<16x4xbf16>
    %cst_334 = arith.constant dense<0.000000e+00> : vector<4x4xf32>
    %1158 = tpu.matmul %1155, %1157, %cst_334 {dimension_numbers = #tpu.dot_dimension_numbers<[1], [0], [0], [1], [0, 0, 1, 1], [], []>} : vector<4x16xbf16>, vector<16x4xbf16>, vector<4x4xf32> -> vector<4x4xf32>
    %cst_335 = arith.constant 2.500000e-01 : f32
    %1159 = vector.broadcast %cst_335 : f32 to vector<4x4xf32>
    %1160 = arith.mulf %1158, %1159 : vector<4x4xf32>
    %cst_336 = arith.constant dense<0xFF800000> : vector<4xf32>
    %1161 = vector.multi_reduction <maximumf>, %1160, %cst_336 [1] : vector<4x4xf32> to vector<4xf32>
    %1162 = vector.shape_cast %1161 : vector<4xf32> to vector<4x1xf32>
    %1163 = vector.broadcast %1162 : vector<4x1xf32> to vector<4x4xf32>
    %1164 = arith.subf %1160, %1163 : vector<4x4xf32>
    %1165 = math.exp %1164 : vector<4x4xf32>
    %cst_337 = arith.constant dense<0.000000e+00> : vector<4xf32>
    %1166 = vector.multi_reduction <add>, %1165, %cst_337 [1] : vector<4x4xf32> to vector<4xf32>
    %1167 = vector.shape_cast %1166 : vector<4xf32> to vector<4x1xf32>
    %1168 = vector.broadcast %1167 : vector<4x1xf32> to vector<4x4xf32>
    %1169 = arith.divf %1165, %1168 : vector<4x4xf32>
    %1170 = arith.truncf %1169 : vector<4x4xf32> to vector<4x4xbf16>
    %1171 = arith.truncf %1154 : vector<4x16xf32> to vector<4x16xbf16>
    %cst_338 = arith.constant dense<0.000000e+00> : vector<4x16xf32>
    %1172 = tpu.matmul %1170, %1171, %cst_338 {dimension_numbers = #tpu.dot_dimension_numbers<[1], [0], [0], [1], [0, 0, 1, 1], [], []>} : vector<4x4xbf16>, vector<4x16xbf16>, vector<4x16xf32> -> vector<4x16xf32>
    %1173 = tpu.concatenate %1151, %1172 in 1 : vector<4x16xf32>, vector<4x16xf32> -> vector<4x32xf32>
    %1174 = tpu.concatenate %1085, %1129, %1173 in 0 : vector<4x32xf32>, vector<4x32xf32>, vector<4x32xf32> -> vector<12x32xf32>
    %1175 = arith.truncf %1174 : vector<12x32xf32> to vector<12x32xbf16>
    %c0_339 = arith.constant 0 : index
    %c0_340 = arith.constant 0 : index
    %1176 = vector.load %arg28[%c0_339, %c0_340] : memref<32x32xbf16, #tpu.memory_space<vmem>>, vector<32x32xbf16>
    %cst_341 = arith.constant dense<0.000000e+00> : vector<12x32xf32>
    %1177 = tpu.matmul %1175, %1176, %cst_341 {dimension_numbers = #tpu.dot_dimension_numbers<[1], [0], [0], [1], [0, 0, 1, 1], [], []>} : vector<12x32xbf16>, vector<32x32xbf16>, vector<12x32xf32> -> vector<12x32xf32>
    %c0_342 = arith.constant 0 : index
    %c0_343 = arith.constant 0 : index
    %1178 = vector.load %arg29[%c0_342, %c0_343] : memref<1x32xf32, #tpu.memory_space<vmem>>, vector<1x32xf32>
    %1179 = vector.broadcast %1178 : vector<1x32xf32> to vector<12x32xf32>
    %1180 = arith.addf %1177, %1179 : vector<12x32xf32>
    %1181 = vector.extract_strided_slice %1180 {offsets = [0, 0], sizes = [4, 32], strides = [1, 1]} : vector<12x32xf32> to vector<4x32xf32>
    %1182 = vector.extract_strided_slice %1180 {offsets = [4, 0], sizes = [4, 32], strides = [1, 1]} : vector<12x32xf32> to vector<4x32xf32>
    %1183 = vector.extract_strided_slice %1180 {offsets = [8, 0], sizes = [4, 32], strides = [1, 1]} : vector<12x32xf32> to vector<4x32xf32>
    %1184 = tpu.concatenate %1181, %1182, %1183 in 1 : vector<4x32xf32>, vector<4x32xf32>, vector<4x32xf32> -> vector<4x96xf32>
    %1185 = arith.truncf %1184 : vector<4x96xf32> to vector<4x96xbf16>
    %c0_344 = arith.constant 0 : index
    %c0_345 = arith.constant 0 : index
    %1186 = vector.load %arg30[%c0_344, %c0_345] : memref<96x64xbf16, #tpu.memory_space<vmem>>, vector<96x64xbf16>
    %cst_346 = arith.constant dense<0.000000e+00> : vector<4x64xf32>
    %1187 = tpu.matmul %1185, %1186, %cst_346 {dimension_numbers = #tpu.dot_dimension_numbers<[1], [0], [0], [1], [0, 0, 1, 1], [], []>} : vector<4x96xbf16>, vector<96x64xbf16>, vector<4x64xf32> -> vector<4x64xf32>
    %c0_347 = arith.constant 0 : index
    %c0_348 = arith.constant 0 : index
    %1188 = vector.load %arg31[%c0_347, %c0_348] : memref<1x64xf32, #tpu.memory_space<vmem>>, vector<1x64xf32>
    %1189 = vector.broadcast %1188 : vector<1x64xf32> to vector<4x64xf32>
    %1190 = arith.addf %1187, %1189 : vector<4x64xf32>
    %cst_349 = arith.constant 0.000000e+00 : f32
    %1191 = vector.broadcast %cst_349 : f32 to vector<4x64xf32>
    %1192 = arith.maximumf %1190, %1191 : vector<4x64xf32>
    %1193 = arith.truncf %1192 : vector<4x64xf32> to vector<4x64xbf16>
    %c0_350 = arith.constant 0 : index
    %c0_351 = arith.constant 0 : index
    %1194 = vector.load %arg32[%c0_350, %c0_351] : memref<64x8xbf16, #tpu.memory_space<vmem>>, vector<64x8xbf16>
    %cst_352 = arith.constant dense<0.000000e+00> : vector<4x8xf32>
    %1195 = tpu.matmul %1193, %1194, %cst_352 {dimension_numbers = #tpu.dot_dimension_numbers<[1], [0], [0], [1], [0, 0, 1, 1], [], []>} : vector<4x64xbf16>, vector<64x8xbf16>, vector<4x8xf32> -> vector<4x8xf32>
    %c0_353 = arith.constant 0 : index
    %c0_354 = arith.constant 0 : index
    %1196 = vector.load %arg33[%c0_353, %c0_354] : memref<1x8xf32, #tpu.memory_space<vmem>>, vector<1x8xf32>
    %1197 = vector.broadcast %1196 : vector<1x8xf32> to vector<4x8xf32>
    %1198 = arith.addf %1195, %1197 : vector<4x8xf32>
    %c0_355 = arith.constant 0 : index
    %c0_356 = arith.constant 0 : index
    %1199 = vector.load %arg35[%c0_355, %c0_356] : memref<4x8xf32, #tpu.memory_space<vmem>>, vector<4x8xf32>
    tpu.vector_store %arg35[%c0_355, %c0_356], %1198 {strides = array<i32>} : memref<4x8xf32, #tpu.memory_space<vmem>>, vector<4x8xf32>,
    return
  }
  func.func @transform_0(%arg0: i32) -> (i32, i32) {
    %c0_i32 = arith.constant 0 : i32
    %c0_i32_0 = arith.constant 0 : i32
    %c0_i32_1 = arith.constant 0 : i32
    return %c0_i32, %c0_i32_0 : i32, i32
  }
  func.func @transform_1(%arg0: i32) -> (i32, i32) {
    %c0_i32 = arith.constant 0 : i32
    %c0_i32_0 = arith.constant 0 : i32
    %c0_i32_1 = arith.constant 0 : i32
    return %c0_i32, %c0_i32_0 : i32, i32
  }
  func.func @transform_2(%arg0: i32) -> (i32, i32) {
    %c0_i32 = arith.constant 0 : i32
    %c0_i32_0 = arith.constant 0 : i32
    %c0_i32_1 = arith.constant 0 : i32
    return %c0_i32, %c0_i32_0 : i32, i32
  }
  func.func @transform_3(%arg0: i32) -> (i32, i32) {
    %c0_i32 = arith.constant 0 : i32
    %c0_i32_0 = arith.constant 0 : i32
    %c0_i32_1 = arith.constant 0 : i32
    return %c0_i32, %c0_i32_0 : i32, i32
  }
  func.func @transform_4(%arg0: i32) -> (i32, i32) {
    %c0_i32 = arith.constant 0 : i32
    %c0_i32_0 = arith.constant 0 : i32
    %c0_i32_1 = arith.constant 0 : i32
    return %c0_i32, %c0_i32_0 : i32, i32
  }
  func.func @transform_5(%arg0: i32) -> (i32, i32) {
    %c0_i32 = arith.constant 0 : i32
    %c0_i32_0 = arith.constant 0 : i32
    %c0_i32_1 = arith.constant 0 : i32
    return %c0_i32, %c0_i32_0 : i32, i32
  }
  func.func @transform_6(%arg0: i32) -> (i32, i32) {
    %c0_i32 = arith.constant 0 : i32
    %c0_i32_0 = arith.constant 0 : i32
    %c0_i32_1 = arith.constant 0 : i32
    return %c0_i32, %c0_i32_0 : i32, i32
  }
  func.func @transform_7(%arg0: i32) -> (i32, i32) {
    %c0_i32 = arith.constant 0 : i32
    %c0_i32_0 = arith.constant 0 : i32
    %c0_i32_1 = arith.constant 0 : i32
    return %c0_i32, %c0_i32_0 : i32, i32
  }
  func.func @transform_8(%arg0: i32) -> (i32, i32) {
    %c0_i32 = arith.constant 0 : i32
    %c0_i32_0 = arith.constant 0 : i32
    %c0_i32_1 = arith.constant 0 : i32
    return %c0_i32, %c0_i32_0 : i32, i32
  }
  func.func @transform_9(%arg0: i32) -> (i32, i32) {
    %c0_i32 = arith.constant 0 : i32
    %c0_i32_0 = arith.constant 0 : i32
    %c0_i32_1 = arith.constant 0 : i32
    return %c0_i32, %c0_i32_0 : i32, i32
  }
  func.func @transform_10(%arg0: i32) -> (i32, i32) {
    %c0_i32 = arith.constant 0 : i32
    %c0_i32_0 = arith.constant 0 : i32
    %c0_i32_1 = arith.constant 0 : i32
    return %c0_i32, %c0_i32_0 : i32, i32
  }
  func.func @transform_11(%arg0: i32) -> (i32, i32) {
    %c0_i32 = arith.constant 0 : i32
    %c0_i32_0 = arith.constant 0 : i32
    %c0_i32_1 = arith.constant 0 : i32
    return %c0_i32, %c0_i32_0 : i32, i32
  }
  func.func @transform_12(%arg0: i32) -> (i32, i32) {
    %c0_i32 = arith.constant 0 : i32
    %c0_i32_0 = arith.constant 0 : i32
    %c0_i32_1 = arith.constant 0 : i32
    return %c0_i32, %c0_i32_0 : i32, i32
  }
  func.func @transform_13(%arg0: i32) -> (i32, i32) {
    %c0_i32 = arith.constant 0 : i32
    %c0_i32_0 = arith.constant 0 : i32
    %c0_i32_1 = arith.constant 0 : i32
    return %c0_i32, %c0_i32_0 : i32, i32
  }
  func.func @transform_14(%arg0: i32) -> (i32, i32) {
    %c0_i32 = arith.constant 0 : i32
    %c0_i32_0 = arith.constant 0 : i32
    %c0_i32_1 = arith.constant 0 : i32
    return %c0_i32, %c0_i32_0 : i32, i32
  }
  func.func @transform_15(%arg0: i32) -> (i32, i32) {
    %c0_i32 = arith.constant 0 : i32
    %c0_i32_0 = arith.constant 0 : i32
    %c0_i32_1 = arith.constant 0 : i32
    return %c0_i32, %c0_i32_0 : i32, i32
  }
  func.func @transform_16(%arg0: i32) -> (i32, i32) {
    %c0_i32 = arith.constant 0 : i32
    %c0_i32_0 = arith.constant 0 : i32
    %c0_i32_1 = arith.constant 0 : i32
    return %c0_i32, %c0_i32_0 : i32, i32
  }
  func.func @transform_17(%arg0: i32) -> (i32, i32) {
    %c0_i32 = arith.constant 0 : i32
    %c0_i32_0 = arith.constant 0 : i32
    %c0_i32_1 = arith.constant 0 : i32
    return %c0_i32, %c0_i32_0 : i32, i32
  }
  func.func @transform_18(%arg0: i32) -> (i32, i32) {
    %c0_i32 = arith.constant 0 : i32
    %c0_i32_0 = arith.constant 0 : i32
    %c0_i32_1 = arith.constant 0 : i32
    return %c0_i32, %c0_i32_0 : i32, i32
  }
  func.func @transform_19(%arg0: i32) -> (i32, i32, i32) {
    %c0_i32 = arith.constant 0 : i32
    %c0_i32_0 = arith.constant 0 : i32
    %c0_i32_1 = arith.constant 0 : i32
    %c0_i32_2 = arith.constant 0 : i32
    return %c0_i32, %c0_i32_0, %c0_i32_1 : i32, i32, i32
  }
  func.func @transform_20(%arg0: i32) -> (i32, i32, i32) {
    %c0_i32 = arith.constant 0 : i32
    %c0_i32_0 = arith.constant 0 : i32
    %c0_i32_1 = arith.constant 0 : i32
    %c0_i32_2 = arith.constant 0 : i32
    return %c0_i32, %c0_i32_0, %c0_i32_1 : i32, i32, i32
  }
  func.func @transform_21(%arg0: i32) -> (i32, i32, i32) {
    %c0_i32 = arith.constant 0 : i32
    %c0_i32_0 = arith.constant 0 : i32
    %c0_i32_1 = arith.constant 0 : i32
    %c0_i32_2 = arith.constant 0 : i32
    return %c0_i32, %c0_i32_0, %c0_i32_1 : i32, i32, i32
  }
  func.func @transform_22(%arg0: i32) -> (i32, i32, i32) {
    %c0_i32 = arith.constant 0 : i32
    %c0_i32_0 = arith.constant 0 : i32
    %c0_i32_1 = arith.constant 0 : i32
    %c0_i32_2 = arith.constant 0 : i32
    return %c0_i32, %c0_i32_0, %c0_i32_1 : i32, i32, i32
  }
  func.func @transform_23(%arg0: i32) -> (i32, i32, i32) {
    %c0_i32 = arith.constant 0 : i32
    %c0_i32_0 = arith.constant 0 : i32
    %c0_i32_1 = arith.constant 0 : i32
    %c0_i32_2 = arith.constant 0 : i32
    return %c0_i32, %c0_i32_0, %c0_i32_1 : i32, i32, i32
  }
  func.func @transform_24(%arg0: i32) -> (i32, i32, i32) {
    %c0_i32 = arith.constant 0 : i32
    %c0_i32_0 = arith.constant 0 : i32
    %c0_i32_1 = arith.constant 0 : i32
    %c0_i32_2 = arith.constant 0 : i32
    return %c0_i32, %c0_i32_0, %c0_i32_1 : i32, i32, i32
  }
  func.func @transform_25(%arg0: i32) -> (i32, i32) {
    %c0_i32 = arith.constant 0 : i32
    %c0_i32_0 = arith.constant 0 : i32
    %c0_i32_1 = arith.constant 0 : i32
    return %c0_i32, %c0_i32_0 : i32, i32
  }
  func.func @transform_26(%arg0: i32) -> (i32, i32) {
    %c0_i32 = arith.constant 0 : i32
    %c0_i32_0 = arith.constant 0 : i32
    %c0_i32_1 = arith.constant 0 : i32
    return %c0_i32, %c0_i32_0 : i32, i32
  }
  func.func @transform_27(%arg0: i32) -> (i32, i32) {
    %c0_i32 = arith.constant 0 : i32
    %c0_i32_0 = arith.constant 0 : i32
    %c0_i32_1 = arith.constant 0 : i32
    return %c0_i32, %c0_i32_0 : i32, i32
  }
  func.func @transform_28(%arg0: i32) -> (i32, i32) {
    %c0_i32 = arith.constant 0 : i32
    %c0_i32_0 = arith.constant 0 : i32
    %c0_i32_1 = arith.constant 0 : i32
    return %c0_i32, %c0_i32_0 : i32, i32
  }
  func.func @transform_29(%arg0: i32) -> (i32, i32) {
    %c0_i32 = arith.constant 0 : i32
    %c0_i32_0 = arith.constant 0 : i32
    %c0_i32_1 = arith.constant 0 : i32
    return %c0_i32, %c0_i32_0 : i32, i32
  }
  func.func @transform_30(%arg0: i32) -> (i32, i32) {
    %c0_i32 = arith.constant 0 : i32
    %c0_i32_0 = arith.constant 0 : i32
    %c0_i32_1 = arith.constant 0 : i32
    return %c0_i32, %c0_i32_0 : i32, i32
  }
  func.func @transform_31(%arg0: i32) -> (i32, i32) {
    %c0_i32 = arith.constant 0 : i32
    %c0_i32_0 = arith.constant 0 : i32
    %c0_i32_1 = arith.constant 0 : i32
    return %c0_i32, %c0_i32_0 : i32, i32
  }
  func.func @transform_32(%arg0: i32) -> (i32, i32) {
    %c0_i32 = arith.constant 0 : i32
    %c0_i32_0 = arith.constant 0 : i32
    %c0_i32_1 = arith.constant 0 : i32
    return %c0_i32, %c0_i32_0 : i32, i32
  }
  func.func @transform_33(%arg0: i32) -> (i32, i32) {
    %c0_i32 = arith.constant 0 : i32
    %c0_i32_0 = arith.constant 0 : i32
    %c0_i32_1 = arith.constant 0 : i32
    return %c0_i32, %c0_i32_0 : i32, i32
  }
  func.func @transform_34(%arg0: i32) -> (i32, i32) {
    %c0_i32 = arith.constant 0 : i32
    %c0_i32_0 = arith.constant 0 : i32
    %c0_i32_1 = arith.constant 0 : i32
    return %c0_i32, %c0_i32_0 : i32, i32
  }
}

</mosaic_0001>

<llo_original>
// kernel: decoder_forward.1
$region0: #{decoder_forward.1}
  #allocation0 [shape = 'u32[]', space=smem, size = 0x4, offset = 0x4, fixed_abs, tag = 'smem constant byte address 0x4 - core index']
  #allocation1 [shape = 'u32[144,128]{1,0:T(1,128)}', space=vmem, size = 0x12000, scoped, tag = 'internal scratch']
  #allocation2 [shape = 'f32[1,1]{1,0:T(1,128)S(1)}', space=vmem, size = 0x200, scoped, tag = 'scoped memory for decoder_forward.1']
  %s0 = inlined_call_operand.smem [shape: u32[35], index: -1, kind: input, shape index: {}]
  %s1 = sld [smem:[%s0]]
  %s2 = scalar_lea.smem %s0, 1
  %s3 = sld [smem:[%s2]]
  %s4 = scalar_lea.smem %s0, 2
  %s5 = sld [smem:[%s4]]
  %s6 = scalar_lea.smem %s0, 3
  %s7 = sld [smem:[%s6]]
  %s8 = scalar_lea.smem %s0, 4
  %s9 = sld [smem:[%s8]]
  %s10 = scalar_lea.smem %s0, 5
  %s11 = sld [smem:[%s10]]
  %s12 = scalar_lea.smem %s0, 6
  %s13 = sld [smem:[%s12]]
  %s14 = scalar_lea.smem %s0, 7
  %s15 = sld [smem:[%s14]]
  %s16 = scalar_lea.smem %s0, 8
  %s17 = sld [smem:[%s16]]
  %s18 = scalar_lea.smem %s0, 9
  %s19 = sld [smem:[%s18]]
  %s20 = scalar_lea.smem %s0, 10
  %s21 = sld [smem:[%s20]]
  %s22 = scalar_lea.smem %s0, 11
  %s23 = sld [smem:[%s22]]
  %s24 = scalar_lea.smem %s0, 12
  %s25 = sld [smem:[%s24]]
  %s26 = scalar_lea.smem %s0, 13
  %s27 = sld [smem:[%s26]]
  %s28 = scalar_lea.smem %s0, 14
  %s29 = sld [smem:[%s28]]
  %s30 = scalar_lea.smem %s0, 15
  %s31 = sld [smem:[%s30]]
  %s32 = scalar_lea.smem %s0, 16
  %s33 = sld [smem:[%s32]]
  %s34 = scalar_lea.smem %s0, 17
  %s35 = sld [smem:[%s34]]
  %s36 = scalar_lea.smem %s0, 18
  %s37 = sld [smem:[%s36]]
  %s38 = scalar_lea.smem %s0, 19
  %s39 = sld [smem:[%s38]]
  %s40 = scalar_lea.smem %s0, 20
  %s41 = sld [smem:[%s40]]
  %s42 = scalar_lea.smem %s0, 21
  %s43 = sld [smem:[%s42]]
  %s44 = scalar_lea.smem %s0, 22
  %s45 = sld [smem:[%s44]]
  %s46 = scalar_lea.smem %s0, 23
  %s47 = sld [smem:[%s46]]
  %s48 = scalar_lea.smem %s0, 24
  %s49 = sld [smem:[%s48]]
  %s50 = scalar_lea.smem %s0, 25
  %s51 = sld [smem:[%s50]]
  %s52 = scalar_lea.smem %s0, 26
  %s53 = sld [smem:[%s52]]
  %s54 = scalar_lea.smem %s0, 27
  %s55 = sld [smem:[%s54]]
  %s56 = scalar_lea.smem %s0, 28
  %s57 = sld [smem:[%s56]]
  %s58 = scalar_lea.smem %s0, 29
  %s59 = sld [smem:[%s58]]
  %s60 = scalar_lea.smem %s0, 30
  %s61 = sld [smem:[%s60]]
  %s62 = scalar_lea.smem %s0, 31
  %s63 = sld [smem:[%s62]]
  %s64 = scalar_lea.smem %s0, 32
  %s65 = sld [smem:[%s64]]
  %s66 = scalar_lea.smem %s0, 33
  %s67 = sld [smem:[%s66]]
  %s68 = scalar_lea.smem %s0, 34
  %s69 = sld [smem:[%s68]]
  %70 = xla_tuple %s67, %s69
  %s71 = sld [smem:[#allocation0]]
  $region150: #{decoder_forward.1} parent=0
    _
  %s73 = ssub.s32 1, %s71
  %s74 = scalar_select 0, %s73, %s71
  %v75 = vstv %s27
  %76 = vst [vmem:[#allocation2] sm:$0x1] %v75
  $region1: #{decoder_forward.1} parent=0
    #allocation3 [shape = 'u8[2048]{0}', space=vmem, size = 0x800, scoped, tag = 'output window, operand 0, single buffered']
    #allocation4 [shape = 's32[1]{0}', space=sflag, size = 0x4, scoped, tag = 'scoped memory for decoder_forward.1']
    #allocation5 [shape = 'u8[2048]{0}', space=vmem, size = 0x800, scoped, tag = 'output window, operand 1, single buffered']
    #allocation6 [shape = 's32[1]{0}', space=sflag, size = 0x4, scoped, tag = 'scoped memory for decoder_forward.1']
    %77 = vsyncpa [#allocation4], 0
    %78 = vsyncpa [#allocation6], 0
    // Predicated region
    $region2: #{decoder_forward.1} parent=1 // pred_check
      _
    $region3: #{decoder_forward.1} parent=1 // pred_check_branch
      %80 = sbr.rel (0) target = $region5
    $region4: #{decoder_forward.1} parent=1 // pred_region
      _
    $region5: #{decoder_forward.1} parent=1 // pred_fallthru
      _
    // Predicated region
    $region6: #{decoder_forward.1} parent=1 // pred_check
      _
    $region7: #{decoder_forward.1} parent=1 // pred_check_branch
      %82 = sbr.rel (0) target = $region9
    $region8: #{decoder_forward.1} parent=1 // pred_region
      _
    $region9: #{decoder_forward.1} parent=1 // pred_fallthru
      _
    // Predicated region
    $region10: #{decoder_forward.1} parent=1 // pred_check
      _
    $region11: #{decoder_forward.1} parent=1 // pred_check_branch
      %84 = sbr.rel (0) target = $region13
    $region12: #{decoder_forward.1} parent=1 // pred_region
      _
    $region13: #{decoder_forward.1} parent=1 // pred_fallthru
      _
    // Predicated region
    $region14: #{decoder_forward.1} parent=1 // pred_check
      _
    $region15: #{decoder_forward.1} parent=1 // pred_check_branch
      %86 = sbr.rel (0) target = $region17
    $region16: #{decoder_forward.1} parent=1 // pred_region
      _
    $region17: #{decoder_forward.1} parent=1 // pred_fallthru
      _
    // Predicated region
    $region18: #{decoder_forward.1} parent=1 // pred_check
      _
    $region19: #{decoder_forward.1} parent=1 // pred_check_branch
      %88 = sbr.rel (0) target = $region21
    $region20: #{decoder_forward.1} parent=1 // pred_region
      _
    $region21: #{decoder_forward.1} parent=1 // pred_fallthru
      _
    // Predicated region
    $region22: #{decoder_forward.1} parent=1 // pred_check
      _
    $region23: #{decoder_forward.1} parent=1 // pred_check_branch
      %90 = sbr.rel (0) target = $region25
    $region24: #{decoder_forward.1} parent=1 // pred_region
      _
    $region25: #{decoder_forward.1} parent=1 // pred_fallthru
      _
    // Predicated region
    $region26: #{decoder_forward.1} parent=1 // pred_check
      _
    $region27: #{decoder_forward.1} parent=1 // pred_check_branch
      %92 = sbr.rel (0) target = $region29
    $region28: #{decoder_forward.1} parent=1 // pred_region
      _
    $region29: #{decoder_forward.1} parent=1 // pred_fallthru
      _
    // Predicated region
    $region30: #{decoder_forward.1} parent=1 // pred_check
      _
    $region31: #{decoder_forward.1} parent=1 // pred_check_branch
      %94 = sbr.rel (0) target = $region33
    $region32: #{decoder_forward.1} parent=1 // pred_region
      _
    $region33: #{decoder_forward.1} parent=1 // pred_fallthru
      _
    // Predicated region
    $region34: #{decoder_forward.1} parent=1 // pred_check
      _
    $region35: #{decoder_forward.1} parent=1 // pred_check_branch
      %96 = sbr.rel (0) target = $region37
    $region36: #{decoder_forward.1} parent=1 // pred_region
      _
    $region37: #{decoder_forward.1} parent=1 // pred_fallthru
      _
    // Predicated region
    $region38: #{decoder_forward.1} parent=1 // pred_check
      _
    $region39: #{decoder_forward.1} parent=1 // pred_check_branch
      %98 = sbr.rel (0) target = $region41
    $region40: #{decoder_forward.1} parent=1 // pred_region
      _
    $region41: #{decoder_forward.1} parent=1 // pred_fallthru
      _
    // Predicated region
    $region42: #{decoder_forward.1} parent=1 // pred_check
      _
    $region43: #{decoder_forward.1} parent=1 // pred_check_branch
      %100 = sbr.rel (0) target = $region45
    $region44: #{decoder_forward.1} parent=1 // pred_region
      _
    $region45: #{decoder_forward.1} parent=1 // pred_fallthru
      _
    // Predicated region
    $region46: #{decoder_forward.1} parent=1 // pred_check
      _
    $region47: #{decoder_forward.1} parent=1 // pred_check_branch
      %102 = sbr.rel (0) target = $region49
    $region48: #{decoder_forward.1} parent=1 // pred_region
      _
    $region49: #{decoder_forward.1} parent=1 // pred_fallthru
      _
    // Predicated region
    $region50: #{decoder_forward.1} parent=1 // pred_check
      _
    $region51: #{decoder_forward.1} parent=1 // pred_check_branch
      %104 = sbr.rel (0) target = $region53
    $region52: #{decoder_forward.1} parent=1 // pred_region
      _
    $region53: #{decoder_forward.1} parent=1 // pred_fallthru
      _
    // Predicated region
    $region54: #{decoder_forward.1} parent=1 // pred_check
      _
    $region55: #{decoder_forward.1} parent=1 // pred_check_branch
      %106 = sbr.rel (0) target = $region57
    $region56: #{decoder_forward.1} parent=1 // pred_region
      _
    $region57: #{decoder_forward.1} parent=1 // pred_fallthru
      _
    // Predicated region
    $region58: #{decoder_forward.1} parent=1 // pred_check
      _
    $region59: #{decoder_forward.1} parent=1 // pred_check_branch
      %108 = sbr.rel (0) target = $region61
    $region60: #{decoder_forward.1} parent=1 // pred_region
      _
    $region61: #{decoder_forward.1} parent=1 // pred_fallthru
      _
    // Predicated region
    $region62: #{decoder_forward.1} parent=1 // pred_check
      _
    $region63: #{decoder_forward.1} parent=1 // pred_check_branch
      %110 = sbr.rel (0) target = $region65
    $region64: #{decoder_forward.1} parent=1 // pred_region
      _
    $region65: #{decoder_forward.1} parent=1 // pred_fallthru
      _
    // Predicated region
    $region66: #{decoder_forward.1} parent=1 // pred_check
      _
    $region67: #{decoder_forward.1} parent=1 // pred_check_branch
      %112 = sbr.rel (0) target = $region69
    $region68: #{decoder_forward.1} parent=1 // pred_region
      _
    $region69: #{decoder_forward.1} parent=1 // pred_fallthru
      _
    // Predicated region
    $region70: #{decoder_forward.1} parent=1 // pred_check
      _
    $region71: #{decoder_forward.1} parent=1 // pred_check_branch
      %114 = sbr.rel (0) target = $region73
    $region72: #{decoder_forward.1} parent=1 // pred_region
      _
    $region73: #{decoder_forward.1} parent=1 // pred_fallthru
      _
    // Predicated region
    $region74: #{decoder_forward.1} parent=1 // pred_check
      _
    $region75: #{decoder_forward.1} parent=1 // pred_check_branch
      %116 = sbr.rel (0) target = $region77
    $region76: #{decoder_forward.1} parent=1 // pred_region
      _
    $region77: #{decoder_forward.1} parent=1 // pred_fallthru
      _
    // Predicated region
    $region78: #{decoder_forward.1} parent=1 // pred_check
      _
    $region79: #{decoder_forward.1} parent=1 // pred_check_branch
      %118 = sbr.rel (0) target = $region81
    $region80: #{decoder_forward.1} parent=1 // pred_region
      _
    $region81: #{decoder_forward.1} parent=1 // pred_fallthru
      _
    // Predicated region
    $region82: #{decoder_forward.1} parent=1 // pred_check
      _
    $region83: #{decoder_forward.1} parent=1 // pred_check_branch
      %120 = sbr.rel (0) target = $region85
    $region84: #{decoder_forward.1} parent=1 // pred_region
      _
    $region85: #{decoder_forward.1} parent=1 // pred_fallthru
      _
    // Predicated region
    $region86: #{decoder_forward.1} parent=1 // pred_check
      _
    $region87: #{decoder_forward.1} parent=1 // pred_check_branch
      %122 = sbr.rel (0) target = $region89
    $region88: #{decoder_forward.1} parent=1 // pred_region
      _
    $region89: #{decoder_forward.1} parent=1 // pred_fallthru
      _
    // Predicated region
    $region90: #{decoder_forward.1} parent=1 // pred_check
      _
    $region91: #{decoder_forward.1} parent=1 // pred_check_branch
      %124 = sbr.rel (0) target = $region93
    $region92: #{decoder_forward.1} parent=1 // pred_region
      _
    $region93: #{decoder_forward.1} parent=1 // pred_fallthru
      _
    // Predicated region
    $region94: #{decoder_forward.1} parent=1 // pred_check
      _
    $region95: #{decoder_forward.1} parent=1 // pred_check_branch
      %126 = sbr.rel (0) target = $region97
    $region96: #{decoder_forward.1} parent=1 // pred_region
      _
    $region97: #{decoder_forward.1} parent=1 // pred_fallthru
      _
    // Predicated region
    $region98: #{decoder_forward.1} parent=1 // pred_check
      _
    $region99: #{decoder_forward.1} parent=1 // pred_check_branch
      %128 = sbr.rel (0) target = $region101
    $region100: #{decoder_forward.1} parent=1 // pred_region
      _
    $region101: #{decoder_forward.1} parent=1 // pred_fallthru
      _
    // Predicated region
    $region102: #{decoder_forward.1} parent=1 // pred_check
      _
    $region103: #{decoder_forward.1} parent=1 // pred_check_branch
      %130 = sbr.rel (0) target = $region105
    $region104: #{decoder_forward.1} parent=1 // pred_region
      _
    $region105: #{decoder_forward.1} parent=1 // pred_fallthru
      _
    // Predicated region
    $region106: #{decoder_forward.1} parent=1 // pred_check
      _
    $region107: #{decoder_forward.1} parent=1 // pred_check_branch
      %132 = sbr.rel (0) target = $region109
    $region108: #{decoder_forward.1} parent=1 // pred_region
      _
    $region109: #{decoder_forward.1} parent=1 // pred_fallthru
      _
    // Predicated region
    $region110: #{decoder_forward.1} parent=1 // pred_check
      _
    $region111: #{decoder_forward.1} parent=1 // pred_check_branch
      %134 = sbr.rel (0) target = $region113
    $region112: #{decoder_forward.1} parent=1 // pred_region
      _
    $region113: #{decoder_forward.1} parent=1 // pred_fallthru
      _
    // Predicated region
    $region114: #{decoder_forward.1} parent=1 // pred_check
      _
    $region115: #{decoder_forward.1} parent=1 // pred_check_branch
      %136 = sbr.rel (0) target = $region117
    $region116: #{decoder_forward.1} parent=1 // pred_region
      _
    $region117: #{decoder_forward.1} parent=1 // pred_fallthru
      _
    // Predicated region
    $region118: #{decoder_forward.1} parent=1 // pred_check
      _
    $region119: #{decoder_forward.1} parent=1 // pred_check_branch
      %138 = sbr.rel (0) target = $region121
    $region120: #{decoder_forward.1} parent=1 // pred_region
      _
    $region121: #{decoder_forward.1} parent=1 // pred_fallthru
      _
    // Predicated region
    $region122: #{decoder_forward.1} parent=1 // pred_check
      _
    $region123: #{decoder_forward.1} parent=1 // pred_check_branch
      %140 = sbr.rel (0) target = $region125
    $region124: #{decoder_forward.1} parent=1 // pred_region
      _
    $region125: #{decoder_forward.1} parent=1 // pred_fallthru
      _
    // Predicated region
    $region126: #{decoder_forward.1} parent=1 // pred_check
      _
    $region127: #{decoder_forward.1} parent=1 // pred_check_branch
      %142 = sbr.rel (0) target = $region129
    $region128: #{decoder_forward.1} parent=1 // pred_region
      _
    $region129: #{decoder_forward.1} parent=1 // pred_fallthru
      _
    // Predicated region
    $region130: #{decoder_forward.1} parent=1 // pred_check
      _
    $region131: #{decoder_forward.1} parent=1 // pred_check_branch
      %144 = sbr.rel (0) target = $region133
    $region132: #{decoder_forward.1} parent=1 // pred_region
      _
    $region133: #{decoder_forward.1} parent=1 // pred_fallthru
      _
    %v146 = vld [vmem:[%s1] sm:$0x1]
    %v147 = vmul.f32 %v146, 0.0749584
    %v148 = vld [vmem:[%s3] sm:$0x1]
    %v149 = vadd.f32 %v147, %v148
    %v150 = vld [vmem:[%s13] sm:$0xff]
    %v151 = vld [vmem:[%s13 + $0x8] sm:$0xff]
    %v152 = vld [vmem:[%s5] sm:$0x7f]
    %v153 = vld [vmem:[%s19] sm:$0xff]
    %v154 = vld [vmem:[%s19 + $0x8] sm:$0xff]
    %156 = vset.pattern.permute.xlu0 0
    %157 = vperm.xlu0 %156, %v153
    %v158 = vpop.permute.xlu0 %157
    %161 = vset.pattern.permute.xlu0 0
    %162 = vperm.xlu0 %161, %v154
    %v163 = vpop.permute.xlu0 %162
    %vm165 = vcmask 56320
    %v167 = vsel %vm165, %v150, 0
    %v170 = vsel %vm165, %v151, 0
    %vm172 = vcmask 1046528
    %v174 = vsel %vm172, %v152, 0
    %176 = vmatprep.subr.mxu0 0.0
    %177 = vmatpush1.msra.mxu0 %v174
    %178 = vmatprep.subr.mxu0 0.0
    %179 = vmatpush1.msra.mxu0 0.0
    %180 = vmatprep.subr.mxu0 0.0
    %181 = vmatpush1.msra.mxu0 0.0
    %182 = vmatprep.subr.mxu0 0.0
    %183 = vmatpush1.msra.mxu0 0.0
    %184 = vmatprep.subr.mxu0 0.0
    %185 = vmatpush1.msra.mxu0 0.0
    %186 = vmatprep.subr.mxu0 0.0
    %187 = vmatpush1.msra.mxu0 0.0
    %188 = vmatprep.subr.mxu0 0.0
    %189 = vmatpush1.msra.mxu0 0.0
    %190 = vmatprep.subr.mxu0 0.0
    %191 = vmatpush1.msra.mxu0 0.0
    %192 = vmatprep.subr.mxu0 0.0
    %193 = vmatpush1.msra.mxu0 0.0
    %194 = vmatprep.subr.mxu0 0.0
    %195 = vmatpush1.msra.mxu0 0.0
    %196 = vmatprep.subr.mxu0 0.0
    %197 = vmatpush1.msra.mxu0 0.0
    %198 = vmatprep.subr.mxu0 0.0
    %199 = vmatpush1.msra.mxu0 0.0
    %200 = vmatprep.subr.mxu0 0.0
    %201 = vmatpush1.msra.mxu0 0.0
    %202 = vmatprep.subr.mxu0 0.0
    %203 = vmatpush1.msra.mxu0 0.0
    %204 = vmatprep.subr.mxu0 0.0
    %205 = vmatpush1.msra.mxu0 0.0
    %206 = vmatprep.subr.mxu0 0.0
    %207 = vmatpush1.msra.mxu0 0.0
    %208 = vmatprep.subr.mxu0 0.0
    %209 = vmatpush1.msra.mxu0 0.0
    %210 = vmatprep.subr.mxu0 0.0
    %211 = vmatpush1.msra.mxu0 0.0
    %212 = vmatprep.subr.mxu0 0.0
    %213 = vmatpush1.msra.mxu0 0.0
    %214 = vmatprep.subr.mxu0 0.0
    %215 = vmatpush1.msra.mxu0 0.0
    %216 = vmatprep.subr.mxu0 0.0
    %217 = vmatpush1.msra.mxu0 0.0
    %218 = vmatprep.subr.mxu0 0.0
    %219 = vmatpush1.msra.mxu0 0.0
    %220 = vmatprep.subr.mxu0 0.0
    %221 = vmatpush1.msra.mxu0 0.0
    %222 = vmatprep.subr.mxu0 0.0
    %223 = vmatpush1.msra.mxu0 0.0
    %224 = vmatprep.subr.mxu0 0.0
    %225 = vmatpush1.msra.mxu0 0.0
    %226 = vmatprep.subr.mxu0 0.0
    %227 = vmatpush1.msra.mxu0 0.0
    %228 = vmatprep.subr.mxu0 0.0
    %229 = vmatpush1.msra.mxu0 0.0
    %230 = vmatprep.subr.mxu0 0.0
    %231 = vmatpush1.msra.mxu0 0.0
    %232 = vmatprep.subr.mxu0 0.0
    %233 = vmatpush1.msra.mxu0 0.0
    %234 = vmatprep.subr.mxu0 0.0
    %235 = vmatpush1.msra.mxu0 0.0
    %236 = vmatprep.subr.mxu0 0.0
    %237 = vmatpush1.msra.mxu0 0.0
    %238 = vmatprep.subr.mxu0 0.0
    %239 = vmatpush1.msra.mxu0 0.0
    %240 = vmatprep.mubr.f32.mxu0 0.0
    %241 = vmatmul.mubr.f32.gmra.mrb[0].mxu0 %v167
    %v242 = vpop.f32.mrb[0].mxu0
    %v243 = vadd.f32 %v158, %v242
    %v244 = vpop.f32.mrb[0].mxu0
    %245 = vmatprep.mubr.f32.mxu0 0.0
    %246 = vmatmul.mubr.f32.gmra.mrb[0].mxu0 %v170
    %v247 = vpop.f32.mrb[0].mxu0
    %v248 = vadd.f32 %v163, %v247
    %v249 = vpop.f32.mrb[0].mxu0
    %250 = vdwg.mxu0
    %v251 = vld [vmem:[%s15] sm:$0xff]
    %v252 = vld [vmem:[%s15 + $0x8] sm:$0xff]
    %v254 = vlaneseq
    %v255 = vshrl.u32 %v254, 7
    %v256 = vsub.s32 0, %v255
    %v257 = vrot.slane %v149, %v256
    %260 = vset.pattern.permute.xlu0 0
    %261 = vperm.xlu0 %260, %v251
    %v262 = vpop.permute.xlu0 %261
    %265 = vset.pattern.permute.xlu0 0
    %266 = vperm.xlu0 %265, %v252
    %v267 = vpop.permute.xlu0 %266
    %v269 = vmul.f32 %v257, %v262
    %v270 = vmul.f32 %v257, %v267
    %v271 = vadd.f32 %v269, %v243
    %v272 = vadd.f32 %v270, %v248
    %v273 = vld [vmem:[%s7] sm:$0x1]
    %v274 = vld [vmem:[%s17] sm:$0xff]
    %v275 = vld [vmem:[%s17 + $0x8] sm:$0xff]
    %v277 = vlaneseq
    %v278 = vshrl.u32 %v277, 7
    %v279 = vsub.s32 0, %v278
    %v280 = vrot.slane %v273, %v279
    %283 = vset.pattern.permute.xlu0 0
    %284 = vperm.xlu0 %283, %v274
    %v285 = vpop.permute.xlu0 %284
    %288 = vset.pattern.permute.xlu0 0
    %289 = vperm.xlu0 %288, %v275
    %v290 = vpop.permute.xlu0 %289
    %v292 = vmul.f32 %v280, %v285
    %v293 = vmul.f32 %v280, %v290
    %v294 = vadd.f32 %v271, %v292
    %v295 = vadd.f32 %v272, %v293
    %v296 = vmul.f32 %v294, 0.5
    %v297 = vmul.f32 %v295, 0.5
    %v298 = vmul.f32 %v294, 0.044715
    %v299 = vmul.f32 %v295, 0.044715
    %v300 = vmul.f32 %v298, %v294
    %v301 = vmul.f32 %v299, %v295
    %v302 = vmul.f32 %v300, %v294
    %v303 = vmul.f32 %v301, %v295
    %v304 = vadd.f32 %v294, %v302
    %v305 = vadd.f32 %v295, %v303
    %v306 = vmul.f32 %v304, 0.7978846
    %v307 = vmul.f32 %v305, 0.7978846
    %v308 = vtanh.pop %v306
    %v309 = vtanh.pop %v307
    %v310 = vadd.f32 %v308, 1.0
    %v311 = vadd.f32 %v309, 1.0
    %v312 = vmul.f32 %v296, %v310
    %v313 = vmul.f32 %v297, %v311
    %vm314 = vcmask 261120
    %v315 = vsel %vm314, %v312, 0.0
    %v316 = vsel %vm314, %v313, 0.0
    %v317 = vadd.f32 %v315, %v316
    %v318 = vrot.slane %v317, 4
    %v319 = vadd.f32 %v317, %v318
    %v320 = vrot.slane %v319, 2
    %v321 = vadd.f32 %v319, %v320
    %v322 = vrot.slane %v321, 1
    %v323 = vadd.f32 %v321, %v322
    %v324 = vrcp.pop 16.0
    %v325 = vmul.f32 %v323, %v324
    %v326 = vsub.f32 %v312, %v325
    %v327 = vsub.f32 %v313, %v325
    %v328 = vmul.f32 %v326, %v326
    %v329 = vmul.f32 %v327, %v327
    %v330 = vsel %vm314, %v328, 0.0
    %v331 = vsel %vm314, %v329, 0.0
    %v332 = vadd.f32 %v330, %v331
    %v333 = vrot.slane %v332, 4
    %v334 = vadd.f32 %v332, %v333
    %v335 = vrot.slane %v334, 2
    %v336 = vadd.f32 %v334, %v335
    %v337 = vrot.slane %v336, 1
    %v338 = vadd.f32 %v336, %v337
    %v339 = vmul.f32 %v338, %v324
    %v340 = vadd.f32 %v339, 1e-05
    %v341 = vrsqrt.pop %v340
    %v342 = vmul.f32 %v326, %v341
    %v343 = vmul.f32 %v327, %v341
    %v344 = vld [vmem:[%s21] sm:$0xff]
    %v345 = vld [vmem:[%s21 + $0x8] sm:$0xff]
    %347 = vset.pattern.permute.xlu0 0
    %348 = vperm.xlu0 %347, %v344
    %v349 = vpop.permute.xlu0 %348
    %352 = vset.pattern.permute.xlu0 0
    %353 = vperm.xlu0 %352, %v345
    %v354 = vpop.permute.xlu0 %353
    %v356 = vmul.f32 %v342, %v349
    %v357 = vmul.f32 %v343, %v354
    %v358 = vld [vmem:[%s23] sm:$0xff]
    %v359 = vld [vmem:[%s23 + $0x8] sm:$0xff]
    %361 = vset.pattern.permute.xlu0 0
    %362 = vperm.xlu0 %361, %v358
    %v363 = vpop.permute.xlu0 %362
    %366 = vset.pattern.permute.xlu0 0
    %367 = vperm.xlu0 %366, %v359
    %v368 = vpop.permute.xlu0 %367
    %v370 = vadd.f32 %v356, %v363
    %v371 = vadd.f32 %v357, %v368
    %v372 = vld [vmem:[%s25] sm:$0xff]
    %v373 = vld [vmem:[%s25 + $0x8] sm:$0xff]
    %375 = vset.pattern.permute.xlu0 0
    %376 = vperm.xlu0 %375, %v372
    %v377 = vpop.permute.xlu0 %376
    %380 = vset.pattern.permute.xlu0 0
    %381 = vperm.xlu0 %380, %v373
    %v382 = vpop.permute.xlu0 %381
    %v384 = vmul.f32 %v370, %v377
    %v385 = vmul.f32 %v371, %v382
    %v386 = vsel %vm314, %v384, 0.0
    %v387 = vsel %vm314, %v385, 0.0
    %v388 = vadd.f32 %v386, %v387
    %v389 = vrot.slane %v388, 4
    %v390 = vadd.f32 %v388, %v389
    %v391 = vrot.slane %v390, 2
    %v392 = vadd.f32 %v390, %v391
    %v393 = vrot.slane %v392, 1
    %v394 = vadd.f32 %v392, %v393
    %v395 = vld [vmem:[#allocation2] sm:$0x1]
    %397 = vset.pattern.permute.xlu0 0
    %398 = vperm.xlu0 %397, %v395
    %v399 = vpop.permute.xlu0 %398
    %v401 = vlaneseq
    %v402 = vshrl.u32 %v401, 7
    %v403 = vsub.s32 0, %v402
    %v404 = vrot.slane %v399, %v403
    %v405 = vadd.f32 %v394, %v404
    %v406 = vld [vmem:[%s9] sm:$0x1]
    %v407 = vsub.f32 1.0, %v406
    %v408 = vmul.f32 %v407, %v405
    %v409 = vsub.f32 %v149, %v408
    %v410 = vld [vmem:[%s11] sm:$0x1]
    %v411 = vmul.f32 %v409, %v410
    %v413 = vlaneseq
    %v414 = vshrl.u32 %v413, 7
    %v415 = vsub.s32 0, %v414
    %v416 = vrot.slane %v411, %v415
    %417 = vrot.lane.b32.xlu0 %v416, 120
    %v418 = vpop.permute.xlu0 %417
    %420 = vrot.lane.b32.xlu0 %v416, 112
    %v421 = vpop.permute.xlu0 %420
    %423 = vrot.lane.b32.xlu0 %v416, 104
    %v424 = vpop.permute.xlu0 %423
    %vm426 = vcmask 1040384
    %v427 = vsel %vm426, %v411, %v418
    %vm428 = vcmask 1041408
    %v429 = vsel %vm428, %v427, %v421
    %vm430 = vcmask 1042432
    %v431 = vsel %vm430, %v429, %v424
    %vm432 = vcmask 60416
    %v433 = vsel %vm432, %v431, 0.0
    %434 = vadd.xlane.f32.xlu0 %v433
    %v435 = vpop.xlane.xlu0 %434
    %v436 = vrcp.pop 8.0
    %v437 = vmul.f32 %v435, %v436
    %v438 = vsub.f32 %v431, %v437
    %v439 = vmul.f32 %v438, %v438
    %v440 = vsel %vm432, %v439, 0.0
    %441 = vadd.xlane.f32.xlu0 %v440
    %v442 = vpop.xlane.xlu0 %441
    %v443 = vmul.f32 %v442, %v436
    %v444 = vadd.f32 %v443, 1e-05
    %v445 = vrsqrt.pop %v444
    %v446 = vmul.f32 %v438, %v445
    %v447 = vld [vmem:[%s29] sm:$0x1]
    %v449 = vlaneseq
    %v450 = vshrl.u32 %v449, 7
    %v451 = vsub.s32 0, %v450
    %v452 = vrot.slane %v447, %v451
    %v454 = vmul.f32 %v446, %v452
    %v455 = vld [vmem:[%s31] sm:$0x1]
    %v457 = vlaneseq
    %v458 = vshrl.u32 %v457, 7
    %v459 = vsub.s32 0, %v458
    %v460 = vrot.slane %v455, %v459
    %v462 = vadd.f32 %v454, %v460
    %463 = vst.msk [vmem:[#allocation3] sm:$0xf] %vm432, %v462
    %v464 = vld [vmem:[%s33] sm:$0xf]
    %v465 = vld [vmem:[%s33 + $0x4] sm:$0xf]
    %v466 = vld [vmem:[%s33 + $0x8] sm:$0xf]
    %v467 = vld [vmem:[%s33 + $0xc] sm:$0xf]
    %v468 = vld [vmem:[%s39] sm:$0xf]
    %v469 = vld [vmem:[%s43] sm:$0x1]
    %v471 = vlaneseq
    %v472 = vshrl.u32 %v471, 7
    %v473 = vsub.s32 0, %v472
    %v474 = vrot.slane %v469, %v473
    %v480 = vunpack.c.l.b16 %v464
    %v481 = vunpack.c.l.b16 %v465
    %v482 = vunpack.c.l.b16 %v466
    %v483 = vunpack.c.l.b16 %v467
    %v484 = vpack.c.b16 %v481, %v480
    %v485 = vpack.c.b16 %v483, %v482
    %vm486 = vcmask 64512
    %v488 = vsel %vm486, %v484, 0
    %v491 = vsel %vm486, %v485, 0
    %vm493 = vcmask 1043456
    %v495 = vsel %vm493, %v468, 0
    %497 = vmatprep.subr.bf16.mxu0 0
    %498 = vmatpush1.bf16.msra.mxu0 %v495
    %499 = vmatprep.subr.bf16.mxu0 0
    %500 = vmatpush1.bf16.msra.mxu0 0
    %501 = vmatprep.subr.bf16.mxu0 0
    %502 = vmatpush1.bf16.msra.mxu0 0
    %503 = vmatprep.subr.bf16.mxu0 0
    %504 = vmatpush1.bf16.msra.mxu0 0
    %505 = vmatprep.subr.bf16.mxu0 0
    %506 = vmatpush1.bf16.msra.mxu0 0
    %507 = vmatprep.subr.bf16.mxu0 0
    %508 = vmatpush1.bf16.msra.mxu0 0
    %509 = vmatprep.subr.bf16.mxu0 0
    %510 = vmatpush1.bf16.msra.mxu0 0
    %511 = vmatprep.subr.bf16.mxu0 0
    %512 = vmatpush1.bf16.msra.mxu0 0
    %513 = vmatprep.subr.bf16.mxu0 0
    %514 = vmatpush1.bf16.msra.mxu0 0
    %515 = vmatprep.subr.bf16.mxu0 0
    %516 = vmatpush1.bf16.msra.mxu0 0
    %517 = vmatprep.subr.bf16.mxu0 0
    %518 = vmatpush1.bf16.msra.mxu0 0
    %519 = vmatprep.subr.bf16.mxu0 0
    %520 = vmatpush1.bf16.msra.mxu0 0
    %521 = vmatprep.subr.bf16.mxu0 0
    %522 = vmatpush1.bf16.msra.mxu0 0
    %523 = vmatprep.subr.bf16.mxu0 0
    %524 = vmatpush1.bf16.msra.mxu0 0
    %525 = vmatprep.subr.bf16.mxu0 0
    %526 = vmatpush1.bf16.msra.mxu0 0
    %527 = vmatprep.subr.bf16.mxu0 0
    %528 = vmatpush1.bf16.msra.mxu0 0
    %529 = vmatprep.mubr.bf16.mxu0 0
    %530 = vmatmul.mubr.bf16.gmra.mrb[0].mxu0 %v488
    %v531 = vpop.f32.mrb[0].mxu0
    %v532 = vadd.f32 %v474, %v531
    %v533 = vpop.f32.mrb[0].mxu0
    %v534 = vpop.f32.mrb[0].mxu0
    %v535 = vadd.f32 %v474, %v534
    %v536 = vpop.f32.mrb[0].mxu0
    %537 = vmatprep.mubr.bf16.mxu0 0
    %538 = vmatmul.mubr.bf16.gmra.mrb[0].mxu0 %v491
    %v539 = vpop.f32.mrb[0].mxu0
    %v540 = vadd.f32 %v474, %v539
    %v541 = vpop.f32.mrb[0].mxu0
    %v542 = vpop.f32.mrb[0].mxu0
    %v543 = vadd.f32 %v474, %v542
    %v544 = vpop.f32.mrb[0].mxu0
    %545 = vdwg.mxu0
    %v546 = vld [vmem:[%s41] sm:$0xf]
    %v547 = vld [vmem:[%s41 + $0x4] sm:$0xf]
    %v548 = vld [vmem:[%s41 + $0x8] sm:$0xf]
    %v549 = vld [vmem:[%s41 + $0xc] sm:$0xf]
    %v554 = vunpack.c.l.b16 %v546
    %v555 = vunpack.c.l.b16 %v547
    %v556 = vunpack.c.l.b16 %v548
    %v557 = vunpack.c.l.b16 %v549
    %v558 = vpack.c.b16 %v555, %v554
    %v559 = vpack.c.b16 %v557, %v556
    %v563 = vsel %vm314, 0, 0
    %565 = vmatprep.subr.bf16.mxu0 0
    %566 = vmatpush1.bf16.msra.mxu0 %v558
    %567 = vmatprep.subr.bf16.mxu0 0
    %568 = vmatpush1.bf16.msra.mxu0 %v559
    %569 = vmatprep.subr.bf16.mxu0 0
    %570 = vmatpush1.bf16.msra.mxu0 0
    %571 = vmatprep.subr.bf16.mxu0 0
    %572 = vmatpush1.bf16.msra.mxu0 0
    %573 = vmatprep.subr.bf16.mxu0 0
    %574 = vmatpush1.bf16.msra.mxu0 0
    %575 = vmatprep.subr.bf16.mxu0 0
    %576 = vmatpush1.bf16.msra.mxu0 0
    %577 = vmatprep.subr.bf16.mxu0 0
    %578 = vmatpush1.bf16.msra.mxu0 0
    %579 = vmatprep.subr.bf16.mxu0 0
    %580 = vmatpush1.bf16.msra.mxu0 0
    %581 = vmatprep.subr.bf16.mxu0 0
    %582 = vmatpush1.bf16.msra.mxu0 0
    %583 = vmatprep.subr.bf16.mxu0 0
    %584 = vmatpush1.bf16.msra.mxu0 0
    %585 = vmatprep.subr.bf16.mxu0 0
    %586 = vmatpush1.bf16.msra.mxu0 0
    %587 = vmatprep.subr.bf16.mxu0 0
    %588 = vmatpush1.bf16.msra.mxu0 0
    %589 = vmatprep.subr.bf16.mxu0 0
    %590 = vmatpush1.bf16.msra.mxu0 0
    %591 = vmatprep.subr.bf16.mxu0 0
    %592 = vmatpush1.bf16.msra.mxu0 0
    %593 = vmatprep.subr.bf16.mxu0 0
    %594 = vmatpush1.bf16.msra.mxu0 0
    %595 = vmatprep.subr.bf16.mxu0 0
    %596 = vmatpush1.bf16.msra.mxu0 0
    %597 = vmatprep.mubr.bf16.mxu0 0
    %598 = vmatmul.mubr.bf16.gmra.mrb[0].mxu0 %v563
    %v599 = vpop.f32.mrb[0].mxu0
    %v600 = vadd.f32 0.0, %v599
    %v601 = vpop.f32.mrb[0].mxu0
    %v602 = vpop.f32.mrb[0].mxu0
    %v603 = vpop.f32.mrb[0].mxu0
    %604 = vdwg.mxu0
    %v605 = vadd.f32 %v532, %v600
    %v606 = vxor.u32 %v605, 2147483648
    %v607 = vmul.f32 %v606, 1.442695
    %v608 = vpow.pop %v607
    %v609 = vadd.f32 %v608, 1.0
    %v610 = vrcp.pop %v609
    %v611 = vmul.f32 1.0, %v610
    %v612 = vtanh.pop %v605
    %v613 = vmul.f32 %v611, 0.0
    %615 = vrot.lane.b32.xlu0 %v612, 64
    %v616 = vpop.permute.xlu0 %615
    %v618 = vmul.f32 %v611, %v616
    %620 = vrot.lane.b32.xlu0 %v618, 32
    %v621 = vpop.permute.xlu0 %620
    %v623 = vadd.f32 %v613, %v621
    %v624 = vtanh.pop %v623
    %626 = vrot.lane.b32.xlu0 %v624, 64
    %v627 = vpop.permute.xlu0 %626
    %v629 = vmul.f32 %v611, %v627
    %v630 = vpack.c.bf16 %v629, %v629
    %632 = vrot.lane.b32.xlu0 %v630, 32
    %v633 = vpop.permute.xlu0 %632
    %v635 = vsel %vm314, %v633, 0
    %637 = vmatprep.subr.bf16.mxu0 0
    %638 = vmatpush1.bf16.msra.mxu0 %v558
    %639 = vmatprep.subr.bf16.mxu0 0
    %640 = vmatpush1.bf16.msra.mxu0 %v559
    %641 = vmatprep.subr.bf16.mxu0 0
    %642 = vmatpush1.bf16.msra.mxu0 0
    %643 = vmatprep.subr.bf16.mxu0 0
    %644 = vmatpush1.bf16.msra.mxu0 0
    %645 = vmatprep.subr.bf16.mxu0 0
    %646 = vmatpush1.bf16.msra.mxu0 0
    %647 = vmatprep.subr.bf16.mxu0 0
    %648 = vmatpush1.bf16.msra.mxu0 0
    %649 = vmatprep.subr.bf16.mxu0 0
    %650 = vmatpush1.bf16.msra.mxu0 0
    %651 = vmatprep.subr.bf16.mxu0 0
    %652 = vmatpush1.bf16.msra.mxu0 0
    %653 = vmatprep.subr.bf16.mxu0 0
    %654 = vmatpush1.bf16.msra.mxu0 0
    %655 = vmatprep.subr.bf16.mxu0 0
    %656 = vmatpush1.bf16.msra.mxu0 0
    %657 = vmatprep.subr.bf16.mxu0 0
    %658 = vmatpush1.bf16.msra.mxu0 0
    %659 = vmatprep.subr.bf16.mxu0 0
    %660 = vmatpush1.bf16.msra.mxu0 0
    %661 = vmatprep.subr.bf16.mxu0 0
    %662 = vmatpush1.bf16.msra.mxu0 0
    %663 = vmatprep.subr.bf16.mxu0 0
    %664 = vmatpush1.bf16.msra.mxu0 0
    %665 = vmatprep.subr.bf16.mxu0 0
    %666 = vmatpush1.bf16.msra.mxu0 0
    %667 = vmatprep.subr.bf16.mxu0 0
    %668 = vmatpush1.bf16.msra.mxu0 0
    %669 = vmatprep.mubr.bf16.mxu0 0
    %670 = vmatmul.mubr.bf16.gmra.mrb[0].mxu0 %v635
    %v671 = vpop.f32.mrb[0].mxu0
    %v672 = vadd.f32 0.0, %v671
    %v673 = vpop.f32.mrb[0].mxu0
    %v674 = vpop.f32.mrb[0].mxu0
    %v675 = vpop.f32.mrb[0].mxu0
    %676 = vdwg.mxu0
    %v678 = vrot.slane %v672, 4
    %v680 = vadd.f32 %v532, %v678
    %v681 = vxor.u32 %v680, 2147483648
    %v682 = vmul.f32 %v681, 1.442695
    %v683 = vpow.pop %v682
    %v684 = vadd.f32 %v683, 1.0
    %v685 = vrcp.pop %v684
    %v686 = vmul.f32 1.0, %v685
    %v687 = vtanh.pop %v680
    %v689 = vrot.slane %v623, 4
    %v691 = vmul.f32 %v686, %v689
    %693 = vrot.lane.b32.xlu0 %v687, 64
    %v694 = vpop.permute.xlu0 %693
    %v696 = vmul.f32 %v686, %v694
    %698 = vrot.lane.b32.xlu0 %v696, 32
    %v699 = vpop.permute.xlu0 %698
    %v701 = vadd.f32 %v691, %v699
    %v702 = vtanh.pop %v701
    %704 = vrot.lane.b32.xlu0 %v702, 64
    %v705 = vpop.permute.xlu0 %704
    %v707 = vmul.f32 %v686, %v705
    %v708 = vpack.c.bf16 %v707, %v707
    %v710 = vrot.slane %v708, 2
    %711 = vrot.lane.b32.xlu0 %v710, 32
    %v712 = vpop.permute.xlu0 %711
    %v714 = vsel %vm314, %v712, 0
    %716 = vmatprep.subr.bf16.mxu0 0
    %717 = vmatpush1.bf16.msra.mxu0 %v558
    %718 = vmatprep.subr.bf16.mxu0 0
    %719 = vmatpush1.bf16.msra.mxu0 %v559
    %720 = vmatprep.subr.bf16.mxu0 0
    %721 = vmatpush1.bf16.msra.mxu0 0
    %722 = vmatprep.subr.bf16.mxu0 0
    %723 = vmatpush1.bf16.msra.mxu0 0
    %724 = vmatprep.subr.bf16.mxu0 0
    %725 = vmatpush1.bf16.msra.mxu0 0
    %726 = vmatprep.subr.bf16.mxu0 0
    %727 = vmatpush1.bf16.msra.mxu0 0
    %728 = vmatprep.subr.bf16.mxu0 0
    %729 = vmatpush1.bf16.msra.mxu0 0
    %730 = vmatprep.subr.bf16.mxu0 0
    %731 = vmatpush1.bf16.msra.mxu0 0
    %732 = vmatprep.subr.bf16.mxu0 0
    %733 = vmatpush1.bf16.msra.mxu0 0
    %734 = vmatprep.subr.bf16.mxu0 0
    %735 = vmatpush1.bf16.msra.mxu0 0
    %736 = vmatprep.subr.bf16.mxu0 0
    %737 = vmatpush1.bf16.msra.mxu0 0
    %738 = vmatprep.subr.bf16.mxu0 0
    %739 = vmatpush1.bf16.msra.mxu0 0
    %740 = vmatprep.subr.bf16.mxu0 0
    %741 = vmatpush1.bf16.msra.mxu0 0
    %742 = vmatprep.subr.bf16.mxu0 0
    %743 = vmatpush1.bf16.msra.mxu0 0
    %744 = vmatprep.subr.bf16.mxu0 0
    %745 = vmatpush1.bf16.msra.mxu0 0
    %746 = vmatprep.subr.bf16.mxu0 0
    %747 = vmatpush1.bf16.msra.mxu0 0
    %748 = vmatprep.mubr.bf16.mxu0 0
    %749 = vmatmul.mubr.bf16.gmra.mrb[0].mxu0 %v714
    %v750 = vpop.f32.mrb[0].mxu0
    %v751 = vadd.f32 0.0, %v750
    %v752 = vpop.f32.mrb[0].mxu0
    %v753 = vpop.f32.mrb[0].mxu0
    %v754 = vpop.f32.mrb[0].mxu0
    %755 = vdwg.mxu0
    %v756 = vadd.f32 %v535, %v751
    %v757 = vxor.u32 %v756, 2147483648
    %v758 = vmul.f32 %v757, 1.442695
    %v759 = vpow.pop %v758
    %v760 = vadd.f32 %v759, 1.0
    %v761 = vrcp.pop %v760
    %v762 = vmul.f32 1.0, %v761
    %v763 = vtanh.pop %v756
    %v765 = vrot.slane %v701, 4
    %v767 = vmul.f32 %v762, %v765
    %769 = vrot.lane.b32.xlu0 %v763, 64
    %v770 = vpop.permute.xlu0 %769
    %v772 = vmul.f32 %v762, %v770
    %774 = vrot.lane.b32.xlu0 %v772, 32
    %v775 = vpop.permute.xlu0 %774
    %v777 = vadd.f32 %v767, %v775
    %v778 = vtanh.pop %v777
    %780 = vrot.lane.b32.xlu0 %v778, 64
    %v781 = vpop.permute.xlu0 %780
    %v783 = vmul.f32 %v762, %v781
    %v784 = vpack.c.bf16 %v783, %v783
    %786 = vrot.lane.b32.xlu0 %v784, 32
    %v787 = vpop.permute.xlu0 %786
    %v789 = vsel %vm314, %v787, 0
    %791 = vmatprep.subr.bf16.mxu0 0
    %792 = vmatpush1.bf16.msra.mxu0 %v558
    %793 = vmatprep.subr.bf16.mxu0 0
    %794 = vmatpush1.bf16.msra.mxu0 %v559
    %795 = vmatprep.subr.bf16.mxu0 0
    %796 = vmatpush1.bf16.msra.mxu0 0
    %797 = vmatprep.subr.bf16.mxu0 0
    %798 = vmatpush1.bf16.msra.mxu0 0
    %799 = vmatprep.subr.bf16.mxu0 0
    %800 = vmatpush1.bf16.msra.mxu0 0
    %801 = vmatprep.subr.bf16.mxu0 0
    %802 = vmatpush1.bf16.msra.mxu0 0
    %803 = vmatprep.subr.bf16.mxu0 0
    %804 = vmatpush1.bf16.msra.mxu0 0
    %805 = vmatprep.subr.bf16.mxu0 0
    %806 = vmatpush1.bf16.msra.mxu0 0
    %807 = vmatprep.subr.bf16.mxu0 0
    %808 = vmatpush1.bf16.msra.mxu0 0
    %809 = vmatprep.subr.bf16.mxu0 0
    %810 = vmatpush1.bf16.msra.mxu0 0
    %811 = vmatprep.subr.bf16.mxu0 0
    %812 = vmatpush1.bf16.msra.mxu0 0
    %813 = vmatprep.subr.bf16.mxu0 0
    %814 = vmatpush1.bf16.msra.mxu0 0
    %815 = vmatprep.subr.bf16.mxu0 0
    %816 = vmatpush1.bf16.msra.mxu0 0
    %817 = vmatprep.subr.bf16.mxu0 0
    %818 = vmatpush1.bf16.msra.mxu0 0
    %819 = vmatprep.subr.bf16.mxu0 0
    %820 = vmatpush1.bf16.msra.mxu0 0
    %821 = vmatprep.subr.bf16.mxu0 0
    %822 = vmatpush1.bf16.msra.mxu0 0
    %823 = vmatprep.mubr.bf16.mxu0 0
    %824 = vmatmul.mubr.bf16.gmra.mrb[0].mxu0 %v789
    %v825 = vpop.f32.mrb[0].mxu0
    %v826 = vadd.f32 0.0, %v825
    %v827 = vpop.f32.mrb[0].mxu0
    %v828 = vpop.f32.mrb[0].mxu0
    %v829 = vpop.f32.mrb[0].mxu0
    %830 = vdwg.mxu0
    %v832 = vrot.slane %v826, 4
    %v834 = vadd.f32 %v535, %v832
    %v835 = vxor.u32 %v834, 2147483648
    %v836 = vmul.f32 %v835, 1.442695
    %v837 = vpow.pop %v836
    %v838 = vadd.f32 %v837, 1.0
    %v839 = vrcp.pop %v838
    %v840 = vmul.f32 1.0, %v839
    %v841 = vtanh.pop %v834
    %v843 = vrot.slane %v777, 4
    %v845 = vmul.f32 %v840, %v843
    %847 = vrot.lane.b32.xlu0 %v841, 64
    %v848 = vpop.permute.xlu0 %847
    %v850 = vmul.f32 %v840, %v848
    %852 = vrot.lane.b32.xlu0 %v850, 32
    %v853 = vpop.permute.xlu0 %852
    %v855 = vadd.f32 %v845, %v853
    %v856 = vtanh.pop %v855
    %858 = vrot.lane.b32.xlu0 %v856, 64
    %v859 = vpop.permute.xlu0 %858
    %v861 = vmul.f32 %v840, %v859
    %v862 = vpack.c.bf16 %v861, %v861
    %v864 = vrot.slane %v862, 2
    %865 = vrot.lane.b32.xlu0 %v864, 32
    %v866 = vpop.permute.xlu0 %865
    %v868 = vsel %vm314, %v866, 0
    %870 = vmatprep.subr.bf16.mxu0 0
    %871 = vmatpush1.bf16.msra.mxu0 %v558
    %872 = vmatprep.subr.bf16.mxu0 0
    %873 = vmatpush1.bf16.msra.mxu0 %v559
    %874 = vmatprep.subr.bf16.mxu0 0
    %875 = vmatpush1.bf16.msra.mxu0 0
    %876 = vmatprep.subr.bf16.mxu0 0
    %877 = vmatpush1.bf16.msra.mxu0 0
    %878 = vmatprep.subr.bf16.mxu0 0
    %879 = vmatpush1.bf16.msra.mxu0 0
    %880 = vmatprep.subr.bf16.mxu0 0
    %881 = vmatpush1.bf16.msra.mxu0 0
    %882 = vmatprep.subr.bf16.mxu0 0
    %883 = vmatpush1.bf16.msra.mxu0 0
    %884 = vmatprep.subr.bf16.mxu0 0
    %885 = vmatpush1.bf16.msra.mxu0 0
    %886 = vmatprep.subr.bf16.mxu0 0
    %887 = vmatpush1.bf16.msra.mxu0 0
    %888 = vmatprep.subr.bf16.mxu0 0
    %889 = vmatpush1.bf16.msra.mxu0 0
    %890 = vmatprep.subr.bf16.mxu0 0
    %891 = vmatpush1.bf16.msra.mxu0 0
    %892 = vmatprep.subr.bf16.mxu0 0
    %893 = vmatpush1.bf16.msra.mxu0 0
    %894 = vmatprep.subr.bf16.mxu0 0
    %895 = vmatpush1.bf16.msra.mxu0 0
    %896 = vmatprep.subr.bf16.mxu0 0
    %897 = vmatpush1.bf16.msra.mxu0 0
    %898 = vmatprep.subr.bf16.mxu0 0
    %899 = vmatpush1.bf16.msra.mxu0 0
    %900 = vmatprep.subr.bf16.mxu0 0
    %901 = vmatpush1.bf16.msra.mxu0 0
    %902 = vmatprep.mubr.bf16.mxu0 0
    %903 = vmatmul.mubr.bf16.gmra.mrb[0].mxu0 %v868
    %v904 = vpop.f32.mrb[0].mxu0
    %v905 = vadd.f32 0.0, %v904
    %v906 = vpop.f32.mrb[0].mxu0
    %v907 = vpop.f32.mrb[0].mxu0
    %v908 = vpop.f32.mrb[0].mxu0
    %909 = vdwg.mxu0
    %v910 = vadd.f32 %v540, %v905
    %v911 = vxor.u32 %v910, 2147483648
    %v912 = vmul.f32 %v911, 1.442695
    %v913 = vpow.pop %v912
    %v914 = vadd.f32 %v913, 1.0
    %v915 = vrcp.pop %v914
    %v916 = vmul.f32 1.0, %v915
    %v917 = vtanh.pop %v910
    %v919 = vrot.slane %v855, 4
    %v921 = vmul.f32 %v916, %v919
    %923 = vrot.lane.b32.xlu0 %v917, 64
    %v924 = vpop.permute.xlu0 %923
    %v926 = vmul.f32 %v916, %v924
    %928 = vrot.lane.b32.xlu0 %v926, 32
    %v929 = vpop.permute.xlu0 %928
    %v931 = vadd.f32 %v921, %v929
    %v932 = vtanh.pop %v931
    %934 = vrot.lane.b32.xlu0 %v932, 64
    %v935 = vpop.permute.xlu0 %934
    %v937 = vmul.f32 %v916, %v935
    %v938 = vpack.c.bf16 %v937, %v937
    %940 = vrot.lane.b32.xlu0 %v938, 32
    %v941 = vpop.permute.xlu0 %940
    %v943 = vsel %vm314, %v941, 0
    %945 = vmatprep.subr.bf16.mxu0 0
    %946 = vmatpush1.bf16.msra.mxu0 %v558
    %947 = vmatprep.subr.bf16.mxu0 0
    %948 = vmatpush1.bf16.msra.mxu0 %v559
    %949 = vmatprep.subr.bf16.mxu0 0
    %950 = vmatpush1.bf16.msra.mxu0 0
    %951 = vmatprep.subr.bf16.mxu0 0
    %952 = vmatpush1.bf16.msra.mxu0 0
    %953 = vmatprep.subr.bf16.mxu0 0
    %954 = vmatpush1.bf16.msra.mxu0 0
    %955 = vmatprep.subr.bf16.mxu0 0
    %956 = vmatpush1.bf16.msra.mxu0 0
    %957 = vmatprep.subr.bf16.mxu0 0
    %958 = vmatpush1.bf16.msra.mxu0 0
    %959 = vmatprep.subr.bf16.mxu0 0
    %960 = vmatpush1.bf16.msra.mxu0 0
    %961 = vmatprep.subr.bf16.mxu0 0
    %962 = vmatpush1.bf16.msra.mxu0 0
    %963 = vmatprep.subr.bf16.mxu0 0
    %964 = vmatpush1.bf16.msra.mxu0 0
    %965 = vmatprep.subr.bf16.mxu0 0
    %966 = vmatpush1.bf16.msra.mxu0 0
    %967 = vmatprep.subr.bf16.mxu0 0
    %968 = vmatpush1.bf16.msra.mxu0 0
    %969 = vmatprep.subr.bf16.mxu0 0
    %970 = vmatpush1.bf16.msra.mxu0 0
    %971 = vmatprep.subr.bf16.mxu0 0
    %972 = vmatpush1.bf16.msra.mxu0 0
    %973 = vmatprep.subr.bf16.mxu0 0
    %974 = vmatpush1.bf16.msra.mxu0 0
    %975 = vmatprep.subr.bf16.mxu0 0
    %976 = vmatpush1.bf16.msra.mxu0 0
    %977 = vmatprep.mubr.bf16.mxu0 0
    %978 = vmatmul.mubr.bf16.gmra.mrb[0].mxu0 %v943
    %v979 = vpop.f32.mrb[0].mxu0
    %v980 = vadd.f32 0.0, %v979
    %v981 = vpop.f32.mrb[0].mxu0
    %v982 = vpop.f32.mrb[0].mxu0
    %v983 = vpop.f32.mrb[0].mxu0
    %984 = vdwg.mxu0
    %v986 = vrot.slane %v980, 4
    %v988 = vadd.f32 %v540, %v986
    %v989 = vxor.u32 %v988, 2147483648
    %v990 = vmul.f32 %v989, 1.442695
    %v991 = vpow.pop %v990
    %v992 = vadd.f32 %v991, 1.0
    %v993 = vrcp.pop %v992
    %v994 = vmul.f32 1.0, %v993
    %v995 = vtanh.pop %v988
    %v997 = vrot.slane %v931, 4
    %v999 = vmul.f32 %v994, %v997
    %1001 = vrot.lane.b32.xlu0 %v995, 64
    %v1002 = vpop.permute.xlu0 %1001
    %v1004 = vmul.f32 %v994, %v1002
    %1006 = vrot.lane.b32.xlu0 %v1004, 32
    %v1007 = vpop.permute.xlu0 %1006
    %v1009 = vadd.f32 %v999, %v1007
    %v1010 = vtanh.pop %v1009
    %1012 = vrot.lane.b32.xlu0 %v1010, 64
    %v1013 = vpop.permute.xlu0 %1012
    %v1015 = vmul.f32 %v994, %v1013
    %v1016 = vpack.c.bf16 %v1015, %v1015
    %v1018 = vrot.slane %v1016, 2
    %1019 = vrot.lane.b32.xlu0 %v1018, 32
    %v1020 = vpop.permute.xlu0 %1019
    %v1022 = vsel %vm314, %v1020, 0
    %1024 = vmatprep.subr.bf16.mxu0 0
    %1025 = vmatpush1.bf16.msra.mxu0 %v558
    %1026 = vmatprep.subr.bf16.mxu0 0
    %1027 = vmatpush1.bf16.msra.mxu0 %v559
    %1028 = vmatprep.subr.bf16.mxu0 0
    %1029 = vmatpush1.bf16.msra.mxu0 0
    %1030 = vmatprep.subr.bf16.mxu0 0
    %1031 = vmatpush1.bf16.msra.mxu0 0
    %1032 = vmatprep.subr.bf16.mxu0 0
    %1033 = vmatpush1.bf16.msra.mxu0 0
    %1034 = vmatprep.subr.bf16.mxu0 0
    %1035 = vmatpush1.bf16.msra.mxu0 0
    %1036 = vmatprep.subr.bf16.mxu0 0
    %1037 = vmatpush1.bf16.msra.mxu0 0
    %1038 = vmatprep.subr.bf16.mxu0 0
    %1039 = vmatpush1.bf16.msra.mxu0 0
    %1040 = vmatprep.subr.bf16.mxu0 0
    %1041 = vmatpush1.bf16.msra.mxu0 0
    %1042 = vmatprep.subr.bf16.mxu0 0
    %1043 = vmatpush1.bf16.msra.mxu0 0
    %1044 = vmatprep.subr.bf16.mxu0 0
    %1045 = vmatpush1.bf16.msra.mxu0 0
    %1046 = vmatprep.subr.bf16.mxu0 0
    %1047 = vmatpush1.bf16.msra.mxu0 0
    %1048 = vmatprep.subr.bf16.mxu0 0
    %1049 = vmatpush1.bf16.msra.mxu0 0
    %1050 = vmatprep.subr.bf16.mxu0 0
    %1051 = vmatpush1.bf16.msra.mxu0 0
    %1052 = vmatprep.subr.bf16.mxu0 0
    %1053 = vmatpush1.bf16.msra.mxu0 0
    %1054 = vmatprep.subr.bf16.mxu0 0
    %1055 = vmatpush1.bf16.msra.mxu0 0
    %1056 = vmatprep.mubr.bf16.mxu0 0
    %1057 = vmatmul.mubr.bf16.gmra.mrb[0].mxu0 %v1022
    %v1058 = vpop.f32.mrb[0].mxu0
    %v1059 = vadd.f32 0.0, %v1058
    %v1060 = vpop.f32.mrb[0].mxu0
    %v1061 = vpop.f32.mrb[0].mxu0
    %v1062 = vpop.f32.mrb[0].mxu0
    %1063 = vdwg.mxu0
    %v1064 = vadd.f32 %v543, %v1059
    %v1065 = vxor.u32 %v1064, 2147483648
    %v1066 = vmul.f32 %v1065, 1.442695
    %v1067 = vpow.pop %v1066
    %v1068 = vadd.f32 %v1067, 1.0
    %v1069 = vrcp.pop %v1068
    %v1070 = vmul.f32 1.0, %v1069
    %v1071 = vtanh.pop %v1064
    %v1073 = vrot.slane %v1009, 4
    %v1075 = vmul.f32 %v1070, %v1073
    %1077 = vrot.lane.b32.xlu0 %v1071, 64
    %v1078 = vpop.permute.xlu0 %1077
    %v1080 = vmul.f32 %v1070, %v1078
    %1082 = vrot.lane.b32.xlu0 %v1080, 32
    %v1083 = vpop.permute.xlu0 %1082
    %v1085 = vadd.f32 %v1075, %v1083
    %v1086 = vtanh.pop %v1085
    %1088 = vrot.lane.b32.xlu0 %v1086, 64
    %v1089 = vpop.permute.xlu0 %1088
    %v1091 = vmul.f32 %v1070, %v1089
    %v1092 = vpack.c.bf16 %v1091, %v1091
    %1094 = vrot.lane.b32.xlu0 %v1092, 32
    %v1095 = vpop.permute.xlu0 %1094
    %v1097 = vsel %vm314, %v1095, 0
    %1099 = vmatprep.subr.bf16.mxu0 0
    %1100 = vmatpush1.bf16.msra.mxu0 %v558
    %1101 = vmatprep.subr.bf16.mxu0 0
    %1102 = vmatpush1.bf16.msra.mxu0 %v559
    %1103 = vmatprep.subr.bf16.mxu0 0
    %1104 = vmatpush1.bf16.msra.mxu0 0
    %1105 = vmatprep.subr.bf16.mxu0 0
    %1106 = vmatpush1.bf16.msra.mxu0 0
    %1107 = vmatprep.subr.bf16.mxu0 0
    %1108 = vmatpush1.bf16.msra.mxu0 0
    %1109 = vmatprep.subr.bf16.mxu0 0
    %1110 = vmatpush1.bf16.msra.mxu0 0
    %1111 = vmatprep.subr.bf16.mxu0 0
    %1112 = vmatpush1.bf16.msra.mxu0 0
    %1113 = vmatprep.subr.bf16.mxu0 0
    %1114 = vmatpush1.bf16.msra.mxu0 0
    %1115 = vmatprep.subr.bf16.mxu0 0
    %1116 = vmatpush1.bf16.msra.mxu0 0
    %1117 = vmatprep.subr.bf16.mxu0 0
    %1118 = vmatpush1.bf16.msra.mxu0 0
    %1119 = vmatprep.subr.bf16.mxu0 0
    %1120 = vmatpush1.bf16.msra.mxu0 0
    %1121 = vmatprep.subr.bf16.mxu0 0
    %1122 = vmatpush1.bf16.msra.mxu0 0
    %1123 = vmatprep.subr.bf16.mxu0 0
    %1124 = vmatpush1.bf16.msra.mxu0 0
    %1125 = vmatprep.subr.bf16.mxu0 0
    %1126 = vmatpush1.bf16.msra.mxu0 0
    %1127 = vmatprep.subr.bf16.mxu0 0
    %1128 = vmatpush1.bf16.msra.mxu0 0
    %1129 = vmatprep.subr.bf16.mxu0 0
    %1130 = vmatpush1.bf16.msra.mxu0 0
    %1131 = vmatprep.mubr.bf16.mxu0 0
    %1132 = vmatmul.mubr.bf16.gmra.mrb[0].mxu0 %v1097
    %v1133 = vpop.f32.mrb[0].mxu0
    %v1134 = vadd.f32 0.0, %v1133
    %v1135 = vpop.f32.mrb[0].mxu0
    %v1136 = vpop.f32.mrb[0].mxu0
    %v1137 = vpop.f32.mrb[0].mxu0
    %1138 = vdwg.mxu0
    %v1140 = vrot.slane %v1134, 4
    %v1142 = vadd.f32 %v543, %v1140
    %v1143 = vxor.u32 %v1142, 2147483648
    %v1144 = vmul.f32 %v1143, 1.442695
    %v1145 = vpow.pop %v1144
    %v1146 = vadd.f32 %v1145, 1.0
    %v1147 = vrcp.pop %v1146
    %v1148 = vmul.f32 1.0, %v1147
    %v1149 = vtanh.pop %v1142
    %v1151 = vrot.slane %v1085, 4
    %v1153 = vmul.f32 %v1148, %v1151
    %1155 = vrot.lane.b32.xlu0 %v1149, 64
    %v1156 = vpop.permute.xlu0 %1155
    %v1158 = vmul.f32 %v1148, %v1156
    %1160 = vrot.lane.b32.xlu0 %v1158, 32
    %v1161 = vpop.permute.xlu0 %1160
    %v1163 = vadd.f32 %v1153, %v1161
    %v1164 = vtanh.pop %v1163
    %1166 = vrot.lane.b32.xlu0 %v1164, 64
    %v1167 = vpop.permute.xlu0 %1166
    %v1169 = vmul.f32 %v1148, %v1167
    %v1170 = vsel %vm493, %v629, %v707
    %v1171 = vsel %vm493, %v783, %v861
    %v1172 = vsel %vm493, %v937, %v1015
    %v1173 = vsel %vm493, %v1091, %v1169
    %v1174 = vpack.c.bf16 %v1171, %v1170
    %v1175 = vpack.c.bf16 %v1173, %v1172
    %v1176 = vld [vmem:[%s45] sm:$0xf]
    %v1177 = vld [vmem:[%s45 + $0x4] sm:$0xf]
    %v1178 = vld [vmem:[%s45 + $0x8] sm:$0xf]
    %v1179 = vld [vmem:[%s45 + $0xc] sm:$0xf]
    %v1180 = vld [vmem:[%s49] sm:$0x1]
    %v1182 = vlaneseq
    %v1183 = vshrl.u32 %v1182, 7
    %v1184 = vsub.s32 0, %v1183
    %v1185 = vrot.slane %v1180, %v1184
    %1189 = vrot.lane.b32.xlu0 %v1174, 32
    %v1190 = vpop.permute.xlu0 %1189
    %1191 = vrot.lane.b32.xlu0 %v1175, 32
    %v1192 = vpop.permute.xlu0 %1191
    %v1197 = vunpack.c.l.b16 %v1176
    %v1198 = vunpack.c.l.b16 %v1177
    %v1199 = vunpack.c.l.b16 %v1178
    %v1200 = vunpack.c.l.b16 %v1179
    %v1201 = vpack.c.b16 %v1198, %v1197
    %v1202 = vpack.c.b16 %v1200, %v1199
    %v1206 = vsel %vm314, %v1190, 0
    %v1209 = vsel %vm314, %v1192, 0
    %1211 = vmatprep.subr.bf16.mxu0 0
    %1212 = vmatpush1.bf16.msra.mxu0 %v1201
    %1213 = vmatprep.subr.bf16.mxu0 0
    %1214 = vmatpush1.bf16.msra.mxu0 %v1202
    %1215 = vmatprep.subr.bf16.mxu0 0
    %1216 = vmatpush1.bf16.msra.mxu0 0
    %1217 = vmatprep.subr.bf16.mxu0 0
    %1218 = vmatpush1.bf16.msra.mxu0 0
    %1219 = vmatprep.subr.bf16.mxu0 0
    %1220 = vmatpush1.bf16.msra.mxu0 0
    %1221 = vmatprep.subr.bf16.mxu0 0
    %1222 = vmatpush1.bf16.msra.mxu0 0
    %1223 = vmatprep.subr.bf16.mxu0 0
    %1224 = vmatpush1.bf16.msra.mxu0 0
    %1225 = vmatprep.subr.bf16.mxu0 0
    %1226 = vmatpush1.bf16.msra.mxu0 0
    %1227 = vmatprep.subr.bf16.mxu0 0
    %1228 = vmatpush1.bf16.msra.mxu0 0
    %1229 = vmatprep.subr.bf16.mxu0 0
    %1230 = vmatpush1.bf16.msra.mxu0 0
    %1231 = vmatprep.subr.bf16.mxu0 0
    %1232 = vmatpush1.bf16.msra.mxu0 0
    %1233 = vmatprep.subr.bf16.mxu0 0
    %1234 = vmatpush1.bf16.msra.mxu0 0
    %1235 = vmatprep.subr.bf16.mxu0 0
    %1236 = vmatpush1.bf16.msra.mxu0 0
    %1237 = vmatprep.subr.bf16.mxu0 0
    %1238 = vmatpush1.bf16.msra.mxu0 0
    %1239 = vmatprep.subr.bf16.mxu0 0
    %1240 = vmatpush1.bf16.msra.mxu0 0
    %1241 = vmatprep.subr.bf16.mxu0 0
    %1242 = vmatpush1.bf16.msra.mxu0 0
    %1243 = vmatprep.mubr.bf16.mxu0 0
    %1244 = vmatmul.mubr.bf16.gmra.mrb[0].mxu0 %v1206
    %v1245 = vpop.f32.mrb[0].mxu0
    %v1246 = vadd.f32 %v1185, %v1245
    %v1247 = vpop.f32.mrb[0].mxu0
    %v1248 = vpop.f32.mrb[0].mxu0
    %v1249 = vadd.f32 %v1185, %v1248
    %v1250 = vpop.f32.mrb[0].mxu0
    %1251 = vmatprep.mubr.bf16.mxu0 0
    %1252 = vmatmul.mubr.bf16.gmra.mrb[0].mxu0 %v1209
    %v1253 = vpop.f32.mrb[0].mxu0
    %v1254 = vadd.f32 %v1185, %v1253
    %v1255 = vpop.f32.mrb[0].mxu0
    %v1256 = vpop.f32.mrb[0].mxu0
    %v1257 = vadd.f32 %v1185, %v1256
    %v1258 = vpop.f32.mrb[0].mxu0
    %1259 = vdwg.mxu0
    %v1260 = vld [vmem:[%s47] sm:$0xf]
    %v1261 = vld [vmem:[%s47 + $0x4] sm:$0xf]
    %v1262 = vld [vmem:[%s47 + $0x8] sm:$0xf]
    %v1263 = vld [vmem:[%s47 + $0xc] sm:$0xf]
    %v1268 = vunpack.c.l.b16 %v1260
    %v1269 = vunpack.c.l.b16 %v1261
    %v1270 = vunpack.c.l.b16 %v1262
    %v1271 = vunpack.c.l.b16 %v1263
    %v1272 = vpack.c.b16 %v1269, %v1268
    %v1273 = vpack.c.b16 %v1271, %v1270
    %1276 = vmatprep.subr.bf16.mxu0 0
    %1277 = vmatpush1.bf16.msra.mxu0 %v1272
    %1278 = vmatprep.subr.bf16.mxu0 0
    %1279 = vmatpush1.bf16.msra.mxu0 %v1273
    %1280 = vmatprep.subr.bf16.mxu0 0
    %1281 = vmatpush1.bf16.msra.mxu0 0
    %1282 = vmatprep.subr.bf16.mxu0 0
    %1283 = vmatpush1.bf16.msra.mxu0 0
    %1284 = vmatprep.subr.bf16.mxu0 0
    %1285 = vmatpush1.bf16.msra.mxu0 0
    %1286 = vmatprep.subr.bf16.mxu0 0
    %1287 = vmatpush1.bf16.msra.mxu0 0
    %1288 = vmatprep.subr.bf16.mxu0 0
    %1289 = vmatpush1.bf16.msra.mxu0 0
    %1290 = vmatprep.subr.bf16.mxu0 0
    %1291 = vmatpush1.bf16.msra.mxu0 0
    %1292 = vmatprep.subr.bf16.mxu0 0
    %1293 = vmatpush1.bf16.msra.mxu0 0
    %1294 = vmatprep.subr.bf16.mxu0 0
    %1295 = vmatpush1.bf16.msra.mxu0 0
    %1296 = vmatprep.subr.bf16.mxu0 0
    %1297 = vmatpush1.bf16.msra.mxu0 0
    %1298 = vmatprep.subr.bf16.mxu0 0
    %1299 = vmatpush1.bf16.msra.mxu0 0
    %1300 = vmatprep.subr.bf16.mxu0 0
    %1301 = vmatpush1.bf16.msra.mxu0 0
    %1302 = vmatprep.subr.bf16.mxu0 0
    %1303 = vmatpush1.bf16.msra.mxu0 0
    %1304 = vmatprep.subr.bf16.mxu0 0
    %1305 = vmatpush1.bf16.msra.mxu0 0
    %1306 = vmatprep.subr.bf16.mxu0 0
    %1307 = vmatpush1.bf16.msra.mxu0 0
    %1308 = vmatprep.mubr.bf16.mxu0 0
    %1309 = vmatmul.mubr.bf16.gmra.mrb[0].mxu0 %v563
    %v1310 = vpop.f32.mrb[0].mxu0
    %v1311 = vadd.f32 0.0, %v1310
    %v1312 = vpop.f32.mrb[0].mxu0
    %v1313 = vpop.f32.mrb[0].mxu0
    %v1314 = vpop.f32.mrb[0].mxu0
    %1315 = vdwg.mxu0
    %v1316 = vadd.f32 %v1246, %v1311
    %v1317 = vxor.u32 %v1316, 2147483648
    %v1318 = vmul.f32 %v1317, 1.442695
    %v1319 = vpow.pop %v1318
    %v1320 = vadd.f32 %v1319, 1.0
    %v1321 = vrcp.pop %v1320
    %v1322 = vmul.f32 1.0, %v1321
    %v1323 = vtanh.pop %v1316
    %v1324 = vmul.f32 %v1322, 0.0
    %1326 = vrot.lane.b32.xlu0 %v1323, 64
    %v1327 = vpop.permute.xlu0 %1326
    %v1329 = vmul.f32 %v1322, %v1327
    %1331 = vrot.lane.b32.xlu0 %v1329, 32
    %v1332 = vpop.permute.xlu0 %1331
    %v1334 = vadd.f32 %v1324, %v1332
    %v1335 = vtanh.pop %v1334
    %1337 = vrot.lane.b32.xlu0 %v1335, 64
    %v1338 = vpop.permute.xlu0 %1337
    %v1340 = vmul.f32 %v1322, %v1338
    %v1341 = vpack.c.bf16 %v1340, %v1340
    %1343 = vrot.lane.b32.xlu0 %v1341, 32
    %v1344 = vpop.permute.xlu0 %1343
    %v1346 = vsel %vm314, %v1344, 0
    %1348 = vmatprep.subr.bf16.mxu0 0
    %1349 = vmatpush1.bf16.msra.mxu0 %v1272
    %1350 = vmatprep.subr.bf16.mxu0 0
    %1351 = vmatpush1.bf16.msra.mxu0 %v1273
    %1352 = vmatprep.subr.bf16.mxu0 0
    %1353 = vmatpush1.bf16.msra.mxu0 0
    %1354 = vmatprep.subr.bf16.mxu0 0
    %1355 = vmatpush1.bf16.msra.mxu0 0
    %1356 = vmatprep.subr.bf16.mxu0 0
    %1357 = vmatpush1.bf16.msra.mxu0 0
    %1358 = vmatprep.subr.bf16.mxu0 0
    %1359 = vmatpush1.bf16.msra.mxu0 0
    %1360 = vmatprep.subr.bf16.mxu0 0
    %1361 = vmatpush1.bf16.msra.mxu0 0
    %1362 = vmatprep.subr.bf16.mxu0 0
    %1363 = vmatpush1.bf16.msra.mxu0 0
    %1364 = vmatprep.subr.bf16.mxu0 0
    %1365 = vmatpush1.bf16.msra.mxu0 0
    %1366 = vmatprep.subr.bf16.mxu0 0
    %1367 = vmatpush1.bf16.msra.mxu0 0
    %1368 = vmatprep.subr.bf16.mxu0 0
    %1369 = vmatpush1.bf16.msra.mxu0 0
    %1370 = vmatprep.subr.bf16.mxu0 0
    %1371 = vmatpush1.bf16.msra.mxu0 0
    %1372 = vmatprep.subr.bf16.mxu0 0
    %1373 = vmatpush1.bf16.msra.mxu0 0
    %1374 = vmatprep.subr.bf16.mxu0 0
    %1375 = vmatpush1.bf16.msra.mxu0 0
    %1376 = vmatprep.subr.bf16.mxu0 0
    %1377 = vmatpush1.bf16.msra.mxu0 0
    %1378 = vmatprep.subr.bf16.mxu0 0
    %1379 = vmatpush1.bf16.msra.mxu0 0
    %1380 = vmatprep.mubr.bf16.mxu0 0
    %1381 = vmatmul.mubr.bf16.gmra.mrb[0].mxu0 %v1346
    %v1382 = vpop.f32.mrb[0].mxu0
    %v1383 = vadd.f32 0.0, %v1382
    %v1384 = vpop.f32.mrb[0].mxu0
    %v1385 = vpop.f32.mrb[0].mxu0
    %v1386 = vpop.f32.mrb[0].mxu0
    %1387 = vdwg.mxu0
    %v1389 = vrot.slane %v1383, 4
    %v1391 = vadd.f32 %v1246, %v1389
    %v1392 = vxor.u32 %v1391, 2147483648
    %v1393 = vmul.f32 %v1392, 1.442695
    %v1394 = vpow.pop %v1393
    %v1395 = vadd.f32 %v1394, 1.0
    %v1396 = vrcp.pop %v1395
    %v1397 = vmul.f32 1.0, %v1396
    %v1398 = vtanh.pop %v1391
    %v1400 = vrot.slane %v1334, 4
    %v1402 = vmul.f32 %v1397, %v1400
    %1404 = vrot.lane.b32.xlu0 %v1398, 64
    %v1405 = vpop.permute.xlu0 %1404
    %v1407 = vmul.f32 %v1397, %v1405
    %1409 = vrot.lane.b32.xlu0 %v1407, 32
    %v1410 = vpop.permute.xlu0 %1409
    %v1412 = vadd.f32 %v1402, %v1410
    %v1413 = vtanh.pop %v1412
    %1415 = vrot.lane.b32.xlu0 %v1413, 64
    %v1416 = vpop.permute.xlu0 %1415
    %v1418 = vmul.f32 %v1397, %v1416
    %v1419 = vpack.c.bf16 %v1418, %v1418
    %v1421 = vrot.slane %v1419, 2
    %1422 = vrot.lane.b32.xlu0 %v1421, 32
    %v1423 = vpop.permute.xlu0 %1422
    %v1425 = vsel %vm314, %v1423, 0
    %1427 = vmatprep.subr.bf16.mxu0 0
    %1428 = vmatpush1.bf16.msra.mxu0 %v1272
    %1429 = vmatprep.subr.bf16.mxu0 0
    %1430 = vmatpush1.bf16.msra.mxu0 %v1273
    %1431 = vmatprep.subr.bf16.mxu0 0
    %1432 = vmatpush1.bf16.msra.mxu0 0
    %1433 = vmatprep.subr.bf16.mxu0 0
    %1434 = vmatpush1.bf16.msra.mxu0 0
    %1435 = vmatprep.subr.bf16.mxu0 0
    %1436 = vmatpush1.bf16.msra.mxu0 0
    %1437 = vmatprep.subr.bf16.mxu0 0
    %1438 = vmatpush1.bf16.msra.mxu0 0
    %1439 = vmatprep.subr.bf16.mxu0 0
    %1440 = vmatpush1.bf16.msra.mxu0 0
    %1441 = vmatprep.subr.bf16.mxu0 0
    %1442 = vmatpush1.bf16.msra.mxu0 0
    %1443 = vmatprep.subr.bf16.mxu0 0
    %1444 = vmatpush1.bf16.msra.mxu0 0
    %1445 = vmatprep.subr.bf16.mxu0 0
    %1446 = vmatpush1.bf16.msra.mxu0 0
    %1447 = vmatprep.subr.bf16.mxu0 0
    %1448 = vmatpush1.bf16.msra.mxu0 0
    %1449 = vmatprep.subr.bf16.mxu0 0
    %1450 = vmatpush1.bf16.msra.mxu0 0
    %1451 = vmatprep.subr.bf16.mxu0 0
    %1452 = vmatpush1.bf16.msra.mxu0 0
    %1453 = vmatprep.subr.bf16.mxu0 0
    %1454 = vmatpush1.bf16.msra.mxu0 0
    %1455 = vmatprep.subr.bf16.mxu0 0
    %1456 = vmatpush1.bf16.msra.mxu0 0
    %1457 = vmatprep.subr.bf16.mxu0 0
    %1458 = vmatpush1.bf16.msra.mxu0 0
    %1459 = vmatprep.mubr.bf16.mxu0 0
    %1460 = vmatmul.mubr.bf16.gmra.mrb[0].mxu0 %v1425
    %v1461 = vpop.f32.mrb[0].mxu0
    %v1462 = vadd.f32 0.0, %v1461
    %v1463 = vpop.f32.mrb[0].mxu0
    %v1464 = vpop.f32.mrb[0].mxu0
    %v1465 = vpop.f32.mrb[0].mxu0
    %1466 = vdwg.mxu0
    %v1467 = vadd.f32 %v1249, %v1462
    %v1468 = vxor.u32 %v1467, 2147483648
    %v1469 = vmul.f32 %v1468, 1.442695
    %v1470 = vpow.pop %v1469
    %v1471 = vadd.f32 %v1470, 1.0
    %v1472 = vrcp.pop %v1471
    %v1473 = vmul.f32 1.0, %v1472
    %v1474 = vtanh.pop %v1467
    %v1476 = vrot.slane %v1412, 4
    %v1478 = vmul.f32 %v1473, %v1476
    %1480 = vrot.lane.b32.xlu0 %v1474, 64
    %v1481 = vpop.permute.xlu0 %1480
    %v1483 = vmul.f32 %v1473, %v1481
    %1485 = vrot.lane.b32.xlu0 %v1483, 32
    %v1486 = vpop.permute.xlu0 %1485
    %v1488 = vadd.f32 %v1478, %v1486
    %v1489 = vtanh.pop %v1488
    %1491 = vrot.lane.b32.xlu0 %v1489, 64
    %v1492 = vpop.permute.xlu0 %1491
    %v1494 = vmul.f32 %v1473, %v1492
    %v1495 = vpack.c.bf16 %v1494, %v1494
    %1497 = vrot.lane.b32.xlu0 %v1495, 32
    %v1498 = vpop.permute.xlu0 %1497
    %v1500 = vsel %vm314, %v1498, 0
    %1502 = vmatprep.subr.bf16.mxu0 0
    %1503 = vmatpush1.bf16.msra.mxu0 %v1272
    %1504 = vmatprep.subr.bf16.mxu0 0
    %1505 = vmatpush1.bf16.msra.mxu0 %v1273
    %1506 = vmatprep.subr.bf16.mxu0 0
    %1507 = vmatpush1.bf16.msra.mxu0 0
    %1508 = vmatprep.subr.bf16.mxu0 0
    %1509 = vmatpush1.bf16.msra.mxu0 0
    %1510 = vmatprep.subr.bf16.mxu0 0
    %1511 = vmatpush1.bf16.msra.mxu0 0
    %1512 = vmatprep.subr.bf16.mxu0 0
    %1513 = vmatpush1.bf16.msra.mxu0 0
    %1514 = vmatprep.subr.bf16.mxu0 0
    %1515 = vmatpush1.bf16.msra.mxu0 0
    %1516 = vmatprep.subr.bf16.mxu0 0
    %1517 = vmatpush1.bf16.msra.mxu0 0
    %1518 = vmatprep.subr.bf16.mxu0 0
    %1519 = vmatpush1.bf16.msra.mxu0 0
    %1520 = vmatprep.subr.bf16.mxu0 0
    %1521 = vmatpush1.bf16.msra.mxu0 0
    %1522 = vmatprep.subr.bf16.mxu0 0
    %1523 = vmatpush1.bf16.msra.mxu0 0
    %1524 = vmatprep.subr.bf16.mxu0 0
    %1525 = vmatpush1.bf16.msra.mxu0 0
    %1526 = vmatprep.subr.bf16.mxu0 0
    %1527 = vmatpush1.bf16.msra.mxu0 0
    %1528 = vmatprep.subr.bf16.mxu0 0
    %1529 = vmatpush1.bf16.msra.mxu0 0
    %1530 = vmatprep.subr.bf16.mxu0 0
    %1531 = vmatpush1.bf16.msra.mxu0 0
    %1532 = vmatprep.subr.bf16.mxu0 0
    %1533 = vmatpush1.bf16.msra.mxu0 0
    %1534 = vmatprep.mubr.bf16.mxu0 0
    %1535 = vmatmul.mubr.bf16.gmra.mrb[0].mxu0 %v1500
    %v1536 = vpop.f32.mrb[0].mxu0
    %v1537 = vadd.f32 0.0, %v1536
    %v1538 = vpop.f32.mrb[0].mxu0
    %v1539 = vpop.f32.mrb[0].mxu0
    %v1540 = vpop.f32.mrb[0].mxu0
    %1541 = vdwg.mxu0
    %v1543 = vrot.slane %v1537, 4
    %v1545 = vadd.f32 %v1249, %v1543
    %v1546 = vxor.u32 %v1545, 2147483648
    %v1547 = vmul.f32 %v1546, 1.442695
    %v1548 = vpow.pop %v1547
    %v1549 = vadd.f32 %v1548, 1.0
    %v1550 = vrcp.pop %v1549
    %v1551 = vmul.f32 1.0, %v1550
    %v1552 = vtanh.pop %v1545
    %v1554 = vrot.slane %v1488, 4
    %v1556 = vmul.f32 %v1551, %v1554
    %1558 = vrot.lane.b32.xlu0 %v1552, 64
    %v1559 = vpop.permute.xlu0 %1558
    %v1561 = vmul.f32 %v1551, %v1559
    %1563 = vrot.lane.b32.xlu0 %v1561, 32
    %v1564 = vpop.permute.xlu0 %1563
    %v1566 = vadd.f32 %v1556, %v1564
    %v1567 = vtanh.pop %v1566
    %1569 = vrot.lane.b32.xlu0 %v1567, 64
    %v1570 = vpop.permute.xlu0 %1569
    %v1572 = vmul.f32 %v1551, %v1570
    %v1573 = vpack.c.bf16 %v1572, %v1572
    %v1575 = vrot.slane %v1573, 2
    %1576 = vrot.lane.b32.xlu0 %v1575, 32
    %v1577 = vpop.permute.xlu0 %1576
    %v1579 = vsel %vm314, %v1577, 0
    %1581 = vmatprep.subr.bf16.mxu0 0
    %1582 = vmatpush1.bf16.msra.mxu0 %v1272
    %1583 = vmatprep.subr.bf16.mxu0 0
    %1584 = vmatpush1.bf16.msra.mxu0 %v1273
    %1585 = vmatprep.subr.bf16.mxu0 0
    %1586 = vmatpush1.bf16.msra.mxu0 0
    %1587 = vmatprep.subr.bf16.mxu0 0
    %1588 = vmatpush1.bf16.msra.mxu0 0
    %1589 = vmatprep.subr.bf16.mxu0 0
    %1590 = vmatpush1.bf16.msra.mxu0 0
    %1591 = vmatprep.subr.bf16.mxu0 0
    %1592 = vmatpush1.bf16.msra.mxu0 0
    %1593 = vmatprep.subr.bf16.mxu0 0
    %1594 = vmatpush1.bf16.msra.mxu0 0
    %1595 = vmatprep.subr.bf16.mxu0 0
    %1596 = vmatpush1.bf16.msra.mxu0 0
    %1597 = vmatprep.subr.bf16.mxu0 0
    %1598 = vmatpush1.bf16.msra.mxu0 0
    %1599 = vmatprep.subr.bf16.mxu0 0
    %1600 = vmatpush1.bf16.msra.mxu0 0
    %1601 = vmatprep.subr.bf16.mxu0 0
    %1602 = vmatpush1.bf16.msra.mxu0 0
    %1603 = vmatprep.subr.bf16.mxu0 0
    %1604 = vmatpush1.bf16.msra.mxu0 0
    %1605 = vmatprep.subr.bf16.mxu0 0
    %1606 = vmatpush1.bf16.msra.mxu0 0
    %1607 = vmatprep.subr.bf16.mxu0 0
    %1608 = vmatpush1.bf16.msra.mxu0 0
    %1609 = vmatprep.subr.bf16.mxu0 0
    %1610 = vmatpush1.bf16.msra.mxu0 0
    %1611 = vmatprep.subr.bf16.mxu0 0
    %1612 = vmatpush1.bf16.msra.mxu0 0
    %1613 = vmatprep.mubr.bf16.mxu0 0
    %1614 = vmatmul.mubr.bf16.gmra.mrb[0].mxu0 %v1579
    %v1615 = vpop.f32.mrb[0].mxu0
    %v1616 = vadd.f32 0.0, %v1615
    %v1617 = vpop.f32.mrb[0].mxu0
    %v1618 = vpop.f32.mrb[0].mxu0
    %v1619 = vpop.f32.mrb[0].mxu0
    %1620 = vdwg.mxu0
    %v1621 = vadd.f32 %v1254, %v1616
    %v1622 = vxor.u32 %v1621, 2147483648
    %v1623 = vmul.f32 %v1622, 1.442695
    %v1624 = vpow.pop %v1623
    %v1625 = vadd.f32 %v1624, 1.0
    %v1626 = vrcp.pop %v1625
    %v1627 = vmul.f32 1.0, %v1626
    %v1628 = vtanh.pop %v1621
    %v1630 = vrot.slane %v1566, 4
    %v1632 = vmul.f32 %v1627, %v1630
    %1634 = vrot.lane.b32.xlu0 %v1628, 64
    %v1635 = vpop.permute.xlu0 %1634
    %v1637 = vmul.f32 %v1627, %v1635
    %1639 = vrot.lane.b32.xlu0 %v1637, 32
    %v1640 = vpop.permute.xlu0 %1639
    %v1642 = vadd.f32 %v1632, %v1640
    %v1643 = vtanh.pop %v1642
    %1645 = vrot.lane.b32.xlu0 %v1643, 64
    %v1646 = vpop.permute.xlu0 %1645
    %v1648 = vmul.f32 %v1627, %v1646
    %v1649 = vpack.c.bf16 %v1648, %v1648
    %1651 = vrot.lane.b32.xlu0 %v1649, 32
    %v1652 = vpop.permute.xlu0 %1651
    %v1654 = vsel %vm314, %v1652, 0
    %1656 = vmatprep.subr.bf16.mxu0 0
    %1657 = vmatpush1.bf16.msra.mxu0 %v1272
    %1658 = vmatprep.subr.bf16.mxu0 0
    %1659 = vmatpush1.bf16.msra.mxu0 %v1273
    %1660 = vmatprep.subr.bf16.mxu0 0
    %1661 = vmatpush1.bf16.msra.mxu0 0
    %1662 = vmatprep.subr.bf16.mxu0 0
    %1663 = vmatpush1.bf16.msra.mxu0 0
    %1664 = vmatprep.subr.bf16.mxu0 0
    %1665 = vmatpush1.bf16.msra.mxu0 0
    %1666 = vmatprep.subr.bf16.mxu0 0
    %1667 = vmatpush1.bf16.msra.mxu0 0
    %1668 = vmatprep.subr.bf16.mxu0 0
    %1669 = vmatpush1.bf16.msra.mxu0 0
    %1670 = vmatprep.subr.bf16.mxu0 0
    %1671 = vmatpush1.bf16.msra.mxu0 0
    %1672 = vmatprep.subr.bf16.mxu0 0
    %1673 = vmatpush1.bf16.msra.mxu0 0
    %1674 = vmatprep.subr.bf16.mxu0 0
    %1675 = vmatpush1.bf16.msra.mxu0 0
    %1676 = vmatprep.subr.bf16.mxu0 0
    %1677 = vmatpush1.bf16.msra.mxu0 0
    %1678 = vmatprep.subr.bf16.mxu0 0
    %1679 = vmatpush1.bf16.msra.mxu0 0
    %1680 = vmatprep.subr.bf16.mxu0 0
    %1681 = vmatpush1.bf16.msra.mxu0 0
    %1682 = vmatprep.subr.bf16.mxu0 0
    %1683 = vmatpush1.bf16.msra.mxu0 0
    %1684 = vmatprep.subr.bf16.mxu0 0
    %1685 = vmatpush1.bf16.msra.mxu0 0
    %1686 = vmatprep.subr.bf16.mxu0 0
    %1687 = vmatpush1.bf16.msra.mxu0 0
    %1688 = vmatprep.mubr.bf16.mxu0 0
    %1689 = vmatmul.mubr.bf16.gmra.mrb[0].mxu0 %v1654
    %v1690 = vpop.f32.mrb[0].mxu0
    %v1691 = vadd.f32 0.0, %v1690
    %v1692 = vpop.f32.mrb[0].mxu0
    %v1693 = vpop.f32.mrb[0].mxu0
    %v1694 = vpop.f32.mrb[0].mxu0
    %1695 = vdwg.mxu0
    %v1697 = vrot.slane %v1691, 4
    %v1699 = vadd.f32 %v1254, %v1697
    %v1700 = vxor.u32 %v1699, 2147483648
    %v1701 = vmul.f32 %v1700, 1.442695
    %v1702 = vpow.pop %v1701
    %v1703 = vadd.f32 %v1702, 1.0
    %v1704 = vrcp.pop %v1703
    %v1705 = vmul.f32 1.0, %v1704
    %v1706 = vtanh.pop %v1699
    %v1708 = vrot.slane %v1642, 4
    %v1710 = vmul.f32 %v1705, %v1708
    %1712 = vrot.lane.b32.xlu0 %v1706, 64
    %v1713 = vpop.permute.xlu0 %1712
    %v1715 = vmul.f32 %v1705, %v1713
    %1717 = vrot.lane.b32.xlu0 %v1715, 32
    %v1718 = vpop.permute.xlu0 %1717
    %v1720 = vadd.f32 %v1710, %v1718
    %v1721 = vtanh.pop %v1720
    %1723 = vrot.lane.b32.xlu0 %v1721, 64
    %v1724 = vpop.permute.xlu0 %1723
    %v1726 = vmul.f32 %v1705, %v1724
    %v1727 = vpack.c.bf16 %v1726, %v1726
    %v1729 = vrot.slane %v1727, 2
    %1730 = vrot.lane.b32.xlu0 %v1729, 32
    %v1731 = vpop.permute.xlu0 %1730
    %v1733 = vsel %vm314, %v1731, 0
    %1735 = vmatprep.subr.bf16.mxu0 0
    %1736 = vmatpush1.bf16.msra.mxu0 %v1272
    %1737 = vmatprep.subr.bf16.mxu0 0
    %1738 = vmatpush1.bf16.msra.mxu0 %v1273
    %1739 = vmatprep.subr.bf16.mxu0 0
    %1740 = vmatpush1.bf16.msra.mxu0 0
    %1741 = vmatprep.subr.bf16.mxu0 0
    %1742 = vmatpush1.bf16.msra.mxu0 0
    %1743 = vmatprep.subr.bf16.mxu0 0
    %1744 = vmatpush1.bf16.msra.mxu0 0
    %1745 = vmatprep.subr.bf16.mxu0 0
    %1746 = vmatpush1.bf16.msra.mxu0 0
    %1747 = vmatprep.subr.bf16.mxu0 0
    %1748 = vmatpush1.bf16.msra.mxu0 0
    %1749 = vmatprep.subr.bf16.mxu0 0
    %1750 = vmatpush1.bf16.msra.mxu0 0
    %1751 = vmatprep.subr.bf16.mxu0 0
    %1752 = vmatpush1.bf16.msra.mxu0 0
    %1753 = vmatprep.subr.bf16.mxu0 0
    %1754 = vmatpush1.bf16.msra.mxu0 0
    %1755 = vmatprep.subr.bf16.mxu0 0
    %1756 = vmatpush1.bf16.msra.mxu0 0
    %1757 = vmatprep.subr.bf16.mxu0 0
    %1758 = vmatpush1.bf16.msra.mxu0 0
    %1759 = vmatprep.subr.bf16.mxu0 0
    %1760 = vmatpush1.bf16.msra.mxu0 0
    %1761 = vmatprep.subr.bf16.mxu0 0
    %1762 = vmatpush1.bf16.msra.mxu0 0
    %1763 = vmatprep.subr.bf16.mxu0 0
    %1764 = vmatpush1.bf16.msra.mxu0 0
    %1765 = vmatprep.subr.bf16.mxu0 0
    %1766 = vmatpush1.bf16.msra.mxu0 0
    %1767 = vmatprep.mubr.bf16.mxu0 0
    %1768 = vmatmul.mubr.bf16.gmra.mrb[0].mxu0 %v1733
    %v1769 = vpop.f32.mrb[0].mxu0
    %v1770 = vadd.f32 0.0, %v1769
    %v1771 = vpop.f32.mrb[0].mxu0
    %v1772 = vpop.f32.mrb[0].mxu0
    %v1773 = vpop.f32.mrb[0].mxu0
    %1774 = vdwg.mxu0
    %v1775 = vadd.f32 %v1257, %v1770
    %v1776 = vxor.u32 %v1775, 2147483648
    %v1777 = vmul.f32 %v1776, 1.442695
    %v1778 = vpow.pop %v1777
    %v1779 = vadd.f32 %v1778, 1.0
    %v1780 = vrcp.pop %v1779
    %v1781 = vmul.f32 1.0, %v1780
    %v1782 = vtanh.pop %v1775
    %v1784 = vrot.slane %v1720, 4
    %v1786 = vmul.f32 %v1781, %v1784
    %1788 = vrot.lane.b32.xlu0 %v1782, 64
    %v1789 = vpop.permute.xlu0 %1788
    %v1791 = vmul.f32 %v1781, %v1789
    %1793 = vrot.lane.b32.xlu0 %v1791, 32
    %v1794 = vpop.permute.xlu0 %1793
    %v1796 = vadd.f32 %v1786, %v1794
    %v1797 = vtanh.pop %v1796
    %1799 = vrot.lane.b32.xlu0 %v1797, 64
    %v1800 = vpop.permute.xlu0 %1799
    %v1802 = vmul.f32 %v1781, %v1800
    %v1803 = vpack.c.bf16 %v1802, %v1802
    %1805 = vrot.lane.b32.xlu0 %v1803, 32
    %v1806 = vpop.permute.xlu0 %1805
    %v1808 = vsel %vm314, %v1806, 0
    %1810 = vmatprep.subr.bf16.mxu0 0
    %1811 = vmatpush1.bf16.msra.mxu0 %v1272
    %1812 = vmatprep.subr.bf16.mxu0 0
    %1813 = vmatpush1.bf16.msra.mxu0 %v1273
    %1814 = vmatprep.subr.bf16.mxu0 0
    %1815 = vmatpush1.bf16.msra.mxu0 0
    %1816 = vmatprep.subr.bf16.mxu0 0
    %1817 = vmatpush1.bf16.msra.mxu0 0
    %1818 = vmatprep.subr.bf16.mxu0 0
    %1819 = vmatpush1.bf16.msra.mxu0 0
    %1820 = vmatprep.subr.bf16.mxu0 0
    %1821 = vmatpush1.bf16.msra.mxu0 0
    %1822 = vmatprep.subr.bf16.mxu0 0
    %1823 = vmatpush1.bf16.msra.mxu0 0
    %1824 = vmatprep.subr.bf16.mxu0 0
    %1825 = vmatpush1.bf16.msra.mxu0 0
    %1826 = vmatprep.subr.bf16.mxu0 0
    %1827 = vmatpush1.bf16.msra.mxu0 0
    %1828 = vmatprep.subr.bf16.mxu0 0
    %1829 = vmatpush1.bf16.msra.mxu0 0
    %1830 = vmatprep.subr.bf16.mxu0 0
    %1831 = vmatpush1.bf16.msra.mxu0 0
    %1832 = vmatprep.subr.bf16.mxu0 0
    %1833 = vmatpush1.bf16.msra.mxu0 0
    %1834 = vmatprep.subr.bf16.mxu0 0
    %1835 = vmatpush1.bf16.msra.mxu0 0
    %1836 = vmatprep.subr.bf16.mxu0 0
    %1837 = vmatpush1.bf16.msra.mxu0 0
    %1838 = vmatprep.subr.bf16.mxu0 0
    %1839 = vmatpush1.bf16.msra.mxu0 0
    %1840 = vmatprep.subr.bf16.mxu0 0
    %1841 = vmatpush1.bf16.msra.mxu0 0
    %1842 = vmatprep.mubr.bf16.mxu0 0
    %1843 = vmatmul.mubr.bf16.gmra.mrb[0].mxu0 %v1808
    %v1844 = vpop.f32.mrb[0].mxu0
    %v1845 = vadd.f32 0.0, %v1844
    %v1846 = vpop.f32.mrb[0].mxu0
    %v1847 = vpop.f32.mrb[0].mxu0
    %v1848 = vpop.f32.mrb[0].mxu0
    %1849 = vdwg.mxu0
    %v1851 = vrot.slane %v1845, 4
    %v1853 = vadd.f32 %v1257, %v1851
    %v1854 = vxor.u32 %v1853, 2147483648
    %v1855 = vmul.f32 %v1854, 1.442695
    %v1856 = vpow.pop %v1855
    %v1857 = vadd.f32 %v1856, 1.0
    %v1858 = vrcp.pop %v1857
    %v1859 = vmul.f32 1.0, %v1858
    %v1860 = vtanh.pop %v1853
    %v1862 = vrot.slane %v1796, 4
    %v1864 = vmul.f32 %v1859, %v1862
    %1866 = vrot.lane.b32.xlu0 %v1860, 64
    %v1867 = vpop.permute.xlu0 %1866
    %v1869 = vmul.f32 %v1859, %v1867
    %1871 = vrot.lane.b32.xlu0 %v1869, 32
    %v1872 = vpop.permute.xlu0 %1871
    %v1874 = vadd.f32 %v1864, %v1872
    %v1875 = vtanh.pop %v1874
    %1877 = vrot.lane.b32.xlu0 %v1875, 64
    %v1878 = vpop.permute.xlu0 %1877
    %v1880 = vmul.f32 %v1859, %v1878
    %v1881 = vld [vmem:[%s35] sm:$0xf]
    %v1882 = vld [vmem:[%s35 + $0x4] sm:$0xf]
    %s1883 = scalar_lea.vmem %s39, 4
    %v1884 = vld [vmem:[%s1883] sm:$0xf]
    %s1885 = scalar_lea.vmem %s43, 1
    %v1886 = vld [vmem:[%s1885] sm:$0x1]
    %v1888 = vlaneseq
    %v1889 = vshrl.u32 %v1888, 7
    %v1890 = vsub.s32 0, %v1889
    %v1891 = vrot.slane %v1886, %v1890
    %v1895 = vunpack.c.l.b16 %v1881
    %v1896 = vunpack.c.l.b16 %v1882
    %v1897 = vpack.c.b16 %v1896, %v1895
    %v1899 = vsel %vm486, %v1897, 0
    %v1902 = vsel %vm493, %v1884, 0
    %1904 = vmatprep.subr.bf16.mxu0 0
    %1905 = vmatpush1.bf16.msra.mxu0 %v1902
    %1906 = vmatprep.subr.bf16.mxu0 0
    %1907 = vmatpush1.bf16.msra.mxu0 0
    %1908 = vmatprep.subr.bf16.mxu0 0
    %1909 = vmatpush1.bf16.msra.mxu0 0
    %1910 = vmatprep.subr.bf16.mxu0 0
    %1911 = vmatpush1.bf16.msra.mxu0 0
    %1912 = vmatprep.subr.bf16.mxu0 0
    %1913 = vmatpush1.bf16.msra.mxu0 0
    %1914 = vmatprep.subr.bf16.mxu0 0
    %1915 = vmatpush1.bf16.msra.mxu0 0
    %1916 = vmatprep.subr.bf16.mxu0 0
    %1917 = vmatpush1.bf16.msra.mxu0 0
    %1918 = vmatprep.subr.bf16.mxu0 0
    %1919 = vmatpush1.bf16.msra.mxu0 0
    %1920 = vmatprep.subr.bf16.mxu0 0
    %1921 = vmatpush1.bf16.msra.mxu0 0
    %1922 = vmatprep.subr.bf16.mxu0 0
    %1923 = vmatpush1.bf16.msra.mxu0 0
    %1924 = vmatprep.subr.bf16.mxu0 0
    %1925 = vmatpush1.bf16.msra.mxu0 0
    %1926 = vmatprep.subr.bf16.mxu0 0
    %1927 = vmatpush1.bf16.msra.mxu0 0
    %1928 = vmatprep.subr.bf16.mxu0 0
    %1929 = vmatpush1.bf16.msra.mxu0 0
    %1930 = vmatprep.subr.bf16.mxu0 0
    %1931 = vmatpush1.bf16.msra.mxu0 0
    %1932 = vmatprep.subr.bf16.mxu0 0
    %1933 = vmatpush1.bf16.msra.mxu0 0
    %1934 = vmatprep.subr.bf16.mxu0 0
    %1935 = vmatpush1.bf16.msra.mxu0 0
    %1936 = vmatprep.mubr.bf16.mxu0 0
    %1937 = vmatmul.mubr.bf16.gmra.mrb[0].mxu0 %v1899
    %v1938 = vpop.f32.mrb[0].mxu0
    %v1939 = vadd.f32 %v1891, %v1938
    %v1940 = vpop.f32.mrb[0].mxu0
    %v1941 = vpop.f32.mrb[0].mxu0
    %v1942 = vadd.f32 %v1891, %v1941
    %v1943 = vpop.f32.mrb[0].mxu0
    %1944 = vdwg.mxu0
    %s1945 = scalar_lea.vmem %s41, 16
    %v1946 = vld [vmem:[%s1945] sm:$0xf]
    %v1947 = vld [vmem:[%s1945 + $0x4] sm:$0xf]
    %v1948 = vld [vmem:[%s1945 + $0x8] sm:$0xf]
    %v1949 = vld [vmem:[%s1945 + $0xc] sm:$0xf]
    %v1954 = vunpack.c.l.b16 %v1946
    %v1955 = vunpack.c.l.b16 %v1947
    %v1956 = vunpack.c.l.b16 %v1948
    %v1957 = vunpack.c.l.b16 %v1949
    %v1958 = vpack.c.b16 %v1955, %v1954
    %v1959 = vpack.c.b16 %v1957, %v1956
    %1962 = vmatprep.subr.bf16.mxu0 0
    %1963 = vmatpush1.bf16.msra.mxu0 %v1958
    %1964 = vmatprep.subr.bf16.mxu0 0
    %1965 = vmatpush1.bf16.msra.mxu0 %v1959
    %1966 = vmatprep.subr.bf16.mxu0 0
    %1967 = vmatpush1.bf16.msra.mxu0 0
    %1968 = vmatprep.subr.bf16.mxu0 0
    %1969 = vmatpush1.bf16.msra.mxu0 0
    %1970 = vmatprep.subr.bf16.mxu0 0
    %1971 = vmatpush1.bf16.msra.mxu0 0
    %1972 = vmatprep.subr.bf16.mxu0 0
    %1973 = vmatpush1.bf16.msra.mxu0 0
    %1974 = vmatprep.subr.bf16.mxu0 0
    %1975 = vmatpush1.bf16.msra.mxu0 0
    %1976 = vmatprep.subr.bf16.mxu0 0
    %1977 = vmatpush1.bf16.msra.mxu0 0
    %1978 = vmatprep.subr.bf16.mxu0 0
    %1979 = vmatpush1.bf16.msra.mxu0 0
    %1980 = vmatprep.subr.bf16.mxu0 0
    %1981 = vmatpush1.bf16.msra.mxu0 0
    %1982 = vmatprep.subr.bf16.mxu0 0
    %1983 = vmatpush1.bf16.msra.mxu0 0
    %1984 = vmatprep.subr.bf16.mxu0 0
    %1985 = vmatpush1.bf16.msra.mxu0 0
    %1986 = vmatprep.subr.bf16.mxu0 0
    %1987 = vmatpush1.bf16.msra.mxu0 0
    %1988 = vmatprep.subr.bf16.mxu0 0
    %1989 = vmatpush1.bf16.msra.mxu0 0
    %1990 = vmatprep.subr.bf16.mxu0 0
    %1991 = vmatpush1.bf16.msra.mxu0 0
    %1992 = vmatprep.subr.bf16.mxu0 0
    %1993 = vmatpush1.bf16.msra.mxu0 0
    %1994 = vmatprep.mubr.bf16.mxu0 0
    %1995 = vmatmul.mubr.bf16.gmra.mrb[0].mxu0 %v563
    %v1996 = vpop.f32.mrb[0].mxu0
    %v1997 = vadd.f32 0.0, %v1996
    %v1998 = vpop.f32.mrb[0].mxu0
    %v1999 = vpop.f32.mrb[0].mxu0
    %v2000 = vpop.f32.mrb[0].mxu0
    %2001 = vdwg.mxu0
    %v2002 = vadd.f32 %v1939, %v1997
    %v2003 = vxor.u32 %v2002, 2147483648
    %v2004 = vmul.f32 %v2003, 1.442695
    %v2005 = vpow.pop %v2004
    %v2006 = vadd.f32 %v2005, 1.0
    %v2007 = vrcp.pop %v2006
    %v2008 = vmul.f32 1.0, %v2007
    %v2009 = vtanh.pop %v2002
    %v2010 = vmul.f32 %v2008, 0.0
    %2012 = vrot.lane.b32.xlu0 %v2009, 64
    %v2013 = vpop.permute.xlu0 %2012
    %v2015 = vmul.f32 %v2008, %v2013
    %2017 = vrot.lane.b32.xlu0 %v2015, 32
    %v2018 = vpop.permute.xlu0 %2017
    %v2020 = vadd.f32 %v2010, %v2018
    %v2021 = vtanh.pop %v2020
    %2023 = vrot.lane.b32.xlu0 %v2021, 64
    %v2024 = vpop.permute.xlu0 %2023
    %v2026 = vmul.f32 %v2008, %v2024
    %v2027 = vpack.c.bf16 %v2026, %v2026
    %2029 = vrot.lane.b32.xlu0 %v2027, 32
    %v2030 = vpop.permute.xlu0 %2029
    %v2032 = vsel %vm314, %v2030, 0
    %2034 = vmatprep.subr.bf16.mxu0 0
    %2035 = vmatpush1.bf16.msra.mxu0 %v1958
    %2036 = vmatprep.subr.bf16.mxu0 0
    %2037 = vmatpush1.bf16.msra.mxu0 %v1959
    %2038 = vmatprep.subr.bf16.mxu0 0
    %2039 = vmatpush1.bf16.msra.mxu0 0
    %2040 = vmatprep.subr.bf16.mxu0 0
    %2041 = vmatpush1.bf16.msra.mxu0 0
    %2042 = vmatprep.subr.bf16.mxu0 0
    %2043 = vmatpush1.bf16.msra.mxu0 0
    %2044 = vmatprep.subr.bf16.mxu0 0
    %2045 = vmatpush1.bf16.msra.mxu0 0
    %2046 = vmatprep.subr.bf16.mxu0 0
    %2047 = vmatpush1.bf16.msra.mxu0 0
    %2048 = vmatprep.subr.bf16.mxu0 0
    %2049 = vmatpush1.bf16.msra.mxu0 0
    %2050 = vmatprep.subr.bf16.mxu0 0
    %2051 = vmatpush1.bf16.msra.mxu0 0
    %2052 = vmatprep.subr.bf16.mxu0 0
    %2053 = vmatpush1.bf16.msra.mxu0 0
    %2054 = vmatprep.subr.bf16.mxu0 0
    %2055 = vmatpush1.bf16.msra.mxu0 0
    %2056 = vmatprep.subr.bf16.mxu0 0
    %2057 = vmatpush1.bf16.msra.mxu0 0
    %2058 = vmatprep.subr.bf16.mxu0 0
    %2059 = vmatpush1.bf16.msra.mxu0 0
    %2060 = vmatprep.subr.bf16.mxu0 0
    %2061 = vmatpush1.bf16.msra.mxu0 0
    %2062 = vmatprep.subr.bf16.mxu0 0
    %2063 = vmatpush1.bf16.msra.mxu0 0
    %2064 = vmatprep.subr.bf16.mxu0 0
    %2065 = vmatpush1.bf16.msra.mxu0 0
    %2066 = vmatprep.mubr.bf16.mxu0 0
    %2067 = vmatmul.mubr.bf16.gmra.mrb[0].mxu0 %v2032
    %v2068 = vpop.f32.mrb[0].mxu0
    %v2069 = vadd.f32 0.0, %v2068
    %v2070 = vpop.f32.mrb[0].mxu0
    %v2071 = vpop.f32.mrb[0].mxu0
    %v2072 = vpop.f32.mrb[0].mxu0
    %2073 = vdwg.mxu0
    %v2075 = vrot.slane %v2069, 4
    %v2077 = vadd.f32 %v1939, %v2075
    %v2078 = vxor.u32 %v2077, 2147483648
    %v2079 = vmul.f32 %v2078, 1.442695
    %v2080 = vpow.pop %v2079
    %v2081 = vadd.f32 %v2080, 1.0
    %v2082 = vrcp.pop %v2081
    %v2083 = vmul.f32 1.0, %v2082
    %v2084 = vtanh.pop %v2077
    %v2086 = vrot.slane %v2020, 4
    %v2088 = vmul.f32 %v2083, %v2086
    %2090 = vrot.lane.b32.xlu0 %v2084, 64
    %v2091 = vpop.permute.xlu0 %2090
    %v2093 = vmul.f32 %v2083, %v2091
    %2095 = vrot.lane.b32.xlu0 %v2093, 32
    %v2096 = vpop.permute.xlu0 %2095
    %v2098 = vadd.f32 %v2088, %v2096
    %v2099 = vtanh.pop %v2098
    %2101 = vrot.lane.b32.xlu0 %v2099, 64
    %v2102 = vpop.permute.xlu0 %2101
    %v2104 = vmul.f32 %v2083, %v2102
    %v2105 = vpack.c.bf16 %v2104, %v2104
    %v2107 = vrot.slane %v2105, 2
    %2108 = vrot.lane.b32.xlu0 %v2107, 32
    %v2109 = vpop.permute.xlu0 %2108
    %v2111 = vsel %vm314, %v2109, 0
    %2113 = vmatprep.subr.bf16.mxu0 0
    %2114 = vmatpush1.bf16.msra.mxu0 %v1958
    %2115 = vmatprep.subr.bf16.mxu0 0
    %2116 = vmatpush1.bf16.msra.mxu0 %v1959
    %2117 = vmatprep.subr.bf16.mxu0 0
    %2118 = vmatpush1.bf16.msra.mxu0 0
    %2119 = vmatprep.subr.bf16.mxu0 0
    %2120 = vmatpush1.bf16.msra.mxu0 0
    %2121 = vmatprep.subr.bf16.mxu0 0
    %2122 = vmatpush1.bf16.msra.mxu0 0
    %2123 = vmatprep.subr.bf16.mxu0 0
    %2124 = vmatpush1.bf16.msra.mxu0 0
    %2125 = vmatprep.subr.bf16.mxu0 0
    %2126 = vmatpush1.bf16.msra.mxu0 0
    %2127 = vmatprep.subr.bf16.mxu0 0
    %2128 = vmatpush1.bf16.msra.mxu0 0
    %2129 = vmatprep.subr.bf16.mxu0 0
    %2130 = vmatpush1.bf16.msra.mxu0 0
    %2131 = vmatprep.subr.bf16.mxu0 0
    %2132 = vmatpush1.bf16.msra.mxu0 0
    %2133 = vmatprep.subr.bf16.mxu0 0
    %2134 = vmatpush1.bf16.msra.mxu0 0
    %2135 = vmatprep.subr.bf16.mxu0 0
    %2136 = vmatpush1.bf16.msra.mxu0 0
    %2137 = vmatprep.subr.bf16.mxu0 0
    %2138 = vmatpush1.bf16.msra.mxu0 0
    %2139 = vmatprep.subr.bf16.mxu0 0
    %2140 = vmatpush1.bf16.msra.mxu0 0
    %2141 = vmatprep.subr.bf16.mxu0 0
    %2142 = vmatpush1.bf16.msra.mxu0 0
    %2143 = vmatprep.subr.bf16.mxu0 0
    %2144 = vmatpush1.bf16.msra.mxu0 0
    %2145 = vmatprep.mubr.bf16.mxu0 0
    %2146 = vmatmul.mubr.bf16.gmra.mrb[0].mxu0 %v2111
    %v2147 = vpop.f32.mrb[0].mxu0
    %v2148 = vadd.f32 0.0, %v2147
    %v2149 = vpop.f32.mrb[0].mxu0
    %v2150 = vpop.f32.mrb[0].mxu0
    %v2151 = vpop.f32.mrb[0].mxu0
    %2152 = vdwg.mxu0
    %v2153 = vadd.f32 %v1942, %v2148
    %v2154 = vxor.u32 %v2153, 2147483648
    %v2155 = vmul.f32 %v2154, 1.442695
    %v2156 = vpow.pop %v2155
    %v2157 = vadd.f32 %v2156, 1.0
    %v2158 = vrcp.pop %v2157
    %v2159 = vmul.f32 1.0, %v2158
    %v2160 = vtanh.pop %v2153
    %v2162 = vrot.slane %v2098, 4
    %v2164 = vmul.f32 %v2159, %v2162
    %2166 = vrot.lane.b32.xlu0 %v2160, 64
    %v2167 = vpop.permute.xlu0 %2166
    %v2169 = vmul.f32 %v2159, %v2167
    %2171 = vrot.lane.b32.xlu0 %v2169, 32
    %v2172 = vpop.permute.xlu0 %2171
    %v2174 = vadd.f32 %v2164, %v2172
    %v2175 = vtanh.pop %v2174
    %2177 = vrot.lane.b32.xlu0 %v2175, 64
    %v2178 = vpop.permute.xlu0 %2177
    %v2180 = vmul.f32 %v2159, %v2178
    %v2181 = vpack.c.bf16 %v2180, %v2180
    %2183 = vrot.lane.b32.xlu0 %v2181, 32
    %v2184 = vpop.permute.xlu0 %2183
    %v2186 = vsel %vm314, %v2184, 0
    %2188 = vmatprep.subr.bf16.mxu0 0
    %2189 = vmatpush1.bf16.msra.mxu0 %v1958
    %2190 = vmatprep.subr.bf16.mxu0 0
    %2191 = vmatpush1.bf16.msra.mxu0 %v1959
    %2192 = vmatprep.subr.bf16.mxu0 0
    %2193 = vmatpush1.bf16.msra.mxu0 0
    %2194 = vmatprep.subr.bf16.mxu0 0
    %2195 = vmatpush1.bf16.msra.mxu0 0
    %2196 = vmatprep.subr.bf16.mxu0 0
    %2197 = vmatpush1.bf16.msra.mxu0 0
    %2198 = vmatprep.subr.bf16.mxu0 0
    %2199 = vmatpush1.bf16.msra.mxu0 0
    %2200 = vmatprep.subr.bf16.mxu0 0
    %2201 = vmatpush1.bf16.msra.mxu0 0
    %2202 = vmatprep.subr.bf16.mxu0 0
    %2203 = vmatpush1.bf16.msra.mxu0 0
    %2204 = vmatprep.subr.bf16.mxu0 0
    %2205 = vmatpush1.bf16.msra.mxu0 0
    %2206 = vmatprep.subr.bf16.mxu0 0
    %2207 = vmatpush1.bf16.msra.mxu0 0
    %2208 = vmatprep.subr.bf16.mxu0 0
    %2209 = vmatpush1.bf16.msra.mxu0 0
    %2210 = vmatprep.subr.bf16.mxu0 0
    %2211 = vmatpush1.bf16.msra.mxu0 0
    %2212 = vmatprep.subr.bf16.mxu0 0
    %2213 = vmatpush1.bf16.msra.mxu0 0
    %2214 = vmatprep.subr.bf16.mxu0 0
    %2215 = vmatpush1.bf16.msra.mxu0 0
    %2216 = vmatprep.subr.bf16.mxu0 0
    %2217 = vmatpush1.bf16.msra.mxu0 0
    %2218 = vmatprep.subr.bf16.mxu0 0
    %2219 = vmatpush1.bf16.msra.mxu0 0
    %2220 = vmatprep.mubr.bf16.mxu0 0
    %2221 = vmatmul.mubr.bf16.gmra.mrb[0].mxu0 %v2186
    %v2222 = vpop.f32.mrb[0].mxu0
    %v2223 = vadd.f32 0.0, %v2222
    %v2224 = vpop.f32.mrb[0].mxu0
    %v2225 = vpop.f32.mrb[0].mxu0
    %v2226 = vpop.f32.mrb[0].mxu0
    %2227 = vdwg.mxu0
    %v2229 = vrot.slane %v2223, 4
    %v2231 = vadd.f32 %v1942, %v2229
    %v2232 = vxor.u32 %v2231, 2147483648
    %v2233 = vmul.f32 %v2232, 1.442695
    %v2234 = vpow.pop %v2233
    %v2235 = vadd.f32 %v2234, 1.0
    %v2236 = vrcp.pop %v2235
    %v2237 = vmul.f32 1.0, %v2236
    %v2238 = vtanh.pop %v2231
    %v2240 = vrot.slane %v2174, 4
    %v2242 = vmul.f32 %v2237, %v2240
    %2244 = vrot.lane.b32.xlu0 %v2238, 64
    %v2245 = vpop.permute.xlu0 %2244
    %v2247 = vmul.f32 %v2237, %v2245
    %2249 = vrot.lane.b32.xlu0 %v2247, 32
    %v2250 = vpop.permute.xlu0 %2249
    %v2252 = vadd.f32 %v2242, %v2250
    %v2253 = vtanh.pop %v2252
    %2255 = vrot.lane.b32.xlu0 %v2253, 64
    %v2256 = vpop.permute.xlu0 %2255
    %v2258 = vmul.f32 %v2237, %v2256
    %v2259 = vsel %vm493, %v2026, %v2104
    %v2260 = vsel %vm493, %v2180, %v2258
    %v2261 = vpack.c.bf16 %v2260, %v2259
    %s2262 = scalar_lea.vmem %s45, 16
    %v2263 = vld [vmem:[%s2262] sm:$0xf]
    %v2264 = vld [vmem:[%s2262 + $0x4] sm:$0xf]
    %v2265 = vld [vmem:[%s2262 + $0x8] sm:$0xf]
    %v2266 = vld [vmem:[%s2262 + $0xc] sm:$0xf]
    %s2267 = scalar_lea.vmem %s49, 1
    %v2268 = vld [vmem:[%s2267] sm:$0x1]
    %v2270 = vlaneseq
    %v2271 = vshrl.u32 %v2270, 7
    %v2272 = vsub.s32 0, %v2271
    %v2273 = vrot.slane %v2268, %v2272
    %2276 = vrot.lane.b32.xlu0 %v2261, 32
    %v2277 = vpop.permute.xlu0 %2276
    %v2282 = vunpack.c.l.b16 %v2263
    %v2283 = vunpack.c.l.b16 %v2264
    %v2284 = vunpack.c.l.b16 %v2265
    %v2285 = vunpack.c.l.b16 %v2266
    %v2286 = vpack.c.b16 %v2283, %v2282
    %v2287 = vpack.c.b16 %v2285, %v2284
    %v2291 = vsel %vm314, %v2277, 0
    %2293 = vmatprep.subr.bf16.mxu0 0
    %2294 = vmatpush1.bf16.msra.mxu0 %v2286
    %2295 = vmatprep.subr.bf16.mxu0 0
    %2296 = vmatpush1.bf16.msra.mxu0 %v2287
    %2297 = vmatprep.subr.bf16.mxu0 0
    %2298 = vmatpush1.bf16.msra.mxu0 0
    %2299 = vmatprep.subr.bf16.mxu0 0
    %2300 = vmatpush1.bf16.msra.mxu0 0
    %2301 = vmatprep.subr.bf16.mxu0 0
    %2302 = vmatpush1.bf16.msra.mxu0 0
    %2303 = vmatprep.subr.bf16.mxu0 0
    %2304 = vmatpush1.bf16.msra.mxu0 0
    %2305 = vmatprep.subr.bf16.mxu0 0
    %2306 = vmatpush1.bf16.msra.mxu0 0
    %2307 = vmatprep.subr.bf16.mxu0 0
    %2308 = vmatpush1.bf16.msra.mxu0 0
    %2309 = vmatprep.subr.bf16.mxu0 0
    %2310 = vmatpush1.bf16.msra.mxu0 0
    %2311 = vmatprep.subr.bf16.mxu0 0
    %2312 = vmatpush1.bf16.msra.mxu0 0
    %2313 = vmatprep.subr.bf16.mxu0 0
    %2314 = vmatpush1.bf16.msra.mxu0 0
    %2315 = vmatprep.subr.bf16.mxu0 0
    %2316 = vmatpush1.bf16.msra.mxu0 0
    %2317 = vmatprep.subr.bf16.mxu0 0
    %2318 = vmatpush1.bf16.msra.mxu0 0
    %2319 = vmatprep.subr.bf16.mxu0 0
    %2320 = vmatpush1.bf16.msra.mxu0 0
    %2321 = vmatprep.subr.bf16.mxu0 0
    %2322 = vmatpush1.bf16.msra.mxu0 0
    %2323 = vmatprep.subr.bf16.mxu0 0
    %2324 = vmatpush1.bf16.msra.mxu0 0
    %2325 = vmatprep.mubr.bf16.mxu0 0
    %2326 = vmatmul.mubr.bf16.gmra.mrb[0].mxu0 %v2291
    %v2327 = vpop.f32.mrb[0].mxu0
    %v2328 = vadd.f32 %v2273, %v2327
    %v2329 = vpop.f32.mrb[0].mxu0
    %v2330 = vpop.f32.mrb[0].mxu0
    %v2331 = vadd.f32 %v2273, %v2330
    %v2332 = vpop.f32.mrb[0].mxu0
    %2333 = vdwg.mxu0
    %s2334 = scalar_lea.vmem %s47, 16
    %v2335 = vld [vmem:[%s2334] sm:$0xf]
    %v2336 = vld [vmem:[%s2334 + $0x4] sm:$0xf]
    %v2337 = vld [vmem:[%s2334 + $0x8] sm:$0xf]
    %v2338 = vld [vmem:[%s2334 + $0xc] sm:$0xf]
    %v2343 = vunpack.c.l.b16 %v2335
    %v2344 = vunpack.c.l.b16 %v2336
    %v2345 = vunpack.c.l.b16 %v2337
    %v2346 = vunpack.c.l.b16 %v2338
    %v2347 = vpack.c.b16 %v2344, %v2343
    %v2348 = vpack.c.b16 %v2346, %v2345
    %2351 = vmatprep.subr.bf16.mxu0 0
    %2352 = vmatpush1.bf16.msra.mxu0 %v2347
    %2353 = vmatprep.subr.bf16.mxu0 0
    %2354 = vmatpush1.bf16.msra.mxu0 %v2348
    %2355 = vmatprep.subr.bf16.mxu0 0
    %2356 = vmatpush1.bf16.msra.mxu0 0
    %2357 = vmatprep.subr.bf16.mxu0 0
    %2358 = vmatpush1.bf16.msra.mxu0 0
    %2359 = vmatprep.subr.bf16.mxu0 0
    %2360 = vmatpush1.bf16.msra.mxu0 0
    %2361 = vmatprep.subr.bf16.mxu0 0
    %2362 = vmatpush1.bf16.msra.mxu0 0
    %2363 = vmatprep.subr.bf16.mxu0 0
    %2364 = vmatpush1.bf16.msra.mxu0 0
    %2365 = vmatprep.subr.bf16.mxu0 0
    %2366 = vmatpush1.bf16.msra.mxu0 0
    %2367 = vmatprep.subr.bf16.mxu0 0
    %2368 = vmatpush1.bf16.msra.mxu0 0
    %2369 = vmatprep.subr.bf16.mxu0 0
    %2370 = vmatpush1.bf16.msra.mxu0 0
    %2371 = vmatprep.subr.bf16.mxu0 0
    %2372 = vmatpush1.bf16.msra.mxu0 0
    %2373 = vmatprep.subr.bf16.mxu0 0
    %2374 = vmatpush1.bf16.msra.mxu0 0
    %2375 = vmatprep.subr.bf16.mxu0 0
    %2376 = vmatpush1.bf16.msra.mxu0 0
    %2377 = vmatprep.subr.bf16.mxu0 0
    %2378 = vmatpush1.bf16.msra.mxu0 0
    %2379 = vmatprep.subr.bf16.mxu0 0
    %2380 = vmatpush1.bf16.msra.mxu0 0
    %2381 = vmatprep.subr.bf16.mxu0 0
    %2382 = vmatpush1.bf16.msra.mxu0 0
    %2383 = vmatprep.mubr.bf16.mxu0 0
    %2384 = vmatmul.mubr.bf16.gmra.mrb[0].mxu0 %v563
    %v2385 = vpop.f32.mrb[0].mxu0
    %v2386 = vadd.f32 0.0, %v2385
    %v2387 = vpop.f32.mrb[0].mxu0
    %v2388 = vpop.f32.mrb[0].mxu0
    %v2389 = vpop.f32.mrb[0].mxu0
    %2390 = vdwg.mxu0
    %v2391 = vadd.f32 %v2328, %v2386
    %v2392 = vxor.u32 %v2391, 2147483648
    %v2393 = vmul.f32 %v2392, 1.442695
    %v2394 = vpow.pop %v2393
    %v2395 = vadd.f32 %v2394, 1.0
    %v2396 = vrcp.pop %v2395
    %v2397 = vmul.f32 1.0, %v2396
    %v2398 = vtanh.pop %v2391
    %v2399 = vmul.f32 %v2397, 0.0
    %2401 = vrot.lane.b32.xlu0 %v2398, 64
    %v2402 = vpop.permute.xlu0 %2401
    %v2404 = vmul.f32 %v2397, %v2402
    %2406 = vrot.lane.b32.xlu0 %v2404, 32
    %v2407 = vpop.permute.xlu0 %2406
    %v2409 = vadd.f32 %v2399, %v2407
    %v2410 = vtanh.pop %v2409
    %2412 = vrot.lane.b32.xlu0 %v2410, 64
    %v2413 = vpop.permute.xlu0 %2412
    %v2415 = vmul.f32 %v2397, %v2413
    %v2416 = vpack.c.bf16 %v2415, %v2415
    %2418 = vrot.lane.b32.xlu0 %v2416, 32
    %v2419 = vpop.permute.xlu0 %2418
    %v2421 = vsel %vm314, %v2419, 0
    %2423 = vmatprep.subr.bf16.mxu0 0
    %2424 = vmatpush1.bf16.msra.mxu0 %v2347
    %2425 = vmatprep.subr.bf16.mxu0 0
    %2426 = vmatpush1.bf16.msra.mxu0 %v2348
    %2427 = vmatprep.subr.bf16.mxu0 0
    %2428 = vmatpush1.bf16.msra.mxu0 0
    %2429 = vmatprep.subr.bf16.mxu0 0
    %2430 = vmatpush1.bf16.msra.mxu0 0
    %2431 = vmatprep.subr.bf16.mxu0 0
    %2432 = vmatpush1.bf16.msra.mxu0 0
    %2433 = vmatprep.subr.bf16.mxu0 0
    %2434 = vmatpush1.bf16.msra.mxu0 0
    %2435 = vmatprep.subr.bf16.mxu0 0
    %2436 = vmatpush1.bf16.msra.mxu0 0
    %2437 = vmatprep.subr.bf16.mxu0 0
    %2438 = vmatpush1.bf16.msra.mxu0 0
    %2439 = vmatprep.subr.bf16.mxu0 0
    %2440 = vmatpush1.bf16.msra.mxu0 0
    %2441 = vmatprep.subr.bf16.mxu0 0
    %2442 = vmatpush1.bf16.msra.mxu0 0
    %2443 = vmatprep.subr.bf16.mxu0 0
    %2444 = vmatpush1.bf16.msra.mxu0 0
    %2445 = vmatprep.subr.bf16.mxu0 0
    %2446 = vmatpush1.bf16.msra.mxu0 0
    %2447 = vmatprep.subr.bf16.mxu0 0
    %2448 = vmatpush1.bf16.msra.mxu0 0
    %2449 = vmatprep.subr.bf16.mxu0 0
    %2450 = vmatpush1.bf16.msra.mxu0 0
    %2451 = vmatprep.subr.bf16.mxu0 0
    %2452 = vmatpush1.bf16.msra.mxu0 0
    %2453 = vmatprep.subr.bf16.mxu0 0
    %2454 = vmatpush1.bf16.msra.mxu0 0
    %2455 = vmatprep.mubr.bf16.mxu0 0
    %2456 = vmatmul.mubr.bf16.gmra.mrb[0].mxu0 %v2421
    %v2457 = vpop.f32.mrb[0].mxu0
    %v2458 = vadd.f32 0.0, %v2457
    %v2459 = vpop.f32.mrb[0].mxu0
    %v2460 = vpop.f32.mrb[0].mxu0
    %v2461 = vpop.f32.mrb[0].mxu0
    %2462 = vdwg.mxu0
    %v2464 = vrot.slane %v2458, 4
    %v2466 = vadd.f32 %v2328, %v2464
    %v2467 = vxor.u32 %v2466, 2147483648
    %v2468 = vmul.f32 %v2467, 1.442695
    %v2469 = vpow.pop %v2468
    %v2470 = vadd.f32 %v2469, 1.0
    %v2471 = vrcp.pop %v2470
    %v2472 = vmul.f32 1.0, %v2471
    %v2473 = vtanh.pop %v2466
    %v2475 = vrot.slane %v2409, 4
    %v2477 = vmul.f32 %v2472, %v2475
    %2479 = vrot.lane.b32.xlu0 %v2473, 64
    %v2480 = vpop.permute.xlu0 %2479
    %v2482 = vmul.f32 %v2472, %v2480
    %2484 = vrot.lane.b32.xlu0 %v2482, 32
    %v2485 = vpop.permute.xlu0 %2484
    %v2487 = vadd.f32 %v2477, %v2485
    %v2488 = vtanh.pop %v2487
    %2490 = vrot.lane.b32.xlu0 %v2488, 64
    %v2491 = vpop.permute.xlu0 %2490
    %v2493 = vmul.f32 %v2472, %v2491
    %v2494 = vpack.c.bf16 %v2493, %v2493
    %v2496 = vrot.slane %v2494, 2
    %2497 = vrot.lane.b32.xlu0 %v2496, 32
    %v2498 = vpop.permute.xlu0 %2497
    %v2500 = vsel %vm314, %v2498, 0
    %2502 = vmatprep.subr.bf16.mxu0 0
    %2503 = vmatpush1.bf16.msra.mxu0 %v2347
    %2504 = vmatprep.subr.bf16.mxu0 0
    %2505 = vmatpush1.bf16.msra.mxu0 %v2348
    %2506 = vmatprep.subr.bf16.mxu0 0
    %2507 = vmatpush1.bf16.msra.mxu0 0
    %2508 = vmatprep.subr.bf16.mxu0 0
    %2509 = vmatpush1.bf16.msra.mxu0 0
    %2510 = vmatprep.subr.bf16.mxu0 0
    %2511 = vmatpush1.bf16.msra.mxu0 0
    %2512 = vmatprep.subr.bf16.mxu0 0
    %2513 = vmatpush1.bf16.msra.mxu0 0
    %2514 = vmatprep.subr.bf16.mxu0 0
    %2515 = vmatpush1.bf16.msra.mxu0 0
    %2516 = vmatprep.subr.bf16.mxu0 0
    %2517 = vmatpush1.bf16.msra.mxu0 0
    %2518 = vmatprep.subr.bf16.mxu0 0
    %2519 = vmatpush1.bf16.msra.mxu0 0
    %2520 = vmatprep.subr.bf16.mxu0 0
    %2521 = vmatpush1.bf16.msra.mxu0 0
    %2522 = vmatprep.subr.bf16.mxu0 0
    %2523 = vmatpush1.bf16.msra.mxu0 0
    %2524 = vmatprep.subr.bf16.mxu0 0
    %2525 = vmatpush1.bf16.msra.mxu0 0
    %2526 = vmatprep.subr.bf16.mxu0 0
    %2527 = vmatpush1.bf16.msra.mxu0 0
    %2528 = vmatprep.subr.bf16.mxu0 0
    %2529 = vmatpush1.bf16.msra.mxu0 0
    %2530 = vmatprep.subr.bf16.mxu0 0
    %2531 = vmatpush1.bf16.msra.mxu0 0
    %2532 = vmatprep.subr.bf16.mxu0 0
    %2533 = vmatpush1.bf16.msra.mxu0 0
    %2534 = vmatprep.mubr.bf16.mxu0 0
    %2535 = vmatmul.mubr.bf16.gmra.mrb[0].mxu0 %v2500
    %v2536 = vpop.f32.mrb[0].mxu0
    %v2537 = vadd.f32 0.0, %v2536
    %v2538 = vpop.f32.mrb[0].mxu0
    %v2539 = vpop.f32.mrb[0].mxu0
    %v2540 = vpop.f32.mrb[0].mxu0
    %2541 = vdwg.mxu0
    %v2542 = vadd.f32 %v2331, %v2537
    %v2543 = vxor.u32 %v2542, 2147483648
    %v2544 = vmul.f32 %v2543, 1.442695
    %v2545 = vpow.pop %v2544
    %v2546 = vadd.f32 %v2545, 1.0
    %v2547 = vrcp.pop %v2546
    %v2548 = vmul.f32 1.0, %v2547
    %v2549 = vtanh.pop %v2542
    %v2551 = vrot.slane %v2487, 4
    %v2553 = vmul.f32 %v2548, %v2551
    %2555 = vrot.lane.b32.xlu0 %v2549, 64
    %v2556 = vpop.permute.xlu0 %2555
    %v2558 = vmul.f32 %v2548, %v2556
    %2560 = vrot.lane.b32.xlu0 %v2558, 32
    %v2561 = vpop.permute.xlu0 %2560
    %v2563 = vadd.f32 %v2553, %v2561
    %v2564 = vtanh.pop %v2563
    %2566 = vrot.lane.b32.xlu0 %v2564, 64
    %v2567 = vpop.permute.xlu0 %2566
    %v2569 = vmul.f32 %v2548, %v2567
    %v2570 = vpack.c.bf16 %v2569, %v2569
    %2572 = vrot.lane.b32.xlu0 %v2570, 32
    %v2573 = vpop.permute.xlu0 %2572
    %v2575 = vsel %vm314, %v2573, 0
    %2577 = vmatprep.subr.bf16.mxu0 0
    %2578 = vmatpush1.bf16.msra.mxu0 %v2347
    %2579 = vmatprep.subr.bf16.mxu0 0
    %2580 = vmatpush1.bf16.msra.mxu0 %v2348
    %2581 = vmatprep.subr.bf16.mxu0 0
    %2582 = vmatpush1.bf16.msra.mxu0 0
    %2583 = vmatprep.subr.bf16.mxu0 0
    %2584 = vmatpush1.bf16.msra.mxu0 0
    %2585 = vmatprep.subr.bf16.mxu0 0
    %2586 = vmatpush1.bf16.msra.mxu0 0
    %2587 = vmatprep.subr.bf16.mxu0 0
    %2588 = vmatpush1.bf16.msra.mxu0 0
    %2589 = vmatprep.subr.bf16.mxu0 0
    %2590 = vmatpush1.bf16.msra.mxu0 0
    %2591 = vmatprep.subr.bf16.mxu0 0
    %2592 = vmatpush1.bf16.msra.mxu0 0
    %2593 = vmatprep.subr.bf16.mxu0 0
    %2594 = vmatpush1.bf16.msra.mxu0 0
    %2595 = vmatprep.subr.bf16.mxu0 0
    %2596 = vmatpush1.bf16.msra.mxu0 0
    %2597 = vmatprep.subr.bf16.mxu0 0
    %2598 = vmatpush1.bf16.msra.mxu0 0
    %2599 = vmatprep.subr.bf16.mxu0 0
    %2600 = vmatpush1.bf16.msra.mxu0 0
    %2601 = vmatprep.subr.bf16.mxu0 0
    %2602 = vmatpush1.bf16.msra.mxu0 0
    %2603 = vmatprep.subr.bf16.mxu0 0
    %2604 = vmatpush1.bf16.msra.mxu0 0
    %2605 = vmatprep.subr.bf16.mxu0 0
    %2606 = vmatpush1.bf16.msra.mxu0 0
    %2607 = vmatprep.subr.bf16.mxu0 0
    %2608 = vmatpush1.bf16.msra.mxu0 0
    %2609 = vmatprep.mubr.bf16.mxu0 0
    %2610 = vmatmul.mubr.bf16.gmra.mrb[0].mxu0 %v2575
    %v2611 = vpop.f32.mrb[0].mxu0
    %v2612 = vadd.f32 0.0, %v2611
    %v2613 = vpop.f32.mrb[0].mxu0
    %v2614 = vpop.f32.mrb[0].mxu0
    %v2615 = vpop.f32.mrb[0].mxu0
    %2616 = vdwg.mxu0
    %v2618 = vrot.slane %v2612, 4
    %v2620 = vadd.f32 %v2331, %v2618
    %v2621 = vxor.u32 %v2620, 2147483648
    %v2622 = vmul.f32 %v2621, 1.442695
    %v2623 = vpow.pop %v2622
    %v2624 = vadd.f32 %v2623, 1.0
    %v2625 = vrcp.pop %v2624
    %v2626 = vmul.f32 1.0, %v2625
    %v2627 = vtanh.pop %v2620
    %v2629 = vrot.slane %v2563, 4
    %v2631 = vmul.f32 %v2626, %v2629
    %2633 = vrot.lane.b32.xlu0 %v2627, 64
    %v2634 = vpop.permute.xlu0 %2633
    %v2636 = vmul.f32 %v2626, %v2634
    %2638 = vrot.lane.b32.xlu0 %v2636, 32
    %v2639 = vpop.permute.xlu0 %2638
    %v2641 = vadd.f32 %v2631, %v2639
    %v2642 = vtanh.pop %v2641
    %2644 = vrot.lane.b32.xlu0 %v2642, 64
    %v2645 = vpop.permute.xlu0 %2644
    %v2647 = vmul.f32 %v2626, %v2645
    %v2648 = vld [vmem:[%s37] sm:$0xf]
    %s2649 = scalar_lea.vmem %s39, 8
    %v2650 = vld [vmem:[%s2649] sm:$0xf]
    %s2651 = scalar_lea.vmem %s43, 2
    %v2652 = vld [vmem:[%s2651] sm:$0x1]
    %v2654 = vlaneseq
    %v2655 = vshrl.u32 %v2654, 7
    %v2656 = vsub.s32 0, %v2655
    %v2657 = vrot.slane %v2652, %v2656
    %v2660 = vsel %vm486, %v2648, 0
    %v2663 = vsel %vm493, %v2650, 0
    %2665 = vmatprep.subr.bf16.mxu0 0
    %2666 = vmatpush1.bf16.msra.mxu0 %v2663
    %2667 = vmatprep.subr.bf16.mxu0 0
    %2668 = vmatpush1.bf16.msra.mxu0 0
    %2669 = vmatprep.subr.bf16.mxu0 0
    %2670 = vmatpush1.bf16.msra.mxu0 0
    %2671 = vmatprep.subr.bf16.mxu0 0
    %2672 = vmatpush1.bf16.msra.mxu0 0
    %2673 = vmatprep.subr.bf16.mxu0 0
    %2674 = vmatpush1.bf16.msra.mxu0 0
    %2675 = vmatprep.subr.bf16.mxu0 0
    %2676 = vmatpush1.bf16.msra.mxu0 0
    %2677 = vmatprep.subr.bf16.mxu0 0
    %2678 = vmatpush1.bf16.msra.mxu0 0
    %2679 = vmatprep.subr.bf16.mxu0 0
    %2680 = vmatpush1.bf16.msra.mxu0 0
    %2681 = vmatprep.subr.bf16.mxu0 0
    %2682 = vmatpush1.bf16.msra.mxu0 0
    %2683 = vmatprep.subr.bf16.mxu0 0
    %2684 = vmatpush1.bf16.msra.mxu0 0
    %2685 = vmatprep.subr.bf16.mxu0 0
    %2686 = vmatpush1.bf16.msra.mxu0 0
    %2687 = vmatprep.subr.bf16.mxu0 0
    %2688 = vmatpush1.bf16.msra.mxu0 0
    %2689 = vmatprep.subr.bf16.mxu0 0
    %2690 = vmatpush1.bf16.msra.mxu0 0
    %2691 = vmatprep.subr.bf16.mxu0 0
    %2692 = vmatpush1.bf16.msra.mxu0 0
    %2693 = vmatprep.subr.bf16.mxu0 0
    %2694 = vmatpush1.bf16.msra.mxu0 0
    %2695 = vmatprep.subr.bf16.mxu0 0
    %2696 = vmatpush1.bf16.msra.mxu0 0
    %2697 = vmatprep.mubr.bf16.mxu0 0
    %2698 = vmatmul.mubr.bf16.gmra.mrb[0].mxu0 %v2660
    %v2699 = vpop.f32.mrb[0].mxu0
    %v2700 = vadd.f32 %v2657, %v2699
    %v2701 = vpop.f32.mrb[0].mxu0
    %v2702 = vpop.f32.mrb[0].mxu0
    %v2703 = vpop.f32.mrb[0].mxu0
    %2704 = vdwg.mxu0
    %s2705 = scalar_lea.vmem %s41, 32
    %v2706 = vld [vmem:[%s2705] sm:$0xf]
    %v2707 = vld [vmem:[%s2705 + $0x4] sm:$0xf]
    %v2708 = vld [vmem:[%s2705 + $0x8] sm:$0xf]
    %v2709 = vld [vmem:[%s2705 + $0xc] sm:$0xf]
    %v2714 = vunpack.c.l.b16 %v2706
    %v2715 = vunpack.c.l.b16 %v2707
    %v2716 = vunpack.c.l.b16 %v2708
    %v2717 = vunpack.c.l.b16 %v2709
    %v2718 = vpack.c.b16 %v2715, %v2714
    %v2719 = vpack.c.b16 %v2717, %v2716
    %2722 = vmatprep.subr.bf16.mxu0 0
    %2723 = vmatpush1.bf16.msra.mxu0 %v2718
    %2724 = vmatprep.subr.bf16.mxu0 0
    %2725 = vmatpush1.bf16.msra.mxu0 %v2719
    %2726 = vmatprep.subr.bf16.mxu0 0
    %2727 = vmatpush1.bf16.msra.mxu0 0
    %2728 = vmatprep.subr.bf16.mxu0 0
    %2729 = vmatpush1.bf16.msra.mxu0 0
    %2730 = vmatprep.subr.bf16.mxu0 0
    %2731 = vmatpush1.bf16.msra.mxu0 0
    %2732 = vmatprep.subr.bf16.mxu0 0
    %2733 = vmatpush1.bf16.msra.mxu0 0
    %2734 = vmatprep.subr.bf16.mxu0 0
    %2735 = vmatpush1.bf16.msra.mxu0 0
    %2736 = vmatprep.subr.bf16.mxu0 0
    %2737 = vmatpush1.bf16.msra.mxu0 0
    %2738 = vmatprep.subr.bf16.mxu0 0
    %2739 = vmatpush1.bf16.msra.mxu0 0
    %2740 = vmatprep.subr.bf16.mxu0 0
    %2741 = vmatpush1.bf16.msra.mxu0 0
    %2742 = vmatprep.subr.bf16.mxu0 0
    %2743 = vmatpush1.bf16.msra.mxu0 0
    %2744 = vmatprep.subr.bf16.mxu0 0
    %2745 = vmatpush1.bf16.msra.mxu0 0
    %2746 = vmatprep.subr.bf16.mxu0 0
    %2747 = vmatpush1.bf16.msra.mxu0 0
    %2748 = vmatprep.subr.bf16.mxu0 0
    %2749 = vmatpush1.bf16.msra.mxu0 0
    %2750 = vmatprep.subr.bf16.mxu0 0
    %2751 = vmatpush1.bf16.msra.mxu0 0
    %2752 = vmatprep.subr.bf16.mxu0 0
    %2753 = vmatpush1.bf16.msra.mxu0 0
    %2754 = vmatprep.mubr.bf16.mxu0 0
    %2755 = vmatmul.mubr.bf16.gmra.mrb[0].mxu0 %v563
    %v2756 = vpop.f32.mrb[0].mxu0
    %v2757 = vadd.f32 0.0, %v2756
    %v2758 = vpop.f32.mrb[0].mxu0
    %v2759 = vpop.f32.mrb[0].mxu0
    %v2760 = vpop.f32.mrb[0].mxu0
    %2761 = vdwg.mxu0
    %v2762 = vadd.f32 %v2700, %v2757
    %v2763 = vxor.u32 %v2762, 2147483648
    %v2764 = vmul.f32 %v2763, 1.442695
    %v2765 = vpow.pop %v2764
    %v2766 = vadd.f32 %v2765, 1.0
    %v2767 = vrcp.pop %v2766
    %v2768 = vmul.f32 1.0, %v2767
    %v2769 = vtanh.pop %v2762
    %v2770 = vmul.f32 %v2768, 0.0
    %2772 = vrot.lane.b32.xlu0 %v2769, 64
    %v2773 = vpop.permute.xlu0 %2772
    %v2775 = vmul.f32 %v2768, %v2773
    %2777 = vrot.lane.b32.xlu0 %v2775, 32
    %v2778 = vpop.permute.xlu0 %2777
    %v2780 = vadd.f32 %v2770, %v2778
    %v2781 = vtanh.pop %v2780
    %2783 = vrot.lane.b32.xlu0 %v2781, 64
    %v2784 = vpop.permute.xlu0 %2783
    %v2786 = vmul.f32 %v2768, %v2784
    %v2787 = vpack.c.bf16 %v2786, %v2786
    %2789 = vrot.lane.b32.xlu0 %v2787, 32
    %v2790 = vpop.permute.xlu0 %2789
    %v2792 = vsel %vm314, %v2790, 0
    %2794 = vmatprep.subr.bf16.mxu0 0
    %2795 = vmatpush1.bf16.msra.mxu0 %v2718
    %2796 = vmatprep.subr.bf16.mxu0 0
    %2797 = vmatpush1.bf16.msra.mxu0 %v2719
    %2798 = vmatprep.subr.bf16.mxu0 0
    %2799 = vmatpush1.bf16.msra.mxu0 0
    %2800 = vmatprep.subr.bf16.mxu0 0
    %2801 = vmatpush1.bf16.msra.mxu0 0
    %2802 = vmatprep.subr.bf16.mxu0 0
    %2803 = vmatpush1.bf16.msra.mxu0 0
    %2804 = vmatprep.subr.bf16.mxu0 0
    %2805 = vmatpush1.bf16.msra.mxu0 0
    %2806 = vmatprep.subr.bf16.mxu0 0
    %2807 = vmatpush1.bf16.msra.mxu0 0
    %2808 = vmatprep.subr.bf16.mxu0 0
    %2809 = vmatpush1.bf16.msra.mxu0 0
    %2810 = vmatprep.subr.bf16.mxu0 0
    %2811 = vmatpush1.bf16.msra.mxu0 0
    %2812 = vmatprep.subr.bf16.mxu0 0
    %2813 = vmatpush1.bf16.msra.mxu0 0
    %2814 = vmatprep.subr.bf16.mxu0 0
    %2815 = vmatpush1.bf16.msra.mxu0 0
    %2816 = vmatprep.subr.bf16.mxu0 0
    %2817 = vmatpush1.bf16.msra.mxu0 0
    %2818 = vmatprep.subr.bf16.mxu0 0
    %2819 = vmatpush1.bf16.msra.mxu0 0
    %2820 = vmatprep.subr.bf16.mxu0 0
    %2821 = vmatpush1.bf16.msra.mxu0 0
    %2822 = vmatprep.subr.bf16.mxu0 0
    %2823 = vmatpush1.bf16.msra.mxu0 0
    %2824 = vmatprep.subr.bf16.mxu0 0
    %2825 = vmatpush1.bf16.msra.mxu0 0
    %2826 = vmatprep.mubr.bf16.mxu0 0
    %2827 = vmatmul.mubr.bf16.gmra.mrb[0].mxu0 %v2792
    %v2828 = vpop.f32.mrb[0].mxu0
    %v2829 = vadd.f32 0.0, %v2828
    %v2830 = vpop.f32.mrb[0].mxu0
    %v2831 = vpop.f32.mrb[0].mxu0
    %v2832 = vpop.f32.mrb[0].mxu0
    %2833 = vdwg.mxu0
    %v2835 = vrot.slane %v2829, 4
    %v2837 = vadd.f32 %v2700, %v2835
    %v2838 = vxor.u32 %v2837, 2147483648
    %v2839 = vmul.f32 %v2838, 1.442695
    %v2840 = vpow.pop %v2839
    %v2841 = vadd.f32 %v2840, 1.0
    %v2842 = vrcp.pop %v2841
    %v2843 = vmul.f32 1.0, %v2842
    %v2844 = vtanh.pop %v2837
    %v2846 = vrot.slane %v2780, 4
    %v2848 = vmul.f32 %v2843, %v2846
    %2850 = vrot.lane.b32.xlu0 %v2844, 64
    %v2851 = vpop.permute.xlu0 %2850
    %v2853 = vmul.f32 %v2843, %v2851
    %2855 = vrot.lane.b32.xlu0 %v2853, 32
    %v2856 = vpop.permute.xlu0 %2855
    %v2858 = vadd.f32 %v2848, %v2856
    %v2859 = vtanh.pop %v2858
    %2861 = vrot.lane.b32.xlu0 %v2859, 64
    %v2862 = vpop.permute.xlu0 %2861
    %v2864 = vmul.f32 %v2843, %v2862
    %v2865 = vsel %vm493, %v2786, %v2864
    %v2866 = vpack.c.bf16 %v2865, %v2865
    %s2867 = scalar_lea.vmem %s45, 32
    %v2868 = vld [vmem:[%s2867] sm:$0xf]
    %v2869 = vld [vmem:[%s2867 + $0x4] sm:$0xf]
    %v2870 = vld [vmem:[%s2867 + $0x8] sm:$0xf]
    %v2871 = vld [vmem:[%s2867 + $0xc] sm:$0xf]
    %s2872 = scalar_lea.vmem %s49, 2
    %v2873 = vld [vmem:[%s2872] sm:$0x1]
    %v2875 = vlaneseq
    %v2876 = vshrl.u32 %v2875, 7
    %v2877 = vsub.s32 0, %v2876
    %v2878 = vrot.slane %v2873, %v2877
    %2881 = vrot.lane.b32.xlu0 %v2866, 32
    %v2882 = vpop.permute.xlu0 %2881
    %v2887 = vunpack.c.l.b16 %v2868
    %v2888 = vunpack.c.l.b16 %v2869
    %v2889 = vunpack.c.l.b16 %v2870
    %v2890 = vunpack.c.l.b16 %v2871
    %v2891 = vpack.c.b16 %v2888, %v2887
    %v2892 = vpack.c.b16 %v2890, %v2889
    %v2896 = vsel %vm314, %v2882, 0
    %2898 = vmatprep.subr.bf16.mxu0 0
    %2899 = vmatpush1.bf16.msra.mxu0 %v2891
    %2900 = vmatprep.subr.bf16.mxu0 0
    %2901 = vmatpush1.bf16.msra.mxu0 %v2892
    %2902 = vmatprep.subr.bf16.mxu0 0
    %2903 = vmatpush1.bf16.msra.mxu0 0
    %2904 = vmatprep.subr.bf16.mxu0 0
    %2905 = vmatpush1.bf16.msra.mxu0 0
    %2906 = vmatprep.subr.bf16.mxu0 0
    %2907 = vmatpush1.bf16.msra.mxu0 0
    %2908 = vmatprep.subr.bf16.mxu0 0
    %2909 = vmatpush1.bf16.msra.mxu0 0
    %2910 = vmatprep.subr.bf16.mxu0 0
    %2911 = vmatpush1.bf16.msra.mxu0 0
    %2912 = vmatprep.subr.bf16.mxu0 0
    %2913 = vmatpush1.bf16.msra.mxu0 0
    %2914 = vmatprep.subr.bf16.mxu0 0
    %2915 = vmatpush1.bf16.msra.mxu0 0
    %2916 = vmatprep.subr.bf16.mxu0 0
    %2917 = vmatpush1.bf16.msra.mxu0 0
    %2918 = vmatprep.subr.bf16.mxu0 0
    %2919 = vmatpush1.bf16.msra.mxu0 0
    %2920 = vmatprep.subr.bf16.mxu0 0
    %2921 = vmatpush1.bf16.msra.mxu0 0
    %2922 = vmatprep.subr.bf16.mxu0 0
    %2923 = vmatpush1.bf16.msra.mxu0 0
    %2924 = vmatprep.subr.bf16.mxu0 0
    %2925 = vmatpush1.bf16.msra.mxu0 0
    %2926 = vmatprep.subr.bf16.mxu0 0
    %2927 = vmatpush1.bf16.msra.mxu0 0
    %2928 = vmatprep.subr.bf16.mxu0 0
    %2929 = vmatpush1.bf16.msra.mxu0 0
    %2930 = vmatprep.mubr.bf16.mxu0 0
    %2931 = vmatmul.mubr.bf16.gmra.mrb[0].mxu0 %v2896
    %v2932 = vpop.f32.mrb[0].mxu0
    %v2933 = vadd.f32 %v2878, %v2932
    %v2934 = vpop.f32.mrb[0].mxu0
    %v2935 = vpop.f32.mrb[0].mxu0
    %v2936 = vpop.f32.mrb[0].mxu0
    %2937 = vdwg.mxu0
    %s2938 = scalar_lea.vmem %s47, 32
    %v2939 = vld [vmem:[%s2938] sm:$0xf]
    %v2940 = vld [vmem:[%s2938 + $0x4] sm:$0xf]
    %v2941 = vld [vmem:[%s2938 + $0x8] sm:$0xf]
    %v2942 = vld [vmem:[%s2938 + $0xc] sm:$0xf]
    %v2947 = vunpack.c.l.b16 %v2939
    %v2948 = vunpack.c.l.b16 %v2940
    %v2949 = vunpack.c.l.b16 %v2941
    %v2950 = vunpack.c.l.b16 %v2942
    %v2951 = vpack.c.b16 %v2948, %v2947
    %v2952 = vpack.c.b16 %v2950, %v2949
    %2955 = vmatprep.subr.bf16.mxu0 0
    %2956 = vmatpush1.bf16.msra.mxu0 %v2951
    %2957 = vmatprep.subr.bf16.mxu0 0
    %2958 = vmatpush1.bf16.msra.mxu0 %v2952
    %2959 = vmatprep.subr.bf16.mxu0 0
    %2960 = vmatpush1.bf16.msra.mxu0 0
    %2961 = vmatprep.subr.bf16.mxu0 0
    %2962 = vmatpush1.bf16.msra.mxu0 0
    %2963 = vmatprep.subr.bf16.mxu0 0
    %2964 = vmatpush1.bf16.msra.mxu0 0
    %2965 = vmatprep.subr.bf16.mxu0 0
    %2966 = vmatpush1.bf16.msra.mxu0 0
    %2967 = vmatprep.subr.bf16.mxu0 0
    %2968 = vmatpush1.bf16.msra.mxu0 0
    %2969 = vmatprep.subr.bf16.mxu0 0
    %2970 = vmatpush1.bf16.msra.mxu0 0
    %2971 = vmatprep.subr.bf16.mxu0 0
    %2972 = vmatpush1.bf16.msra.mxu0 0
    %2973 = vmatprep.subr.bf16.mxu0 0
    %2974 = vmatpush1.bf16.msra.mxu0 0
    %2975 = vmatprep.subr.bf16.mxu0 0
    %2976 = vmatpush1.bf16.msra.mxu0 0
    %2977 = vmatprep.subr.bf16.mxu0 0
    %2978 = vmatpush1.bf16.msra.mxu0 0
    %2979 = vmatprep.subr.bf16.mxu0 0
    %2980 = vmatpush1.bf16.msra.mxu0 0
    %2981 = vmatprep.subr.bf16.mxu0 0
    %2982 = vmatpush1.bf16.msra.mxu0 0
    %2983 = vmatprep.subr.bf16.mxu0 0
    %2984 = vmatpush1.bf16.msra.mxu0 0
    %2985 = vmatprep.subr.bf16.mxu0 0
    %2986 = vmatpush1.bf16.msra.mxu0 0
    %2987 = vmatprep.mubr.bf16.mxu0 0
    %2988 = vmatmul.mubr.bf16.gmra.mrb[0].mxu0 %v563
    %v2989 = vpop.f32.mrb[0].mxu0
    %v2990 = vadd.f32 0.0, %v2989
    %v2991 = vpop.f32.mrb[0].mxu0
    %v2992 = vpop.f32.mrb[0].mxu0
    %v2993 = vpop.f32.mrb[0].mxu0
    %2994 = vdwg.mxu0
    %v2995 = vadd.f32 %v2933, %v2990
    %v2996 = vxor.u32 %v2995, 2147483648
    %v2997 = vmul.f32 %v2996, 1.442695
    %v2998 = vpow.pop %v2997
    %v2999 = vadd.f32 %v2998, 1.0
    %v3000 = vrcp.pop %v2999
    %v3001 = vmul.f32 1.0, %v3000
    %v3002 = vtanh.pop %v2995
    %v3003 = vmul.f32 %v3001, 0.0
    %3005 = vrot.lane.b32.xlu0 %v3002, 64
    %v3006 = vpop.permute.xlu0 %3005
    %v3008 = vmul.f32 %v3001, %v3006
    %3010 = vrot.lane.b32.xlu0 %v3008, 32
    %v3011 = vpop.permute.xlu0 %3010
    %v3013 = vadd.f32 %v3003, %v3011
    %v3014 = vtanh.pop %v3013
    %3016 = vrot.lane.b32.xlu0 %v3014, 64
    %v3017 = vpop.permute.xlu0 %3016
    %v3019 = vmul.f32 %v3001, %v3017
    %v3020 = vpack.c.bf16 %v3019, %v3019
    %3022 = vrot.lane.b32.xlu0 %v3020, 32
    %v3023 = vpop.permute.xlu0 %3022
    %v3025 = vsel %vm314, %v3023, 0
    %3027 = vmatprep.subr.bf16.mxu0 0
    %3028 = vmatpush1.bf16.msra.mxu0 %v2951
    %3029 = vmatprep.subr.bf16.mxu0 0
    %3030 = vmatpush1.bf16.msra.mxu0 %v2952
    %3031 = vmatprep.subr.bf16.mxu0 0
    %3032 = vmatpush1.bf16.msra.mxu0 0
    %3033 = vmatprep.subr.bf16.mxu0 0
    %3034 = vmatpush1.bf16.msra.mxu0 0
    %3035 = vmatprep.subr.bf16.mxu0 0
    %3036 = vmatpush1.bf16.msra.mxu0 0
    %3037 = vmatprep.subr.bf16.mxu0 0
    %3038 = vmatpush1.bf16.msra.mxu0 0
    %3039 = vmatprep.subr.bf16.mxu0 0
    %3040 = vmatpush1.bf16.msra.mxu0 0
    %3041 = vmatprep.subr.bf16.mxu0 0
    %3042 = vmatpush1.bf16.msra.mxu0 0
    %3043 = vmatprep.subr.bf16.mxu0 0
    %3044 = vmatpush1.bf16.msra.mxu0 0
    %3045 = vmatprep.subr.bf16.mxu0 0
    %3046 = vmatpush1.bf16.msra.mxu0 0
    %3047 = vmatprep.subr.bf16.mxu0 0
    %3048 = vmatpush1.bf16.msra.mxu0 0
    %3049 = vmatprep.subr.bf16.mxu0 0
    %3050 = vmatpush1.bf16.msra.mxu0 0
    %3051 = vmatprep.subr.bf16.mxu0 0
    %3052 = vmatpush1.bf16.msra.mxu0 0
    %3053 = vmatprep.subr.bf16.mxu0 0
    %3054 = vmatpush1.bf16.msra.mxu0 0
    %3055 = vmatprep.subr.bf16.mxu0 0
    %3056 = vmatpush1.bf16.msra.mxu0 0
    %3057 = vmatprep.subr.bf16.mxu0 0
    %3058 = vmatpush1.bf16.msra.mxu0 0
    %3059 = vmatprep.mubr.bf16.mxu0 0
    %3060 = vmatmul.mubr.bf16.gmra.mrb[0].mxu0 %v3025
    %v3061 = vpop.f32.mrb[0].mxu0
    %v3062 = vadd.f32 0.0, %v3061
    %v3063 = vpop.f32.mrb[0].mxu0
    %v3064 = vpop.f32.mrb[0].mxu0
    %v3065 = vpop.f32.mrb[0].mxu0
    %3066 = vdwg.mxu0
    %v3068 = vrot.slane %v3062, 4
    %v3070 = vadd.f32 %v2933, %v3068
    %v3071 = vxor.u32 %v3070, 2147483648
    %v3072 = vmul.f32 %v3071, 1.442695
    %v3073 = vpow.pop %v3072
    %v3074 = vadd.f32 %v3073, 1.0
    %v3075 = vrcp.pop %v3074
    %v3076 = vmul.f32 1.0, %v3075
    %v3077 = vtanh.pop %v3070
    %v3079 = vrot.slane %v3013, 4
    %v3081 = vmul.f32 %v3076, %v3079
    %3083 = vrot.lane.b32.xlu0 %v3077, 64
    %v3084 = vpop.permute.xlu0 %3083
    %v3086 = vmul.f32 %v3076, %v3084
    %3088 = vrot.lane.b32.xlu0 %v3086, 32
    %v3089 = vpop.permute.xlu0 %3088
    %v3091 = vadd.f32 %v3081, %v3089
    %v3092 = vtanh.pop %v3091
    %3094 = vrot.lane.b32.xlu0 %v3092, 64
    %v3095 = vpop.permute.xlu0 %3094
    %v3097 = vmul.f32 %v3076, %v3095
    %v3099 = vrot.slane %v1880, 4
    %v3102 = vrot.slane %v3097, 4
    %v3104 = vsel %vm493, %v3099, %v2647
    %v3105 = vpack.c.bf16 %v3102, %v3104
    %v3106 = vld [vmem:[%s51] sm:$0xf]
    %v3107 = vld [vmem:[%s51 + $0x4] sm:$0xf]
    %v3108 = vld [vmem:[%s51 + $0x8] sm:$0xf]
    %v3109 = vld [vmem:[%s51 + $0xc] sm:$0xf]
    %v3110 = vld [vmem:[%s53] sm:$0x1]
    %v3112 = vlaneseq
    %v3113 = vshrl.u32 %v3112, 7
    %v3114 = vsub.s32 0, %v3113
    %v3115 = vrot.slane %v3110, %v3114
    %3118 = vrot.lane.b32.xlu0 %v3105, 32
    %v3119 = vpop.permute.xlu0 %3118
    %v3124 = vunpack.c.l.b16 %v3106
    %v3125 = vunpack.c.l.b16 %v3107
    %v3126 = vunpack.c.l.b16 %v3108
    %v3127 = vunpack.c.l.b16 %v3109
    %v3128 = vpack.c.b16 %v3125, %v3124
    %v3129 = vpack.c.b16 %v3127, %v3126
    %v3133 = vsel %vm314, %v3119, 0
    %3135 = vmatprep.subr.bf16.mxu0 0
    %3136 = vmatpush1.bf16.msra.mxu0 %v3128
    %3137 = vmatprep.subr.bf16.mxu0 0
    %3138 = vmatpush1.bf16.msra.mxu0 %v3129
    %3139 = vmatprep.subr.bf16.mxu0 0
    %3140 = vmatpush1.bf16.msra.mxu0 0
    %3141 = vmatprep.subr.bf16.mxu0 0
    %3142 = vmatpush1.bf16.msra.mxu0 0
    %3143 = vmatprep.subr.bf16.mxu0 0
    %3144 = vmatpush1.bf16.msra.mxu0 0
    %3145 = vmatprep.subr.bf16.mxu0 0
    %3146 = vmatpush1.bf16.msra.mxu0 0
    %3147 = vmatprep.subr.bf16.mxu0 0
    %3148 = vmatpush1.bf16.msra.mxu0 0
    %3149 = vmatprep.subr.bf16.mxu0 0
    %3150 = vmatpush1.bf16.msra.mxu0 0
    %3151 = vmatprep.subr.bf16.mxu0 0
    %3152 = vmatpush1.bf16.msra.mxu0 0
    %3153 = vmatprep.subr.bf16.mxu0 0
    %3154 = vmatpush1.bf16.msra.mxu0 0
    %3155 = vmatprep.subr.bf16.mxu0 0
    %3156 = vmatpush1.bf16.msra.mxu0 0
    %3157 = vmatprep.subr.bf16.mxu0 0
    %3158 = vmatpush1.bf16.msra.mxu0 0
    %3159 = vmatprep.subr.bf16.mxu0 0
    %3160 = vmatpush1.bf16.msra.mxu0 0
    %3161 = vmatprep.subr.bf16.mxu0 0
    %3162 = vmatpush1.bf16.msra.mxu0 0
    %3163 = vmatprep.subr.bf16.mxu0 0
    %3164 = vmatpush1.bf16.msra.mxu0 0
    %3165 = vmatprep.subr.bf16.mxu0 0
    %3166 = vmatpush1.bf16.msra.mxu0 0
    %3167 = vmatprep.mubr.bf16.mxu0 0
    %3168 = vmatmul.mubr.bf16.gmra.mrb[0].mxu0 %v3133
    %v3169 = vpop.f32.mrb[0].mxu0
    %v3170 = vadd.f32 %v3115, %v3169
    %v3171 = vpop.f32.mrb[0].mxu0
    %v3172 = vpop.f32.mrb[0].mxu0
    %v3173 = vadd.f32 %v3115, %v3172
    %v3174 = vpop.f32.mrb[0].mxu0
    %3175 = vdwg.mxu0
    %v3176 = vpack.c.bf16 %v3170, %v3170
    %3178 = vrot.lane.b32.xlu0 %v3170, 96
    %v3179 = vpop.permute.xlu0 %3178
    %3181 = vxpose.xlu0.b32.start [1/16] %v3179, 128
    %3182 = vxpose.xlu0.b32.cont [2/16] 0.0, 128
    %3183 = vxpose.xlu0.b32.cont [3/16] 0.0, 128
    %3184 = vxpose.xlu0.b32.cont [4/16] 0.0, 128
    %3185 = vxpose.xlu0.b32.cont [5/16] 0.0, 128
    %3186 = vxpose.xlu0.b32.cont [6/16] 0.0, 128
    %3187 = vxpose.xlu0.b32.cont [7/16] 0.0, 128
    %3188 = vxpose.xlu0.b32.cont [8/16] 0.0, 128
    %3189 = vxpose.xlu0.b32.cont [9/16] 0.0, 128
    %3190 = vxpose.xlu0.b32.cont [10/16] 0.0, 128
    %3191 = vxpose.xlu0.b32.cont [11/16] 0.0, 128
    %3192 = vxpose.xlu0.b32.cont [12/16] 0.0, 128
    %3193 = vxpose.xlu0.b32.cont [13/16] 0.0, 128
    %3194 = vxpose.xlu0.b32.cont [14/16] 0.0, 128
    %3195 = vxpose.xlu0.b32.cont [15/16] 0.0, 128
    %3196 = vxpose.xlu0.b32.end [16/16] 0.0, 128
    %v3197 = vpop.trf.xlu0
    %v3198 = vpop.trf.xlu0
    %v3199 = vpop.trf.xlu0
    %v3200 = vpop.trf.xlu0
    %v3201 = vpop.trf.xlu0
    %v3202 = vpop.trf.xlu0
    %v3203 = vpop.trf.xlu0
    %v3204 = vpop.trf.xlu0
    %v3205 = vpop.trf.xlu0
    %v3206 = vpop.trf.xlu0
    %v3207 = vpop.trf.xlu0
    %v3208 = vpop.trf.xlu0
    %v3209 = vpop.trf.xlu0
    %v3210 = vpop.trf.xlu0
    %v3211 = vpop.trf.xlu0
    %v3212 = vpop.trf.xlu0
    %v3213 = vpack.c.bf16 %v3198, %v3197
    %vm3214 = vcmask 130048
    %v3216 = vsel %vm3214, %v3176, 0
    %3218 = vmatprep.subr.bf16.mxu0 0
    %3219 = vmatpush1.bf16.msra.mxu0 %v3213
    %3220 = vmatprep.subr.bf16.mxu0 0
    %3221 = vmatpush1.bf16.msra.mxu0 0
    %3222 = vmatprep.subr.bf16.mxu0 0
    %3223 = vmatpush1.bf16.msra.mxu0 0
    %3224 = vmatprep.subr.bf16.mxu0 0
    %3225 = vmatpush1.bf16.msra.mxu0 0
    %3226 = vmatprep.subr.bf16.mxu0 0
    %3227 = vmatpush1.bf16.msra.mxu0 0
    %3228 = vmatprep.subr.bf16.mxu0 0
    %3229 = vmatpush1.bf16.msra.mxu0 0
    %3230 = vmatprep.subr.bf16.mxu0 0
    %3231 = vmatpush1.bf16.msra.mxu0 0
    %3232 = vmatprep.subr.bf16.mxu0 0
    %3233 = vmatpush1.bf16.msra.mxu0 0
    %3234 = vmatprep.subr.bf16.mxu0 0
    %3235 = vmatpush1.bf16.msra.mxu0 0
    %3236 = vmatprep.subr.bf16.mxu0 0
    %3237 = vmatpush1.bf16.msra.mxu0 0
    %3238 = vmatprep.subr.bf16.mxu0 0
    %3239 = vmatpush1.bf16.msra.mxu0 0
    %3240 = vmatprep.subr.bf16.mxu0 0
    %3241 = vmatpush1.bf16.msra.mxu0 0
    %3242 = vmatprep.subr.bf16.mxu0 0
    %3243 = vmatpush1.bf16.msra.mxu0 0
    %3244 = vmatprep.subr.bf16.mxu0 0
    %3245 = vmatpush1.bf16.msra.mxu0 0
    %3246 = vmatprep.subr.bf16.mxu0 0
    %3247 = vmatpush1.bf16.msra.mxu0 0
    %3248 = vmatprep.subr.bf16.mxu0 0
    %3249 = vmatpush1.bf16.msra.mxu0 0
    %3250 = vmatprep.mubr.bf16.mxu0 0
    %3251 = vmatmul.mubr.bf16.gmra.mrb[0].mxu0 %v3216
    %v3252 = vpop.f32.mrb[0].mxu0
    %v3253 = vadd.f32 0.0, %v3252
    %v3254 = vpop.f32.mrb[0].mxu0
    %v3255 = vpop.f32.mrb[0].mxu0
    %v3256 = vpop.f32.mrb[0].mxu0
    %3257 = vdwg.mxu0
    %v3258 = vmul.f32 %v3253, 0.25
    %vm3259 = vcmask 27648
    %v3260 = vsel %vm3259, %v3258, -inf
    %3261 = vmax.xlane.f32.xlu0 %v3260
    %v3262 = vpop.xlane.xlu0 %3261
    %v3263 = vsub.f32 %v3258, %v3262
    %v3264 = vmul.f32 %v3263, 1.442695
    %v3265 = vpow.pop %v3264
    %v3266 = vsel %vm3259, %v3265, 0.0
    %3267 = vadd.xlane.f32.xlu0 %v3266
    %v3268 = vpop.xlane.xlu0 %3267
    %v3269 = vrcp.pop %v3268
    %v3270 = vmul.f32 %v3265, %v3269
    %v3271 = vpack.c.bf16 %v3270, %v3270
    %3273 = vrot.lane.b32.xlu0 %v3176, 64
    %v3274 = vpop.permute.xlu0 %3273
    %vm3275 = vcmask 31744
    %v3277 = vsel %vm3275, %v3271, 0
    %v3280 = vsel %vm428, %v3274, 0
    %3282 = vmatprep.subr.bf16.mxu0 0
    %3283 = vmatpush1.bf16.msra.mxu0 %v3280
    %3284 = vmatprep.subr.bf16.mxu0 0
    %3285 = vmatpush1.bf16.msra.mxu0 0
    %3286 = vmatprep.subr.bf16.mxu0 0
    %3287 = vmatpush1.bf16.msra.mxu0 0
    %3288 = vmatprep.subr.bf16.mxu0 0
    %3289 = vmatpush1.bf16.msra.mxu0 0
    %3290 = vmatprep.subr.bf16.mxu0 0
    %3291 = vmatpush1.bf16.msra.mxu0 0
    %3292 = vmatprep.subr.bf16.mxu0 0
    %3293 = vmatpush1.bf16.msra.mxu0 0
    %3294 = vmatprep.subr.bf16.mxu0 0
    %3295 = vmatpush1.bf16.msra.mxu0 0
    %3296 = vmatprep.subr.bf16.mxu0 0
    %3297 = vmatpush1.bf16.msra.mxu0 0
    %3298 = vmatprep.subr.bf16.mxu0 0
    %3299 = vmatpush1.bf16.msra.mxu0 0
    %3300 = vmatprep.subr.bf16.mxu0 0
    %3301 = vmatpush1.bf16.msra.mxu0 0
    %3302 = vmatprep.subr.bf16.mxu0 0
    %3303 = vmatpush1.bf16.msra.mxu0 0
    %3304 = vmatprep.subr.bf16.mxu0 0
    %3305 = vmatpush1.bf16.msra.mxu0 0
    %3306 = vmatprep.subr.bf16.mxu0 0
    %3307 = vmatpush1.bf16.msra.mxu0 0
    %3308 = vmatprep.subr.bf16.mxu0 0
    %3309 = vmatpush1.bf16.msra.mxu0 0
    %3310 = vmatprep.subr.bf16.mxu0 0
    %3311 = vmatpush1.bf16.msra.mxu0 0
    %3312 = vmatprep.subr.bf16.mxu0 0
    %3313 = vmatpush1.bf16.msra.mxu0 0
    %3314 = vmatprep.mubr.bf16.mxu0 0
    %3315 = vmatmul.mubr.bf16.gmra.mrb[0].mxu0 %v3277
    %v3316 = vpop.f32.mrb[0].mxu0
    %v3317 = vadd.f32 0.0, %v3316
    %v3318 = vpop.f32.mrb[0].mxu0
    %v3319 = vpop.f32.mrb[0].mxu0
    %v3320 = vpop.f32.mrb[0].mxu0
    %3321 = vdwg.mxu0
    %3322 = vrot.lane.b32.xlu0 %v3170, 80
    %v3323 = vpop.permute.xlu0 %3322
    %3325 = vxpose.xlu0.b32.start [1/16] %v3323, 128
    %3326 = vxpose.xlu0.b32.cont [2/16] 0.0, 128
    %3327 = vxpose.xlu0.b32.cont [3/16] 0.0, 128
    %3328 = vxpose.xlu0.b32.cont [4/16] 0.0, 128
    %3329 = vxpose.xlu0.b32.cont [5/16] 0.0, 128
    %3330 = vxpose.xlu0.b32.cont [6/16] 0.0, 128
    %3331 = vxpose.xlu0.b32.cont [7/16] 0.0, 128
    %3332 = vxpose.xlu0.b32.cont [8/16] 0.0, 128
    %3333 = vxpose.xlu0.b32.cont [9/16] 0.0, 128
    %3334 = vxpose.xlu0.b32.cont [10/16] 0.0, 128
    %3335 = vxpose.xlu0.b32.cont [11/16] 0.0, 128
    %3336 = vxpose.xlu0.b32.cont [12/16] 0.0, 128
    %3337 = vxpose.xlu0.b32.cont [13/16] 0.0, 128
    %3338 = vxpose.xlu0.b32.cont [14/16] 0.0, 128
    %3339 = vxpose.xlu0.b32.cont [15/16] 0.0, 128
    %3340 = vxpose.xlu0.b32.end [16/16] 0.0, 128
    %v3341 = vpop.trf.xlu0
    %v3342 = vpop.trf.xlu0
    %v3343 = vpop.trf.xlu0
    %v3344 = vpop.trf.xlu0
    %v3345 = vpop.trf.xlu0
    %v3346 = vpop.trf.xlu0
    %v3347 = vpop.trf.xlu0
    %v3348 = vpop.trf.xlu0
    %v3349 = vpop.trf.xlu0
    %v3350 = vpop.trf.xlu0
    %v3351 = vpop.trf.xlu0
    %v3352 = vpop.trf.xlu0
    %v3353 = vpop.trf.xlu0
    %v3354 = vpop.trf.xlu0
    %v3355 = vpop.trf.xlu0
    %v3356 = vpop.trf.xlu0
    %v3357 = vpack.c.bf16 %v3342, %v3341
    %3358 = vrot.lane.b32.xlu0 %v3176, 112
    %v3359 = vpop.permute.xlu0 %3358
    %v3361 = vsel %vm3214, %v3359, 0
    %3363 = vmatprep.subr.bf16.mxu0 0
    %3364 = vmatpush1.bf16.msra.mxu0 %v3357
    %3365 = vmatprep.subr.bf16.mxu0 0
    %3366 = vmatpush1.bf16.msra.mxu0 0
    %3367 = vmatprep.subr.bf16.mxu0 0
    %3368 = vmatpush1.bf16.msra.mxu0 0
    %3369 = vmatprep.subr.bf16.mxu0 0
    %3370 = vmatpush1.bf16.msra.mxu0 0
    %3371 = vmatprep.subr.bf16.mxu0 0
    %3372 = vmatpush1.bf16.msra.mxu0 0
    %3373 = vmatprep.subr.bf16.mxu0 0
    %3374 = vmatpush1.bf16.msra.mxu0 0
    %3375 = vmatprep.subr.bf16.mxu0 0
    %3376 = vmatpush1.bf16.msra.mxu0 0
    %3377 = vmatprep.subr.bf16.mxu0 0
    %3378 = vmatpush1.bf16.msra.mxu0 0
    %3379 = vmatprep.subr.bf16.mxu0 0
    %3380 = vmatpush1.bf16.msra.mxu0 0
    %3381 = vmatprep.subr.bf16.mxu0 0
    %3382 = vmatpush1.bf16.msra.mxu0 0
    %3383 = vmatprep.subr.bf16.mxu0 0
    %3384 = vmatpush1.bf16.msra.mxu0 0
    %3385 = vmatprep.subr.bf16.mxu0 0
    %3386 = vmatpush1.bf16.msra.mxu0 0
    %3387 = vmatprep.subr.bf16.mxu0 0
    %3388 = vmatpush1.bf16.msra.mxu0 0
    %3389 = vmatprep.subr.bf16.mxu0 0
    %3390 = vmatpush1.bf16.msra.mxu0 0
    %3391 = vmatprep.subr.bf16.mxu0 0
    %3392 = vmatpush1.bf16.msra.mxu0 0
    %3393 = vmatprep.subr.bf16.mxu0 0
    %3394 = vmatpush1.bf16.msra.mxu0 0
    %3395 = vmatprep.mubr.bf16.mxu0 0
    %3396 = vmatmul.mubr.bf16.gmra.mrb[0].mxu0 %v3361
    %v3397 = vpop.f32.mrb[0].mxu0
    %v3398 = vadd.f32 0.0, %v3397
    %v3399 = vpop.f32.mrb[0].mxu0
    %v3400 = vpop.f32.mrb[0].mxu0
    %v3401 = vpop.f32.mrb[0].mxu0
    %3402 = vdwg.mxu0
    %v3403 = vmul.f32 %v3398, 0.25
    %v3404 = vsel %vm3259, %v3403, -inf
    %3405 = vmax.xlane.f32.xlu0 %v3404
    %v3406 = vpop.xlane.xlu0 %3405
    %v3407 = vsub.f32 %v3403, %v3406
    %v3408 = vmul.f32 %v3407, 1.442695
    %v3409 = vpow.pop %v3408
    %v3410 = vsel %vm3259, %v3409, 0.0
    %3411 = vadd.xlane.f32.xlu0 %v3410
    %v3412 = vpop.xlane.xlu0 %3411
    %v3413 = vrcp.pop %v3412
    %v3414 = vmul.f32 %v3409, %v3413
    %v3415 = vpack.c.bf16 %v3414, %v3414
    %3416 = vrot.lane.b32.xlu0 %v3176, 48
    %v3417 = vpop.permute.xlu0 %3416
    %v3419 = vsel %vm3275, %v3415, 0
    %v3422 = vsel %vm428, %v3417, 0
    %3424 = vmatprep.subr.bf16.mxu0 0
    %3425 = vmatpush1.bf16.msra.mxu0 %v3422
    %3426 = vmatprep.subr.bf16.mxu0 0
    %3427 = vmatpush1.bf16.msra.mxu0 0
    %3428 = vmatprep.subr.bf16.mxu0 0
    %3429 = vmatpush1.bf16.msra.mxu0 0
    %3430 = vmatprep.subr.bf16.mxu0 0
    %3431 = vmatpush1.bf16.msra.mxu0 0
    %3432 = vmatprep.subr.bf16.mxu0 0
    %3433 = vmatpush1.bf16.msra.mxu0 0
    %3434 = vmatprep.subr.bf16.mxu0 0
    %3435 = vmatpush1.bf16.msra.mxu0 0
    %3436 = vmatprep.subr.bf16.mxu0 0
    %3437 = vmatpush1.bf16.msra.mxu0 0
    %3438 = vmatprep.subr.bf16.mxu0 0
    %3439 = vmatpush1.bf16.msra.mxu0 0
    %3440 = vmatprep.subr.bf16.mxu0 0
    %3441 = vmatpush1.bf16.msra.mxu0 0
    %3442 = vmatprep.subr.bf16.mxu0 0
    %3443 = vmatpush1.bf16.msra.mxu0 0
    %3444 = vmatprep.subr.bf16.mxu0 0
    %3445 = vmatpush1.bf16.msra.mxu0 0
    %3446 = vmatprep.subr.bf16.mxu0 0
    %3447 = vmatpush1.bf16.msra.mxu0 0
    %3448 = vmatprep.subr.bf16.mxu0 0
    %3449 = vmatpush1.bf16.msra.mxu0 0
    %3450 = vmatprep.subr.bf16.mxu0 0
    %3451 = vmatpush1.bf16.msra.mxu0 0
    %3452 = vmatprep.subr.bf16.mxu0 0
    %3453 = vmatpush1.bf16.msra.mxu0 0
    %3454 = vmatprep.subr.bf16.mxu0 0
    %3455 = vmatpush1.bf16.msra.mxu0 0
    %3456 = vmatprep.mubr.bf16.mxu0 0
    %3457 = vmatmul.mubr.bf16.gmra.mrb[0].mxu0 %v3419
    %v3458 = vpop.f32.mrb[0].mxu0
    %v3459 = vadd.f32 0.0, %v3458
    %v3460 = vpop.f32.mrb[0].mxu0
    %v3461 = vpop.f32.mrb[0].mxu0
    %v3462 = vpop.f32.mrb[0].mxu0
    %3463 = vdwg.mxu0
    %3465 = vrot.lane.b32.xlu0 %v3459, 16
    %v3466 = vpop.permute.xlu0 %3465
    %v3468 = vsel %vm3214, %v3317, %v3466
    %v3469 = vrot.slane %v3170, 4
    %3470 = vrot.lane.b32.xlu0 %v3469, 96
    %v3471 = vpop.permute.xlu0 %3470
    %3473 = vxpose.xlu0.b32.start [1/16] %v3471, 128
    %3474 = vxpose.xlu0.b32.cont [2/16] 0.0, 128
    %3475 = vxpose.xlu0.b32.cont [3/16] 0.0, 128
    %3476 = vxpose.xlu0.b32.cont [4/16] 0.0, 128
    %3477 = vxpose.xlu0.b32.cont [5/16] 0.0, 128
    %3478 = vxpose.xlu0.b32.cont [6/16] 0.0, 128
    %3479 = vxpose.xlu0.b32.cont [7/16] 0.0, 128
    %3480 = vxpose.xlu0.b32.cont [8/16] 0.0, 128
    %3481 = vxpose.xlu0.b32.cont [9/16] 0.0, 128
    %3482 = vxpose.xlu0.b32.cont [10/16] 0.0, 128
    %3483 = vxpose.xlu0.b32.cont [11/16] 0.0, 128
    %3484 = vxpose.xlu0.b32.cont [12/16] 0.0, 128
    %3485 = vxpose.xlu0.b32.cont [13/16] 0.0, 128
    %3486 = vxpose.xlu0.b32.cont [14/16] 0.0, 128
    %3487 = vxpose.xlu0.b32.cont [15/16] 0.0, 128
    %3488 = vxpose.xlu0.b32.end [16/16] 0.0, 128
    %v3489 = vpop.trf.xlu0
    %v3490 = vpop.trf.xlu0
    %v3491 = vpop.trf.xlu0
    %v3492 = vpop.trf.xlu0
    %v3493 = vpop.trf.xlu0
    %v3494 = vpop.trf.xlu0
    %v3495 = vpop.trf.xlu0
    %v3496 = vpop.trf.xlu0
    %v3497 = vpop.trf.xlu0
    %v3498 = vpop.trf.xlu0
    %v3499 = vpop.trf.xlu0
    %v3500 = vpop.trf.xlu0
    %v3501 = vpop.trf.xlu0
    %v3502 = vpop.trf.xlu0
    %v3503 = vpop.trf.xlu0
    %v3504 = vpop.trf.xlu0
    %v3505 = vpack.c.bf16 %v3490, %v3489
    %v3506 = vrot.slane %v3176, 2
    %v3508 = vsel %vm3214, %v3506, 0
    %3510 = vmatprep.subr.bf16.mxu0 0
    %3511 = vmatpush1.bf16.msra.mxu0 %v3505
    %3512 = vmatprep.subr.bf16.mxu0 0
    %3513 = vmatpush1.bf16.msra.mxu0 0
    %3514 = vmatprep.subr.bf16.mxu0 0
    %3515 = vmatpush1.bf16.msra.mxu0 0
    %3516 = vmatprep.subr.bf16.mxu0 0
    %3517 = vmatpush1.bf16.msra.mxu0 0
    %3518 = vmatprep.subr.bf16.mxu0 0
    %3519 = vmatpush1.bf16.msra.mxu0 0
    %3520 = vmatprep.subr.bf16.mxu0 0
    %3521 = vmatpush1.bf16.msra.mxu0 0
    %3522 = vmatprep.subr.bf16.mxu0 0
    %3523 = vmatpush1.bf16.msra.mxu0 0
    %3524 = vmatprep.subr.bf16.mxu0 0
    %3525 = vmatpush1.bf16.msra.mxu0 0
    %3526 = vmatprep.subr.bf16.mxu0 0
    %3527 = vmatpush1.bf16.msra.mxu0 0
    %3528 = vmatprep.subr.bf16.mxu0 0
    %3529 = vmatpush1.bf16.msra.mxu0 0
    %3530 = vmatprep.subr.bf16.mxu0 0
    %3531 = vmatpush1.bf16.msra.mxu0 0
    %3532 = vmatprep.subr.bf16.mxu0 0
    %3533 = vmatpush1.bf16.msra.mxu0 0
    %3534 = vmatprep.subr.bf16.mxu0 0
    %3535 = vmatpush1.bf16.msra.mxu0 0
    %3536 = vmatprep.subr.bf16.mxu0 0
    %3537 = vmatpush1.bf16.msra.mxu0 0
    %3538 = vmatprep.subr.bf16.mxu0 0
    %3539 = vmatpush1.bf16.msra.mxu0 0
    %3540 = vmatprep.subr.bf16.mxu0 0
    %3541 = vmatpush1.bf16.msra.mxu0 0
    %3542 = vmatprep.mubr.bf16.mxu0 0
    %3543 = vmatmul.mubr.bf16.gmra.mrb[0].mxu0 %v3508
    %v3544 = vpop.f32.mrb[0].mxu0
    %v3545 = vadd.f32 0.0, %v3544
    %v3546 = vpop.f32.mrb[0].mxu0
    %v3547 = vpop.f32.mrb[0].mxu0
    %v3548 = vpop.f32.mrb[0].mxu0
    %3549 = vdwg.mxu0
    %v3550 = vmul.f32 %v3545, 0.25
    %v3551 = vsel %vm3259, %v3550, -inf
    %3552 = vmax.xlane.f32.xlu0 %v3551
    %v3553 = vpop.xlane.xlu0 %3552
    %v3554 = vsub.f32 %v3550, %v3553
    %v3555 = vmul.f32 %v3554, 1.442695
    %v3556 = vpow.pop %v3555
    %v3557 = vsel %vm3259, %v3556, 0.0
    %3558 = vadd.xlane.f32.xlu0 %v3557
    %v3559 = vpop.xlane.xlu0 %3558
    %v3560 = vrcp.pop %v3559
    %v3561 = vmul.f32 %v3556, %v3560
    %v3562 = vpack.c.bf16 %v3561, %v3561
    %3563 = vrot.lane.b32.xlu0 %v3506, 64
    %v3564 = vpop.permute.xlu0 %3563
    %v3566 = vsel %vm3275, %v3562, 0
    %v3569 = vsel %vm428, %v3564, 0
    %3571 = vmatprep.subr.bf16.mxu0 0
    %3572 = vmatpush1.bf16.msra.mxu0 %v3569
    %3573 = vmatprep.subr.bf16.mxu0 0
    %3574 = vmatpush1.bf16.msra.mxu0 0
    %3575 = vmatprep.subr.bf16.mxu0 0
    %3576 = vmatpush1.bf16.msra.mxu0 0
    %3577 = vmatprep.subr.bf16.mxu0 0
    %3578 = vmatpush1.bf16.msra.mxu0 0
    %3579 = vmatprep.subr.bf16.mxu0 0
    %3580 = vmatpush1.bf16.msra.mxu0 0
    %3581 = vmatprep.subr.bf16.mxu0 0
    %3582 = vmatpush1.bf16.msra.mxu0 0
    %3583 = vmatprep.subr.bf16.mxu0 0
    %3584 = vmatpush1.bf16.msra.mxu0 0
    %3585 = vmatprep.subr.bf16.mxu0 0
    %3586 = vmatpush1.bf16.msra.mxu0 0
    %3587 = vmatprep.subr.bf16.mxu0 0
    %3588 = vmatpush1.bf16.msra.mxu0 0
    %3589 = vmatprep.subr.bf16.mxu0 0
    %3590 = vmatpush1.bf16.msra.mxu0 0
    %3591 = vmatprep.subr.bf16.mxu0 0
    %3592 = vmatpush1.bf16.msra.mxu0 0
    %3593 = vmatprep.subr.bf16.mxu0 0
    %3594 = vmatpush1.bf16.msra.mxu0 0
    %3595 = vmatprep.subr.bf16.mxu0 0
    %3596 = vmatpush1.bf16.msra.mxu0 0
    %3597 = vmatprep.subr.bf16.mxu0 0
    %3598 = vmatpush1.bf16.msra.mxu0 0
    %3599 = vmatprep.subr.bf16.mxu0 0
    %3600 = vmatpush1.bf16.msra.mxu0 0
    %3601 = vmatprep.subr.bf16.mxu0 0
    %3602 = vmatpush1.bf16.msra.mxu0 0
    %3603 = vmatprep.mubr.bf16.mxu0 0
    %3604 = vmatmul.mubr.bf16.gmra.mrb[0].mxu0 %v3566
    %v3605 = vpop.f32.mrb[0].mxu0
    %v3606 = vadd.f32 0.0, %v3605
    %v3607 = vpop.f32.mrb[0].mxu0
    %v3608 = vpop.f32.mrb[0].mxu0
    %v3609 = vpop.f32.mrb[0].mxu0
    %3610 = vdwg.mxu0
    %3611 = vrot.lane.b32.xlu0 %v3469, 80
    %v3612 = vpop.permute.xlu0 %3611
    %3614 = vxpose.xlu0.b32.start [1/16] %v3612, 128
    %3615 = vxpose.xlu0.b32.cont [2/16] 0.0, 128
    %3616 = vxpose.xlu0.b32.cont [3/16] 0.0, 128
    %3617 = vxpose.xlu0.b32.cont [4/16] 0.0, 128
    %3618 = vxpose.xlu0.b32.cont [5/16] 0.0, 128
    %3619 = vxpose.xlu0.b32.cont [6/16] 0.0, 128
    %3620 = vxpose.xlu0.b32.cont [7/16] 0.0, 128
    %3621 = vxpose.xlu0.b32.cont [8/16] 0.0, 128
    %3622 = vxpose.xlu0.b32.cont [9/16] 0.0, 128
    %3623 = vxpose.xlu0.b32.cont [10/16] 0.0, 128
    %3624 = vxpose.xlu0.b32.cont [11/16] 0.0, 128
    %3625 = vxpose.xlu0.b32.cont [12/16] 0.0, 128
    %3626 = vxpose.xlu0.b32.cont [13/16] 0.0, 128
    %3627 = vxpose.xlu0.b32.cont [14/16] 0.0, 128
    %3628 = vxpose.xlu0.b32.cont [15/16] 0.0, 128
    %3629 = vxpose.xlu0.b32.end [16/16] 0.0, 128
    %v3630 = vpop.trf.xlu0
    %v3631 = vpop.trf.xlu0
    %v3632 = vpop.trf.xlu0
    %v3633 = vpop.trf.xlu0
    %v3634 = vpop.trf.xlu0
    %v3635 = vpop.trf.xlu0
    %v3636 = vpop.trf.xlu0
    %v3637 = vpop.trf.xlu0
    %v3638 = vpop.trf.xlu0
    %v3639 = vpop.trf.xlu0
    %v3640 = vpop.trf.xlu0
    %v3641 = vpop.trf.xlu0
    %v3642 = vpop.trf.xlu0
    %v3643 = vpop.trf.xlu0
    %v3644 = vpop.trf.xlu0
    %v3645 = vpop.trf.xlu0
    %v3646 = vpack.c.bf16 %v3631, %v3630
    %3647 = vrot.lane.b32.xlu0 %v3506, 112
    %v3648 = vpop.permute.xlu0 %3647
    %v3650 = vsel %vm3214, %v3648, 0
    %3652 = vmatprep.subr.bf16.mxu0 0
    %3653 = vmatpush1.bf16.msra.mxu0 %v3646
    %3654 = vmatprep.subr.bf16.mxu0 0
    %3655 = vmatpush1.bf16.msra.mxu0 0
    %3656 = vmatprep.subr.bf16.mxu0 0
    %3657 = vmatpush1.bf16.msra.mxu0 0
    %3658 = vmatprep.subr.bf16.mxu0 0
    %3659 = vmatpush1.bf16.msra.mxu0 0
    %3660 = vmatprep.subr.bf16.mxu0 0
    %3661 = vmatpush1.bf16.msra.mxu0 0
    %3662 = vmatprep.subr.bf16.mxu0 0
    %3663 = vmatpush1.bf16.msra.mxu0 0
    %3664 = vmatprep.subr.bf16.mxu0 0
    %3665 = vmatpush1.bf16.msra.mxu0 0
    %3666 = vmatprep.subr.bf16.mxu0 0
    %3667 = vmatpush1.bf16.msra.mxu0 0
    %3668 = vmatprep.subr.bf16.mxu0 0
    %3669 = vmatpush1.bf16.msra.mxu0 0
    %3670 = vmatprep.subr.bf16.mxu0 0
    %3671 = vmatpush1.bf16.msra.mxu0 0
    %3672 = vmatprep.subr.bf16.mxu0 0
    %3673 = vmatpush1.bf16.msra.mxu0 0
    %3674 = vmatprep.subr.bf16.mxu0 0
    %3675 = vmatpush1.bf16.msra.mxu0 0
    %3676 = vmatprep.subr.bf16.mxu0 0
    %3677 = vmatpush1.bf16.msra.mxu0 0
    %3678 = vmatprep.subr.bf16.mxu0 0
    %3679 = vmatpush1.bf16.msra.mxu0 0
    %3680 = vmatprep.subr.bf16.mxu0 0
    %3681 = vmatpush1.bf16.msra.mxu0 0
    %3682 = vmatprep.subr.bf16.mxu0 0
    %3683 = vmatpush1.bf16.msra.mxu0 0
    %3684 = vmatprep.mubr.bf16.mxu0 0
    %3685 = vmatmul.mubr.bf16.gmra.mrb[0].mxu0 %v3650
    %v3686 = vpop.f32.mrb[0].mxu0
    %v3687 = vadd.f32 0.0, %v3686
    %v3688 = vpop.f32.mrb[0].mxu0
    %v3689 = vpop.f32.mrb[0].mxu0
    %v3690 = vpop.f32.mrb[0].mxu0
    %3691 = vdwg.mxu0
    %v3692 = vmul.f32 %v3687, 0.25
    %v3693 = vsel %vm3259, %v3692, -inf
    %3694 = vmax.xlane.f32.xlu0 %v3693
    %v3695 = vpop.xlane.xlu0 %3694
    %v3696 = vsub.f32 %v3692, %v3695
    %v3697 = vmul.f32 %v3696, 1.442695
    %v3698 = vpow.pop %v3697
    %v3699 = vsel %vm3259, %v3698, 0.0
    %3700 = vadd.xlane.f32.xlu0 %v3699
    %v3701 = vpop.xlane.xlu0 %3700
    %v3702 = vrcp.pop %v3701
    %v3703 = vmul.f32 %v3698, %v3702
    %v3704 = vpack.c.bf16 %v3703, %v3703
    %3705 = vrot.lane.b32.xlu0 %v3506, 48
    %v3706 = vpop.permute.xlu0 %3705
    %v3708 = vsel %vm3275, %v3704, 0
    %v3711 = vsel %vm428, %v3706, 0
    %3713 = vmatprep.subr.bf16.mxu0 0
    %3714 = vmatpush1.bf16.msra.mxu0 %v3711
    %3715 = vmatprep.subr.bf16.mxu0 0
    %3716 = vmatpush1.bf16.msra.mxu0 0
    %3717 = vmatprep.subr.bf16.mxu0 0
    %3718 = vmatpush1.bf16.msra.mxu0 0
    %3719 = vmatprep.subr.bf16.mxu0 0
    %3720 = vmatpush1.bf16.msra.mxu0 0
    %3721 = vmatprep.subr.bf16.mxu0 0
    %3722 = vmatpush1.bf16.msra.mxu0 0
    %3723 = vmatprep.subr.bf16.mxu0 0
    %3724 = vmatpush1.bf16.msra.mxu0 0
    %3725 = vmatprep.subr.bf16.mxu0 0
    %3726 = vmatpush1.bf16.msra.mxu0 0
    %3727 = vmatprep.subr.bf16.mxu0 0
    %3728 = vmatpush1.bf16.msra.mxu0 0
    %3729 = vmatprep.subr.bf16.mxu0 0
    %3730 = vmatpush1.bf16.msra.mxu0 0
    %3731 = vmatprep.subr.bf16.mxu0 0
    %3732 = vmatpush1.bf16.msra.mxu0 0
    %3733 = vmatprep.subr.bf16.mxu0 0
    %3734 = vmatpush1.bf16.msra.mxu0 0
    %3735 = vmatprep.subr.bf16.mxu0 0
    %3736 = vmatpush1.bf16.msra.mxu0 0
    %3737 = vmatprep.subr.bf16.mxu0 0
    %3738 = vmatpush1.bf16.msra.mxu0 0
    %3739 = vmatprep.subr.bf16.mxu0 0
    %3740 = vmatpush1.bf16.msra.mxu0 0
    %3741 = vmatprep.subr.bf16.mxu0 0
    %3742 = vmatpush1.bf16.msra.mxu0 0
    %3743 = vmatprep.subr.bf16.mxu0 0
    %3744 = vmatpush1.bf16.msra.mxu0 0
    %3745 = vmatprep.mubr.bf16.mxu0 0
    %3746 = vmatmul.mubr.bf16.gmra.mrb[0].mxu0 %v3708
    %v3747 = vpop.f32.mrb[0].mxu0
    %v3748 = vadd.f32 0.0, %v3747
    %v3749 = vpop.f32.mrb[0].mxu0
    %v3750 = vpop.f32.mrb[0].mxu0
    %v3751 = vpop.f32.mrb[0].mxu0
    %3752 = vdwg.mxu0
    %3754 = vrot.lane.b32.xlu0 %v3748, 16
    %v3755 = vpop.permute.xlu0 %3754
    %v3757 = vsel %vm3214, %v3606, %v3755
    %v3758 = vpack.c.bf16 %v3173, %v3173
    %3760 = vrot.lane.b32.xlu0 %v3173, 96
    %v3761 = vpop.permute.xlu0 %3760
    %3763 = vxpose.xlu0.b32.start [1/16] %v3761, 128
    %3764 = vxpose.xlu0.b32.cont [2/16] 0.0, 128
    %3765 = vxpose.xlu0.b32.cont [3/16] 0.0, 128
    %3766 = vxpose.xlu0.b32.cont [4/16] 0.0, 128
    %3767 = vxpose.xlu0.b32.cont [5/16] 0.0, 128
    %3768 = vxpose.xlu0.b32.cont [6/16] 0.0, 128
    %3769 = vxpose.xlu0.b32.cont [7/16] 0.0, 128
    %3770 = vxpose.xlu0.b32.cont [8/16] 0.0, 128
    %3771 = vxpose.xlu0.b32.cont [9/16] 0.0, 128
    %3772 = vxpose.xlu0.b32.cont [10/16] 0.0, 128
    %3773 = vxpose.xlu0.b32.cont [11/16] 0.0, 128
    %3774 = vxpose.xlu0.b32.cont [12/16] 0.0, 128
    %3775 = vxpose.xlu0.b32.cont [13/16] 0.0, 128
    %3776 = vxpose.xlu0.b32.cont [14/16] 0.0, 128
    %3777 = vxpose.xlu0.b32.cont [15/16] 0.0, 128
    %3778 = vxpose.xlu0.b32.end [16/16] 0.0, 128
    %v3779 = vpop.trf.xlu0
    %v3780 = vpop.trf.xlu0
    %v3781 = vpop.trf.xlu0
    %v3782 = vpop.trf.xlu0
    %v3783 = vpop.trf.xlu0
    %v3784 = vpop.trf.xlu0
    %v3785 = vpop.trf.xlu0
    %v3786 = vpop.trf.xlu0
    %v3787 = vpop.trf.xlu0
    %v3788 = vpop.trf.xlu0
    %v3789 = vpop.trf.xlu0
    %v3790 = vpop.trf.xlu0
    %v3791 = vpop.trf.xlu0
    %v3792 = vpop.trf.xlu0
    %v3793 = vpop.trf.xlu0
    %v3794 = vpop.trf.xlu0
    %v3795 = vpack.c.bf16 %v3780, %v3779
    %v3797 = vsel %vm3214, %v3758, 0
    %3799 = vmatprep.subr.bf16.mxu0 0
    %3800 = vmatpush1.bf16.msra.mxu0 %v3795
    %3801 = vmatprep.subr.bf16.mxu0 0
    %3802 = vmatpush1.bf16.msra.mxu0 0
    %3803 = vmatprep.subr.bf16.mxu0 0
    %3804 = vmatpush1.bf16.msra.mxu0 0
    %3805 = vmatprep.subr.bf16.mxu0 0
    %3806 = vmatpush1.bf16.msra.mxu0 0
    %3807 = vmatprep.subr.bf16.mxu0 0
    %3808 = vmatpush1.bf16.msra.mxu0 0
    %3809 = vmatprep.subr.bf16.mxu0 0
    %3810 = vmatpush1.bf16.msra.mxu0 0
    %3811 = vmatprep.subr.bf16.mxu0 0
    %3812 = vmatpush1.bf16.msra.mxu0 0
    %3813 = vmatprep.subr.bf16.mxu0 0
    %3814 = vmatpush1.bf16.msra.mxu0 0
    %3815 = vmatprep.subr.bf16.mxu0 0
    %3816 = vmatpush1.bf16.msra.mxu0 0
    %3817 = vmatprep.subr.bf16.mxu0 0
    %3818 = vmatpush1.bf16.msra.mxu0 0
    %3819 = vmatprep.subr.bf16.mxu0 0
    %3820 = vmatpush1.bf16.msra.mxu0 0
    %3821 = vmatprep.subr.bf16.mxu0 0
    %3822 = vmatpush1.bf16.msra.mxu0 0
    %3823 = vmatprep.subr.bf16.mxu0 0
    %3824 = vmatpush1.bf16.msra.mxu0 0
    %3825 = vmatprep.subr.bf16.mxu0 0
    %3826 = vmatpush1.bf16.msra.mxu0 0
    %3827 = vmatprep.subr.bf16.mxu0 0
    %3828 = vmatpush1.bf16.msra.mxu0 0
    %3829 = vmatprep.subr.bf16.mxu0 0
    %3830 = vmatpush1.bf16.msra.mxu0 0
    %3831 = vmatprep.mubr.bf16.mxu0 0
    %3832 = vmatmul.mubr.bf16.gmra.mrb[0].mxu0 %v3797
    %v3833 = vpop.f32.mrb[0].mxu0
    %v3834 = vadd.f32 0.0, %v3833
    %v3835 = vpop.f32.mrb[0].mxu0
    %v3836 = vpop.f32.mrb[0].mxu0
    %v3837 = vpop.f32.mrb[0].mxu0
    %3838 = vdwg.mxu0
    %v3839 = vmul.f32 %v3834, 0.25
    %v3840 = vsel %vm3259, %v3839, -inf
    %3841 = vmax.xlane.f32.xlu0 %v3840
    %v3842 = vpop.xlane.xlu0 %3841
    %v3843 = vsub.f32 %v3839, %v3842
    %v3844 = vmul.f32 %v3843, 1.442695
    %v3845 = vpow.pop %v3844
    %v3846 = vsel %vm3259, %v3845, 0.0
    %3847 = vadd.xlane.f32.xlu0 %v3846
    %v3848 = vpop.xlane.xlu0 %3847
    %v3849 = vrcp.pop %v3848
    %v3850 = vmul.f32 %v3845, %v3849
    %v3851 = vpack.c.bf16 %v3850, %v3850
    %3853 = vrot.lane.b32.xlu0 %v3758, 64
    %v3854 = vpop.permute.xlu0 %3853
    %v3856 = vsel %vm3275, %v3851, 0
    %v3859 = vsel %vm428, %v3854, 0
    %3861 = vmatprep.subr.bf16.mxu0 0
    %3862 = vmatpush1.bf16.msra.mxu0 %v3859
    %3863 = vmatprep.subr.bf16.mxu0 0
    %3864 = vmatpush1.bf16.msra.mxu0 0
    %3865 = vmatprep.subr.bf16.mxu0 0
    %3866 = vmatpush1.bf16.msra.mxu0 0
    %3867 = vmatprep.subr.bf16.mxu0 0
    %3868 = vmatpush1.bf16.msra.mxu0 0
    %3869 = vmatprep.subr.bf16.mxu0 0
    %3870 = vmatpush1.bf16.msra.mxu0 0
    %3871 = vmatprep.subr.bf16.mxu0 0
    %3872 = vmatpush1.bf16.msra.mxu0 0
    %3873 = vmatprep.subr.bf16.mxu0 0
    %3874 = vmatpush1.bf16.msra.mxu0 0
    %3875 = vmatprep.subr.bf16.mxu0 0
    %3876 = vmatpush1.bf16.msra.mxu0 0
    %3877 = vmatprep.subr.bf16.mxu0 0
    %3878 = vmatpush1.bf16.msra.mxu0 0
    %3879 = vmatprep.subr.bf16.mxu0 0
    %3880 = vmatpush1.bf16.msra.mxu0 0
    %3881 = vmatprep.subr.bf16.mxu0 0
    %3882 = vmatpush1.bf16.msra.mxu0 0
    %3883 = vmatprep.subr.bf16.mxu0 0
    %3884 = vmatpush1.bf16.msra.mxu0 0
    %3885 = vmatprep.subr.bf16.mxu0 0
    %3886 = vmatpush1.bf16.msra.mxu0 0
    %3887 = vmatprep.subr.bf16.mxu0 0
    %3888 = vmatpush1.bf16.msra.mxu0 0
    %3889 = vmatprep.subr.bf16.mxu0 0
    %3890 = vmatpush1.bf16.msra.mxu0 0
    %3891 = vmatprep.subr.bf16.mxu0 0
    %3892 = vmatpush1.bf16.msra.mxu0 0
    %3893 = vmatprep.mubr.bf16.mxu0 0
    %3894 = vmatmul.mubr.bf16.gmra.mrb[0].mxu0 %v3856
    %v3895 = vpop.f32.mrb[0].mxu0
    %v3896 = vadd.f32 0.0, %v3895
    %v3897 = vpop.f32.mrb[0].mxu0
    %v3898 = vpop.f32.mrb[0].mxu0
    %v3899 = vpop.f32.mrb[0].mxu0
    %3900 = vdwg.mxu0
    %3901 = vrot.lane.b32.xlu0 %v3173, 80
    %v3902 = vpop.permute.xlu0 %3901
    %3904 = vxpose.xlu0.b32.start [1/16] %v3902, 128
    %3905 = vxpose.xlu0.b32.cont [2/16] 0.0, 128
    %3906 = vxpose.xlu0.b32.cont [3/16] 0.0, 128
    %3907 = vxpose.xlu0.b32.cont [4/16] 0.0, 128
    %3908 = vxpose.xlu0.b32.cont [5/16] 0.0, 128
    %3909 = vxpose.xlu0.b32.cont [6/16] 0.0, 128
    %3910 = vxpose.xlu0.b32.cont [7/16] 0.0, 128
    %3911 = vxpose.xlu0.b32.cont [8/16] 0.0, 128
    %3912 = vxpose.xlu0.b32.cont [9/16] 0.0, 128
    %3913 = vxpose.xlu0.b32.cont [10/16] 0.0, 128
    %3914 = vxpose.xlu0.b32.cont [11/16] 0.0, 128
    %3915 = vxpose.xlu0.b32.cont [12/16] 0.0, 128
    %3916 = vxpose.xlu0.b32.cont [13/16] 0.0, 128
    %3917 = vxpose.xlu0.b32.cont [14/16] 0.0, 128
    %3918 = vxpose.xlu0.b32.cont [15/16] 0.0, 128
    %3919 = vxpose.xlu0.b32.end [16/16] 0.0, 128
    %v3920 = vpop.trf.xlu0
    %v3921 = vpop.trf.xlu0
    %v3922 = vpop.trf.xlu0
    %v3923 = vpop.trf.xlu0
    %v3924 = vpop.trf.xlu0
    %v3925 = vpop.trf.xlu0
    %v3926 = vpop.trf.xlu0
    %v3927 = vpop.trf.xlu0
    %v3928 = vpop.trf.xlu0
    %v3929 = vpop.trf.xlu0
    %v3930 = vpop.trf.xlu0
    %v3931 = vpop.trf.xlu0
    %v3932 = vpop.trf.xlu0
    %v3933 = vpop.trf.xlu0
    %v3934 = vpop.trf.xlu0
    %v3935 = vpop.trf.xlu0
    %v3936 = vpack.c.bf16 %v3921, %v3920
    %3937 = vrot.lane.b32.xlu0 %v3758, 112
    %v3938 = vpop.permute.xlu0 %3937
    %v3940 = vsel %vm3214, %v3938, 0
    %3942 = vmatprep.subr.bf16.mxu0 0
    %3943 = vmatpush1.bf16.msra.mxu0 %v3936
    %3944 = vmatprep.subr.bf16.mxu0 0
    %3945 = vmatpush1.bf16.msra.mxu0 0
    %3946 = vmatprep.subr.bf16.mxu0 0
    %3947 = vmatpush1.bf16.msra.mxu0 0
    %3948 = vmatprep.subr.bf16.mxu0 0
    %3949 = vmatpush1.bf16.msra.mxu0 0
    %3950 = vmatprep.subr.bf16.mxu0 0
    %3951 = vmatpush1.bf16.msra.mxu0 0
    %3952 = vmatprep.subr.bf16.mxu0 0
    %3953 = vmatpush1.bf16.msra.mxu0 0
    %3954 = vmatprep.subr.bf16.mxu0 0
    %3955 = vmatpush1.bf16.msra.mxu0 0
    %3956 = vmatprep.subr.bf16.mxu0 0
    %3957 = vmatpush1.bf16.msra.mxu0 0
    %3958 = vmatprep.subr.bf16.mxu0 0
    %3959 = vmatpush1.bf16.msra.mxu0 0
    %3960 = vmatprep.subr.bf16.mxu0 0
    %3961 = vmatpush1.bf16.msra.mxu0 0
    %3962 = vmatprep.subr.bf16.mxu0 0
    %3963 = vmatpush1.bf16.msra.mxu0 0
    %3964 = vmatprep.subr.bf16.mxu0 0
    %3965 = vmatpush1.bf16.msra.mxu0 0
    %3966 = vmatprep.subr.bf16.mxu0 0
    %3967 = vmatpush1.bf16.msra.mxu0 0
    %3968 = vmatprep.subr.bf16.mxu0 0
    %3969 = vmatpush1.bf16.msra.mxu0 0
    %3970 = vmatprep.subr.bf16.mxu0 0
    %3971 = vmatpush1.bf16.msra.mxu0 0
    %3972 = vmatprep.subr.bf16.mxu0 0
    %3973 = vmatpush1.bf16.msra.mxu0 0
    %3974 = vmatprep.mubr.bf16.mxu0 0
    %3975 = vmatmul.mubr.bf16.gmra.mrb[0].mxu0 %v3940
    %v3976 = vpop.f32.mrb[0].mxu0
    %v3977 = vadd.f32 0.0, %v3976
    %v3978 = vpop.f32.mrb[0].mxu0
    %v3979 = vpop.f32.mrb[0].mxu0
    %v3980 = vpop.f32.mrb[0].mxu0
    %3981 = vdwg.mxu0
    %v3982 = vmul.f32 %v3977, 0.25
    %v3983 = vsel %vm3259, %v3982, -inf
    %3984 = vmax.xlane.f32.xlu0 %v3983
    %v3985 = vpop.xlane.xlu0 %3984
    %v3986 = vsub.f32 %v3982, %v3985
    %v3987 = vmul.f32 %v3986, 1.442695
    %v3988 = vpow.pop %v3987
    %v3989 = vsel %vm3259, %v3988, 0.0
    %3990 = vadd.xlane.f32.xlu0 %v3989
    %v3991 = vpop.xlane.xlu0 %3990
    %v3992 = vrcp.pop %v3991
    %v3993 = vmul.f32 %v3988, %v3992
    %v3994 = vpack.c.bf16 %v3993, %v3993
    %3995 = vrot.lane.b32.xlu0 %v3758, 48
    %v3996 = vpop.permute.xlu0 %3995
    %v3998 = vsel %vm3275, %v3994, 0
    %v4001 = vsel %vm428, %v3996, 0
    %4003 = vmatprep.subr.bf16.mxu0 0
    %4004 = vmatpush1.bf16.msra.mxu0 %v4001
    %4005 = vmatprep.subr.bf16.mxu0 0
    %4006 = vmatpush1.bf16.msra.mxu0 0
    %4007 = vmatprep.subr.bf16.mxu0 0
    %4008 = vmatpush1.bf16.msra.mxu0 0
    %4009 = vmatprep.subr.bf16.mxu0 0
    %4010 = vmatpush1.bf16.msra.mxu0 0
    %4011 = vmatprep.subr.bf16.mxu0 0
    %4012 = vmatpush1.bf16.msra.mxu0 0
    %4013 = vmatprep.subr.bf16.mxu0 0
    %4014 = vmatpush1.bf16.msra.mxu0 0
    %4015 = vmatprep.subr.bf16.mxu0 0
    %4016 = vmatpush1.bf16.msra.mxu0 0
    %4017 = vmatprep.subr.bf16.mxu0 0
    %4018 = vmatpush1.bf16.msra.mxu0 0
    %4019 = vmatprep.subr.bf16.mxu0 0
    %4020 = vmatpush1.bf16.msra.mxu0 0
    %4021 = vmatprep.subr.bf16.mxu0 0
    %4022 = vmatpush1.bf16.msra.mxu0 0
    %4023 = vmatprep.subr.bf16.mxu0 0
    %4024 = vmatpush1.bf16.msra.mxu0 0
    %4025 = vmatprep.subr.bf16.mxu0 0
    %4026 = vmatpush1.bf16.msra.mxu0 0
    %4027 = vmatprep.subr.bf16.mxu0 0
    %4028 = vmatpush1.bf16.msra.mxu0 0
    %4029 = vmatprep.subr.bf16.mxu0 0
    %4030 = vmatpush1.bf16.msra.mxu0 0
    %4031 = vmatprep.subr.bf16.mxu0 0
    %4032 = vmatpush1.bf16.msra.mxu0 0
    %4033 = vmatprep.subr.bf16.mxu0 0
    %4034 = vmatpush1.bf16.msra.mxu0 0
    %4035 = vmatprep.mubr.bf16.mxu0 0
    %4036 = vmatmul.mubr.bf16.gmra.mrb[0].mxu0 %v3998
    %v4037 = vpop.f32.mrb[0].mxu0
    %v4038 = vadd.f32 0.0, %v4037
    %v4039 = vpop.f32.mrb[0].mxu0
    %v4040 = vpop.f32.mrb[0].mxu0
    %v4041 = vpop.f32.mrb[0].mxu0
    %4042 = vdwg.mxu0
    %4044 = vrot.lane.b32.xlu0 %v4038, 16
    %v4045 = vpop.permute.xlu0 %4044
    %v4047 = vsel %vm3214, %v3896, %v4045
    %v4049 = vrot.slane %v3757, 4
    %v4051 = vsel %vm493, %v3468, %v4049
    %v4052 = vpack.c.bf16 %v4047, %v4051
    %v4053 = vld [vmem:[%s55] sm:$0xf]
    %v4054 = vld [vmem:[%s55 + $0x4] sm:$0xf]
    %v4055 = vld [vmem:[%s55 + $0x8] sm:$0xf]
    %v4056 = vld [vmem:[%s55 + $0xc] sm:$0xf]
    %v4057 = vld [vmem:[%s57] sm:$0x1]
    %v4059 = vlaneseq
    %v4060 = vshrl.u32 %v4059, 7
    %v4061 = vsub.s32 0, %v4060
    %v4062 = vrot.slane %v4057, %v4061
    %v4068 = vunpack.c.l.b16 %v4053
    %v4069 = vunpack.c.l.b16 %v4054
    %v4070 = vunpack.c.l.b16 %v4055
    %v4071 = vunpack.c.l.b16 %v4056
    %v4072 = vpack.c.b16 %v4069, %v4068
    %v4073 = vpack.c.b16 %v4071, %v4070
    %v4077 = vsel %vm314, %v4052, 0
    %4079 = vmatprep.subr.bf16.mxu0 0
    %4080 = vmatpush1.bf16.msra.mxu0 %v4072
    %4081 = vmatprep.subr.bf16.mxu0 0
    %4082 = vmatpush1.bf16.msra.mxu0 %v4073
    %4083 = vmatprep.subr.bf16.mxu0 0
    %4084 = vmatpush1.bf16.msra.mxu0 0
    %4085 = vmatprep.subr.bf16.mxu0 0
    %4086 = vmatpush1.bf16.msra.mxu0 0
    %4087 = vmatprep.subr.bf16.mxu0 0
    %4088 = vmatpush1.bf16.msra.mxu0 0
    %4089 = vmatprep.subr.bf16.mxu0 0
    %4090 = vmatpush1.bf16.msra.mxu0 0
    %4091 = vmatprep.subr.bf16.mxu0 0
    %4092 = vmatpush1.bf16.msra.mxu0 0
    %4093 = vmatprep.subr.bf16.mxu0 0
    %4094 = vmatpush1.bf16.msra.mxu0 0
    %4095 = vmatprep.subr.bf16.mxu0 0
    %4096 = vmatpush1.bf16.msra.mxu0 0
    %4097 = vmatprep.subr.bf16.mxu0 0
    %4098 = vmatpush1.bf16.msra.mxu0 0
    %4099 = vmatprep.subr.bf16.mxu0 0
    %4100 = vmatpush1.bf16.msra.mxu0 0
    %4101 = vmatprep.subr.bf16.mxu0 0
    %4102 = vmatpush1.bf16.msra.mxu0 0
    %4103 = vmatprep.subr.bf16.mxu0 0
    %4104 = vmatpush1.bf16.msra.mxu0 0
    %4105 = vmatprep.subr.bf16.mxu0 0
    %4106 = vmatpush1.bf16.msra.mxu0 0
    %4107 = vmatprep.subr.bf16.mxu0 0
    %4108 = vmatpush1.bf16.msra.mxu0 0
    %4109 = vmatprep.subr.bf16.mxu0 0
    %4110 = vmatpush1.bf16.msra.mxu0 0
    %4111 = vmatprep.mubr.bf16.mxu0 0
    %4112 = vmatmul.mubr.bf16.gmra.mrb[0].mxu0 %v4077
    %v4113 = vpop.f32.mrb[0].mxu0
    %v4114 = vadd.f32 %v4062, %v4113
    %v4115 = vpop.f32.mrb[0].mxu0
    %v4116 = vpop.f32.mrb[0].mxu0
    %v4117 = vadd.f32 %v4062, %v4116
    %v4118 = vpop.f32.mrb[0].mxu0
    %4119 = vdwg.mxu0
    %v4121 = vrot.slane %v4114, 4
    %4122 = vrot.lane.b32.xlu0 %v4121, 32
    %v4123 = vpop.permute.xlu0 %4122
    %4126 = vrot.lane.b32.xlu0 %v4117, 64
    %v4127 = vpop.permute.xlu0 %4126
    %v4129 = vsel %vm314, %v4114, %v4123
    %vm4130 = vcmask 523264
    %v4131 = vsel %vm4130, %v4129, %v4127
    %v4132 = vpack.c.bf16 %v4131, %v4131
    %v4133 = vld [vmem:[%s59] sm:$0xf]
    %v4134 = vld [vmem:[%s59 + $0x4] sm:$0xf]
    %v4135 = vld [vmem:[%s59 + $0x8] sm:$0xf]
    %v4136 = vld [vmem:[%s59 + $0xc] sm:$0xf]
    %v4137 = vld [vmem:[%s59 + $0x10] sm:$0xf]
    %v4138 = vld [vmem:[%s59 + $0x14] sm:$0xf]
    %v4139 = vld [vmem:[%s59 + $0x18] sm:$0xf]
    %v4140 = vld [vmem:[%s59 + $0x1c] sm:$0xf]
    %v4141 = vld [vmem:[%s59 + $0x20] sm:$0xf]
    %v4142 = vld [vmem:[%s59 + $0x24] sm:$0xf]
    %v4143 = vld [vmem:[%s59 + $0x28] sm:$0xf]
    %v4144 = vld [vmem:[%s59 + $0x2c] sm:$0xf]
    %v4145 = vld [vmem:[%s61] sm:$0x1]
    %v4147 = vlaneseq
    %v4148 = vshrl.u32 %v4147, 7
    %v4149 = vsub.s32 0, %v4148
    %v4150 = vrot.slane %v4145, %v4149
    %v4164 = vunpack.c.l.b16 %v4133
    %v4165 = vunpack.c.l.b16 %v4134
    %v4166 = vunpack.c.l.b16 %v4135
    %v4167 = vunpack.c.l.b16 %v4136
    %v4168 = vunpack.c.l.b16 %v4137
    %v4169 = vunpack.c.l.b16 %v4138
    %v4170 = vunpack.c.l.b16 %v4139
    %v4171 = vunpack.c.l.b16 %v4140
    %v4172 = vunpack.c.l.b16 %v4141
    %v4173 = vunpack.c.l.b16 %v4142
    %v4174 = vunpack.c.l.b16 %v4143
    %v4175 = vunpack.c.l.b16 %v4144
    %v4176 = vpack.c.b16 %v4165, %v4164
    %v4177 = vpack.c.b16 %v4167, %v4166
    %v4178 = vpack.c.b16 %v4169, %v4168
    %v4179 = vpack.c.b16 %v4171, %v4170
    %v4180 = vpack.c.b16 %v4173, %v4172
    %v4181 = vpack.c.b16 %v4175, %v4174
    %vm4188 = vcmask 785408
    %v4190 = vsel %vm4188, %v4132, 0
    %4192 = vmatprep.subr.bf16.mxu0 0
    %4193 = vmatpush1.bf16.msra.mxu0 %v4176
    %4194 = vmatprep.subr.bf16.mxu0 0
    %4195 = vmatpush1.bf16.msra.mxu0 %v4177
    %4196 = vmatprep.subr.bf16.mxu0 0
    %4197 = vmatpush1.bf16.msra.mxu0 %v4178
    %4198 = vmatprep.subr.bf16.mxu0 0
    %4199 = vmatpush1.bf16.msra.mxu0 %v4179
    %4200 = vmatprep.subr.bf16.mxu0 0
    %4201 = vmatpush1.bf16.msra.mxu0 %v4180
    %4202 = vmatprep.subr.bf16.mxu0 0
    %4203 = vmatpush1.bf16.msra.mxu0 %v4181
    %4204 = vmatprep.subr.bf16.mxu0 0
    %4205 = vmatpush1.bf16.msra.mxu0 0
    %4206 = vmatprep.subr.bf16.mxu0 0
    %4207 = vmatpush1.bf16.msra.mxu0 0
    %4208 = vmatprep.subr.bf16.mxu0 0
    %4209 = vmatpush1.bf16.msra.mxu0 0
    %4210 = vmatprep.subr.bf16.mxu0 0
    %4211 = vmatpush1.bf16.msra.mxu0 0
    %4212 = vmatprep.subr.bf16.mxu0 0
    %4213 = vmatpush1.bf16.msra.mxu0 0
    %4214 = vmatprep.subr.bf16.mxu0 0
    %4215 = vmatpush1.bf16.msra.mxu0 0
    %4216 = vmatprep.subr.bf16.mxu0 0
    %4217 = vmatpush1.bf16.msra.mxu0 0
    %4218 = vmatprep.subr.bf16.mxu0 0
    %4219 = vmatpush1.bf16.msra.mxu0 0
    %4220 = vmatprep.subr.bf16.mxu0 0
    %4221 = vmatpush1.bf16.msra.mxu0 0
    %4222 = vmatprep.subr.bf16.mxu0 0
    %4223 = vmatpush1.bf16.msra.mxu0 0
    %4224 = vmatprep.mubr.bf16.mxu0 0
    %4225 = vmatmul.mubr.bf16.gmra.mrb[0].mxu0 %v4190
    %v4226 = vpop.f32.mrb[0].mxu0
    %v4227 = vadd.f32 %v4150, %v4226
    %v4228 = vpop.f32.mrb[0].mxu0
    %v4229 = vpop.f32.mrb[0].mxu0
    %v4230 = vpop.f32.mrb[0].mxu0
    %4231 = vdwg.mxu0
    %v4232 = vmax.f32 %v4227, 0.0
    %v4233 = vpack.c.bf16 %v4232, %v4232
    %v4234 = vld [vmem:[%s63] sm:$0xf]
    %v4235 = vld [vmem:[%s63 + $0x4] sm:$0xf]
    %v4236 = vld [vmem:[%s63 + $0x8] sm:$0xf]
    %v4237 = vld [vmem:[%s63 + $0xc] sm:$0xf]
    %v4238 = vld [vmem:[%s63 + $0x10] sm:$0xf]
    %v4239 = vld [vmem:[%s63 + $0x14] sm:$0xf]
    %v4240 = vld [vmem:[%s63 + $0x18] sm:$0xf]
    %v4241 = vld [vmem:[%s63 + $0x1c] sm:$0xf]
    %v4242 = vld [vmem:[%s65] sm:$0x1]
    %v4244 = vlaneseq
    %v4245 = vshrl.u32 %v4244, 7
    %v4246 = vsub.s32 0, %v4245
    %v4247 = vrot.slane %v4242, %v4246
    %v4257 = vunpack.c.l.b16 %v4234
    %v4258 = vunpack.c.l.b16 %v4235
    %v4259 = vunpack.c.l.b16 %v4236
    %v4260 = vunpack.c.l.b16 %v4237
    %v4261 = vunpack.c.l.b16 %v4238
    %v4262 = vunpack.c.l.b16 %v4239
    %v4263 = vunpack.c.l.b16 %v4240
    %v4264 = vunpack.c.l.b16 %v4241
    %v4265 = vpack.c.b16 %v4258, %v4257
    %v4266 = vpack.c.b16 %v4260, %v4259
    %v4267 = vpack.c.b16 %v4262, %v4261
    %v4268 = vpack.c.b16 %v4264, %v4263
    %v4274 = vsel %vm4130, %v4233, 0
    %4276 = vmatprep.subr.bf16.mxu0 0
    %4277 = vmatpush1.bf16.msra.mxu0 %v4265
    %4278 = vmatprep.subr.bf16.mxu0 0
    %4279 = vmatpush1.bf16.msra.mxu0 %v4266
    %4280 = vmatprep.subr.bf16.mxu0 0
    %4281 = vmatpush1.bf16.msra.mxu0 %v4267
    %4282 = vmatprep.subr.bf16.mxu0 0
    %4283 = vmatpush1.bf16.msra.mxu0 %v4268
    %4284 = vmatprep.subr.bf16.mxu0 0
    %4285 = vmatpush1.bf16.msra.mxu0 0
    %4286 = vmatprep.subr.bf16.mxu0 0
    %4287 = vmatpush1.bf16.msra.mxu0 0
    %4288 = vmatprep.subr.bf16.mxu0 0
    %4289 = vmatpush1.bf16.msra.mxu0 0
    %4290 = vmatprep.subr.bf16.mxu0 0
    %4291 = vmatpush1.bf16.msra.mxu0 0
    %4292 = vmatprep.subr.bf16.mxu0 0
    %4293 = vmatpush1.bf16.msra.mxu0 0
    %4294 = vmatprep.subr.bf16.mxu0 0
    %4295 = vmatpush1.bf16.msra.mxu0 0
    %4296 = vmatprep.subr.bf16.mxu0 0
    %4297 = vmatpush1.bf16.msra.mxu0 0
    %4298 = vmatprep.subr.bf16.mxu0 0
    %4299 = vmatpush1.bf16.msra.mxu0 0
    %4300 = vmatprep.subr.bf16.mxu0 0
    %4301 = vmatpush1.bf16.msra.mxu0 0
    %4302 = vmatprep.subr.bf16.mxu0 0
    %4303 = vmatpush1.bf16.msra.mxu0 0
    %4304 = vmatprep.subr.bf16.mxu0 0
    %4305 = vmatpush1.bf16.msra.mxu0 0
    %4306 = vmatprep.subr.bf16.mxu0 0
    %4307 = vmatpush1.bf16.msra.mxu0 0
    %4308 = vmatprep.mubr.bf16.mxu0 0
    %4309 = vmatmul.mubr.bf16.gmra.mrb[0].mxu0 %v4274
    %v4310 = vpop.f32.mrb[0].mxu0
    %v4311 = vadd.f32 %v4247, %v4310
    %v4312 = vpop.f32.mrb[0].mxu0
    %v4313 = vpop.f32.mrb[0].mxu0
    %v4314 = vpop.f32.mrb[0].mxu0
    %4315 = vdwg.mxu0
    %4316 = vst.msk [vmem:[#allocation5] sm:$0xf] %vm432, %v4311
    // Predicated region
    $region134: #{decoder_forward.1} parent=1 // pred_check
      _
    $region135: #{decoder_forward.1} parent=1 // pred_check_branch
      %4318 = sbr.rel (0) target = $region137
    $region136: #{decoder_forward.1} parent=1 // pred_region
      %s4320 = ssub.s32 64, 64
      %4321 = vsyncadd [#allocation4], %s4320
      %s4323 = sshll.u32 [#allocation3], 4
      %s4324 = int_to_ptr.vmem [resolvable:$true] %s4323
      %4326 = dma.vmem_to_hbm [thread:$0]  %s4324, 64, %s67, [#allocation4]
    $region137: #{decoder_forward.1} parent=1 // pred_fallthru
      _
    // Predicated region
    $region138: #{decoder_forward.1} parent=1 // pred_check
      _
    $region139: #{decoder_forward.1} parent=1 // pred_check_branch
      %4328 = sbr.rel (0) target = $region141
    $region140: #{decoder_forward.1} parent=1 // pred_region
      %s4330 = ssub.s32 64, 64
      %4331 = vsyncadd [#allocation6], %s4330
      %s4333 = sshll.u32 [#allocation5], 4
      %s4334 = int_to_ptr.vmem [resolvable:$true] %s4333
      %4336 = dma.vmem_to_hbm [thread:$0]  %s4334, 64, %s69, [#allocation6]
    $region141: #{decoder_forward.1} parent=1 // pred_fallthru
      _
    // Predicated region
    $region142: #{decoder_forward.1} parent=1 // pred_check
      _
    $region143: #{decoder_forward.1} parent=1 // pred_check_branch
      %4338 = sbr.rel (0) target = $region145
    $region144: #{decoder_forward.1} parent=1 // pred_region
      %4339 = dma.done [#allocation4], 64
    $region145: #{decoder_forward.1} parent=1 // pred_fallthru
      _
    // Predicated region
    $region146: #{decoder_forward.1} parent=1 // pred_check
      _
    $region147: #{decoder_forward.1} parent=1 // pred_check_branch
      %4341 = sbr.rel (0) target = $region149
    $region148: #{decoder_forward.1} parent=1 // pred_region
      %4342 = dma.done [#allocation6], 64
    $region149: #{decoder_forward.1} parent=1 // pred_fallthru
      _
    %4343 = vsyncpa [#allocation4], 1
    %4344 = vsyncpa [#allocation6], 1

</llo_original>
